<compile_context>
chip_gen: v7x
topology: tpu7x:2x2x1
jax: 0.10.0
libtpu: 0.0.40
codegen_flags: <defaults>
</compile_context>

<pallas_src>
import functools

import jax
import jax.numpy as jnp
from jax import lax
from jax.experimental import pallas as pl
from jax.experimental.pallas import tpu as pltpu


def _msa_kernel(w_taps_ref, w_out_ref, x_ref, o_ref, *, h, w_p, ksize):
    # w_taps_ref: VMEM (49, n_mid, c_in)  per-tap weights of the fused 7x7 filter bank
    # w_out_ref : VMEM (n_mid, 1)         1x1 conv_out combine weights (column)
    # x_ref     : VMEM (1, c_in, h_p*w_p) zero-padded input, spatial flattened on lanes
    # o_ref     : VMEM (1, c_in, h*w_p)   gated output (W padding cropped by wrapper)
    n_mid = w_taps_ref.shape[1]
    l_out = h * w_p

    # Fused multi-scale convolution: for every tap (dy, dx), matmul the tap's
    # (n_mid, c_in) weights against a lane-contiguous shifted slice of x.
    acc = jnp.zeros((n_mid, l_out), jnp.float32)
    for dy in range(ksize):
        for dx in range(ksize):
            start = dy * w_p + dx
            xs = x_ref[0, :, start:start + l_out]            # (c_in, l_out)
            acc = acc + jnp.dot(w_taps_ref[dy * ksize + dx], xs,
                                preferred_element_type=jnp.float32)

    mid = jnp.maximum(acc, 0.0)                              # ReLU        (n_mid, l_out)
    att = jnp.sum(w_out_ref[...] * mid, axis=0, keepdims=True)   # 1x1 conv -> (1, l_out)
    gate = 1.0 / (1.0 + jnp.exp(-att))                       # sigmoid

    center = (ksize // 2) * w_p + (ksize // 2)
    x_c = x_ref[0, :, center:center + l_out]                 # original (unpadded) x
    o_ref[0] = (x_c * gate).astype(o_ref.dtype)              # one dense lane-wide store


def multi_scale_spatial_attention(x, w1, w2, w3, w_out):
    """Fused forward of MultiScaleSpatialAttention.

    x:     (N, C, H, W) float32 (NCHW)
    w1:    (C//2, C, 3, 3)   conv1 weight (bias=False)
    w2:    (C//2, C, 5, 5)   conv2 weight
    w3:    (C//2, C, 7, 7)   conv3 weight
    w_out: (1, 3*C//2, 1, 1) conv_out weight
    returns (N, C, H, W)
    """
    n, c_in, h, w = x.shape
    c_mid = c_in // 2
    n_mid = 3 * c_mid
    ksize = 7
    pad = ksize // 2                                         # 3

    assert w1.shape == (c_mid, c_in, 3, 3)
    assert w2.shape == (c_mid, c_in, 5, 5)
    assert w3.shape == (c_mid, c_in, 7, 7)
    assert w_out.shape == (1, n_mid, 1, 1)

    # Embed the 3x3 (pad 1) and 5x5 (pad 2) filters into a centered 7x7 (pad 3)
    # filter bank: identical conv results, one combined convolution.
    w1e = jnp.pad(w1, ((0, 0), (0, 0), (2, 2), (2, 2)))
    w2e = jnp.pad(w2, ((0, 0), (0, 0), (1, 1), (1, 1)))
    w_all = jnp.concatenate([w1e, w2e, w3], axis=0)          # (n_mid, c_in, 7, 7)
    # Per-tap weight matrices, tap index t = dy*7 + dx.
    w_taps = jnp.transpose(w_all, (2, 3, 0, 1)).reshape(ksize * ksize, n_mid, c_in)
    w_out_col = w_out.reshape(n_mid, 1)

    # Zero-pad spatially and flatten (H, W) onto the lane axis.  One extra bottom
    # row keeps every shifted flat slice of length h*w_p inside the buffer.
    w_p = w + 2 * pad
    h_p = h + 2 * pad + 1
    l_pad = h_p * w_p
    x_pad = jnp.pad(x, ((0, 0), (0, 0), (pad, pad + 1), (pad, pad)))
    x_flat = x_pad.reshape(n, c_in, l_pad)

    kernel = functools.partial(_msa_kernel, h=h, w_p=w_p, ksize=ksize)
    out_flat = pl.pallas_call(
        kernel,
        out_shape=jax.ShapeDtypeStruct((n, c_in, h * w_p), x.dtype),
        grid=(n,),
        in_specs=[
            pl.BlockSpec((ksize * ksize, n_mid, c_in), lambda i: (0, 0, 0)),  # VMEM weights
            pl.BlockSpec((n_mid, 1), lambda i: (0, 0)),                       # combine weights
            pl.BlockSpec((1, c_in, l_pad), lambda i: (i, 0, 0)),              # one batch slab
        ],
        out_specs=pl.BlockSpec((1, c_in, h * w_p), lambda i: (i, 0, 0)),
        compiler_params=pltpu.CompilerParams(
            dimension_semantics=("parallel",)),
    )(w_taps, w_out_col, x_flat)

    # Crop the W padding (reshape is a free bitcast; slice is a tiny XLA copy).
    return out_flat.reshape(n, c_in, h, w_p)[:, :, :, :w]


def _reference(x, w1, w2, w3, w_out):
    """Pure-JAX reference of the PyTorch forward (accurate precision)."""
    dn = ("NCHW", "OIHW", "NCHW")

    def conv(inp, ker, p):
        return lax.conv_general_dilated(
            inp, ker, window_strides=(1, 1), padding=((p, p), (p, p)),
            dimension_numbers=dn, precision=lax.Precision.HIGHEST)

    f1 = jax.nn.relu(conv(x, w1, 1))
    f2 = jax.nn.relu(conv(x, w2, 2))
    f3 = jax.nn.relu(conv(x, w3, 3))
    combined = jnp.concatenate([f1, f2, f3], axis=1)
    att = conv(combined, w_out, 0)
    return x * jax.nn.sigmoid(att)


if __name__ == "__main__":
    key = jax.random.PRNGKey(0)
    kx, k1, k2, k3, k4 = jax.random.split(key, 5)

    N, C, H, W = 2, 4, 16, 16
    c_mid = C // 2

    x = jax.random.normal(kx, (N, C, H, W), dtype=jnp.float32)
    w1 = jax.random.normal(k1, (c_mid, C, 3, 3), dtype=jnp.float32) * 0.2
    w2 = jax.random.normal(k2, (c_mid, C, 5, 5), dtype=jnp.float32) * 0.1
    w3 = jax.random.normal(k3, (c_mid, C, 7, 7), dtype=jnp.float32) * 0.05
    w_out = jax.random.normal(k4, (1, 3 * c_mid, 1, 1), dtype=jnp.float32) * 0.3

    y = jax.block_until_ready(multi_scale_spatial_attention(x, w1, w2, w3, w_out))
    y_ref = _reference(x, w1, w2, w3, w_out)

    assert y.shape == (N, C, H, W)
    max_err = float(jnp.max(jnp.abs(y - y_ref)))
    # Tolerance covers possible reduced-precision MXU passes for the f32 matmuls.
    assert jnp.allclose(y, y_ref, atol=2e-2, rtol=2e-2), f"max abs err {max_err}"
    print("KERNEL_OK")
</pallas_src>

<mosaic_0001>
module attributes {stable_mosaic.version = 11 : i64} {
  func.func @_msa_kernel(%arg0: i32, %arg1: memref<49x6x4xf32, #tpu.memory_space<vmem>>, %arg2: memref<6x1xf32, #tpu.memory_space<vmem>>, %arg3: memref<1x4x506xf32, #tpu.memory_space<vmem>>, %arg4: memref<1x4x352xf32, #tpu.memory_space<vmem>>) attributes {dimension_semantics = [#tpu.dimension_semantics<parallel>], iteration_bounds = array<i64: 2>, scalar_prefetch = 0 : i64, scratch_operands = 0 : i64, tpu.core_type = #tpu.core_type<tc>, window_params = [{pipeline_mode = #tpu.pipeline_mode<synchronous>, transform_indices = @transform_0, window_bounds = array<i64: 49, 6, 4>}, {pipeline_mode = #tpu.pipeline_mode<synchronous>, transform_indices = @transform_1, window_bounds = array<i64: 6, 1>}, {transform_indices = @transform_2, window_bounds = array<i64: 1, 4, 506>}, {transform_indices = @transform_3, window_bounds = array<i64: 1, 4, 352>}]} {
    %cst = arith.constant 0.000000e+00 : f32
    %0 = vector.broadcast %cst : f32 to vector<6x352xf32>
    %c0 = arith.constant 0 : index
    %c0_0 = arith.constant 0 : index
    %c0_1 = arith.constant 0 : index
    %1 = vector.load %arg3[%c0, %c0_0, %c0_1] : memref<1x4x506xf32, #tpu.memory_space<vmem>>, vector<1x4x352xf32>
    %2 = vector.shape_cast %1 : vector<1x4x352xf32> to vector<4x352xf32>
    %c0_2 = arith.constant 0 : index
    %c0_3 = arith.constant 0 : index
    %c0_4 = arith.constant 0 : index
    %3 = vector.load %arg1[%c0_2, %c0_3, %c0_4] : memref<49x6x4xf32, #tpu.memory_space<vmem>>, vector<1x6x4xf32>
    %4 = vector.shape_cast %3 : vector<1x6x4xf32> to vector<6x4xf32>
    %cst_5 = arith.constant dense<0.000000e+00> : vector<6x352xf32>
    %5 = tpu.matmul %4, %2, %cst_5 {dimension_numbers = #tpu.dot_dimension_numbers<[1], [0], [0], [1], [0, 0, 1, 1], [], []>} : vector<6x4xf32>, vector<4x352xf32>, vector<6x352xf32> -> vector<6x352xf32>
    %6 = arith.addf %0, %5 : vector<6x352xf32>
    %c0_6 = arith.constant 0 : index
    %c0_7 = arith.constant 0 : index
    %c1 = arith.constant 1 : index
    %7 = vector.load %arg3[%c0_6, %c0_7, %c1] : memref<1x4x506xf32, #tpu.memory_space<vmem>>, vector<1x4x352xf32>
    %8 = vector.shape_cast %7 : vector<1x4x352xf32> to vector<4x352xf32>
    %c1_8 = arith.constant 1 : index
    %c0_9 = arith.constant 0 : index
    %c0_10 = arith.constant 0 : index
    %9 = vector.load %arg1[%c1_8, %c0_9, %c0_10] : memref<49x6x4xf32, #tpu.memory_space<vmem>>, vector<1x6x4xf32>
    %10 = vector.shape_cast %9 : vector<1x6x4xf32> to vector<6x4xf32>
    %cst_11 = arith.constant dense<0.000000e+00> : vector<6x352xf32>
    %11 = tpu.matmul %10, %8, %cst_11 {dimension_numbers = #tpu.dot_dimension_numbers<[1], [0], [0], [1], [0, 0, 1, 1], [], []>} : vector<6x4xf32>, vector<4x352xf32>, vector<6x352xf32> -> vector<6x352xf32>
    %12 = arith.addf %6, %11 : vector<6x352xf32>
    %c0_12 = arith.constant 0 : index
    %c0_13 = arith.constant 0 : index
    %c2 = arith.constant 2 : index
    %13 = vector.load %arg3[%c0_12, %c0_13, %c2] : memref<1x4x506xf32, #tpu.memory_space<vmem>>, vector<1x4x352xf32>
    %14 = vector.shape_cast %13 : vector<1x4x352xf32> to vector<4x352xf32>
    %c2_14 = arith.constant 2 : index
    %c0_15 = arith.constant 0 : index
    %c0_16 = arith.constant 0 : index
    %15 = vector.load %arg1[%c2_14, %c0_15, %c0_16] : memref<49x6x4xf32, #tpu.memory_space<vmem>>, vector<1x6x4xf32>
    %16 = vector.shape_cast %15 : vector<1x6x4xf32> to vector<6x4xf32>
    %cst_17 = arith.constant dense<0.000000e+00> : vector<6x352xf32>
    %17 = tpu.matmul %16, %14, %cst_17 {dimension_numbers = #tpu.dot_dimension_numbers<[1], [0], [0], [1], [0, 0, 1, 1], [], []>} : vector<6x4xf32>, vector<4x352xf32>, vector<6x352xf32> -> vector<6x352xf32>
    %18 = arith.addf %12, %17 : vector<6x352xf32>
    %c0_18 = arith.constant 0 : index
    %c0_19 = arith.constant 0 : index
    %c3 = arith.constant 3 : index
    %19 = vector.load %arg3[%c0_18, %c0_19, %c3] : memref<1x4x506xf32, #tpu.memory_space<vmem>>, vector<1x4x352xf32>
    %20 = vector.shape_cast %19 : vector<1x4x352xf32> to vector<4x352xf32>
    %c3_20 = arith.constant 3 : index
    %c0_21 = arith.constant 0 : index
    %c0_22 = arith.constant 0 : index
    %21 = vector.load %arg1[%c3_20, %c0_21, %c0_22] : memref<49x6x4xf32, #tpu.memory_space<vmem>>, vector<1x6x4xf32>
    %22 = vector.shape_cast %21 : vector<1x6x4xf32> to vector<6x4xf32>
    %cst_23 = arith.constant dense<0.000000e+00> : vector<6x352xf32>
    %23 = tpu.matmul %22, %20, %cst_23 {dimension_numbers = #tpu.dot_dimension_numbers<[1], [0], [0], [1], [0, 0, 1, 1], [], []>} : vector<6x4xf32>, vector<4x352xf32>, vector<6x352xf32> -> vector<6x352xf32>
    %24 = arith.addf %18, %23 : vector<6x352xf32>
    %c0_24 = arith.constant 0 : index
    %c0_25 = arith.constant 0 : index
    %c4 = arith.constant 4 : index
    %25 = vector.load %arg3[%c0_24, %c0_25, %c4] : memref<1x4x506xf32, #tpu.memory_space<vmem>>, vector<1x4x352xf32>
    %26 = vector.shape_cast %25 : vector<1x4x352xf32> to vector<4x352xf32>
    %c4_26 = arith.constant 4 : index
    %c0_27 = arith.constant 0 : index
    %c0_28 = arith.constant 0 : index
    %27 = vector.load %arg1[%c4_26, %c0_27, %c0_28] : memref<49x6x4xf32, #tpu.memory_space<vmem>>, vector<1x6x4xf32>
    %28 = vector.shape_cast %27 : vector<1x6x4xf32> to vector<6x4xf32>
    %cst_29 = arith.constant dense<0.000000e+00> : vector<6x352xf32>
    %29 = tpu.matmul %28, %26, %cst_29 {dimension_numbers = #tpu.dot_dimension_numbers<[1], [0], [0], [1], [0, 0, 1, 1], [], []>} : vector<6x4xf32>, vector<4x352xf32>, vector<6x352xf32> -> vector<6x352xf32>
    %30 = arith.addf %24, %29 : vector<6x352xf32>
    %c0_30 = arith.constant 0 : index
    %c0_31 = arith.constant 0 : index
    %c5 = arith.constant 5 : index
    %31 = vector.load %arg3[%c0_30, %c0_31, %c5] : memref<1x4x506xf32, #tpu.memory_space<vmem>>, vector<1x4x352xf32>
    %32 = vector.shape_cast %31 : vector<1x4x352xf32> to vector<4x352xf32>
    %c5_32 = arith.constant 5 : index
    %c0_33 = arith.constant 0 : index
    %c0_34 = arith.constant 0 : index
    %33 = vector.load %arg1[%c5_32, %c0_33, %c0_34] : memref<49x6x4xf32, #tpu.memory_space<vmem>>, vector<1x6x4xf32>
    %34 = vector.shape_cast %33 : vector<1x6x4xf32> to vector<6x4xf32>
    %cst_35 = arith.constant dense<0.000000e+00> : vector<6x352xf32>
    %35 = tpu.matmul %34, %32, %cst_35 {dimension_numbers = #tpu.dot_dimension_numbers<[1], [0], [0], [1], [0, 0, 1, 1], [], []>} : vector<6x4xf32>, vector<4x352xf32>, vector<6x352xf32> -> vector<6x352xf32>
    %36 = arith.addf %30, %35 : vector<6x352xf32>
    %c0_36 = arith.constant 0 : index
    %c0_37 = arith.constant 0 : index
    %c6 = arith.constant 6 : index
    %37 = vector.load %arg3[%c0_36, %c0_37, %c6] : memref<1x4x506xf32, #tpu.memory_space<vmem>>, vector<1x4x352xf32>
    %38 = vector.shape_cast %37 : vector<1x4x352xf32> to vector<4x352xf32>
    %c6_38 = arith.constant 6 : index
    %c0_39 = arith.constant 0 : index
    %c0_40 = arith.constant 0 : index
    %39 = vector.load %arg1[%c6_38, %c0_39, %c0_40] : memref<49x6x4xf32, #tpu.memory_space<vmem>>, vector<1x6x4xf32>
    %40 = vector.shape_cast %39 : vector<1x6x4xf32> to vector<6x4xf32>
    %cst_41 = arith.constant dense<0.000000e+00> : vector<6x352xf32>
    %41 = tpu.matmul %40, %38, %cst_41 {dimension_numbers = #tpu.dot_dimension_numbers<[1], [0], [0], [1], [0, 0, 1, 1], [], []>} : vector<6x4xf32>, vector<4x352xf32>, vector<6x352xf32> -> vector<6x352xf32>
    %42 = arith.addf %36, %41 : vector<6x352xf32>
    %c0_42 = arith.constant 0 : index
    %c0_43 = arith.constant 0 : index
    %c22 = arith.constant 22 : index
    %43 = vector.load %arg3[%c0_42, %c0_43, %c22] : memref<1x4x506xf32, #tpu.memory_space<vmem>>, vector<1x4x352xf32>
    %44 = vector.shape_cast %43 : vector<1x4x352xf32> to vector<4x352xf32>
    %c7 = arith.constant 7 : index
    %c0_44 = arith.constant 0 : index
    %c0_45 = arith.constant 0 : index
    %45 = vector.load %arg1[%c7, %c0_44, %c0_45] : memref<49x6x4xf32, #tpu.memory_space<vmem>>, vector<1x6x4xf32>
    %46 = vector.shape_cast %45 : vector<1x6x4xf32> to vector<6x4xf32>
    %cst_46 = arith.constant dense<0.000000e+00> : vector<6x352xf32>
    %47 = tpu.matmul %46, %44, %cst_46 {dimension_numbers = #tpu.dot_dimension_numbers<[1], [0], [0], [1], [0, 0, 1, 1], [], []>} : vector<6x4xf32>, vector<4x352xf32>, vector<6x352xf32> -> vector<6x352xf32>
    %48 = arith.addf %42, %47 : vector<6x352xf32>
    %c0_47 = arith.constant 0 : index
    %c0_48 = arith.constant 0 : index
    %c23 = arith.constant 23 : index
    %49 = vector.load %arg3[%c0_47, %c0_48, %c23] : memref<1x4x506xf32, #tpu.memory_space<vmem>>, vector<1x4x352xf32>
    %50 = vector.shape_cast %49 : vector<1x4x352xf32> to vector<4x352xf32>
    %c8 = arith.constant 8 : index
    %c0_49 = arith.constant 0 : index
    %c0_50 = arith.constant 0 : index
    %51 = vector.load %arg1[%c8, %c0_49, %c0_50] : memref<49x6x4xf32, #tpu.memory_space<vmem>>, vector<1x6x4xf32>
    %52 = vector.shape_cast %51 : vector<1x6x4xf32> to vector<6x4xf32>
    %cst_51 = arith.constant dense<0.000000e+00> : vector<6x352xf32>
    %53 = tpu.matmul %52, %50, %cst_51 {dimension_numbers = #tpu.dot_dimension_numbers<[1], [0], [0], [1], [0, 0, 1, 1], [], []>} : vector<6x4xf32>, vector<4x352xf32>, vector<6x352xf32> -> vector<6x352xf32>
    %54 = arith.addf %48, %53 : vector<6x352xf32>
    %c0_52 = arith.constant 0 : index
    %c0_53 = arith.constant 0 : index
    %c24 = arith.constant 24 : index
    %55 = vector.load %arg3[%c0_52, %c0_53, %c24] : memref<1x4x506xf32, #tpu.memory_space<vmem>>, vector<1x4x352xf32>
    %56 = vector.shape_cast %55 : vector<1x4x352xf32> to vector<4x352xf32>
    %c9 = arith.constant 9 : index
    %c0_54 = arith.constant 0 : index
    %c0_55 = arith.constant 0 : index
    %57 = vector.load %arg1[%c9, %c0_54, %c0_55] : memref<49x6x4xf32, #tpu.memory_space<vmem>>, vector<1x6x4xf32>
    %58 = vector.shape_cast %57 : vector<1x6x4xf32> to vector<6x4xf32>
    %cst_56 = arith.constant dense<0.000000e+00> : vector<6x352xf32>
    %59 = tpu.matmul %58, %56, %cst_56 {dimension_numbers = #tpu.dot_dimension_numbers<[1], [0], [0], [1], [0, 0, 1, 1], [], []>} : vector<6x4xf32>, vector<4x352xf32>, vector<6x352xf32> -> vector<6x352xf32>
    %60 = arith.addf %54, %59 : vector<6x352xf32>
    %c0_57 = arith.constant 0 : index
    %c0_58 = arith.constant 0 : index
    %c25 = arith.constant 25 : index
    %61 = vector.load %arg3[%c0_57, %c0_58, %c25] : memref<1x4x506xf32, #tpu.memory_space<vmem>>, vector<1x4x352xf32>
    %62 = vector.shape_cast %61 : vector<1x4x352xf32> to vector<4x352xf32>
    %c10 = arith.constant 10 : index
    %c0_59 = arith.constant 0 : index
    %c0_60 = arith.constant 0 : index
    %63 = vector.load %arg1[%c10, %c0_59, %c0_60] : memref<49x6x4xf32, #tpu.memory_space<vmem>>, vector<1x6x4xf32>
    %64 = vector.shape_cast %63 : vector<1x6x4xf32> to vector<6x4xf32>
    %cst_61 = arith.constant dense<0.000000e+00> : vector<6x352xf32>
    %65 = tpu.matmul %64, %62, %cst_61 {dimension_numbers = #tpu.dot_dimension_numbers<[1], [0], [0], [1], [0, 0, 1, 1], [], []>} : vector<6x4xf32>, vector<4x352xf32>, vector<6x352xf32> -> vector<6x352xf32>
    %66 = arith.addf %60, %65 : vector<6x352xf32>
    %c0_62 = arith.constant 0 : index
    %c0_63 = arith.constant 0 : index
    %c26 = arith.constant 26 : index
    %67 = vector.load %arg3[%c0_62, %c0_63, %c26] : memref<1x4x506xf32, #tpu.memory_space<vmem>>, vector<1x4x352xf32>
    %68 = vector.shape_cast %67 : vector<1x4x352xf32> to vector<4x352xf32>
    %c11 = arith.constant 11 : index
    %c0_64 = arith.constant 0 : index
    %c0_65 = arith.constant 0 : index
    %69 = vector.load %arg1[%c11, %c0_64, %c0_65] : memref<49x6x4xf32, #tpu.memory_space<vmem>>, vector<1x6x4xf32>
    %70 = vector.shape_cast %69 : vector<1x6x4xf32> to vector<6x4xf32>
    %cst_66 = arith.constant dense<0.000000e+00> : vector<6x352xf32>
    %71 = tpu.matmul %70, %68, %cst_66 {dimension_numbers = #tpu.dot_dimension_numbers<[1], [0], [0], [1], [0, 0, 1, 1], [], []>} : vector<6x4xf32>, vector<4x352xf32>, vector<6x352xf32> -> vector<6x352xf32>
    %72 = arith.addf %66, %71 : vector<6x352xf32>
    %c0_67 = arith.constant 0 : index
    %c0_68 = arith.constant 0 : index
    %c27 = arith.constant 27 : index
    %73 = vector.load %arg3[%c0_67, %c0_68, %c27] : memref<1x4x506xf32, #tpu.memory_space<vmem>>, vector<1x4x352xf32>
    %74 = vector.shape_cast %73 : vector<1x4x352xf32> to vector<4x352xf32>
    %c12 = arith.constant 12 : index
    %c0_69 = arith.constant 0 : index
    %c0_70 = arith.constant 0 : index
    %75 = vector.load %arg1[%c12, %c0_69, %c0_70] : memref<49x6x4xf32, #tpu.memory_space<vmem>>, vector<1x6x4xf32>
    %76 = vector.shape_cast %75 : vector<1x6x4xf32> to vector<6x4xf32>
    %cst_71 = arith.constant dense<0.000000e+00> : vector<6x352xf32>
    %77 = tpu.matmul %76, %74, %cst_71 {dimension_numbers = #tpu.dot_dimension_numbers<[1], [0], [0], [1], [0, 0, 1, 1], [], []>} : vector<6x4xf32>, vector<4x352xf32>, vector<6x352xf32> -> vector<6x352xf32>
    %78 = arith.addf %72, %77 : vector<6x352xf32>
    %c0_72 = arith.constant 0 : index
    %c0_73 = arith.constant 0 : index
    %c28 = arith.constant 28 : index
    %79 = vector.load %arg3[%c0_72, %c0_73, %c28] : memref<1x4x506xf32, #tpu.memory_space<vmem>>, vector<1x4x352xf32>
    %80 = vector.shape_cast %79 : vector<1x4x352xf32> to vector<4x352xf32>
    %c13 = arith.constant 13 : index
    %c0_74 = arith.constant 0 : index
    %c0_75 = arith.constant 0 : index
    %81 = vector.load %arg1[%c13, %c0_74, %c0_75] : memref<49x6x4xf32, #tpu.memory_space<vmem>>, vector<1x6x4xf32>
    %82 = vector.shape_cast %81 : vector<1x6x4xf32> to vector<6x4xf32>
    %cst_76 = arith.constant dense<0.000000e+00> : vector<6x352xf32>
    %83 = tpu.matmul %82, %80, %cst_76 {dimension_numbers = #tpu.dot_dimension_numbers<[1], [0], [0], [1], [0, 0, 1, 1], [], []>} : vector<6x4xf32>, vector<4x352xf32>, vector<6x352xf32> -> vector<6x352xf32>
    %84 = arith.addf %78, %83 : vector<6x352xf32>
    %c0_77 = arith.constant 0 : index
    %c0_78 = arith.constant 0 : index
    %c44 = arith.constant 44 : index
    %85 = vector.load %arg3[%c0_77, %c0_78, %c44] : memref<1x4x506xf32, #tpu.memory_space<vmem>>, vector<1x4x352xf32>
    %86 = vector.shape_cast %85 : vector<1x4x352xf32> to vector<4x352xf32>
    %c14 = arith.constant 14 : index
    %c0_79 = arith.constant 0 : index
    %c0_80 = arith.constant 0 : index
    %87 = vector.load %arg1[%c14, %c0_79, %c0_80] : memref<49x6x4xf32, #tpu.memory_space<vmem>>, vector<1x6x4xf32>
    %88 = vector.shape_cast %87 : vector<1x6x4xf32> to vector<6x4xf32>
    %cst_81 = arith.constant dense<0.000000e+00> : vector<6x352xf32>
    %89 = tpu.matmul %88, %86, %cst_81 {dimension_numbers = #tpu.dot_dimension_numbers<[1], [0], [0], [1], [0, 0, 1, 1], [], []>} : vector<6x4xf32>, vector<4x352xf32>, vector<6x352xf32> -> vector<6x352xf32>
    %90 = arith.addf %84, %89 : vector<6x352xf32>
    %c0_82 = arith.constant 0 : index
    %c0_83 = arith.constant 0 : index
    %c45 = arith.constant 45 : index
    %91 = vector.load %arg3[%c0_82, %c0_83, %c45] : memref<1x4x506xf32, #tpu.memory_space<vmem>>, vector<1x4x352xf32>
    %92 = vector.shape_cast %91 : vector<1x4x352xf32> to vector<4x352xf32>
    %c15 = arith.constant 15 : index
    %c0_84 = arith.constant 0 : index
    %c0_85 = arith.constant 0 : index
    %93 = vector.load %arg1[%c15, %c0_84, %c0_85] : memref<49x6x4xf32, #tpu.memory_space<vmem>>, vector<1x6x4xf32>
    %94 = vector.shape_cast %93 : vector<1x6x4xf32> to vector<6x4xf32>
    %cst_86 = arith.constant dense<0.000000e+00> : vector<6x352xf32>
    %95 = tpu.matmul %94, %92, %cst_86 {dimension_numbers = #tpu.dot_dimension_numbers<[1], [0], [0], [1], [0, 0, 1, 1], [], []>} : vector<6x4xf32>, vector<4x352xf32>, vector<6x352xf32> -> vector<6x352xf32>
    %96 = arith.addf %90, %95 : vector<6x352xf32>
    %c0_87 = arith.constant 0 : index
    %c0_88 = arith.constant 0 : index
    %c46 = arith.constant 46 : index
    %97 = vector.load %arg3[%c0_87, %c0_88, %c46] : memref<1x4x506xf32, #tpu.memory_space<vmem>>, vector<1x4x352xf32>
    %98 = vector.shape_cast %97 : vector<1x4x352xf32> to vector<4x352xf32>
    %c16 = arith.constant 16 : index
    %c0_89 = arith.constant 0 : index
    %c0_90 = arith.constant 0 : index
    %99 = vector.load %arg1[%c16, %c0_89, %c0_90] : memref<49x6x4xf32, #tpu.memory_space<vmem>>, vector<1x6x4xf32>
    %100 = vector.shape_cast %99 : vector<1x6x4xf32> to vector<6x4xf32>
    %cst_91 = arith.constant dense<0.000000e+00> : vector<6x352xf32>
    %101 = tpu.matmul %100, %98, %cst_91 {dimension_numbers = #tpu.dot_dimension_numbers<[1], [0], [0], [1], [0, 0, 1, 1], [], []>} : vector<6x4xf32>, vector<4x352xf32>, vector<6x352xf32> -> vector<6x352xf32>
    %102 = arith.addf %96, %101 : vector<6x352xf32>
    %c0_92 = arith.constant 0 : index
    %c0_93 = arith.constant 0 : index
    %c47 = arith.constant 47 : index
    %103 = vector.load %arg3[%c0_92, %c0_93, %c47] : memref<1x4x506xf32, #tpu.memory_space<vmem>>, vector<1x4x352xf32>
    %104 = vector.shape_cast %103 : vector<1x4x352xf32> to vector<4x352xf32>
    %c17 = arith.constant 17 : index
    %c0_94 = arith.constant 0 : index
    %c0_95 = arith.constant 0 : index
    %105 = vector.load %arg1[%c17, %c0_94, %c0_95] : memref<49x6x4xf32, #tpu.memory_space<vmem>>, vector<1x6x4xf32>
    %106 = vector.shape_cast %105 : vector<1x6x4xf32> to vector<6x4xf32>
    %cst_96 = arith.constant dense<0.000000e+00> : vector<6x352xf32>
    %107 = tpu.matmul %106, %104, %cst_96 {dimension_numbers = #tpu.dot_dimension_numbers<[1], [0], [0], [1], [0, 0, 1, 1], [], []>} : vector<6x4xf32>, vector<4x352xf32>, vector<6x352xf32> -> vector<6x352xf32>
    %108 = arith.addf %102, %107 : vector<6x352xf32>
    %c0_97 = arith.constant 0 : index
    %c0_98 = arith.constant 0 : index
    %c48 = arith.constant 48 : index
    %109 = vector.load %arg3[%c0_97, %c0_98, %c48] : memref<1x4x506xf32, #tpu.memory_space<vmem>>, vector<1x4x352xf32>
    %110 = vector.shape_cast %109 : vector<1x4x352xf32> to vector<4x352xf32>
    %c18 = arith.constant 18 : index
    %c0_99 = arith.constant 0 : index
    %c0_100 = arith.constant 0 : index
    %111 = vector.load %arg1[%c18, %c0_99, %c0_100] : memref<49x6x4xf32, #tpu.memory_space<vmem>>, vector<1x6x4xf32>
    %112 = vector.shape_cast %111 : vector<1x6x4xf32> to vector<6x4xf32>
    %cst_101 = arith.constant dense<0.000000e+00> : vector<6x352xf32>
    %113 = tpu.matmul %112, %110, %cst_101 {dimension_numbers = #tpu.dot_dimension_numbers<[1], [0], [0], [1], [0, 0, 1, 1], [], []>} : vector<6x4xf32>, vector<4x352xf32>, vector<6x352xf32> -> vector<6x352xf32>
    %114 = arith.addf %108, %113 : vector<6x352xf32>
    %c0_102 = arith.constant 0 : index
    %c0_103 = arith.constant 0 : index
    %c49 = arith.constant 49 : index
    %115 = vector.load %arg3[%c0_102, %c0_103, %c49] : memref<1x4x506xf32, #tpu.memory_space<vmem>>, vector<1x4x352xf32>
    %116 = vector.shape_cast %115 : vector<1x4x352xf32> to vector<4x352xf32>
    %c19 = arith.constant 19 : index
    %c0_104 = arith.constant 0 : index
    %c0_105 = arith.constant 0 : index
    %117 = vector.load %arg1[%c19, %c0_104, %c0_105] : memref<49x6x4xf32, #tpu.memory_space<vmem>>, vector<1x6x4xf32>
    %118 = vector.shape_cast %117 : vector<1x6x4xf32> to vector<6x4xf32>
    %cst_106 = arith.constant dense<0.000000e+00> : vector<6x352xf32>
    %119 = tpu.matmul %118, %116, %cst_106 {dimension_numbers = #tpu.dot_dimension_numbers<[1], [0], [0], [1], [0, 0, 1, 1], [], []>} : vector<6x4xf32>, vector<4x352xf32>, vector<6x352xf32> -> vector<6x352xf32>
    %120 = arith.addf %114, %119 : vector<6x352xf32>
    %c0_107 = arith.constant 0 : index
    %c0_108 = arith.constant 0 : index
    %c50 = arith.constant 50 : index
    %121 = vector.load %arg3[%c0_107, %c0_108, %c50] : memref<1x4x506xf32, #tpu.memory_space<vmem>>, vector<1x4x352xf32>
    %122 = vector.shape_cast %121 : vector<1x4x352xf32> to vector<4x352xf32>
    %c20 = arith.constant 20 : index
    %c0_109 = arith.constant 0 : index
    %c0_110 = arith.constant 0 : index
    %123 = vector.load %arg1[%c20, %c0_109, %c0_110] : memref<49x6x4xf32, #tpu.memory_space<vmem>>, vector<1x6x4xf32>
    %124 = vector.shape_cast %123 : vector<1x6x4xf32> to vector<6x4xf32>
    %cst_111 = arith.constant dense<0.000000e+00> : vector<6x352xf32>
    %125 = tpu.matmul %124, %122, %cst_111 {dimension_numbers = #tpu.dot_dimension_numbers<[1], [0], [0], [1], [0, 0, 1, 1], [], []>} : vector<6x4xf32>, vector<4x352xf32>, vector<6x352xf32> -> vector<6x352xf32>
    %126 = arith.addf %120, %125 : vector<6x352xf32>
    %c0_112 = arith.constant 0 : index
    %c0_113 = arith.constant 0 : index
    %c66 = arith.constant 66 : index
    %127 = vector.load %arg3[%c0_112, %c0_113, %c66] : memref<1x4x506xf32, #tpu.memory_space<vmem>>, vector<1x4x352xf32>
    %128 = vector.shape_cast %127 : vector<1x4x352xf32> to vector<4x352xf32>
    %c21 = arith.constant 21 : index
    %c0_114 = arith.constant 0 : index
    %c0_115 = arith.constant 0 : index
    %129 = vector.load %arg1[%c21, %c0_114, %c0_115] : memref<49x6x4xf32, #tpu.memory_space<vmem>>, vector<1x6x4xf32>
    %130 = vector.shape_cast %129 : vector<1x6x4xf32> to vector<6x4xf32>
    %cst_116 = arith.constant dense<0.000000e+00> : vector<6x352xf32>
    %131 = tpu.matmul %130, %128, %cst_116 {dimension_numbers = #tpu.dot_dimension_numbers<[1], [0], [0], [1], [0, 0, 1, 1], [], []>} : vector<6x4xf32>, vector<4x352xf32>, vector<6x352xf32> -> vector<6x352xf32>
    %132 = arith.addf %126, %131 : vector<6x352xf32>
    %c0_117 = arith.constant 0 : index
    %c0_118 = arith.constant 0 : index
    %c67 = arith.constant 67 : index
    %133 = vector.load %arg3[%c0_117, %c0_118, %c67] : memref<1x4x506xf32, #tpu.memory_space<vmem>>, vector<1x4x352xf32>
    %134 = vector.shape_cast %133 : vector<1x4x352xf32> to vector<4x352xf32>
    %c22_119 = arith.constant 22 : index
    %c0_120 = arith.constant 0 : index
    %c0_121 = arith.constant 0 : index
    %135 = vector.load %arg1[%c22_119, %c0_120, %c0_121] : memref<49x6x4xf32, #tpu.memory_space<vmem>>, vector<1x6x4xf32>
    %136 = vector.shape_cast %135 : vector<1x6x4xf32> to vector<6x4xf32>
    %cst_122 = arith.constant dense<0.000000e+00> : vector<6x352xf32>
    %137 = tpu.matmul %136, %134, %cst_122 {dimension_numbers = #tpu.dot_dimension_numbers<[1], [0], [0], [1], [0, 0, 1, 1], [], []>} : vector<6x4xf32>, vector<4x352xf32>, vector<6x352xf32> -> vector<6x352xf32>
    %138 = arith.addf %132, %137 : vector<6x352xf32>
    %c0_123 = arith.constant 0 : index
    %c0_124 = arith.constant 0 : index
    %c68 = arith.constant 68 : index
    %139 = vector.load %arg3[%c0_123, %c0_124, %c68] : memref<1x4x506xf32, #tpu.memory_space<vmem>>, vector<1x4x352xf32>
    %140 = vector.shape_cast %139 : vector<1x4x352xf32> to vector<4x352xf32>
    %c23_125 = arith.constant 23 : index
    %c0_126 = arith.constant 0 : index
    %c0_127 = arith.constant 0 : index
    %141 = vector.load %arg1[%c23_125, %c0_126, %c0_127] : memref<49x6x4xf32, #tpu.memory_space<vmem>>, vector<1x6x4xf32>
    %142 = vector.shape_cast %141 : vector<1x6x4xf32> to vector<6x4xf32>
    %cst_128 = arith.constant dense<0.000000e+00> : vector<6x352xf32>
    %143 = tpu.matmul %142, %140, %cst_128 {dimension_numbers = #tpu.dot_dimension_numbers<[1], [0], [0], [1], [0, 0, 1, 1], [], []>} : vector<6x4xf32>, vector<4x352xf32>, vector<6x352xf32> -> vector<6x352xf32>
    %144 = arith.addf %138, %143 : vector<6x352xf32>
    %c0_129 = arith.constant 0 : index
    %c0_130 = arith.constant 0 : index
    %c69 = arith.constant 69 : index
    %145 = vector.load %arg3[%c0_129, %c0_130, %c69] : memref<1x4x506xf32, #tpu.memory_space<vmem>>, vector<1x4x352xf32>
    %146 = vector.shape_cast %145 : vector<1x4x352xf32> to vector<4x352xf32>
    %c24_131 = arith.constant 24 : index
    %c0_132 = arith.constant 0 : index
    %c0_133 = arith.constant 0 : index
    %147 = vector.load %arg1[%c24_131, %c0_132, %c0_133] : memref<49x6x4xf32, #tpu.memory_space<vmem>>, vector<1x6x4xf32>
    %148 = vector.shape_cast %147 : vector<1x6x4xf32> to vector<6x4xf32>
    %cst_134 = arith.constant dense<0.000000e+00> : vector<6x352xf32>
    %149 = tpu.matmul %148, %146, %cst_134 {dimension_numbers = #tpu.dot_dimension_numbers<[1], [0], [0], [1], [0, 0, 1, 1], [], []>} : vector<6x4xf32>, vector<4x352xf32>, vector<6x352xf32> -> vector<6x352xf32>
    %150 = arith.addf %144, %149 : vector<6x352xf32>
    %c0_135 = arith.constant 0 : index
    %c0_136 = arith.constant 0 : index
    %c70 = arith.constant 70 : index
    %151 = vector.load %arg3[%c0_135, %c0_136, %c70] : memref<1x4x506xf32, #tpu.memory_space<vmem>>, vector<1x4x352xf32>
    %152 = vector.shape_cast %151 : vector<1x4x352xf32> to vector<4x352xf32>
    %c25_137 = arith.constant 25 : index
    %c0_138 = arith.constant 0 : index
    %c0_139 = arith.constant 0 : index
    %153 = vector.load %arg1[%c25_137, %c0_138, %c0_139] : memref<49x6x4xf32, #tpu.memory_space<vmem>>, vector<1x6x4xf32>
    %154 = vector.shape_cast %153 : vector<1x6x4xf32> to vector<6x4xf32>
    %cst_140 = arith.constant dense<0.000000e+00> : vector<6x352xf32>
    %155 = tpu.matmul %154, %152, %cst_140 {dimension_numbers = #tpu.dot_dimension_numbers<[1], [0], [0], [1], [0, 0, 1, 1], [], []>} : vector<6x4xf32>, vector<4x352xf32>, vector<6x352xf32> -> vector<6x352xf32>
    %156 = arith.addf %150, %155 : vector<6x352xf32>
    %c0_141 = arith.constant 0 : index
    %c0_142 = arith.constant 0 : index
    %c71 = arith.constant 71 : index
    %157 = vector.load %arg3[%c0_141, %c0_142, %c71] : memref<1x4x506xf32, #tpu.memory_space<vmem>>, vector<1x4x352xf32>
    %158 = vector.shape_cast %157 : vector<1x4x352xf32> to vector<4x352xf32>
    %c26_143 = arith.constant 26 : index
    %c0_144 = arith.constant 0 : index
    %c0_145 = arith.constant 0 : index
    %159 = vector.load %arg1[%c26_143, %c0_144, %c0_145] : memref<49x6x4xf32, #tpu.memory_space<vmem>>, vector<1x6x4xf32>
    %160 = vector.shape_cast %159 : vector<1x6x4xf32> to vector<6x4xf32>
    %cst_146 = arith.constant dense<0.000000e+00> : vector<6x352xf32>
    %161 = tpu.matmul %160, %158, %cst_146 {dimension_numbers = #tpu.dot_dimension_numbers<[1], [0], [0], [1], [0, 0, 1, 1], [], []>} : vector<6x4xf32>, vector<4x352xf32>, vector<6x352xf32> -> vector<6x352xf32>
    %162 = arith.addf %156, %161 : vector<6x352xf32>
    %c0_147 = arith.constant 0 : index
    %c0_148 = arith.constant 0 : index
    %c72 = arith.constant 72 : index
    %163 = vector.load %arg3[%c0_147, %c0_148, %c72] : memref<1x4x506xf32, #tpu.memory_space<vmem>>, vector<1x4x352xf32>
    %164 = vector.shape_cast %163 : vector<1x4x352xf32> to vector<4x352xf32>
    %c27_149 = arith.constant 27 : index
    %c0_150 = arith.constant 0 : index
    %c0_151 = arith.constant 0 : index
    %165 = vector.load %arg1[%c27_149, %c0_150, %c0_151] : memref<49x6x4xf32, #tpu.memory_space<vmem>>, vector<1x6x4xf32>
    %166 = vector.shape_cast %165 : vector<1x6x4xf32> to vector<6x4xf32>
    %cst_152 = arith.constant dense<0.000000e+00> : vector<6x352xf32>
    %167 = tpu.matmul %166, %164, %cst_152 {dimension_numbers = #tpu.dot_dimension_numbers<[1], [0], [0], [1], [0, 0, 1, 1], [], []>} : vector<6x4xf32>, vector<4x352xf32>, vector<6x352xf32> -> vector<6x352xf32>
    %168 = arith.addf %162, %167 : vector<6x352xf32>
    %c0_153 = arith.constant 0 : index
    %c0_154 = arith.constant 0 : index
    %c88 = arith.constant 88 : index
    %169 = vector.load %arg3[%c0_153, %c0_154, %c88] : memref<1x4x506xf32, #tpu.memory_space<vmem>>, vector<1x4x352xf32>
    %170 = vector.shape_cast %169 : vector<1x4x352xf32> to vector<4x352xf32>
    %c28_155 = arith.constant 28 : index
    %c0_156 = arith.constant 0 : index
    %c0_157 = arith.constant 0 : index
    %171 = vector.load %arg1[%c28_155, %c0_156, %c0_157] : memref<49x6x4xf32, #tpu.memory_space<vmem>>, vector<1x6x4xf32>
    %172 = vector.shape_cast %171 : vector<1x6x4xf32> to vector<6x4xf32>
    %cst_158 = arith.constant dense<0.000000e+00> : vector<6x352xf32>
    %173 = tpu.matmul %172, %170, %cst_158 {dimension_numbers = #tpu.dot_dimension_numbers<[1], [0], [0], [1], [0, 0, 1, 1], [], []>} : vector<6x4xf32>, vector<4x352xf32>, vector<6x352xf32> -> vector<6x352xf32>
    %174 = arith.addf %168, %173 : vector<6x352xf32>
    %c0_159 = arith.constant 0 : index
    %c0_160 = arith.constant 0 : index
    %c89 = arith.constant 89 : index
    %175 = vector.load %arg3[%c0_159, %c0_160, %c89] : memref<1x4x506xf32, #tpu.memory_space<vmem>>, vector<1x4x352xf32>
    %176 = vector.shape_cast %175 : vector<1x4x352xf32> to vector<4x352xf32>
    %c29 = arith.constant 29 : index
    %c0_161 = arith.constant 0 : index
    %c0_162 = arith.constant 0 : index
    %177 = vector.load %arg1[%c29, %c0_161, %c0_162] : memref<49x6x4xf32, #tpu.memory_space<vmem>>, vector<1x6x4xf32>
    %178 = vector.shape_cast %177 : vector<1x6x4xf32> to vector<6x4xf32>
    %cst_163 = arith.constant dense<0.000000e+00> : vector<6x352xf32>
    %179 = tpu.matmul %178, %176, %cst_163 {dimension_numbers = #tpu.dot_dimension_numbers<[1], [0], [0], [1], [0, 0, 1, 1], [], []>} : vector<6x4xf32>, vector<4x352xf32>, vector<6x352xf32> -> vector<6x352xf32>
    %180 = arith.addf %174, %179 : vector<6x352xf32>
    %c0_164 = arith.constant 0 : index
    %c0_165 = arith.constant 0 : index
    %c90 = arith.constant 90 : index
    %181 = vector.load %arg3[%c0_164, %c0_165, %c90] : memref<1x4x506xf32, #tpu.memory_space<vmem>>, vector<1x4x352xf32>
    %182 = vector.shape_cast %181 : vector<1x4x352xf32> to vector<4x352xf32>
    %c30 = arith.constant 30 : index
    %c0_166 = arith.constant 0 : index
    %c0_167 = arith.constant 0 : index
    %183 = vector.load %arg1[%c30, %c0_166, %c0_167] : memref<49x6x4xf32, #tpu.memory_space<vmem>>, vector<1x6x4xf32>
    %184 = vector.shape_cast %183 : vector<1x6x4xf32> to vector<6x4xf32>
    %cst_168 = arith.constant dense<0.000000e+00> : vector<6x352xf32>
    %185 = tpu.matmul %184, %182, %cst_168 {dimension_numbers = #tpu.dot_dimension_numbers<[1], [0], [0], [1], [0, 0, 1, 1], [], []>} : vector<6x4xf32>, vector<4x352xf32>, vector<6x352xf32> -> vector<6x352xf32>
    %186 = arith.addf %180, %185 : vector<6x352xf32>
    %c0_169 = arith.constant 0 : index
    %c0_170 = arith.constant 0 : index
    %c91 = arith.constant 91 : index
    %187 = vector.load %arg3[%c0_169, %c0_170, %c91] : memref<1x4x506xf32, #tpu.memory_space<vmem>>, vector<1x4x352xf32>
    %188 = vector.shape_cast %187 : vector<1x4x352xf32> to vector<4x352xf32>
    %c31 = arith.constant 31 : index
    %c0_171 = arith.constant 0 : index
    %c0_172 = arith.constant 0 : index
    %189 = vector.load %arg1[%c31, %c0_171, %c0_172] : memref<49x6x4xf32, #tpu.memory_space<vmem>>, vector<1x6x4xf32>
    %190 = vector.shape_cast %189 : vector<1x6x4xf32> to vector<6x4xf32>
    %cst_173 = arith.constant dense<0.000000e+00> : vector<6x352xf32>
    %191 = tpu.matmul %190, %188, %cst_173 {dimension_numbers = #tpu.dot_dimension_numbers<[1], [0], [0], [1], [0, 0, 1, 1], [], []>} : vector<6x4xf32>, vector<4x352xf32>, vector<6x352xf32> -> vector<6x352xf32>
    %192 = arith.addf %186, %191 : vector<6x352xf32>
    %c0_174 = arith.constant 0 : index
    %c0_175 = arith.constant 0 : index
    %c92 = arith.constant 92 : index
    %193 = vector.load %arg3[%c0_174, %c0_175, %c92] : memref<1x4x506xf32, #tpu.memory_space<vmem>>, vector<1x4x352xf32>
    %194 = vector.shape_cast %193 : vector<1x4x352xf32> to vector<4x352xf32>
    %c32 = arith.constant 32 : index
    %c0_176 = arith.constant 0 : index
    %c0_177 = arith.constant 0 : index
    %195 = vector.load %arg1[%c32, %c0_176, %c0_177] : memref<49x6x4xf32, #tpu.memory_space<vmem>>, vector<1x6x4xf32>
    %196 = vector.shape_cast %195 : vector<1x6x4xf32> to vector<6x4xf32>
    %cst_178 = arith.constant dense<0.000000e+00> : vector<6x352xf32>
    %197 = tpu.matmul %196, %194, %cst_178 {dimension_numbers = #tpu.dot_dimension_numbers<[1], [0], [0], [1], [0, 0, 1, 1], [], []>} : vector<6x4xf32>, vector<4x352xf32>, vector<6x352xf32> -> vector<6x352xf32>
    %198 = arith.addf %192, %197 : vector<6x352xf32>
    %c0_179 = arith.constant 0 : index
    %c0_180 = arith.constant 0 : index
    %c93 = arith.constant 93 : index
    %199 = vector.load %arg3[%c0_179, %c0_180, %c93] : memref<1x4x506xf32, #tpu.memory_space<vmem>>, vector<1x4x352xf32>
    %200 = vector.shape_cast %199 : vector<1x4x352xf32> to vector<4x352xf32>
    %c33 = arith.constant 33 : index
    %c0_181 = arith.constant 0 : index
    %c0_182 = arith.constant 0 : index
    %201 = vector.load %arg1[%c33, %c0_181, %c0_182] : memref<49x6x4xf32, #tpu.memory_space<vmem>>, vector<1x6x4xf32>
    %202 = vector.shape_cast %201 : vector<1x6x4xf32> to vector<6x4xf32>
    %cst_183 = arith.constant dense<0.000000e+00> : vector<6x352xf32>
    %203 = tpu.matmul %202, %200, %cst_183 {dimension_numbers = #tpu.dot_dimension_numbers<[1], [0], [0], [1], [0, 0, 1, 1], [], []>} : vector<6x4xf32>, vector<4x352xf32>, vector<6x352xf32> -> vector<6x352xf32>
    %204 = arith.addf %198, %203 : vector<6x352xf32>
    %c0_184 = arith.constant 0 : index
    %c0_185 = arith.constant 0 : index
    %c94 = arith.constant 94 : index
    %205 = vector.load %arg3[%c0_184, %c0_185, %c94] : memref<1x4x506xf32, #tpu.memory_space<vmem>>, vector<1x4x352xf32>
    %206 = vector.shape_cast %205 : vector<1x4x352xf32> to vector<4x352xf32>
    %c34 = arith.constant 34 : index
    %c0_186 = arith.constant 0 : index
    %c0_187 = arith.constant 0 : index
    %207 = vector.load %arg1[%c34, %c0_186, %c0_187] : memref<49x6x4xf32, #tpu.memory_space<vmem>>, vector<1x6x4xf32>
    %208 = vector.shape_cast %207 : vector<1x6x4xf32> to vector<6x4xf32>
    %cst_188 = arith.constant dense<0.000000e+00> : vector<6x352xf32>
    %209 = tpu.matmul %208, %206, %cst_188 {dimension_numbers = #tpu.dot_dimension_numbers<[1], [0], [0], [1], [0, 0, 1, 1], [], []>} : vector<6x4xf32>, vector<4x352xf32>, vector<6x352xf32> -> vector<6x352xf32>
    %210 = arith.addf %204, %209 : vector<6x352xf32>
    %c0_189 = arith.constant 0 : index
    %c0_190 = arith.constant 0 : index
    %c110 = arith.constant 110 : index
    %211 = vector.load %arg3[%c0_189, %c0_190, %c110] : memref<1x4x506xf32, #tpu.memory_space<vmem>>, vector<1x4x352xf32>
    %212 = vector.shape_cast %211 : vector<1x4x352xf32> to vector<4x352xf32>
    %c35 = arith.constant 35 : index
    %c0_191 = arith.constant 0 : index
    %c0_192 = arith.constant 0 : index
    %213 = vector.load %arg1[%c35, %c0_191, %c0_192] : memref<49x6x4xf32, #tpu.memory_space<vmem>>, vector<1x6x4xf32>
    %214 = vector.shape_cast %213 : vector<1x6x4xf32> to vector<6x4xf32>
    %cst_193 = arith.constant dense<0.000000e+00> : vector<6x352xf32>
    %215 = tpu.matmul %214, %212, %cst_193 {dimension_numbers = #tpu.dot_dimension_numbers<[1], [0], [0], [1], [0, 0, 1, 1], [], []>} : vector<6x4xf32>, vector<4x352xf32>, vector<6x352xf32> -> vector<6x352xf32>
    %216 = arith.addf %210, %215 : vector<6x352xf32>
    %c0_194 = arith.constant 0 : index
    %c0_195 = arith.constant 0 : index
    %c111 = arith.constant 111 : index
    %217 = vector.load %arg3[%c0_194, %c0_195, %c111] : memref<1x4x506xf32, #tpu.memory_space<vmem>>, vector<1x4x352xf32>
    %218 = vector.shape_cast %217 : vector<1x4x352xf32> to vector<4x352xf32>
    %c36 = arith.constant 36 : index
    %c0_196 = arith.constant 0 : index
    %c0_197 = arith.constant 0 : index
    %219 = vector.load %arg1[%c36, %c0_196, %c0_197] : memref<49x6x4xf32, #tpu.memory_space<vmem>>, vector<1x6x4xf32>
    %220 = vector.shape_cast %219 : vector<1x6x4xf32> to vector<6x4xf32>
    %cst_198 = arith.constant dense<0.000000e+00> : vector<6x352xf32>
    %221 = tpu.matmul %220, %218, %cst_198 {dimension_numbers = #tpu.dot_dimension_numbers<[1], [0], [0], [1], [0, 0, 1, 1], [], []>} : vector<6x4xf32>, vector<4x352xf32>, vector<6x352xf32> -> vector<6x352xf32>
    %222 = arith.addf %216, %221 : vector<6x352xf32>
    %c0_199 = arith.constant 0 : index
    %c0_200 = arith.constant 0 : index
    %c112 = arith.constant 112 : index
    %223 = vector.load %arg3[%c0_199, %c0_200, %c112] : memref<1x4x506xf32, #tpu.memory_space<vmem>>, vector<1x4x352xf32>
    %224 = vector.shape_cast %223 : vector<1x4x352xf32> to vector<4x352xf32>
    %c37 = arith.constant 37 : index
    %c0_201 = arith.constant 0 : index
    %c0_202 = arith.constant 0 : index
    %225 = vector.load %arg1[%c37, %c0_201, %c0_202] : memref<49x6x4xf32, #tpu.memory_space<vmem>>, vector<1x6x4xf32>
    %226 = vector.shape_cast %225 : vector<1x6x4xf32> to vector<6x4xf32>
    %cst_203 = arith.constant dense<0.000000e+00> : vector<6x352xf32>
    %227 = tpu.matmul %226, %224, %cst_203 {dimension_numbers = #tpu.dot_dimension_numbers<[1], [0], [0], [1], [0, 0, 1, 1], [], []>} : vector<6x4xf32>, vector<4x352xf32>, vector<6x352xf32> -> vector<6x352xf32>
    %228 = arith.addf %222, %227 : vector<6x352xf32>
    %c0_204 = arith.constant 0 : index
    %c0_205 = arith.constant 0 : index
    %c113 = arith.constant 113 : index
    %229 = vector.load %arg3[%c0_204, %c0_205, %c113] : memref<1x4x506xf32, #tpu.memory_space<vmem>>, vector<1x4x352xf32>
    %230 = vector.shape_cast %229 : vector<1x4x352xf32> to vector<4x352xf32>
    %c38 = arith.constant 38 : index
    %c0_206 = arith.constant 0 : index
    %c0_207 = arith.constant 0 : index
    %231 = vector.load %arg1[%c38, %c0_206, %c0_207] : memref<49x6x4xf32, #tpu.memory_space<vmem>>, vector<1x6x4xf32>
    %232 = vector.shape_cast %231 : vector<1x6x4xf32> to vector<6x4xf32>
    %cst_208 = arith.constant dense<0.000000e+00> : vector<6x352xf32>
    %233 = tpu.matmul %232, %230, %cst_208 {dimension_numbers = #tpu.dot_dimension_numbers<[1], [0], [0], [1], [0, 0, 1, 1], [], []>} : vector<6x4xf32>, vector<4x352xf32>, vector<6x352xf32> -> vector<6x352xf32>
    %234 = arith.addf %228, %233 : vector<6x352xf32>
    %c0_209 = arith.constant 0 : index
    %c0_210 = arith.constant 0 : index
    %c114 = arith.constant 114 : index
    %235 = vector.load %arg3[%c0_209, %c0_210, %c114] : memref<1x4x506xf32, #tpu.memory_space<vmem>>, vector<1x4x352xf32>
    %236 = vector.shape_cast %235 : vector<1x4x352xf32> to vector<4x352xf32>
    %c39 = arith.constant 39 : index
    %c0_211 = arith.constant 0 : index
    %c0_212 = arith.constant 0 : index
    %237 = vector.load %arg1[%c39, %c0_211, %c0_212] : memref<49x6x4xf32, #tpu.memory_space<vmem>>, vector<1x6x4xf32>
    %238 = vector.shape_cast %237 : vector<1x6x4xf32> to vector<6x4xf32>
    %cst_213 = arith.constant dense<0.000000e+00> : vector<6x352xf32>
    %239 = tpu.matmul %238, %236, %cst_213 {dimension_numbers = #tpu.dot_dimension_numbers<[1], [0], [0], [1], [0, 0, 1, 1], [], []>} : vector<6x4xf32>, vector<4x352xf32>, vector<6x352xf32> -> vector<6x352xf32>
    %240 = arith.addf %234, %239 : vector<6x352xf32>
    %c0_214 = arith.constant 0 : index
    %c0_215 = arith.constant 0 : index
    %c115 = arith.constant 115 : index
    %241 = vector.load %arg3[%c0_214, %c0_215, %c115] : memref<1x4x506xf32, #tpu.memory_space<vmem>>, vector<1x4x352xf32>
    %242 = vector.shape_cast %241 : vector<1x4x352xf32> to vector<4x352xf32>
    %c40 = arith.constant 40 : index
    %c0_216 = arith.constant 0 : index
    %c0_217 = arith.constant 0 : index
    %243 = vector.load %arg1[%c40, %c0_216, %c0_217] : memref<49x6x4xf32, #tpu.memory_space<vmem>>, vector<1x6x4xf32>
    %244 = vector.shape_cast %243 : vector<1x6x4xf32> to vector<6x4xf32>
    %cst_218 = arith.constant dense<0.000000e+00> : vector<6x352xf32>
    %245 = tpu.matmul %244, %242, %cst_218 {dimension_numbers = #tpu.dot_dimension_numbers<[1], [0], [0], [1], [0, 0, 1, 1], [], []>} : vector<6x4xf32>, vector<4x352xf32>, vector<6x352xf32> -> vector<6x352xf32>
    %246 = arith.addf %240, %245 : vector<6x352xf32>
    %c0_219 = arith.constant 0 : index
    %c0_220 = arith.constant 0 : index
    %c116 = arith.constant 116 : index
    %247 = vector.load %arg3[%c0_219, %c0_220, %c116] : memref<1x4x506xf32, #tpu.memory_space<vmem>>, vector<1x4x352xf32>
    %248 = vector.shape_cast %247 : vector<1x4x352xf32> to vector<4x352xf32>
    %c41 = arith.constant 41 : index
    %c0_221 = arith.constant 0 : index
    %c0_222 = arith.constant 0 : index
    %249 = vector.load %arg1[%c41, %c0_221, %c0_222] : memref<49x6x4xf32, #tpu.memory_space<vmem>>, vector<1x6x4xf32>
    %250 = vector.shape_cast %249 : vector<1x6x4xf32> to vector<6x4xf32>
    %cst_223 = arith.constant dense<0.000000e+00> : vector<6x352xf32>
    %251 = tpu.matmul %250, %248, %cst_223 {dimension_numbers = #tpu.dot_dimension_numbers<[1], [0], [0], [1], [0, 0, 1, 1], [], []>} : vector<6x4xf32>, vector<4x352xf32>, vector<6x352xf32> -> vector<6x352xf32>
    %252 = arith.addf %246, %251 : vector<6x352xf32>
    %c0_224 = arith.constant 0 : index
    %c0_225 = arith.constant 0 : index
    %c132 = arith.constant 132 : index
    %253 = vector.load %arg3[%c0_224, %c0_225, %c132] : memref<1x4x506xf32, #tpu.memory_space<vmem>>, vector<1x4x352xf32>
    %254 = vector.shape_cast %253 : vector<1x4x352xf32> to vector<4x352xf32>
    %c42 = arith.constant 42 : index
    %c0_226 = arith.constant 0 : index
    %c0_227 = arith.constant 0 : index
    %255 = vector.load %arg1[%c42, %c0_226, %c0_227] : memref<49x6x4xf32, #tpu.memory_space<vmem>>, vector<1x6x4xf32>
    %256 = vector.shape_cast %255 : vector<1x6x4xf32> to vector<6x4xf32>
    %cst_228 = arith.constant dense<0.000000e+00> : vector<6x352xf32>
    %257 = tpu.matmul %256, %254, %cst_228 {dimension_numbers = #tpu.dot_dimension_numbers<[1], [0], [0], [1], [0, 0, 1, 1], [], []>} : vector<6x4xf32>, vector<4x352xf32>, vector<6x352xf32> -> vector<6x352xf32>
    %258 = arith.addf %252, %257 : vector<6x352xf32>
    %c0_229 = arith.constant 0 : index
    %c0_230 = arith.constant 0 : index
    %c133 = arith.constant 133 : index
    %259 = vector.load %arg3[%c0_229, %c0_230, %c133] : memref<1x4x506xf32, #tpu.memory_space<vmem>>, vector<1x4x352xf32>
    %260 = vector.shape_cast %259 : vector<1x4x352xf32> to vector<4x352xf32>
    %c43 = arith.constant 43 : index
    %c0_231 = arith.constant 0 : index
    %c0_232 = arith.constant 0 : index
    %261 = vector.load %arg1[%c43, %c0_231, %c0_232] : memref<49x6x4xf32, #tpu.memory_space<vmem>>, vector<1x6x4xf32>
    %262 = vector.shape_cast %261 : vector<1x6x4xf32> to vector<6x4xf32>
    %cst_233 = arith.constant dense<0.000000e+00> : vector<6x352xf32>
    %263 = tpu.matmul %262, %260, %cst_233 {dimension_numbers = #tpu.dot_dimension_numbers<[1], [0], [0], [1], [0, 0, 1, 1], [], []>} : vector<6x4xf32>, vector<4x352xf32>, vector<6x352xf32> -> vector<6x352xf32>
    %264 = arith.addf %258, %263 : vector<6x352xf32>
    %c0_234 = arith.constant 0 : index
    %c0_235 = arith.constant 0 : index
    %c134 = arith.constant 134 : index
    %265 = vector.load %arg3[%c0_234, %c0_235, %c134] : memref<1x4x506xf32, #tpu.memory_space<vmem>>, vector<1x4x352xf32>
    %266 = vector.shape_cast %265 : vector<1x4x352xf32> to vector<4x352xf32>
    %c44_236 = arith.constant 44 : index
    %c0_237 = arith.constant 0 : index
    %c0_238 = arith.constant 0 : index
    %267 = vector.load %arg1[%c44_236, %c0_237, %c0_238] : memref<49x6x4xf32, #tpu.memory_space<vmem>>, vector<1x6x4xf32>
    %268 = vector.shape_cast %267 : vector<1x6x4xf32> to vector<6x4xf32>
    %cst_239 = arith.constant dense<0.000000e+00> : vector<6x352xf32>
    %269 = tpu.matmul %268, %266, %cst_239 {dimension_numbers = #tpu.dot_dimension_numbers<[1], [0], [0], [1], [0, 0, 1, 1], [], []>} : vector<6x4xf32>, vector<4x352xf32>, vector<6x352xf32> -> vector<6x352xf32>
    %270 = arith.addf %264, %269 : vector<6x352xf32>
    %c0_240 = arith.constant 0 : index
    %c0_241 = arith.constant 0 : index
    %c135 = arith.constant 135 : index
    %271 = vector.load %arg3[%c0_240, %c0_241, %c135] : memref<1x4x506xf32, #tpu.memory_space<vmem>>, vector<1x4x352xf32>
    %272 = vector.shape_cast %271 : vector<1x4x352xf32> to vector<4x352xf32>
    %c45_242 = arith.constant 45 : index
    %c0_243 = arith.constant 0 : index
    %c0_244 = arith.constant 0 : index
    %273 = vector.load %arg1[%c45_242, %c0_243, %c0_244] : memref<49x6x4xf32, #tpu.memory_space<vmem>>, vector<1x6x4xf32>
    %274 = vector.shape_cast %273 : vector<1x6x4xf32> to vector<6x4xf32>
    %cst_245 = arith.constant dense<0.000000e+00> : vector<6x352xf32>
    %275 = tpu.matmul %274, %272, %cst_245 {dimension_numbers = #tpu.dot_dimension_numbers<[1], [0], [0], [1], [0, 0, 1, 1], [], []>} : vector<6x4xf32>, vector<4x352xf32>, vector<6x352xf32> -> vector<6x352xf32>
    %276 = arith.addf %270, %275 : vector<6x352xf32>
    %c0_246 = arith.constant 0 : index
    %c0_247 = arith.constant 0 : index
    %c136 = arith.constant 136 : index
    %277 = vector.load %arg3[%c0_246, %c0_247, %c136] : memref<1x4x506xf32, #tpu.memory_space<vmem>>, vector<1x4x352xf32>
    %278 = vector.shape_cast %277 : vector<1x4x352xf32> to vector<4x352xf32>
    %c46_248 = arith.constant 46 : index
    %c0_249 = arith.constant 0 : index
    %c0_250 = arith.constant 0 : index
    %279 = vector.load %arg1[%c46_248, %c0_249, %c0_250] : memref<49x6x4xf32, #tpu.memory_space<vmem>>, vector<1x6x4xf32>
    %280 = vector.shape_cast %279 : vector<1x6x4xf32> to vector<6x4xf32>
    %cst_251 = arith.constant dense<0.000000e+00> : vector<6x352xf32>
    %281 = tpu.matmul %280, %278, %cst_251 {dimension_numbers = #tpu.dot_dimension_numbers<[1], [0], [0], [1], [0, 0, 1, 1], [], []>} : vector<6x4xf32>, vector<4x352xf32>, vector<6x352xf32> -> vector<6x352xf32>
    %282 = arith.addf %276, %281 : vector<6x352xf32>
    %c0_252 = arith.constant 0 : index
    %c0_253 = arith.constant 0 : index
    %c137 = arith.constant 137 : index
    %283 = vector.load %arg3[%c0_252, %c0_253, %c137] : memref<1x4x506xf32, #tpu.memory_space<vmem>>, vector<1x4x352xf32>
    %284 = vector.shape_cast %283 : vector<1x4x352xf32> to vector<4x352xf32>
    %c47_254 = arith.constant 47 : index
    %c0_255 = arith.constant 0 : index
    %c0_256 = arith.constant 0 : index
    %285 = vector.load %arg1[%c47_254, %c0_255, %c0_256] : memref<49x6x4xf32, #tpu.memory_space<vmem>>, vector<1x6x4xf32>
    %286 = vector.shape_cast %285 : vector<1x6x4xf32> to vector<6x4xf32>
    %cst_257 = arith.constant dense<0.000000e+00> : vector<6x352xf32>
    %287 = tpu.matmul %286, %284, %cst_257 {dimension_numbers = #tpu.dot_dimension_numbers<[1], [0], [0], [1], [0, 0, 1, 1], [], []>} : vector<6x4xf32>, vector<4x352xf32>, vector<6x352xf32> -> vector<6x352xf32>
    %288 = arith.addf %282, %287 : vector<6x352xf32>
    %c0_258 = arith.constant 0 : index
    %c0_259 = arith.constant 0 : index
    %c138 = arith.constant 138 : index
    %289 = vector.load %arg3[%c0_258, %c0_259, %c138] : memref<1x4x506xf32, #tpu.memory_space<vmem>>, vector<1x4x352xf32>
    %290 = vector.shape_cast %289 : vector<1x4x352xf32> to vector<4x352xf32>
    %c48_260 = arith.constant 48 : index
    %c0_261 = arith.constant 0 : index
    %c0_262 = arith.constant 0 : index
    %291 = vector.load %arg1[%c48_260, %c0_261, %c0_262] : memref<49x6x4xf32, #tpu.memory_space<vmem>>, vector<1x6x4xf32>
    %292 = vector.shape_cast %291 : vector<1x6x4xf32> to vector<6x4xf32>
    %cst_263 = arith.constant dense<0.000000e+00> : vector<6x352xf32>
    %293 = tpu.matmul %292, %290, %cst_263 {dimension_numbers = #tpu.dot_dimension_numbers<[1], [0], [0], [1], [0, 0, 1, 1], [], []>} : vector<6x4xf32>, vector<4x352xf32>, vector<6x352xf32> -> vector<6x352xf32>
    %294 = arith.addf %288, %293 : vector<6x352xf32>
    %cst_264 = arith.constant 0.000000e+00 : f32
    %295 = vector.broadcast %cst_264 : f32 to vector<6x352xf32>
    %296 = arith.maximumf %294, %295 : vector<6x352xf32>
    %c0_265 = arith.constant 0 : index
    %c0_266 = arith.constant 0 : index
    %297 = vector.load %arg2[%c0_265, %c0_266] : memref<6x1xf32, #tpu.memory_space<vmem>>, vector<6x1xf32>
    %298 = vector.broadcast %297 : vector<6x1xf32> to vector<6x352xf32>
    %299 = arith.mulf %298, %296 : vector<6x352xf32>
    %cst_267 = arith.constant dense<0.000000e+00> : vector<352xf32>
    %300 = vector.multi_reduction <add>, %299, %cst_267 [0] : vector<6x352xf32> to vector<352xf32>
    %301 = vector.shape_cast %300 : vector<352xf32> to vector<1x352xf32>
    %cst_268 = arith.constant 0.000000e+00 : f32
    %302 = vector.broadcast %cst_268 : f32 to vector<1x352xf32>
    %303 = arith.subf %302, %301 : vector<1x352xf32>
    %304 = math.exp %303 : vector<1x352xf32>
    %cst_269 = arith.constant 1.000000e+00 : f32
    %305 = vector.broadcast %cst_269 : f32 to vector<1x352xf32>
    %306 = arith.addf %305, %304 : vector<1x352xf32>
    %cst_270 = arith.constant 1.000000e+00 : f32
    %307 = vector.broadcast %cst_270 : f32 to vector<1x352xf32>
    %308 = arith.divf %307, %306 : vector<1x352xf32>
    %c0_271 = arith.constant 0 : index
    %c0_272 = arith.constant 0 : index
    %c69_273 = arith.constant 69 : index
    %309 = vector.load %arg3[%c0_271, %c0_272, %c69_273] : memref<1x4x506xf32, #tpu.memory_space<vmem>>, vector<1x4x352xf32>
    %310 = vector.shape_cast %309 : vector<1x4x352xf32> to vector<4x352xf32>
    %311 = vector.broadcast %308 : vector<1x352xf32> to vector<4x352xf32>
    %312 = arith.mulf %310, %311 : vector<4x352xf32>
    %c0_274 = arith.constant 0 : index
    %c0_275 = arith.constant 0 : index
    %c0_276 = arith.constant 0 : index
    %313 = vector.load %arg4[%c0_274, %c0_275, %c0_276] : memref<1x4x352xf32, #tpu.memory_space<vmem>>, vector<1x4x352xf32>
    %314 = vector.shape_cast %313 : vector<1x4x352xf32> to vector<4x352xf32>
    %315 = vector.shape_cast %312 : vector<4x352xf32> to vector<1x4x352xf32>
    tpu.vector_store %arg4[%c0_274, %c0_275, %c0_276], %315 {strides = array<i32>} : memref<1x4x352xf32, #tpu.memory_space<vmem>>, vector<1x4x352xf32>,
    return
  }
  func.func @transform_0(%arg0: i32) -> (i32, i32, i32) {
    %c0_i32 = arith.constant 0 : i32
    %c0_i32_0 = arith.constant 0 : i32
    %c0_i32_1 = arith.constant 0 : i32
    %c0_i32_2 = arith.constant 0 : i32
    return %c0_i32, %c0_i32_0, %c0_i32_1 : i32, i32, i32
  }
  func.func @transform_1(%arg0: i32) -> (i32, i32) {
    %c0_i32 = arith.constant 0 : i32
    %c0_i32_0 = arith.constant 0 : i32
    %c0_i32_1 = arith.constant 0 : i32
    return %c0_i32, %c0_i32_0 : i32, i32
  }
  func.func @transform_2(%arg0: i32) -> (i32, i32, i32) {
    %c0_i32 = arith.constant 0 : i32
    %c0_i32_0 = arith.constant 0 : i32
    %c0_i32_1 = arith.constant 0 : i32
    return %arg0, %c0_i32, %c0_i32_0 : i32, i32, i32
  }
  func.func @transform_3(%arg0: i32) -> (i32, i32, i32) {
    %c0_i32 = arith.constant 0 : i32
    %c0_i32_0 = arith.constant 0 : i32
    %c0_i32_1 = arith.constant 0 : i32
    return %arg0, %c0_i32, %c0_i32_0 : i32, i32, i32
  }
}

</mosaic_0001>

<llo_original>
// kernel: tpu_custom_call.1
$region0: #{tpu_custom_call.1}
  #allocation0 [shape = 'u32[]', space=smem, size = 0x4, offset = 0x4, fixed_abs, tag = 'smem constant byte address 0x4 - core index']
  #allocation1 [shape = 'u32[144,128]{1,0:T(1,128)}', space=vmem, size = 0x12000, scoped, tag = 'internal scratch']
  %s0 = inlined_call_operand.vmem [shape: f32[49,6,4], index: 0, kind: input, shape index: {}]
  %s1 = inlined_call_operand.vmem [shape: f32[6,1], index: 1, kind: input, shape index: {}]
  %s2 = inlined_call_operand.vmem [shape: f32[2,4,506], index: 2, kind: input, shape index: {}]
  %s3 = inlined_call_operand.hbm [shape: f32[2,4,352], index: 3, kind: output, shape index: {}]
  %s4 = sld [smem:[#allocation0]]
  $region45: #{tpu_custom_call.1} parent=0
    _
  %s6 = ssub.s32 1, %s4
  %s7 = scalar_select 0, %s6, %s4
  $region1: #{tpu_custom_call.1} parent=0
    #allocation2 [shape = 'u8[12288]{0}', space=vmem, size = 0x3000, scoped, tag = 'output window, operand 0']
    #allocation3 [shape = 's32[2]{0}', space=sflag, size = 0x8, scoped, tag = 'scoped memory for tpu_custom_call.1']
    %8 = vsyncpa [#allocation3], 0
    %s9 = scalar_lea.sflag [#allocation3], 1
    %10 = vsyncpa %s9, 0
    loop: start=0, step=1, limit=4
    $region2: #{tpu_custom_call.1} parent=1 // loop_pre_header
      _
    $region3: #{tpu_custom_call.1} parent=1 // loop_header
      %s12 = sphi 0, %s16
      %p13 = scmp.ge.s32.totalorder %s12, 4
      %s20 = sphi 0, %s20
      %s22 = sphi 0, %s20
      %s23 = sphi 0, %s22
      %s37 = sphi 0, %s23
      %s41 = sphi 0, %s41
      %s43 = sphi 0, %s41
      %s44 = sphi 0, %s43
      %s58 = sphi 0, %s44
      %s64 = sphi 0, %s66
      %s67 = sphi 0, %s64
      %s68 = sphi 0, %s67
      %s84 = sphi 0, %s68
      %s90 = sphi 0, %s92
      %s93 = sphi 0, %s90
      %s94 = sphi 0, %s93
      %s110 = sphi 0, %s94
    $region4: #{tpu_custom_call.1} parent=1 // loop_header_branch
      %15 = sbr.rel (%p13) target = $region8
    $region5: #{tpu_custom_call.1} parent=1 // loop_body
      %s17 = ssub.s32 %s12, 1
      %s18 = ssub.s32 %s12, 2
      %s19 = sadd.s32 %s12, 1
      %s21 = sadd.s32 %s20, 1
      %p24 = scmp.eq.s32.totalorder %s12, 1
      %p25 = scmp.ne.s32.totalorder %s20, %s22
      %p26 = scmp.eq.s32.totalorder %s12, 0
      %p27 = por %p25, %p26
      %p28 = scmp.ne.s32.totalorder %s20, %s22
      %p29 = scmp.eq.s32.totalorder %s17, 1
      %p30 = por %p28, %p29
      %p31 = scmp.ne.s32.totalorder %s22, %s23
      %p32 = scmp.eq.s32.totalorder %s17, 0
      %p33 = por %p31, %p32
      %p34 = scmp.ne.s32.totalorder %s22, %s23
      %p35 = scmp.eq.s32.totalorder %s18, 1
      %p36 = por %p34, %p35
      %p38 = scmp.ne.s32.totalorder %s23, %s37
      %p39 = scmp.eq.s32.totalorder %s18, 0
      %p40 = por %p38, %p39
      %s42 = sadd.s32 %s41, 1
      %p45 = scmp.eq.s32.totalorder %s12, 1
      %p46 = scmp.ne.s32.totalorder %s41, %s43
      %p47 = scmp.eq.s32.totalorder %s12, 0
      %p48 = por %p46, %p47
      %p49 = scmp.ne.s32.totalorder %s41, %s43
      %p50 = scmp.eq.s32.totalorder %s17, 1
      %p51 = por %p49, %p50
      %p52 = scmp.ne.s32.totalorder %s43, %s44
      %p53 = scmp.eq.s32.totalorder %s17, 0
      %p54 = por %p52, %p53
      %p55 = scmp.ne.s32.totalorder %s43, %s44
      %p56 = scmp.eq.s32.totalorder %s18, 1
      %p57 = por %p55, %p56
      %p59 = scmp.ne.s32.totalorder %s44, %s58
      %p60 = scmp.eq.s32.totalorder %s18, 0
      %p61 = por %p59, %p60
      %s62 = ssub.s32 %s12, %s19
      %p63 = scmp.eq.s32.totalorder %s62, 0
      %s65 = sadd.s32 %s64, 1
      %s66 = scalar_select %p63, %s64, %s65
      %p69 = pneg %p63
      %p70 = scmp.eq.s32.totalorder %s12, 1
      %p71 = por %p69, %p70
      %p72 = scmp.ne.s32.totalorder %s64, %s67
      %p73 = scmp.eq.s32.totalorder %s12, 0
      %p74 = por %p72, %p73
      %p75 = scmp.ne.s32.totalorder %s64, %s67
      %p76 = scmp.eq.s32.totalorder %s17, 1
      %p77 = por %p75, %p76
      %p78 = scmp.ne.s32.totalorder %s67, %s68
      %p79 = scmp.eq.s32.totalorder %s17, 0
      %p80 = por %p78, %p79
      %p81 = scmp.ne.s32.totalorder %s67, %s68
      %p82 = scmp.eq.s32.totalorder %s18, 1
      %p83 = por %p81, %p82
      %p85 = scmp.ne.s32.totalorder %s68, %s84
      %p86 = scmp.eq.s32.totalorder %s18, 0
      %p87 = por %p85, %p86
      %s88 = ssub.s32 %s12, %s19
      %p89 = scmp.eq.s32.totalorder %s88, 0
      %s91 = sadd.s32 %s90, 1
      %s92 = scalar_select %p89, %s90, %s91
      %p95 = pneg %p89
      %p96 = scmp.eq.s32.totalorder %s12, 1
      %p97 = por %p95, %p96
      %p98 = scmp.ne.s32.totalorder %s90, %s93
      %p99 = scmp.eq.s32.totalorder %s12, 0
      %p100 = por %p98, %p99
      %p101 = scmp.ne.s32.totalorder %s90, %s93
      %p102 = scmp.eq.s32.totalorder %s17, 1
      %p103 = por %p101, %p102
      %p104 = scmp.ne.s32.totalorder %s93, %s94
      %p105 = scmp.eq.s32.totalorder %s17, 0
      %p106 = por %p104, %p105
      %p107 = scmp.ne.s32.totalorder %s93, %s94
      %p108 = scmp.eq.s32.totalorder %s18, 1
      %p109 = por %p107, %p108
      %p111 = scmp.ne.s32.totalorder %s94, %s110
      %p112 = scmp.eq.s32.totalorder %s18, 0
      %p113 = por %p111, %p112
      %p114 = scmp.le.s32.totalorder 1, %s12
      %p115 = scmp.lt.s32.totalorder %s12, 3
      %p116 = pnand %p114, %p115
      %p117 = pneg %p116
      // Predicated region
      $region9: #{tpu_custom_call.1} parent=5 // pred_check
        _
      $region10: #{tpu_custom_call.1} parent=5 // pred_check_branch
        %119 = sbr.rel (%p116) target = $region12
      $region11: #{tpu_custom_call.1} parent=5 // pred_region
        %s120 = ssub.s32 %s12, 1
        // Predicated region
        $region13: #{tpu_custom_call.1} parent=11 // pred_check
          %p121 = pneg %p33
        $region14: #{tpu_custom_call.1} parent=11 // pred_check_branch
          %123 = sbr.rel (%p121) target = $region16
        $region15: #{tpu_custom_call.1} parent=11 // pred_region
          _
        $region16: #{tpu_custom_call.1} parent=11 // pred_fallthru
          _
        // Predicated region
        $region17: #{tpu_custom_call.1} parent=11 // pred_check
          %p124 = pneg %p54
        $region18: #{tpu_custom_call.1} parent=11 // pred_check_branch
          %126 = sbr.rel (%p124) target = $region20
        $region19: #{tpu_custom_call.1} parent=11 // pred_region
          _
        $region20: #{tpu_custom_call.1} parent=11 // pred_fallthru
          _
      $region12: #{tpu_custom_call.1} parent=5 // pred_fallthru
        _
      %p127 = scmp.lt.s32.totalorder %s12, 2
      // Predicated region
      $region21: #{tpu_custom_call.1} parent=5 // pred_check
        %p128 = pneg %p127
      $region22: #{tpu_custom_call.1} parent=5 // pred_check_branch
        %130 = sbr.rel (%p128) target = $region24
      $region23: #{tpu_custom_call.1} parent=5 // pred_region
        // Predicated region
        $region25: #{tpu_custom_call.1} parent=23 // pred_check
          %p131 = pneg %p74
        $region26: #{tpu_custom_call.1} parent=23 // pred_check_branch
          %133 = sbr.rel (%p131) target = $region28
        $region27: #{tpu_custom_call.1} parent=23 // pred_region
          %p134 = scmp.lt.s32.totalorder %s12, 1
          %s135 = scalar_select %p134, %s12, 1
          %s136 = smul.addr %s135, 4
          %s137 = smul.addr %s136, 4
          %s138 = scalar_lea.vmem %s2, %s137
        $region28: #{tpu_custom_call.1} parent=23 // pred_fallthru
          _
      $region24: #{tpu_custom_call.1} parent=5 // pred_fallthru
        _
      %p139 = scmp.le.s32.totalorder 1, %s12
      %p140 = scmp.lt.s32.totalorder %s12, 3
      %p141 = pnand %p139, %p140
      %p142 = pneg %p141
      // Predicated region
      $region29: #{tpu_custom_call.1} parent=5 // pred_check
        _
      $region30: #{tpu_custom_call.1} parent=5 // pred_check_branch
        %144 = sbr.rel (%p141) target = $region32
      $region31: #{tpu_custom_call.1} parent=5 // pred_region
        %s145 = ssub.s32 %s12, 1
        %p146 = pneg %p33
        %p147 = pneg %p30
        %p148 = pneg %p54
        %p149 = pneg %p51
        %p150 = scmp.lt.s32.totalorder %s17, 1
        %s151 = scalar_select %p150, %s17, 1
        %s152 = smul.addr %s151, 4
        %s153 = smul.addr %s152, 4
        %s154 = scalar_lea.vmem %s2, %s153
        %p155 = pneg %p80
        %p156 = pneg %p77
        %p157 = pneg %p106
        %p158 = pneg %p103
        %s159 = sand.u32 %s93, 1
        %s160 = scalar_lea.sflag [#allocation3], %s159
        %s161 = sand.u32 %s93, 1
        %s162 = smul.addr %s161, 12
        %s163 = scalar_lea.vmem [#allocation2], %s162
        %p164 = scmp.lt.s32.totalorder %s17, 1
        %s165 = scalar_select %p164, %s17, 1
        %s166 = smul.addr %s165, 4
        %s167 = smul.addr %s166, 4
        %s168 = scalar_lea.vmem %s2, %s167
        %v169 = vld [vmem:[%s168] sm:$0xff]
        %v170 = vld [vmem:[%s168 + $0x8] sm:$0xf]
        %v171 = vld [vmem:[%s0] sm:$0x3f]
        %s172 = scalar_lea.vmem %s0, 8
        %v173 = vld [vmem:[%s172] sm:$0x3f]
        %v176 = vcombine.high %v169, %v169
        %177 = vrot.lane.b32.xlu0 %v169, 127
        %v178 = vpop.permute.xlu0 %177
        %179 = vrot.lane.b32.xlu0 %v176, 127
        %v180 = vpop.permute.xlu0 %179
        %181 = vrot.lane.b32.xlu0 %v170, 127
        %v182 = vpop.permute.xlu0 %181
        %vm183 = vcmask 1039360
        %v184 = vsel %vm183, %v178, %v180
        %v185 = vsel %vm183, %v180, %v182
        %vm186 = vcmask 31744
        %v188 = vsel %vm186, %v173, 0
        %vm190 = vcmask 1043456
        %v191 = vsel %vm190, %v184, 0
        %v193 = vsel %vm190, %v185, 0
        %v195 = vsel %vm190, %v182, 0
        %197 = vmatprep.subr.mxu0 %v193
        %198 = vmatpush1.msra.mxu0 %v191
        %199 = vmatprep.subr.mxu0 0.0
        %200 = vmatpush1.msra.mxu0 0.0
        %201 = vmatprep.subr.mxu0 0.0
        %202 = vmatpush1.msra.mxu0 0.0
        %203 = vmatprep.subr.mxu0 0.0
        %204 = vmatpush1.msra.mxu0 0.0
        %205 = vmatprep.subr.mxu0 0.0
        %206 = vmatpush1.msra.mxu0 0.0
        %207 = vmatprep.subr.mxu0 0.0
        %208 = vmatpush1.msra.mxu0 0.0
        %209 = vmatprep.subr.mxu0 0.0
        %210 = vmatpush1.msra.mxu0 0.0
        %211 = vmatprep.subr.mxu0 0.0
        %212 = vmatpush1.msra.mxu0 0.0
        %213 = vmatprep.subr.mxu0 0.0
        %214 = vmatpush1.msra.mxu0 0.0
        %215 = vmatprep.subr.mxu0 0.0
        %216 = vmatpush1.msra.mxu0 0.0
        %217 = vmatprep.subr.mxu0 0.0
        %218 = vmatpush1.msra.mxu0 0.0
        %219 = vmatprep.subr.mxu0 0.0
        %220 = vmatpush1.msra.mxu0 0.0
        %221 = vmatprep.subr.mxu0 0.0
        %222 = vmatpush1.msra.mxu0 0.0
        %223 = vmatprep.subr.mxu0 0.0
        %224 = vmatpush1.msra.mxu0 0.0
        %225 = vmatprep.subr.mxu0 0.0
        %226 = vmatpush1.msra.mxu0 0.0
        %227 = vmatprep.subr.mxu0 0.0
        %228 = vmatpush1.msra.mxu0 0.0
        %229 = vmatprep.subr.mxu0 0.0
        %230 = vmatpush1.msra.mxu0 0.0
        %231 = vmatprep.subr.mxu0 0.0
        %232 = vmatpush1.msra.mxu0 0.0
        %233 = vmatprep.subr.mxu0 0.0
        %234 = vmatpush1.msra.mxu0 0.0
        %235 = vmatprep.subr.mxu0 0.0
        %236 = vmatpush1.msra.mxu0 0.0
        %237 = vmatprep.subr.mxu0 0.0
        %238 = vmatpush1.msra.mxu0 0.0
        %239 = vmatprep.subr.mxu0 0.0
        %240 = vmatpush1.msra.mxu0 0.0
        %241 = vmatprep.subr.mxu0 0.0
        %242 = vmatpush1.msra.mxu0 0.0
        %243 = vmatprep.subr.mxu0 0.0
        %244 = vmatpush1.msra.mxu0 0.0
        %245 = vmatprep.subr.mxu0 0.0
        %246 = vmatpush1.msra.mxu0 0.0
        %247 = vmatprep.subr.mxu0 0.0
        %248 = vmatpush1.msra.mxu0 0.0
        %249 = vmatprep.subr.mxu0 0.0
        %250 = vmatpush1.msra.mxu0 0.0
        %251 = vmatprep.subr.mxu0 0.0
        %252 = vmatpush1.msra.mxu0 0.0
        %253 = vmatprep.subr.mxu0 0.0
        %254 = vmatpush1.msra.mxu0 0.0
        %255 = vmatprep.subr.mxu0 0.0
        %256 = vmatpush1.msra.mxu0 0.0
        %257 = vmatprep.subr.mxu0 0.0
        %258 = vmatpush1.msra.mxu0 0.0
        %259 = vmatprep.subr.mxu0 0.0
        %260 = vmatpush1.msra.mxu0 0.0
        %261 = vmatprep.mubr.f32.mxu0 0.0
        %262 = vmatmul.mubr.f32.gmra.mrb[0].mxu0 %v188
        %v263 = vpop.f32.mrb[0].mxu0
        %v264 = vadd.f32 0.0, %v263
        %v265 = vpop.f32.mrb[0].mxu0
        %v266 = vadd.f32 0.0, %v265
        %267 = vdwg.mxu0
        %268 = vmatprep.subr.mxu0 0.0
        %269 = vmatpush1.msra.mxu0 %v195
        %270 = vmatprep.subr.mxu0 0.0
        %271 = vmatpush1.msra.mxu0 0.0
        %272 = vmatprep.subr.mxu0 0.0
        %273 = vmatpush1.msra.mxu0 0.0
        %274 = vmatprep.subr.mxu0 0.0
        %275 = vmatpush1.msra.mxu0 0.0
        %276 = vmatprep.subr.mxu0 0.0
        %277 = vmatpush1.msra.mxu0 0.0
        %278 = vmatprep.subr.mxu0 0.0
        %279 = vmatpush1.msra.mxu0 0.0
        %280 = vmatprep.subr.mxu0 0.0
        %281 = vmatpush1.msra.mxu0 0.0
        %282 = vmatprep.subr.mxu0 0.0
        %283 = vmatpush1.msra.mxu0 0.0
        %284 = vmatprep.subr.mxu0 0.0
        %285 = vmatpush1.msra.mxu0 0.0
        %286 = vmatprep.subr.mxu0 0.0
        %287 = vmatpush1.msra.mxu0 0.0
        %288 = vmatprep.subr.mxu0 0.0
        %289 = vmatpush1.msra.mxu0 0.0
        %290 = vmatprep.subr.mxu0 0.0
        %291 = vmatpush1.msra.mxu0 0.0
        %292 = vmatprep.subr.mxu0 0.0
        %293 = vmatpush1.msra.mxu0 0.0
        %294 = vmatprep.subr.mxu0 0.0
        %295 = vmatpush1.msra.mxu0 0.0
        %296 = vmatprep.subr.mxu0 0.0
        %297 = vmatpush1.msra.mxu0 0.0
        %298 = vmatprep.subr.mxu0 0.0
        %299 = vmatpush1.msra.mxu0 0.0
        %300 = vmatprep.subr.mxu0 0.0
        %301 = vmatpush1.msra.mxu0 0.0
        %302 = vmatprep.subr.mxu0 0.0
        %303 = vmatpush1.msra.mxu0 0.0
        %304 = vmatprep.subr.mxu0 0.0
        %305 = vmatpush1.msra.mxu0 0.0
        %306 = vmatprep.subr.mxu0 0.0
        %307 = vmatpush1.msra.mxu0 0.0
        %308 = vmatprep.subr.mxu0 0.0
        %309 = vmatpush1.msra.mxu0 0.0
        %310 = vmatprep.subr.mxu0 0.0
        %311 = vmatpush1.msra.mxu0 0.0
        %312 = vmatprep.subr.mxu0 0.0
        %313 = vmatpush1.msra.mxu0 0.0
        %314 = vmatprep.subr.mxu0 0.0
        %315 = vmatpush1.msra.mxu0 0.0
        %316 = vmatprep.subr.mxu0 0.0
        %317 = vmatpush1.msra.mxu0 0.0
        %318 = vmatprep.subr.mxu0 0.0
        %319 = vmatpush1.msra.mxu0 0.0
        %320 = vmatprep.subr.mxu0 0.0
        %321 = vmatpush1.msra.mxu0 0.0
        %322 = vmatprep.subr.mxu0 0.0
        %323 = vmatpush1.msra.mxu0 0.0
        %324 = vmatprep.subr.mxu0 0.0
        %325 = vmatpush1.msra.mxu0 0.0
        %326 = vmatprep.subr.mxu0 0.0
        %327 = vmatpush1.msra.mxu0 0.0
        %328 = vmatprep.subr.mxu0 0.0
        %329 = vmatpush1.msra.mxu0 0.0
        %330 = vmatprep.subr.mxu0 0.0
        %331 = vmatpush1.msra.mxu0 0.0
        %332 = vmatprep.mubr.f32.mxu0 0.0
        %333 = vmatmul.mubr.f32.gmra.mrb[0].mxu0 %v188
        %v334 = vpop.f32.mrb[0].mxu0
        %v335 = vadd.f32 0.0, %v334
        %v336 = vpop.f32.mrb[0].mxu0
        %337 = vdwg.mxu0
        %v339 = vsel %vm186, %v171, 0
        %v341 = vsel %vm190, %v169, 0
        %v343 = vsel %vm190, %v176, 0
        %v345 = vsel %vm190, %v170, 0
        %347 = vmatprep.subr.mxu0 %v343
        %348 = vmatpush1.msra.mxu0 %v341
        %349 = vmatprep.subr.mxu0 0.0
        %350 = vmatpush1.msra.mxu0 0.0
        %351 = vmatprep.subr.mxu0 0.0
        %352 = vmatpush1.msra.mxu0 0.0
        %353 = vmatprep.subr.mxu0 0.0
        %354 = vmatpush1.msra.mxu0 0.0
        %355 = vmatprep.subr.mxu0 0.0
        %356 = vmatpush1.msra.mxu0 0.0
        %357 = vmatprep.subr.mxu0 0.0
        %358 = vmatpush1.msra.mxu0 0.0
        %359 = vmatprep.subr.mxu0 0.0
        %360 = vmatpush1.msra.mxu0 0.0
        %361 = vmatprep.subr.mxu0 0.0
        %362 = vmatpush1.msra.mxu0 0.0
        %363 = vmatprep.subr.mxu0 0.0
        %364 = vmatpush1.msra.mxu0 0.0
        %365 = vmatprep.subr.mxu0 0.0
        %366 = vmatpush1.msra.mxu0 0.0
        %367 = vmatprep.subr.mxu0 0.0
        %368 = vmatpush1.msra.mxu0 0.0
        %369 = vmatprep.subr.mxu0 0.0
        %370 = vmatpush1.msra.mxu0 0.0
        %371 = vmatprep.subr.mxu0 0.0
        %372 = vmatpush1.msra.mxu0 0.0
        %373 = vmatprep.subr.mxu0 0.0
        %374 = vmatpush1.msra.mxu0 0.0
        %375 = vmatprep.subr.mxu0 0.0
        %376 = vmatpush1.msra.mxu0 0.0
        %377 = vmatprep.subr.mxu0 0.0
        %378 = vmatpush1.msra.mxu0 0.0
        %379 = vmatprep.subr.mxu0 0.0
        %380 = vmatpush1.msra.mxu0 0.0
        %381 = vmatprep.subr.mxu0 0.0
        %382 = vmatpush1.msra.mxu0 0.0
        %383 = vmatprep.subr.mxu0 0.0
        %384 = vmatpush1.msra.mxu0 0.0
        %385 = vmatprep.subr.mxu0 0.0
        %386 = vmatpush1.msra.mxu0 0.0
        %387 = vmatprep.subr.mxu0 0.0
        %388 = vmatpush1.msra.mxu0 0.0
        %389 = vmatprep.subr.mxu0 0.0
        %390 = vmatpush1.msra.mxu0 0.0
        %391 = vmatprep.subr.mxu0 0.0
        %392 = vmatpush1.msra.mxu0 0.0
        %393 = vmatprep.subr.mxu0 0.0
        %394 = vmatpush1.msra.mxu0 0.0
        %395 = vmatprep.subr.mxu0 0.0
        %396 = vmatpush1.msra.mxu0 0.0
        %397 = vmatprep.subr.mxu0 0.0
        %398 = vmatpush1.msra.mxu0 0.0
        %399 = vmatprep.subr.mxu0 0.0
        %400 = vmatpush1.msra.mxu0 0.0
        %401 = vmatprep.subr.mxu0 0.0
        %402 = vmatpush1.msra.mxu0 0.0
        %403 = vmatprep.subr.mxu0 0.0
        %404 = vmatpush1.msra.mxu0 0.0
        %405 = vmatprep.subr.mxu0 0.0
        %406 = vmatpush1.msra.mxu0 0.0
        %407 = vmatprep.subr.mxu0 0.0
        %408 = vmatpush1.msra.mxu0 0.0
        %409 = vmatprep.subr.mxu0 0.0
        %410 = vmatpush1.msra.mxu0 0.0
        %411 = vmatprep.mubr.f32.mxu0 0.0
        %412 = vmatmul.mubr.f32.gmra.mrb[0].mxu0 %v339
        %v413 = vpop.f32.mrb[0].mxu0
        %v414 = vadd.f32 %v264, %v413
        %v415 = vpop.f32.mrb[0].mxu0
        %v416 = vadd.f32 %v266, %v415
        %417 = vdwg.mxu0
        %418 = vmatprep.subr.mxu0 0.0
        %419 = vmatpush1.msra.mxu0 %v345
        %420 = vmatprep.subr.mxu0 0.0
        %421 = vmatpush1.msra.mxu0 0.0
        %422 = vmatprep.subr.mxu0 0.0
        %423 = vmatpush1.msra.mxu0 0.0
        %424 = vmatprep.subr.mxu0 0.0
        %425 = vmatpush1.msra.mxu0 0.0
        %426 = vmatprep.subr.mxu0 0.0
        %427 = vmatpush1.msra.mxu0 0.0
        %428 = vmatprep.subr.mxu0 0.0
        %429 = vmatpush1.msra.mxu0 0.0
        %430 = vmatprep.subr.mxu0 0.0
        %431 = vmatpush1.msra.mxu0 0.0
        %432 = vmatprep.subr.mxu0 0.0
        %433 = vmatpush1.msra.mxu0 0.0
        %434 = vmatprep.subr.mxu0 0.0
        %435 = vmatpush1.msra.mxu0 0.0
        %436 = vmatprep.subr.mxu0 0.0
        %437 = vmatpush1.msra.mxu0 0.0
        %438 = vmatprep.subr.mxu0 0.0
        %439 = vmatpush1.msra.mxu0 0.0
        %440 = vmatprep.subr.mxu0 0.0
        %441 = vmatpush1.msra.mxu0 0.0
        %442 = vmatprep.subr.mxu0 0.0
        %443 = vmatpush1.msra.mxu0 0.0
        %444 = vmatprep.subr.mxu0 0.0
        %445 = vmatpush1.msra.mxu0 0.0
        %446 = vmatprep.subr.mxu0 0.0
        %447 = vmatpush1.msra.mxu0 0.0
        %448 = vmatprep.subr.mxu0 0.0
        %449 = vmatpush1.msra.mxu0 0.0
        %450 = vmatprep.subr.mxu0 0.0
        %451 = vmatpush1.msra.mxu0 0.0
        %452 = vmatprep.subr.mxu0 0.0
        %453 = vmatpush1.msra.mxu0 0.0
        %454 = vmatprep.subr.mxu0 0.0
        %455 = vmatpush1.msra.mxu0 0.0
        %456 = vmatprep.subr.mxu0 0.0
        %457 = vmatpush1.msra.mxu0 0.0
        %458 = vmatprep.subr.mxu0 0.0
        %459 = vmatpush1.msra.mxu0 0.0
        %460 = vmatprep.subr.mxu0 0.0
        %461 = vmatpush1.msra.mxu0 0.0
        %462 = vmatprep.subr.mxu0 0.0
        %463 = vmatpush1.msra.mxu0 0.0
        %464 = vmatprep.subr.mxu0 0.0
        %465 = vmatpush1.msra.mxu0 0.0
        %466 = vmatprep.subr.mxu0 0.0
        %467 = vmatpush1.msra.mxu0 0.0
        %468 = vmatprep.subr.mxu0 0.0
        %469 = vmatpush1.msra.mxu0 0.0
        %470 = vmatprep.subr.mxu0 0.0
        %471 = vmatpush1.msra.mxu0 0.0
        %472 = vmatprep.subr.mxu0 0.0
        %473 = vmatpush1.msra.mxu0 0.0
        %474 = vmatprep.subr.mxu0 0.0
        %475 = vmatpush1.msra.mxu0 0.0
        %476 = vmatprep.subr.mxu0 0.0
        %477 = vmatpush1.msra.mxu0 0.0
        %478 = vmatprep.subr.mxu0 0.0
        %479 = vmatpush1.msra.mxu0 0.0
        %480 = vmatprep.subr.mxu0 0.0
        %481 = vmatpush1.msra.mxu0 0.0
        %482 = vmatprep.mubr.f32.mxu0 0.0
        %483 = vmatmul.mubr.f32.gmra.mrb[0].mxu0 %v339
        %v484 = vpop.f32.mrb[0].mxu0
        %v485 = vadd.f32 %v335, %v484
        %v486 = vpop.f32.mrb[0].mxu0
        %487 = vdwg.mxu0
        %v488 = vld [vmem:[%s168] sm:$0xff]
        %v489 = vld [vmem:[%s168 + $0x8] sm:$0xf]
        %s490 = scalar_lea.vmem %s0, 16
        %v491 = vld [vmem:[%s490] sm:$0x3f]
        %v494 = vcombine.high %v488, %v488
        %495 = vrot.lane.b32.xlu0 %v488, 126
        %v496 = vpop.permute.xlu0 %495
        %497 = vrot.lane.b32.xlu0 %v494, 126
        %v498 = vpop.permute.xlu0 %497
        %499 = vrot.lane.b32.xlu0 %v489, 126
        %v500 = vpop.permute.xlu0 %499
        %vm501 = vcmask 1031168
        %v502 = vsel %vm501, %v496, %v498
        %v503 = vsel %vm501, %v498, %v500
        %v505 = vsel %vm186, %v491, 0
        %v507 = vsel %vm190, %v502, 0
        %v509 = vsel %vm190, %v503, 0
        %v511 = vsel %vm190, %v500, 0
        %513 = vmatprep.subr.mxu0 %v509
        %514 = vmatpush1.msra.mxu0 %v507
        %515 = vmatprep.subr.mxu0 0.0
        %516 = vmatpush1.msra.mxu0 0.0
        %517 = vmatprep.subr.mxu0 0.0
        %518 = vmatpush1.msra.mxu0 0.0
        %519 = vmatprep.subr.mxu0 0.0
        %520 = vmatpush1.msra.mxu0 0.0
        %521 = vmatprep.subr.mxu0 0.0
        %522 = vmatpush1.msra.mxu0 0.0
        %523 = vmatprep.subr.mxu0 0.0
        %524 = vmatpush1.msra.mxu0 0.0
        %525 = vmatprep.subr.mxu0 0.0
        %526 = vmatpush1.msra.mxu0 0.0
        %527 = vmatprep.subr.mxu0 0.0
        %528 = vmatpush1.msra.mxu0 0.0
        %529 = vmatprep.subr.mxu0 0.0
        %530 = vmatpush1.msra.mxu0 0.0
        %531 = vmatprep.subr.mxu0 0.0
        %532 = vmatpush1.msra.mxu0 0.0
        %533 = vmatprep.subr.mxu0 0.0
        %534 = vmatpush1.msra.mxu0 0.0
        %535 = vmatprep.subr.mxu0 0.0
        %536 = vmatpush1.msra.mxu0 0.0
        %537 = vmatprep.subr.mxu0 0.0
        %538 = vmatpush1.msra.mxu0 0.0
        %539 = vmatprep.subr.mxu0 0.0
        %540 = vmatpush1.msra.mxu0 0.0
        %541 = vmatprep.subr.mxu0 0.0
        %542 = vmatpush1.msra.mxu0 0.0
        %543 = vmatprep.subr.mxu0 0.0
        %544 = vmatpush1.msra.mxu0 0.0
        %545 = vmatprep.subr.mxu0 0.0
        %546 = vmatpush1.msra.mxu0 0.0
        %547 = vmatprep.subr.mxu0 0.0
        %548 = vmatpush1.msra.mxu0 0.0
        %549 = vmatprep.subr.mxu0 0.0
        %550 = vmatpush1.msra.mxu0 0.0
        %551 = vmatprep.subr.mxu0 0.0
        %552 = vmatpush1.msra.mxu0 0.0
        %553 = vmatprep.subr.mxu0 0.0
        %554 = vmatpush1.msra.mxu0 0.0
        %555 = vmatprep.subr.mxu0 0.0
        %556 = vmatpush1.msra.mxu0 0.0
        %557 = vmatprep.subr.mxu0 0.0
        %558 = vmatpush1.msra.mxu0 0.0
        %559 = vmatprep.subr.mxu0 0.0
        %560 = vmatpush1.msra.mxu0 0.0
        %561 = vmatprep.subr.mxu0 0.0
        %562 = vmatpush1.msra.mxu0 0.0
        %563 = vmatprep.subr.mxu0 0.0
        %564 = vmatpush1.msra.mxu0 0.0
        %565 = vmatprep.subr.mxu0 0.0
        %566 = vmatpush1.msra.mxu0 0.0
        %567 = vmatprep.subr.mxu0 0.0
        %568 = vmatpush1.msra.mxu0 0.0
        %569 = vmatprep.subr.mxu0 0.0
        %570 = vmatpush1.msra.mxu0 0.0
        %571 = vmatprep.subr.mxu0 0.0
        %572 = vmatpush1.msra.mxu0 0.0
        %573 = vmatprep.subr.mxu0 0.0
        %574 = vmatpush1.msra.mxu0 0.0
        %575 = vmatprep.subr.mxu0 0.0
        %576 = vmatpush1.msra.mxu0 0.0
        %577 = vmatprep.mubr.f32.mxu0 0.0
        %578 = vmatmul.mubr.f32.gmra.mrb[0].mxu0 %v505
        %v579 = vpop.f32.mrb[0].mxu0
        %v580 = vadd.f32 0.0, %v579
        %v581 = vpop.f32.mrb[0].mxu0
        %v582 = vadd.f32 0.0, %v581
        %583 = vdwg.mxu0
        %584 = vmatprep.subr.mxu0 0.0
        %585 = vmatpush1.msra.mxu0 %v511
        %586 = vmatprep.subr.mxu0 0.0
        %587 = vmatpush1.msra.mxu0 0.0
        %588 = vmatprep.subr.mxu0 0.0
        %589 = vmatpush1.msra.mxu0 0.0
        %590 = vmatprep.subr.mxu0 0.0
        %591 = vmatpush1.msra.mxu0 0.0
        %592 = vmatprep.subr.mxu0 0.0
        %593 = vmatpush1.msra.mxu0 0.0
        %594 = vmatprep.subr.mxu0 0.0
        %595 = vmatpush1.msra.mxu0 0.0
        %596 = vmatprep.subr.mxu0 0.0
        %597 = vmatpush1.msra.mxu0 0.0
        %598 = vmatprep.subr.mxu0 0.0
        %599 = vmatpush1.msra.mxu0 0.0
        %600 = vmatprep.subr.mxu0 0.0
        %601 = vmatpush1.msra.mxu0 0.0
        %602 = vmatprep.subr.mxu0 0.0
        %603 = vmatpush1.msra.mxu0 0.0
        %604 = vmatprep.subr.mxu0 0.0
        %605 = vmatpush1.msra.mxu0 0.0
        %606 = vmatprep.subr.mxu0 0.0
        %607 = vmatpush1.msra.mxu0 0.0
        %608 = vmatprep.subr.mxu0 0.0
        %609 = vmatpush1.msra.mxu0 0.0
        %610 = vmatprep.subr.mxu0 0.0
        %611 = vmatpush1.msra.mxu0 0.0
        %612 = vmatprep.subr.mxu0 0.0
        %613 = vmatpush1.msra.mxu0 0.0
        %614 = vmatprep.subr.mxu0 0.0
        %615 = vmatpush1.msra.mxu0 0.0
        %616 = vmatprep.subr.mxu0 0.0
        %617 = vmatpush1.msra.mxu0 0.0
        %618 = vmatprep.subr.mxu0 0.0
        %619 = vmatpush1.msra.mxu0 0.0
        %620 = vmatprep.subr.mxu0 0.0
        %621 = vmatpush1.msra.mxu0 0.0
        %622 = vmatprep.subr.mxu0 0.0
        %623 = vmatpush1.msra.mxu0 0.0
        %624 = vmatprep.subr.mxu0 0.0
        %625 = vmatpush1.msra.mxu0 0.0
        %626 = vmatprep.subr.mxu0 0.0
        %627 = vmatpush1.msra.mxu0 0.0
        %628 = vmatprep.subr.mxu0 0.0
        %629 = vmatpush1.msra.mxu0 0.0
        %630 = vmatprep.subr.mxu0 0.0
        %631 = vmatpush1.msra.mxu0 0.0
        %632 = vmatprep.subr.mxu0 0.0
        %633 = vmatpush1.msra.mxu0 0.0
        %634 = vmatprep.subr.mxu0 0.0
        %635 = vmatpush1.msra.mxu0 0.0
        %636 = vmatprep.subr.mxu0 0.0
        %637 = vmatpush1.msra.mxu0 0.0
        %638 = vmatprep.subr.mxu0 0.0
        %639 = vmatpush1.msra.mxu0 0.0
        %640 = vmatprep.subr.mxu0 0.0
        %641 = vmatpush1.msra.mxu0 0.0
        %642 = vmatprep.subr.mxu0 0.0
        %643 = vmatpush1.msra.mxu0 0.0
        %644 = vmatprep.subr.mxu0 0.0
        %645 = vmatpush1.msra.mxu0 0.0
        %646 = vmatprep.subr.mxu0 0.0
        %647 = vmatpush1.msra.mxu0 0.0
        %648 = vmatprep.mubr.f32.mxu0 0.0
        %649 = vmatmul.mubr.f32.gmra.mrb[0].mxu0 %v505
        %v650 = vpop.f32.mrb[0].mxu0
        %v651 = vadd.f32 0.0, %v650
        %v652 = vpop.f32.mrb[0].mxu0
        %653 = vdwg.mxu0
        %v654 = vadd.f32 %v414, %v580
        %v655 = vadd.f32 %v416, %v582
        %v656 = vadd.f32 %v485, %v651
        %v657 = vld [vmem:[%s168] sm:$0xff]
        %v658 = vld [vmem:[%s168 + $0x8] sm:$0xf]
        %s659 = scalar_lea.vmem %s0, 24
        %v660 = vld [vmem:[%s659] sm:$0x3f]
        %v663 = vcombine.high %v657, %v657
        %664 = vrot.lane.b32.xlu0 %v657, 125
        %v665 = vpop.permute.xlu0 %664
        %666 = vrot.lane.b32.xlu0 %v663, 125
        %v667 = vpop.permute.xlu0 %666
        %668 = vrot.lane.b32.xlu0 %v658, 125
        %v669 = vpop.permute.xlu0 %668
        %vm670 = vcmask 1022976
        %v671 = vsel %vm670, %v665, %v667
        %v672 = vsel %vm670, %v667, %v669
        %v674 = vsel %vm186, %v660, 0
        %v676 = vsel %vm190, %v671, 0
        %v678 = vsel %vm190, %v672, 0
        %v680 = vsel %vm190, %v669, 0
        %682 = vmatprep.subr.mxu0 %v678
        %683 = vmatpush1.msra.mxu0 %v676
        %684 = vmatprep.subr.mxu0 0.0
        %685 = vmatpush1.msra.mxu0 0.0
        %686 = vmatprep.subr.mxu0 0.0
        %687 = vmatpush1.msra.mxu0 0.0
        %688 = vmatprep.subr.mxu0 0.0
        %689 = vmatpush1.msra.mxu0 0.0
        %690 = vmatprep.subr.mxu0 0.0
        %691 = vmatpush1.msra.mxu0 0.0
        %692 = vmatprep.subr.mxu0 0.0
        %693 = vmatpush1.msra.mxu0 0.0
        %694 = vmatprep.subr.mxu0 0.0
        %695 = vmatpush1.msra.mxu0 0.0
        %696 = vmatprep.subr.mxu0 0.0
        %697 = vmatpush1.msra.mxu0 0.0
        %698 = vmatprep.subr.mxu0 0.0
        %699 = vmatpush1.msra.mxu0 0.0
        %700 = vmatprep.subr.mxu0 0.0
        %701 = vmatpush1.msra.mxu0 0.0
        %702 = vmatprep.subr.mxu0 0.0
        %703 = vmatpush1.msra.mxu0 0.0
        %704 = vmatprep.subr.mxu0 0.0
        %705 = vmatpush1.msra.mxu0 0.0
        %706 = vmatprep.subr.mxu0 0.0
        %707 = vmatpush1.msra.mxu0 0.0
        %708 = vmatprep.subr.mxu0 0.0
        %709 = vmatpush1.msra.mxu0 0.0
        %710 = vmatprep.subr.mxu0 0.0
        %711 = vmatpush1.msra.mxu0 0.0
        %712 = vmatprep.subr.mxu0 0.0
        %713 = vmatpush1.msra.mxu0 0.0
        %714 = vmatprep.subr.mxu0 0.0
        %715 = vmatpush1.msra.mxu0 0.0
        %716 = vmatprep.subr.mxu0 0.0
        %717 = vmatpush1.msra.mxu0 0.0
        %718 = vmatprep.subr.mxu0 0.0
        %719 = vmatpush1.msra.mxu0 0.0
        %720 = vmatprep.subr.mxu0 0.0
        %721 = vmatpush1.msra.mxu0 0.0
        %722 = vmatprep.subr.mxu0 0.0
        %723 = vmatpush1.msra.mxu0 0.0
        %724 = vmatprep.subr.mxu0 0.0
        %725 = vmatpush1.msra.mxu0 0.0
        %726 = vmatprep.subr.mxu0 0.0
        %727 = vmatpush1.msra.mxu0 0.0
        %728 = vmatprep.subr.mxu0 0.0
        %729 = vmatpush1.msra.mxu0 0.0
        %730 = vmatprep.subr.mxu0 0.0
        %731 = vmatpush1.msra.mxu0 0.0
        %732 = vmatprep.subr.mxu0 0.0
        %733 = vmatpush1.msra.mxu0 0.0
        %734 = vmatprep.subr.mxu0 0.0
        %735 = vmatpush1.msra.mxu0 0.0
        %736 = vmatprep.subr.mxu0 0.0
        %737 = vmatpush1.msra.mxu0 0.0
        %738 = vmatprep.subr.mxu0 0.0
        %739 = vmatpush1.msra.mxu0 0.0
        %740 = vmatprep.subr.mxu0 0.0
        %741 = vmatpush1.msra.mxu0 0.0
        %742 = vmatprep.subr.mxu0 0.0
        %743 = vmatpush1.msra.mxu0 0.0
        %744 = vmatprep.subr.mxu0 0.0
        %745 = vmatpush1.msra.mxu0 0.0
        %746 = vmatprep.mubr.f32.mxu0 0.0
        %747 = vmatmul.mubr.f32.gmra.mrb[0].mxu0 %v674
        %v748 = vpop.f32.mrb[0].mxu0
        %v749 = vadd.f32 0.0, %v748
        %v750 = vpop.f32.mrb[0].mxu0
        %v751 = vadd.f32 0.0, %v750
        %752 = vdwg.mxu0
        %753 = vmatprep.subr.mxu0 0.0
        %754 = vmatpush1.msra.mxu0 %v680
        %755 = vmatprep.subr.mxu0 0.0
        %756 = vmatpush1.msra.mxu0 0.0
        %757 = vmatprep.subr.mxu0 0.0
        %758 = vmatpush1.msra.mxu0 0.0
        %759 = vmatprep.subr.mxu0 0.0
        %760 = vmatpush1.msra.mxu0 0.0
        %761 = vmatprep.subr.mxu0 0.0
        %762 = vmatpush1.msra.mxu0 0.0
        %763 = vmatprep.subr.mxu0 0.0
        %764 = vmatpush1.msra.mxu0 0.0
        %765 = vmatprep.subr.mxu0 0.0
        %766 = vmatpush1.msra.mxu0 0.0
        %767 = vmatprep.subr.mxu0 0.0
        %768 = vmatpush1.msra.mxu0 0.0
        %769 = vmatprep.subr.mxu0 0.0
        %770 = vmatpush1.msra.mxu0 0.0
        %771 = vmatprep.subr.mxu0 0.0
        %772 = vmatpush1.msra.mxu0 0.0
        %773 = vmatprep.subr.mxu0 0.0
        %774 = vmatpush1.msra.mxu0 0.0
        %775 = vmatprep.subr.mxu0 0.0
        %776 = vmatpush1.msra.mxu0 0.0
        %777 = vmatprep.subr.mxu0 0.0
        %778 = vmatpush1.msra.mxu0 0.0
        %779 = vmatprep.subr.mxu0 0.0
        %780 = vmatpush1.msra.mxu0 0.0
        %781 = vmatprep.subr.mxu0 0.0
        %782 = vmatpush1.msra.mxu0 0.0
        %783 = vmatprep.subr.mxu0 0.0
        %784 = vmatpush1.msra.mxu0 0.0
        %785 = vmatprep.subr.mxu0 0.0
        %786 = vmatpush1.msra.mxu0 0.0
        %787 = vmatprep.subr.mxu0 0.0
        %788 = vmatpush1.msra.mxu0 0.0
        %789 = vmatprep.subr.mxu0 0.0
        %790 = vmatpush1.msra.mxu0 0.0
        %791 = vmatprep.subr.mxu0 0.0
        %792 = vmatpush1.msra.mxu0 0.0
        %793 = vmatprep.subr.mxu0 0.0
        %794 = vmatpush1.msra.mxu0 0.0
        %795 = vmatprep.subr.mxu0 0.0
        %796 = vmatpush1.msra.mxu0 0.0
        %797 = vmatprep.subr.mxu0 0.0
        %798 = vmatpush1.msra.mxu0 0.0
        %799 = vmatprep.subr.mxu0 0.0
        %800 = vmatpush1.msra.mxu0 0.0
        %801 = vmatprep.subr.mxu0 0.0
        %802 = vmatpush1.msra.mxu0 0.0
        %803 = vmatprep.subr.mxu0 0.0
        %804 = vmatpush1.msra.mxu0 0.0
        %805 = vmatprep.subr.mxu0 0.0
        %806 = vmatpush1.msra.mxu0 0.0
        %807 = vmatprep.subr.mxu0 0.0
        %808 = vmatpush1.msra.mxu0 0.0
        %809 = vmatprep.subr.mxu0 0.0
        %810 = vmatpush1.msra.mxu0 0.0
        %811 = vmatprep.subr.mxu0 0.0
        %812 = vmatpush1.msra.mxu0 0.0
        %813 = vmatprep.subr.mxu0 0.0
        %814 = vmatpush1.msra.mxu0 0.0
        %815 = vmatprep.subr.mxu0 0.0
        %816 = vmatpush1.msra.mxu0 0.0
        %817 = vmatprep.mubr.f32.mxu0 0.0
        %818 = vmatmul.mubr.f32.gmra.mrb[0].mxu0 %v674
        %v819 = vpop.f32.mrb[0].mxu0
        %v820 = vadd.f32 0.0, %v819
        %v821 = vpop.f32.mrb[0].mxu0
        %822 = vdwg.mxu0
        %v823 = vadd.f32 %v654, %v749
        %v824 = vadd.f32 %v655, %v751
        %v825 = vadd.f32 %v656, %v820
        %v826 = vld [vmem:[%s168] sm:$0xff]
        %v827 = vld [vmem:[%s168 + $0x8] sm:$0xf]
        %s828 = scalar_lea.vmem %s0, 32
        %v829 = vld [vmem:[%s828] sm:$0x3f]
        %v832 = vcombine.high %v826, %v826
        %833 = vrot.lane.b32.xlu0 %v826, 124
        %v834 = vpop.permute.xlu0 %833
        %835 = vrot.lane.b32.xlu0 %v832, 124
        %v836 = vpop.permute.xlu0 %835
        %837 = vrot.lane.b32.xlu0 %v827, 124
        %v838 = vpop.permute.xlu0 %837
        %vm839 = vcmask 1014784
        %v840 = vsel %vm839, %v834, %v836
        %v841 = vsel %vm839, %v836, %v838
        %v843 = vsel %vm186, %v829, 0
        %v845 = vsel %vm190, %v840, 0
        %v847 = vsel %vm190, %v841, 0
        %v849 = vsel %vm190, %v838, 0
        %851 = vmatprep.subr.mxu0 %v847
        %852 = vmatpush1.msra.mxu0 %v845
        %853 = vmatprep.subr.mxu0 0.0
        %854 = vmatpush1.msra.mxu0 0.0
        %855 = vmatprep.subr.mxu0 0.0
        %856 = vmatpush1.msra.mxu0 0.0
        %857 = vmatprep.subr.mxu0 0.0
        %858 = vmatpush1.msra.mxu0 0.0
        %859 = vmatprep.subr.mxu0 0.0
        %860 = vmatpush1.msra.mxu0 0.0
        %861 = vmatprep.subr.mxu0 0.0
        %862 = vmatpush1.msra.mxu0 0.0
        %863 = vmatprep.subr.mxu0 0.0
        %864 = vmatpush1.msra.mxu0 0.0
        %865 = vmatprep.subr.mxu0 0.0
        %866 = vmatpush1.msra.mxu0 0.0
        %867 = vmatprep.subr.mxu0 0.0
        %868 = vmatpush1.msra.mxu0 0.0
        %869 = vmatprep.subr.mxu0 0.0
        %870 = vmatpush1.msra.mxu0 0.0
        %871 = vmatprep.subr.mxu0 0.0
        %872 = vmatpush1.msra.mxu0 0.0
        %873 = vmatprep.subr.mxu0 0.0
        %874 = vmatpush1.msra.mxu0 0.0
        %875 = vmatprep.subr.mxu0 0.0
        %876 = vmatpush1.msra.mxu0 0.0
        %877 = vmatprep.subr.mxu0 0.0
        %878 = vmatpush1.msra.mxu0 0.0
        %879 = vmatprep.subr.mxu0 0.0
        %880 = vmatpush1.msra.mxu0 0.0
        %881 = vmatprep.subr.mxu0 0.0
        %882 = vmatpush1.msra.mxu0 0.0
        %883 = vmatprep.subr.mxu0 0.0
        %884 = vmatpush1.msra.mxu0 0.0
        %885 = vmatprep.subr.mxu0 0.0
        %886 = vmatpush1.msra.mxu0 0.0
        %887 = vmatprep.subr.mxu0 0.0
        %888 = vmatpush1.msra.mxu0 0.0
        %889 = vmatprep.subr.mxu0 0.0
        %890 = vmatpush1.msra.mxu0 0.0
        %891 = vmatprep.subr.mxu0 0.0
        %892 = vmatpush1.msra.mxu0 0.0
        %893 = vmatprep.subr.mxu0 0.0
        %894 = vmatpush1.msra.mxu0 0.0
        %895 = vmatprep.subr.mxu0 0.0
        %896 = vmatpush1.msra.mxu0 0.0
        %897 = vmatprep.subr.mxu0 0.0
        %898 = vmatpush1.msra.mxu0 0.0
        %899 = vmatprep.subr.mxu0 0.0
        %900 = vmatpush1.msra.mxu0 0.0
        %901 = vmatprep.subr.mxu0 0.0
        %902 = vmatpush1.msra.mxu0 0.0
        %903 = vmatprep.subr.mxu0 0.0
        %904 = vmatpush1.msra.mxu0 0.0
        %905 = vmatprep.subr.mxu0 0.0
        %906 = vmatpush1.msra.mxu0 0.0
        %907 = vmatprep.subr.mxu0 0.0
        %908 = vmatpush1.msra.mxu0 0.0
        %909 = vmatprep.subr.mxu0 0.0
        %910 = vmatpush1.msra.mxu0 0.0
        %911 = vmatprep.subr.mxu0 0.0
        %912 = vmatpush1.msra.mxu0 0.0
        %913 = vmatprep.subr.mxu0 0.0
        %914 = vmatpush1.msra.mxu0 0.0
        %915 = vmatprep.mubr.f32.mxu0 0.0
        %916 = vmatmul.mubr.f32.gmra.mrb[0].mxu0 %v843
        %v917 = vpop.f32.mrb[0].mxu0
        %v918 = vadd.f32 0.0, %v917
        %v919 = vpop.f32.mrb[0].mxu0
        %v920 = vadd.f32 0.0, %v919
        %921 = vdwg.mxu0
        %922 = vmatprep.subr.mxu0 0.0
        %923 = vmatpush1.msra.mxu0 %v849
        %924 = vmatprep.subr.mxu0 0.0
        %925 = vmatpush1.msra.mxu0 0.0
        %926 = vmatprep.subr.mxu0 0.0
        %927 = vmatpush1.msra.mxu0 0.0
        %928 = vmatprep.subr.mxu0 0.0
        %929 = vmatpush1.msra.mxu0 0.0
        %930 = vmatprep.subr.mxu0 0.0
        %931 = vmatpush1.msra.mxu0 0.0
        %932 = vmatprep.subr.mxu0 0.0
        %933 = vmatpush1.msra.mxu0 0.0
        %934 = vmatprep.subr.mxu0 0.0
        %935 = vmatpush1.msra.mxu0 0.0
        %936 = vmatprep.subr.mxu0 0.0
        %937 = vmatpush1.msra.mxu0 0.0
        %938 = vmatprep.subr.mxu0 0.0
        %939 = vmatpush1.msra.mxu0 0.0
        %940 = vmatprep.subr.mxu0 0.0
        %941 = vmatpush1.msra.mxu0 0.0
        %942 = vmatprep.subr.mxu0 0.0
        %943 = vmatpush1.msra.mxu0 0.0
        %944 = vmatprep.subr.mxu0 0.0
        %945 = vmatpush1.msra.mxu0 0.0
        %946 = vmatprep.subr.mxu0 0.0
        %947 = vmatpush1.msra.mxu0 0.0
        %948 = vmatprep.subr.mxu0 0.0
        %949 = vmatpush1.msra.mxu0 0.0
        %950 = vmatprep.subr.mxu0 0.0
        %951 = vmatpush1.msra.mxu0 0.0
        %952 = vmatprep.subr.mxu0 0.0
        %953 = vmatpush1.msra.mxu0 0.0
        %954 = vmatprep.subr.mxu0 0.0
        %955 = vmatpush1.msra.mxu0 0.0
        %956 = vmatprep.subr.mxu0 0.0
        %957 = vmatpush1.msra.mxu0 0.0
        %958 = vmatprep.subr.mxu0 0.0
        %959 = vmatpush1.msra.mxu0 0.0
        %960 = vmatprep.subr.mxu0 0.0
        %961 = vmatpush1.msra.mxu0 0.0
        %962 = vmatprep.subr.mxu0 0.0
        %963 = vmatpush1.msra.mxu0 0.0
        %964 = vmatprep.subr.mxu0 0.0
        %965 = vmatpush1.msra.mxu0 0.0
        %966 = vmatprep.subr.mxu0 0.0
        %967 = vmatpush1.msra.mxu0 0.0
        %968 = vmatprep.subr.mxu0 0.0
        %969 = vmatpush1.msra.mxu0 0.0
        %970 = vmatprep.subr.mxu0 0.0
        %971 = vmatpush1.msra.mxu0 0.0
        %972 = vmatprep.subr.mxu0 0.0
        %973 = vmatpush1.msra.mxu0 0.0
        %974 = vmatprep.subr.mxu0 0.0
        %975 = vmatpush1.msra.mxu0 0.0
        %976 = vmatprep.subr.mxu0 0.0
        %977 = vmatpush1.msra.mxu0 0.0
        %978 = vmatprep.subr.mxu0 0.0
        %979 = vmatpush1.msra.mxu0 0.0
        %980 = vmatprep.subr.mxu0 0.0
        %981 = vmatpush1.msra.mxu0 0.0
        %982 = vmatprep.subr.mxu0 0.0
        %983 = vmatpush1.msra.mxu0 0.0
        %984 = vmatprep.subr.mxu0 0.0
        %985 = vmatpush1.msra.mxu0 0.0
        %986 = vmatprep.mubr.f32.mxu0 0.0
        %987 = vmatmul.mubr.f32.gmra.mrb[0].mxu0 %v843
        %v988 = vpop.f32.mrb[0].mxu0
        %v989 = vadd.f32 0.0, %v988
        %v990 = vpop.f32.mrb[0].mxu0
        %991 = vdwg.mxu0
        %v992 = vadd.f32 %v823, %v918
        %v993 = vadd.f32 %v824, %v920
        %v994 = vadd.f32 %v825, %v989
        %v995 = vld [vmem:[%s168] sm:$0xff]
        %v996 = vld [vmem:[%s168 + $0x8] sm:$0xf]
        %s997 = scalar_lea.vmem %s0, 40
        %v998 = vld [vmem:[%s997] sm:$0x3f]
        %v1001 = vcombine.high %v995, %v995
        %1002 = vrot.lane.b32.xlu0 %v995, 123
        %v1003 = vpop.permute.xlu0 %1002
        %1004 = vrot.lane.b32.xlu0 %v1001, 123
        %v1005 = vpop.permute.xlu0 %1004
        %1006 = vrot.lane.b32.xlu0 %v996, 123
        %v1007 = vpop.permute.xlu0 %1006
        %vm1008 = vcmask 1006592
        %v1009 = vsel %vm1008, %v1003, %v1005
        %v1010 = vsel %vm1008, %v1005, %v1007
        %v1012 = vsel %vm186, %v998, 0
        %v1014 = vsel %vm190, %v1009, 0
        %v1016 = vsel %vm190, %v1010, 0
        %v1018 = vsel %vm190, %v1007, 0
        %1020 = vmatprep.subr.mxu0 %v1016
        %1021 = vmatpush1.msra.mxu0 %v1014
        %1022 = vmatprep.subr.mxu0 0.0
        %1023 = vmatpush1.msra.mxu0 0.0
        %1024 = vmatprep.subr.mxu0 0.0
        %1025 = vmatpush1.msra.mxu0 0.0
        %1026 = vmatprep.subr.mxu0 0.0
        %1027 = vmatpush1.msra.mxu0 0.0
        %1028 = vmatprep.subr.mxu0 0.0
        %1029 = vmatpush1.msra.mxu0 0.0
        %1030 = vmatprep.subr.mxu0 0.0
        %1031 = vmatpush1.msra.mxu0 0.0
        %1032 = vmatprep.subr.mxu0 0.0
        %1033 = vmatpush1.msra.mxu0 0.0
        %1034 = vmatprep.subr.mxu0 0.0
        %1035 = vmatpush1.msra.mxu0 0.0
        %1036 = vmatprep.subr.mxu0 0.0
        %1037 = vmatpush1.msra.mxu0 0.0
        %1038 = vmatprep.subr.mxu0 0.0
        %1039 = vmatpush1.msra.mxu0 0.0
        %1040 = vmatprep.subr.mxu0 0.0
        %1041 = vmatpush1.msra.mxu0 0.0
        %1042 = vmatprep.subr.mxu0 0.0
        %1043 = vmatpush1.msra.mxu0 0.0
        %1044 = vmatprep.subr.mxu0 0.0
        %1045 = vmatpush1.msra.mxu0 0.0
        %1046 = vmatprep.subr.mxu0 0.0
        %1047 = vmatpush1.msra.mxu0 0.0
        %1048 = vmatprep.subr.mxu0 0.0
        %1049 = vmatpush1.msra.mxu0 0.0
        %1050 = vmatprep.subr.mxu0 0.0
        %1051 = vmatpush1.msra.mxu0 0.0
        %1052 = vmatprep.subr.mxu0 0.0
        %1053 = vmatpush1.msra.mxu0 0.0
        %1054 = vmatprep.subr.mxu0 0.0
        %1055 = vmatpush1.msra.mxu0 0.0
        %1056 = vmatprep.subr.mxu0 0.0
        %1057 = vmatpush1.msra.mxu0 0.0
        %1058 = vmatprep.subr.mxu0 0.0
        %1059 = vmatpush1.msra.mxu0 0.0
        %1060 = vmatprep.subr.mxu0 0.0
        %1061 = vmatpush1.msra.mxu0 0.0
        %1062 = vmatprep.subr.mxu0 0.0
        %1063 = vmatpush1.msra.mxu0 0.0
        %1064 = vmatprep.subr.mxu0 0.0
        %1065 = vmatpush1.msra.mxu0 0.0
        %1066 = vmatprep.subr.mxu0 0.0
        %1067 = vmatpush1.msra.mxu0 0.0
        %1068 = vmatprep.subr.mxu0 0.0
        %1069 = vmatpush1.msra.mxu0 0.0
        %1070 = vmatprep.subr.mxu0 0.0
        %1071 = vmatpush1.msra.mxu0 0.0
        %1072 = vmatprep.subr.mxu0 0.0
        %1073 = vmatpush1.msra.mxu0 0.0
        %1074 = vmatprep.subr.mxu0 0.0
        %1075 = vmatpush1.msra.mxu0 0.0
        %1076 = vmatprep.subr.mxu0 0.0
        %1077 = vmatpush1.msra.mxu0 0.0
        %1078 = vmatprep.subr.mxu0 0.0
        %1079 = vmatpush1.msra.mxu0 0.0
        %1080 = vmatprep.subr.mxu0 0.0
        %1081 = vmatpush1.msra.mxu0 0.0
        %1082 = vmatprep.subr.mxu0 0.0
        %1083 = vmatpush1.msra.mxu0 0.0
        %1084 = vmatprep.mubr.f32.mxu0 0.0
        %1085 = vmatmul.mubr.f32.gmra.mrb[0].mxu0 %v1012
        %v1086 = vpop.f32.mrb[0].mxu0
        %v1087 = vadd.f32 0.0, %v1086
        %v1088 = vpop.f32.mrb[0].mxu0
        %v1089 = vadd.f32 0.0, %v1088
        %1090 = vdwg.mxu0
        %1091 = vmatprep.subr.mxu0 0.0
        %1092 = vmatpush1.msra.mxu0 %v1018
        %1093 = vmatprep.subr.mxu0 0.0
        %1094 = vmatpush1.msra.mxu0 0.0
        %1095 = vmatprep.subr.mxu0 0.0
        %1096 = vmatpush1.msra.mxu0 0.0
        %1097 = vmatprep.subr.mxu0 0.0
        %1098 = vmatpush1.msra.mxu0 0.0
        %1099 = vmatprep.subr.mxu0 0.0
        %1100 = vmatpush1.msra.mxu0 0.0
        %1101 = vmatprep.subr.mxu0 0.0
        %1102 = vmatpush1.msra.mxu0 0.0
        %1103 = vmatprep.subr.mxu0 0.0
        %1104 = vmatpush1.msra.mxu0 0.0
        %1105 = vmatprep.subr.mxu0 0.0
        %1106 = vmatpush1.msra.mxu0 0.0
        %1107 = vmatprep.subr.mxu0 0.0
        %1108 = vmatpush1.msra.mxu0 0.0
        %1109 = vmatprep.subr.mxu0 0.0
        %1110 = vmatpush1.msra.mxu0 0.0
        %1111 = vmatprep.subr.mxu0 0.0
        %1112 = vmatpush1.msra.mxu0 0.0
        %1113 = vmatprep.subr.mxu0 0.0
        %1114 = vmatpush1.msra.mxu0 0.0
        %1115 = vmatprep.subr.mxu0 0.0
        %1116 = vmatpush1.msra.mxu0 0.0
        %1117 = vmatprep.subr.mxu0 0.0
        %1118 = vmatpush1.msra.mxu0 0.0
        %1119 = vmatprep.subr.mxu0 0.0
        %1120 = vmatpush1.msra.mxu0 0.0
        %1121 = vmatprep.subr.mxu0 0.0
        %1122 = vmatpush1.msra.mxu0 0.0
        %1123 = vmatprep.subr.mxu0 0.0
        %1124 = vmatpush1.msra.mxu0 0.0
        %1125 = vmatprep.subr.mxu0 0.0
        %1126 = vmatpush1.msra.mxu0 0.0
        %1127 = vmatprep.subr.mxu0 0.0
        %1128 = vmatpush1.msra.mxu0 0.0
        %1129 = vmatprep.subr.mxu0 0.0
        %1130 = vmatpush1.msra.mxu0 0.0
        %1131 = vmatprep.subr.mxu0 0.0
        %1132 = vmatpush1.msra.mxu0 0.0
        %1133 = vmatprep.subr.mxu0 0.0
        %1134 = vmatpush1.msra.mxu0 0.0
        %1135 = vmatprep.subr.mxu0 0.0
        %1136 = vmatpush1.msra.mxu0 0.0
        %1137 = vmatprep.subr.mxu0 0.0
        %1138 = vmatpush1.msra.mxu0 0.0
        %1139 = vmatprep.subr.mxu0 0.0
        %1140 = vmatpush1.msra.mxu0 0.0
        %1141 = vmatprep.subr.mxu0 0.0
        %1142 = vmatpush1.msra.mxu0 0.0
        %1143 = vmatprep.subr.mxu0 0.0
        %1144 = vmatpush1.msra.mxu0 0.0
        %1145 = vmatprep.subr.mxu0 0.0
        %1146 = vmatpush1.msra.mxu0 0.0
        %1147 = vmatprep.subr.mxu0 0.0
        %1148 = vmatpush1.msra.mxu0 0.0
        %1149 = vmatprep.subr.mxu0 0.0
        %1150 = vmatpush1.msra.mxu0 0.0
        %1151 = vmatprep.subr.mxu0 0.0
        %1152 = vmatpush1.msra.mxu0 0.0
        %1153 = vmatprep.subr.mxu0 0.0
        %1154 = vmatpush1.msra.mxu0 0.0
        %1155 = vmatprep.mubr.f32.mxu0 0.0
        %1156 = vmatmul.mubr.f32.gmra.mrb[0].mxu0 %v1012
        %v1157 = vpop.f32.mrb[0].mxu0
        %v1158 = vadd.f32 0.0, %v1157
        %v1159 = vpop.f32.mrb[0].mxu0
        %1160 = vdwg.mxu0
        %v1161 = vadd.f32 %v992, %v1087
        %v1162 = vadd.f32 %v993, %v1089
        %v1163 = vadd.f32 %v994, %v1158
        %v1164 = vld [vmem:[%s168] sm:$0xff]
        %v1165 = vld [vmem:[%s168 + $0x8] sm:$0xf]
        %s1166 = scalar_lea.vmem %s0, 48
        %v1167 = vld [vmem:[%s1166] sm:$0x3f]
        %v1170 = vcombine.high %v1164, %v1164
        %1171 = vrot.lane.b32.xlu0 %v1164, 122
        %v1172 = vpop.permute.xlu0 %1171
        %1173 = vrot.lane.b32.xlu0 %v1170, 122
        %v1174 = vpop.permute.xlu0 %1173
        %1175 = vrot.lane.b32.xlu0 %v1165, 122
        %v1176 = vpop.permute.xlu0 %1175
        %vm1177 = vcmask 998400
        %v1178 = vsel %vm1177, %v1172, %v1174
        %v1179 = vsel %vm1177, %v1174, %v1176
        %v1181 = vsel %vm186, %v1167, 0
        %v1183 = vsel %vm190, %v1178, 0
        %v1185 = vsel %vm190, %v1179, 0
        %v1187 = vsel %vm190, %v1176, 0
        %1189 = vmatprep.subr.mxu0 %v1185
        %1190 = vmatpush1.msra.mxu0 %v1183
        %1191 = vmatprep.subr.mxu0 0.0
        %1192 = vmatpush1.msra.mxu0 0.0
        %1193 = vmatprep.subr.mxu0 0.0
        %1194 = vmatpush1.msra.mxu0 0.0
        %1195 = vmatprep.subr.mxu0 0.0
        %1196 = vmatpush1.msra.mxu0 0.0
        %1197 = vmatprep.subr.mxu0 0.0
        %1198 = vmatpush1.msra.mxu0 0.0
        %1199 = vmatprep.subr.mxu0 0.0
        %1200 = vmatpush1.msra.mxu0 0.0
        %1201 = vmatprep.subr.mxu0 0.0
        %1202 = vmatpush1.msra.mxu0 0.0
        %1203 = vmatprep.subr.mxu0 0.0
        %1204 = vmatpush1.msra.mxu0 0.0
        %1205 = vmatprep.subr.mxu0 0.0
        %1206 = vmatpush1.msra.mxu0 0.0
        %1207 = vmatprep.subr.mxu0 0.0
        %1208 = vmatpush1.msra.mxu0 0.0
        %1209 = vmatprep.subr.mxu0 0.0
        %1210 = vmatpush1.msra.mxu0 0.0
        %1211 = vmatprep.subr.mxu0 0.0
        %1212 = vmatpush1.msra.mxu0 0.0
        %1213 = vmatprep.subr.mxu0 0.0
        %1214 = vmatpush1.msra.mxu0 0.0
        %1215 = vmatprep.subr.mxu0 0.0
        %1216 = vmatpush1.msra.mxu0 0.0
        %1217 = vmatprep.subr.mxu0 0.0
        %1218 = vmatpush1.msra.mxu0 0.0
        %1219 = vmatprep.subr.mxu0 0.0
        %1220 = vmatpush1.msra.mxu0 0.0
        %1221 = vmatprep.subr.mxu0 0.0
        %1222 = vmatpush1.msra.mxu0 0.0
        %1223 = vmatprep.subr.mxu0 0.0
        %1224 = vmatpush1.msra.mxu0 0.0
        %1225 = vmatprep.subr.mxu0 0.0
        %1226 = vmatpush1.msra.mxu0 0.0
        %1227 = vmatprep.subr.mxu0 0.0
        %1228 = vmatpush1.msra.mxu0 0.0
        %1229 = vmatprep.subr.mxu0 0.0
        %1230 = vmatpush1.msra.mxu0 0.0
        %1231 = vmatprep.subr.mxu0 0.0
        %1232 = vmatpush1.msra.mxu0 0.0
        %1233 = vmatprep.subr.mxu0 0.0
        %1234 = vmatpush1.msra.mxu0 0.0
        %1235 = vmatprep.subr.mxu0 0.0
        %1236 = vmatpush1.msra.mxu0 0.0
        %1237 = vmatprep.subr.mxu0 0.0
        %1238 = vmatpush1.msra.mxu0 0.0
        %1239 = vmatprep.subr.mxu0 0.0
        %1240 = vmatpush1.msra.mxu0 0.0
        %1241 = vmatprep.subr.mxu0 0.0
        %1242 = vmatpush1.msra.mxu0 0.0
        %1243 = vmatprep.subr.mxu0 0.0
        %1244 = vmatpush1.msra.mxu0 0.0
        %1245 = vmatprep.subr.mxu0 0.0
        %1246 = vmatpush1.msra.mxu0 0.0
        %1247 = vmatprep.subr.mxu0 0.0
        %1248 = vmatpush1.msra.mxu0 0.0
        %1249 = vmatprep.subr.mxu0 0.0
        %1250 = vmatpush1.msra.mxu0 0.0
        %1251 = vmatprep.subr.mxu0 0.0
        %1252 = vmatpush1.msra.mxu0 0.0
        %1253 = vmatprep.mubr.f32.mxu0 0.0
        %1254 = vmatmul.mubr.f32.gmra.mrb[0].mxu0 %v1181
        %v1255 = vpop.f32.mrb[0].mxu0
        %v1256 = vadd.f32 0.0, %v1255
        %v1257 = vpop.f32.mrb[0].mxu0
        %v1258 = vadd.f32 0.0, %v1257
        %1259 = vdwg.mxu0
        %1260 = vmatprep.subr.mxu0 0.0
        %1261 = vmatpush1.msra.mxu0 %v1187
        %1262 = vmatprep.subr.mxu0 0.0
        %1263 = vmatpush1.msra.mxu0 0.0
        %1264 = vmatprep.subr.mxu0 0.0
        %1265 = vmatpush1.msra.mxu0 0.0
        %1266 = vmatprep.subr.mxu0 0.0
        %1267 = vmatpush1.msra.mxu0 0.0
        %1268 = vmatprep.subr.mxu0 0.0
        %1269 = vmatpush1.msra.mxu0 0.0
        %1270 = vmatprep.subr.mxu0 0.0
        %1271 = vmatpush1.msra.mxu0 0.0
        %1272 = vmatprep.subr.mxu0 0.0
        %1273 = vmatpush1.msra.mxu0 0.0
        %1274 = vmatprep.subr.mxu0 0.0
        %1275 = vmatpush1.msra.mxu0 0.0
        %1276 = vmatprep.subr.mxu0 0.0
        %1277 = vmatpush1.msra.mxu0 0.0
        %1278 = vmatprep.subr.mxu0 0.0
        %1279 = vmatpush1.msra.mxu0 0.0
        %1280 = vmatprep.subr.mxu0 0.0
        %1281 = vmatpush1.msra.mxu0 0.0
        %1282 = vmatprep.subr.mxu0 0.0
        %1283 = vmatpush1.msra.mxu0 0.0
        %1284 = vmatprep.subr.mxu0 0.0
        %1285 = vmatpush1.msra.mxu0 0.0
        %1286 = vmatprep.subr.mxu0 0.0
        %1287 = vmatpush1.msra.mxu0 0.0
        %1288 = vmatprep.subr.mxu0 0.0
        %1289 = vmatpush1.msra.mxu0 0.0
        %1290 = vmatprep.subr.mxu0 0.0
        %1291 = vmatpush1.msra.mxu0 0.0
        %1292 = vmatprep.subr.mxu0 0.0
        %1293 = vmatpush1.msra.mxu0 0.0
        %1294 = vmatprep.subr.mxu0 0.0
        %1295 = vmatpush1.msra.mxu0 0.0
        %1296 = vmatprep.subr.mxu0 0.0
        %1297 = vmatpush1.msra.mxu0 0.0
        %1298 = vmatprep.subr.mxu0 0.0
        %1299 = vmatpush1.msra.mxu0 0.0
        %1300 = vmatprep.subr.mxu0 0.0
        %1301 = vmatpush1.msra.mxu0 0.0
        %1302 = vmatprep.subr.mxu0 0.0
        %1303 = vmatpush1.msra.mxu0 0.0
        %1304 = vmatprep.subr.mxu0 0.0
        %1305 = vmatpush1.msra.mxu0 0.0
        %1306 = vmatprep.subr.mxu0 0.0
        %1307 = vmatpush1.msra.mxu0 0.0
        %1308 = vmatprep.subr.mxu0 0.0
        %1309 = vmatpush1.msra.mxu0 0.0
        %1310 = vmatprep.subr.mxu0 0.0
        %1311 = vmatpush1.msra.mxu0 0.0
        %1312 = vmatprep.subr.mxu0 0.0
        %1313 = vmatpush1.msra.mxu0 0.0
        %1314 = vmatprep.subr.mxu0 0.0
        %1315 = vmatpush1.msra.mxu0 0.0
        %1316 = vmatprep.subr.mxu0 0.0
        %1317 = vmatpush1.msra.mxu0 0.0
        %1318 = vmatprep.subr.mxu0 0.0
        %1319 = vmatpush1.msra.mxu0 0.0
        %1320 = vmatprep.subr.mxu0 0.0
        %1321 = vmatpush1.msra.mxu0 0.0
        %1322 = vmatprep.subr.mxu0 0.0
        %1323 = vmatpush1.msra.mxu0 0.0
        %1324 = vmatprep.mubr.f32.mxu0 0.0
        %1325 = vmatmul.mubr.f32.gmra.mrb[0].mxu0 %v1181
        %v1326 = vpop.f32.mrb[0].mxu0
        %v1327 = vadd.f32 0.0, %v1326
        %v1328 = vpop.f32.mrb[0].mxu0
        %1329 = vdwg.mxu0
        %v1330 = vadd.f32 %v1161, %v1256
        %v1331 = vadd.f32 %v1162, %v1258
        %v1332 = vadd.f32 %v1163, %v1327
        %v1333 = vld [vmem:[%s168] sm:$0xff]
        %v1334 = vld [vmem:[%s168 + $0x8] sm:$0xf]
        %s1335 = scalar_lea.vmem %s0, 56
        %v1336 = vld [vmem:[%s1335] sm:$0x3f]
        %v1339 = vcombine.high %v1333, %v1333
        %1340 = vrot.lane.b32.xlu0 %v1333, 106
        %v1341 = vpop.permute.xlu0 %1340
        %1342 = vrot.lane.b32.xlu0 %v1339, 106
        %v1343 = vpop.permute.xlu0 %1342
        %1344 = vrot.lane.b32.xlu0 %v1334, 106
        %v1345 = vpop.permute.xlu0 %1344
        %vm1346 = vcmask 867328
        %v1347 = vsel %vm1346, %v1341, %v1343
        %v1348 = vsel %vm1346, %v1343, %v1345
        %v1350 = vsel %vm186, %v1336, 0
        %v1352 = vsel %vm190, %v1347, 0
        %v1354 = vsel %vm190, %v1348, 0
        %v1356 = vsel %vm190, %v1345, 0
        %1358 = vmatprep.subr.mxu0 %v1354
        %1359 = vmatpush1.msra.mxu0 %v1352
        %1360 = vmatprep.subr.mxu0 0.0
        %1361 = vmatpush1.msra.mxu0 0.0
        %1362 = vmatprep.subr.mxu0 0.0
        %1363 = vmatpush1.msra.mxu0 0.0
        %1364 = vmatprep.subr.mxu0 0.0
        %1365 = vmatpush1.msra.mxu0 0.0
        %1366 = vmatprep.subr.mxu0 0.0
        %1367 = vmatpush1.msra.mxu0 0.0
        %1368 = vmatprep.subr.mxu0 0.0
        %1369 = vmatpush1.msra.mxu0 0.0
        %1370 = vmatprep.subr.mxu0 0.0
        %1371 = vmatpush1.msra.mxu0 0.0
        %1372 = vmatprep.subr.mxu0 0.0
        %1373 = vmatpush1.msra.mxu0 0.0
        %1374 = vmatprep.subr.mxu0 0.0
        %1375 = vmatpush1.msra.mxu0 0.0
        %1376 = vmatprep.subr.mxu0 0.0
        %1377 = vmatpush1.msra.mxu0 0.0
        %1378 = vmatprep.subr.mxu0 0.0
        %1379 = vmatpush1.msra.mxu0 0.0
        %1380 = vmatprep.subr.mxu0 0.0
        %1381 = vmatpush1.msra.mxu0 0.0
        %1382 = vmatprep.subr.mxu0 0.0
        %1383 = vmatpush1.msra.mxu0 0.0
        %1384 = vmatprep.subr.mxu0 0.0
        %1385 = vmatpush1.msra.mxu0 0.0
        %1386 = vmatprep.subr.mxu0 0.0
        %1387 = vmatpush1.msra.mxu0 0.0
        %1388 = vmatprep.subr.mxu0 0.0
        %1389 = vmatpush1.msra.mxu0 0.0
        %1390 = vmatprep.subr.mxu0 0.0
        %1391 = vmatpush1.msra.mxu0 0.0
        %1392 = vmatprep.subr.mxu0 0.0
        %1393 = vmatpush1.msra.mxu0 0.0
        %1394 = vmatprep.subr.mxu0 0.0
        %1395 = vmatpush1.msra.mxu0 0.0
        %1396 = vmatprep.subr.mxu0 0.0
        %1397 = vmatpush1.msra.mxu0 0.0
        %1398 = vmatprep.subr.mxu0 0.0
        %1399 = vmatpush1.msra.mxu0 0.0
        %1400 = vmatprep.subr.mxu0 0.0
        %1401 = vmatpush1.msra.mxu0 0.0
        %1402 = vmatprep.subr.mxu0 0.0
        %1403 = vmatpush1.msra.mxu0 0.0
        %1404 = vmatprep.subr.mxu0 0.0
        %1405 = vmatpush1.msra.mxu0 0.0
        %1406 = vmatprep.subr.mxu0 0.0
        %1407 = vmatpush1.msra.mxu0 0.0
        %1408 = vmatprep.subr.mxu0 0.0
        %1409 = vmatpush1.msra.mxu0 0.0
        %1410 = vmatprep.subr.mxu0 0.0
        %1411 = vmatpush1.msra.mxu0 0.0
        %1412 = vmatprep.subr.mxu0 0.0
        %1413 = vmatpush1.msra.mxu0 0.0
        %1414 = vmatprep.subr.mxu0 0.0
        %1415 = vmatpush1.msra.mxu0 0.0
        %1416 = vmatprep.subr.mxu0 0.0
        %1417 = vmatpush1.msra.mxu0 0.0
        %1418 = vmatprep.subr.mxu0 0.0
        %1419 = vmatpush1.msra.mxu0 0.0
        %1420 = vmatprep.subr.mxu0 0.0
        %1421 = vmatpush1.msra.mxu0 0.0
        %1422 = vmatprep.mubr.f32.mxu0 0.0
        %1423 = vmatmul.mubr.f32.gmra.mrb[0].mxu0 %v1350
        %v1424 = vpop.f32.mrb[0].mxu0
        %v1425 = vadd.f32 0.0, %v1424
        %v1426 = vpop.f32.mrb[0].mxu0
        %v1427 = vadd.f32 0.0, %v1426
        %1428 = vdwg.mxu0
        %1429 = vmatprep.subr.mxu0 0.0
        %1430 = vmatpush1.msra.mxu0 %v1356
        %1431 = vmatprep.subr.mxu0 0.0
        %1432 = vmatpush1.msra.mxu0 0.0
        %1433 = vmatprep.subr.mxu0 0.0
        %1434 = vmatpush1.msra.mxu0 0.0
        %1435 = vmatprep.subr.mxu0 0.0
        %1436 = vmatpush1.msra.mxu0 0.0
        %1437 = vmatprep.subr.mxu0 0.0
        %1438 = vmatpush1.msra.mxu0 0.0
        %1439 = vmatprep.subr.mxu0 0.0
        %1440 = vmatpush1.msra.mxu0 0.0
        %1441 = vmatprep.subr.mxu0 0.0
        %1442 = vmatpush1.msra.mxu0 0.0
        %1443 = vmatprep.subr.mxu0 0.0
        %1444 = vmatpush1.msra.mxu0 0.0
        %1445 = vmatprep.subr.mxu0 0.0
        %1446 = vmatpush1.msra.mxu0 0.0
        %1447 = vmatprep.subr.mxu0 0.0
        %1448 = vmatpush1.msra.mxu0 0.0
        %1449 = vmatprep.subr.mxu0 0.0
        %1450 = vmatpush1.msra.mxu0 0.0
        %1451 = vmatprep.subr.mxu0 0.0
        %1452 = vmatpush1.msra.mxu0 0.0
        %1453 = vmatprep.subr.mxu0 0.0
        %1454 = vmatpush1.msra.mxu0 0.0
        %1455 = vmatprep.subr.mxu0 0.0
        %1456 = vmatpush1.msra.mxu0 0.0
        %1457 = vmatprep.subr.mxu0 0.0
        %1458 = vmatpush1.msra.mxu0 0.0
        %1459 = vmatprep.subr.mxu0 0.0
        %1460 = vmatpush1.msra.mxu0 0.0
        %1461 = vmatprep.subr.mxu0 0.0
        %1462 = vmatpush1.msra.mxu0 0.0
        %1463 = vmatprep.subr.mxu0 0.0
        %1464 = vmatpush1.msra.mxu0 0.0
        %1465 = vmatprep.subr.mxu0 0.0
        %1466 = vmatpush1.msra.mxu0 0.0
        %1467 = vmatprep.subr.mxu0 0.0
        %1468 = vmatpush1.msra.mxu0 0.0
        %1469 = vmatprep.subr.mxu0 0.0
        %1470 = vmatpush1.msra.mxu0 0.0
        %1471 = vmatprep.subr.mxu0 0.0
        %1472 = vmatpush1.msra.mxu0 0.0
        %1473 = vmatprep.subr.mxu0 0.0
        %1474 = vmatpush1.msra.mxu0 0.0
        %1475 = vmatprep.subr.mxu0 0.0
        %1476 = vmatpush1.msra.mxu0 0.0
        %1477 = vmatprep.subr.mxu0 0.0
        %1478 = vmatpush1.msra.mxu0 0.0
        %1479 = vmatprep.subr.mxu0 0.0
        %1480 = vmatpush1.msra.mxu0 0.0
        %1481 = vmatprep.subr.mxu0 0.0
        %1482 = vmatpush1.msra.mxu0 0.0
        %1483 = vmatprep.subr.mxu0 0.0
        %1484 = vmatpush1.msra.mxu0 0.0
        %1485 = vmatprep.subr.mxu0 0.0
        %1486 = vmatpush1.msra.mxu0 0.0
        %1487 = vmatprep.subr.mxu0 0.0
        %1488 = vmatpush1.msra.mxu0 0.0
        %1489 = vmatprep.subr.mxu0 0.0
        %1490 = vmatpush1.msra.mxu0 0.0
        %1491 = vmatprep.subr.mxu0 0.0
        %1492 = vmatpush1.msra.mxu0 0.0
        %1493 = vmatprep.mubr.f32.mxu0 0.0
        %1494 = vmatmul.mubr.f32.gmra.mrb[0].mxu0 %v1350
        %v1495 = vpop.f32.mrb[0].mxu0
        %v1496 = vadd.f32 0.0, %v1495
        %v1497 = vpop.f32.mrb[0].mxu0
        %1498 = vdwg.mxu0
        %v1499 = vadd.f32 %v1330, %v1425
        %v1500 = vadd.f32 %v1331, %v1427
        %v1501 = vadd.f32 %v1332, %v1496
        %v1502 = vld [vmem:[%s168] sm:$0xff]
        %v1503 = vld [vmem:[%s168 + $0x8] sm:$0xf]
        %s1504 = scalar_lea.vmem %s0, 64
        %v1505 = vld [vmem:[%s1504] sm:$0x3f]
        %v1508 = vcombine.high %v1502, %v1502
        %1509 = vrot.lane.b32.xlu0 %v1502, 105
        %v1510 = vpop.permute.xlu0 %1509
        %1511 = vrot.lane.b32.xlu0 %v1508, 105
        %v1512 = vpop.permute.xlu0 %1511
        %1513 = vrot.lane.b32.xlu0 %v1503, 105
        %v1514 = vpop.permute.xlu0 %1513
        %vm1515 = vcmask 859136
        %v1516 = vsel %vm1515, %v1510, %v1512
        %v1517 = vsel %vm1515, %v1512, %v1514
        %v1519 = vsel %vm186, %v1505, 0
        %v1521 = vsel %vm190, %v1516, 0
        %v1523 = vsel %vm190, %v1517, 0
        %v1525 = vsel %vm190, %v1514, 0
        %1527 = vmatprep.subr.mxu0 %v1523
        %1528 = vmatpush1.msra.mxu0 %v1521
        %1529 = vmatprep.subr.mxu0 0.0
        %1530 = vmatpush1.msra.mxu0 0.0
        %1531 = vmatprep.subr.mxu0 0.0
        %1532 = vmatpush1.msra.mxu0 0.0
        %1533 = vmatprep.subr.mxu0 0.0
        %1534 = vmatpush1.msra.mxu0 0.0
        %1535 = vmatprep.subr.mxu0 0.0
        %1536 = vmatpush1.msra.mxu0 0.0
        %1537 = vmatprep.subr.mxu0 0.0
        %1538 = vmatpush1.msra.mxu0 0.0
        %1539 = vmatprep.subr.mxu0 0.0
        %1540 = vmatpush1.msra.mxu0 0.0
        %1541 = vmatprep.subr.mxu0 0.0
        %1542 = vmatpush1.msra.mxu0 0.0
        %1543 = vmatprep.subr.mxu0 0.0
        %1544 = vmatpush1.msra.mxu0 0.0
        %1545 = vmatprep.subr.mxu0 0.0
        %1546 = vmatpush1.msra.mxu0 0.0
        %1547 = vmatprep.subr.mxu0 0.0
        %1548 = vmatpush1.msra.mxu0 0.0
        %1549 = vmatprep.subr.mxu0 0.0
        %1550 = vmatpush1.msra.mxu0 0.0
        %1551 = vmatprep.subr.mxu0 0.0
        %1552 = vmatpush1.msra.mxu0 0.0
        %1553 = vmatprep.subr.mxu0 0.0
        %1554 = vmatpush1.msra.mxu0 0.0
        %1555 = vmatprep.subr.mxu0 0.0
        %1556 = vmatpush1.msra.mxu0 0.0
        %1557 = vmatprep.subr.mxu0 0.0
        %1558 = vmatpush1.msra.mxu0 0.0
        %1559 = vmatprep.subr.mxu0 0.0
        %1560 = vmatpush1.msra.mxu0 0.0
        %1561 = vmatprep.subr.mxu0 0.0
        %1562 = vmatpush1.msra.mxu0 0.0
        %1563 = vmatprep.subr.mxu0 0.0
        %1564 = vmatpush1.msra.mxu0 0.0
        %1565 = vmatprep.subr.mxu0 0.0
        %1566 = vmatpush1.msra.mxu0 0.0
        %1567 = vmatprep.subr.mxu0 0.0
        %1568 = vmatpush1.msra.mxu0 0.0
        %1569 = vmatprep.subr.mxu0 0.0
        %1570 = vmatpush1.msra.mxu0 0.0
        %1571 = vmatprep.subr.mxu0 0.0
        %1572 = vmatpush1.msra.mxu0 0.0
        %1573 = vmatprep.subr.mxu0 0.0
        %1574 = vmatpush1.msra.mxu0 0.0
        %1575 = vmatprep.subr.mxu0 0.0
        %1576 = vmatpush1.msra.mxu0 0.0
        %1577 = vmatprep.subr.mxu0 0.0
        %1578 = vmatpush1.msra.mxu0 0.0
        %1579 = vmatprep.subr.mxu0 0.0
        %1580 = vmatpush1.msra.mxu0 0.0
        %1581 = vmatprep.subr.mxu0 0.0
        %1582 = vmatpush1.msra.mxu0 0.0
        %1583 = vmatprep.subr.mxu0 0.0
        %1584 = vmatpush1.msra.mxu0 0.0
        %1585 = vmatprep.subr.mxu0 0.0
        %1586 = vmatpush1.msra.mxu0 0.0
        %1587 = vmatprep.subr.mxu0 0.0
        %1588 = vmatpush1.msra.mxu0 0.0
        %1589 = vmatprep.subr.mxu0 0.0
        %1590 = vmatpush1.msra.mxu0 0.0
        %1591 = vmatprep.mubr.f32.mxu0 0.0
        %1592 = vmatmul.mubr.f32.gmra.mrb[0].mxu0 %v1519
        %v1593 = vpop.f32.mrb[0].mxu0
        %v1594 = vadd.f32 0.0, %v1593
        %v1595 = vpop.f32.mrb[0].mxu0
        %v1596 = vadd.f32 0.0, %v1595
        %1597 = vdwg.mxu0
        %1598 = vmatprep.subr.mxu0 0.0
        %1599 = vmatpush1.msra.mxu0 %v1525
        %1600 = vmatprep.subr.mxu0 0.0
        %1601 = vmatpush1.msra.mxu0 0.0
        %1602 = vmatprep.subr.mxu0 0.0
        %1603 = vmatpush1.msra.mxu0 0.0
        %1604 = vmatprep.subr.mxu0 0.0
        %1605 = vmatpush1.msra.mxu0 0.0
        %1606 = vmatprep.subr.mxu0 0.0
        %1607 = vmatpush1.msra.mxu0 0.0
        %1608 = vmatprep.subr.mxu0 0.0
        %1609 = vmatpush1.msra.mxu0 0.0
        %1610 = vmatprep.subr.mxu0 0.0
        %1611 = vmatpush1.msra.mxu0 0.0
        %1612 = vmatprep.subr.mxu0 0.0
        %1613 = vmatpush1.msra.mxu0 0.0
        %1614 = vmatprep.subr.mxu0 0.0
        %1615 = vmatpush1.msra.mxu0 0.0
        %1616 = vmatprep.subr.mxu0 0.0
        %1617 = vmatpush1.msra.mxu0 0.0
        %1618 = vmatprep.subr.mxu0 0.0
        %1619 = vmatpush1.msra.mxu0 0.0
        %1620 = vmatprep.subr.mxu0 0.0
        %1621 = vmatpush1.msra.mxu0 0.0
        %1622 = vmatprep.subr.mxu0 0.0
        %1623 = vmatpush1.msra.mxu0 0.0
        %1624 = vmatprep.subr.mxu0 0.0
        %1625 = vmatpush1.msra.mxu0 0.0
        %1626 = vmatprep.subr.mxu0 0.0
        %1627 = vmatpush1.msra.mxu0 0.0
        %1628 = vmatprep.subr.mxu0 0.0
        %1629 = vmatpush1.msra.mxu0 0.0
        %1630 = vmatprep.subr.mxu0 0.0
        %1631 = vmatpush1.msra.mxu0 0.0
        %1632 = vmatprep.subr.mxu0 0.0
        %1633 = vmatpush1.msra.mxu0 0.0
        %1634 = vmatprep.subr.mxu0 0.0
        %1635 = vmatpush1.msra.mxu0 0.0
        %1636 = vmatprep.subr.mxu0 0.0
        %1637 = vmatpush1.msra.mxu0 0.0
        %1638 = vmatprep.subr.mxu0 0.0
        %1639 = vmatpush1.msra.mxu0 0.0
        %1640 = vmatprep.subr.mxu0 0.0
        %1641 = vmatpush1.msra.mxu0 0.0
        %1642 = vmatprep.subr.mxu0 0.0
        %1643 = vmatpush1.msra.mxu0 0.0
        %1644 = vmatprep.subr.mxu0 0.0
        %1645 = vmatpush1.msra.mxu0 0.0
        %1646 = vmatprep.subr.mxu0 0.0
        %1647 = vmatpush1.msra.mxu0 0.0
        %1648 = vmatprep.subr.mxu0 0.0
        %1649 = vmatpush1.msra.mxu0 0.0
        %1650 = vmatprep.subr.mxu0 0.0
        %1651 = vmatpush1.msra.mxu0 0.0
        %1652 = vmatprep.subr.mxu0 0.0
        %1653 = vmatpush1.msra.mxu0 0.0
        %1654 = vmatprep.subr.mxu0 0.0
        %1655 = vmatpush1.msra.mxu0 0.0
        %1656 = vmatprep.subr.mxu0 0.0
        %1657 = vmatpush1.msra.mxu0 0.0
        %1658 = vmatprep.subr.mxu0 0.0
        %1659 = vmatpush1.msra.mxu0 0.0
        %1660 = vmatprep.subr.mxu0 0.0
        %1661 = vmatpush1.msra.mxu0 0.0
        %1662 = vmatprep.mubr.f32.mxu0 0.0
        %1663 = vmatmul.mubr.f32.gmra.mrb[0].mxu0 %v1519
        %v1664 = vpop.f32.mrb[0].mxu0
        %v1665 = vadd.f32 0.0, %v1664
        %v1666 = vpop.f32.mrb[0].mxu0
        %1667 = vdwg.mxu0
        %v1668 = vadd.f32 %v1499, %v1594
        %v1669 = vadd.f32 %v1500, %v1596
        %v1670 = vadd.f32 %v1501, %v1665
        %v1671 = vld [vmem:[%s168] sm:$0xff]
        %v1672 = vld [vmem:[%s168 + $0x8] sm:$0xf]
        %s1673 = scalar_lea.vmem %s0, 72
        %v1674 = vld [vmem:[%s1673] sm:$0x3f]
        %v1677 = vcombine.high %v1671, %v1671
        %1678 = vrot.lane.b32.xlu0 %v1671, 104
        %v1679 = vpop.permute.xlu0 %1678
        %1680 = vrot.lane.b32.xlu0 %v1677, 104
        %v1681 = vpop.permute.xlu0 %1680
        %1682 = vrot.lane.b32.xlu0 %v1672, 104
        %v1683 = vpop.permute.xlu0 %1682
        %vm1684 = vcmask 850944
        %v1685 = vsel %vm1684, %v1679, %v1681
        %v1686 = vsel %vm1684, %v1681, %v1683
        %v1688 = vsel %vm186, %v1674, 0
        %v1690 = vsel %vm190, %v1685, 0
        %v1692 = vsel %vm190, %v1686, 0
        %v1694 = vsel %vm190, %v1683, 0
        %1696 = vmatprep.subr.mxu0 %v1692
        %1697 = vmatpush1.msra.mxu0 %v1690
        %1698 = vmatprep.subr.mxu0 0.0
        %1699 = vmatpush1.msra.mxu0 0.0
        %1700 = vmatprep.subr.mxu0 0.0
        %1701 = vmatpush1.msra.mxu0 0.0
        %1702 = vmatprep.subr.mxu0 0.0
        %1703 = vmatpush1.msra.mxu0 0.0
        %1704 = vmatprep.subr.mxu0 0.0
        %1705 = vmatpush1.msra.mxu0 0.0
        %1706 = vmatprep.subr.mxu0 0.0
        %1707 = vmatpush1.msra.mxu0 0.0
        %1708 = vmatprep.subr.mxu0 0.0
        %1709 = vmatpush1.msra.mxu0 0.0
        %1710 = vmatprep.subr.mxu0 0.0
        %1711 = vmatpush1.msra.mxu0 0.0
        %1712 = vmatprep.subr.mxu0 0.0
        %1713 = vmatpush1.msra.mxu0 0.0
        %1714 = vmatprep.subr.mxu0 0.0
        %1715 = vmatpush1.msra.mxu0 0.0
        %1716 = vmatprep.subr.mxu0 0.0
        %1717 = vmatpush1.msra.mxu0 0.0
        %1718 = vmatprep.subr.mxu0 0.0
        %1719 = vmatpush1.msra.mxu0 0.0
        %1720 = vmatprep.subr.mxu0 0.0
        %1721 = vmatpush1.msra.mxu0 0.0
        %1722 = vmatprep.subr.mxu0 0.0
        %1723 = vmatpush1.msra.mxu0 0.0
        %1724 = vmatprep.subr.mxu0 0.0
        %1725 = vmatpush1.msra.mxu0 0.0
        %1726 = vmatprep.subr.mxu0 0.0
        %1727 = vmatpush1.msra.mxu0 0.0
        %1728 = vmatprep.subr.mxu0 0.0
        %1729 = vmatpush1.msra.mxu0 0.0
        %1730 = vmatprep.subr.mxu0 0.0
        %1731 = vmatpush1.msra.mxu0 0.0
        %1732 = vmatprep.subr.mxu0 0.0
        %1733 = vmatpush1.msra.mxu0 0.0
        %1734 = vmatprep.subr.mxu0 0.0
        %1735 = vmatpush1.msra.mxu0 0.0
        %1736 = vmatprep.subr.mxu0 0.0
        %1737 = vmatpush1.msra.mxu0 0.0
        %1738 = vmatprep.subr.mxu0 0.0
        %1739 = vmatpush1.msra.mxu0 0.0
        %1740 = vmatprep.subr.mxu0 0.0
        %1741 = vmatpush1.msra.mxu0 0.0
        %1742 = vmatprep.subr.mxu0 0.0
        %1743 = vmatpush1.msra.mxu0 0.0
        %1744 = vmatprep.subr.mxu0 0.0
        %1745 = vmatpush1.msra.mxu0 0.0
        %1746 = vmatprep.subr.mxu0 0.0
        %1747 = vmatpush1.msra.mxu0 0.0
        %1748 = vmatprep.subr.mxu0 0.0
        %1749 = vmatpush1.msra.mxu0 0.0
        %1750 = vmatprep.subr.mxu0 0.0
        %1751 = vmatpush1.msra.mxu0 0.0
        %1752 = vmatprep.subr.mxu0 0.0
        %1753 = vmatpush1.msra.mxu0 0.0
        %1754 = vmatprep.subr.mxu0 0.0
        %1755 = vmatpush1.msra.mxu0 0.0
        %1756 = vmatprep.subr.mxu0 0.0
        %1757 = vmatpush1.msra.mxu0 0.0
        %1758 = vmatprep.subr.mxu0 0.0
        %1759 = vmatpush1.msra.mxu0 0.0
        %1760 = vmatprep.mubr.f32.mxu0 0.0
        %1761 = vmatmul.mubr.f32.gmra.mrb[0].mxu0 %v1688
        %v1762 = vpop.f32.mrb[0].mxu0
        %v1763 = vadd.f32 0.0, %v1762
        %v1764 = vpop.f32.mrb[0].mxu0
        %v1765 = vadd.f32 0.0, %v1764
        %1766 = vdwg.mxu0
        %1767 = vmatprep.subr.mxu0 0.0
        %1768 = vmatpush1.msra.mxu0 %v1694
        %1769 = vmatprep.subr.mxu0 0.0
        %1770 = vmatpush1.msra.mxu0 0.0
        %1771 = vmatprep.subr.mxu0 0.0
        %1772 = vmatpush1.msra.mxu0 0.0
        %1773 = vmatprep.subr.mxu0 0.0
        %1774 = vmatpush1.msra.mxu0 0.0
        %1775 = vmatprep.subr.mxu0 0.0
        %1776 = vmatpush1.msra.mxu0 0.0
        %1777 = vmatprep.subr.mxu0 0.0
        %1778 = vmatpush1.msra.mxu0 0.0
        %1779 = vmatprep.subr.mxu0 0.0
        %1780 = vmatpush1.msra.mxu0 0.0
        %1781 = vmatprep.subr.mxu0 0.0
        %1782 = vmatpush1.msra.mxu0 0.0
        %1783 = vmatprep.subr.mxu0 0.0
        %1784 = vmatpush1.msra.mxu0 0.0
        %1785 = vmatprep.subr.mxu0 0.0
        %1786 = vmatpush1.msra.mxu0 0.0
        %1787 = vmatprep.subr.mxu0 0.0
        %1788 = vmatpush1.msra.mxu0 0.0
        %1789 = vmatprep.subr.mxu0 0.0
        %1790 = vmatpush1.msra.mxu0 0.0
        %1791 = vmatprep.subr.mxu0 0.0
        %1792 = vmatpush1.msra.mxu0 0.0
        %1793 = vmatprep.subr.mxu0 0.0
        %1794 = vmatpush1.msra.mxu0 0.0
        %1795 = vmatprep.subr.mxu0 0.0
        %1796 = vmatpush1.msra.mxu0 0.0
        %1797 = vmatprep.subr.mxu0 0.0
        %1798 = vmatpush1.msra.mxu0 0.0
        %1799 = vmatprep.subr.mxu0 0.0
        %1800 = vmatpush1.msra.mxu0 0.0
        %1801 = vmatprep.subr.mxu0 0.0
        %1802 = vmatpush1.msra.mxu0 0.0
        %1803 = vmatprep.subr.mxu0 0.0
        %1804 = vmatpush1.msra.mxu0 0.0
        %1805 = vmatprep.subr.mxu0 0.0
        %1806 = vmatpush1.msra.mxu0 0.0
        %1807 = vmatprep.subr.mxu0 0.0
        %1808 = vmatpush1.msra.mxu0 0.0
        %1809 = vmatprep.subr.mxu0 0.0
        %1810 = vmatpush1.msra.mxu0 0.0
        %1811 = vmatprep.subr.mxu0 0.0
        %1812 = vmatpush1.msra.mxu0 0.0
        %1813 = vmatprep.subr.mxu0 0.0
        %1814 = vmatpush1.msra.mxu0 0.0
        %1815 = vmatprep.subr.mxu0 0.0
        %1816 = vmatpush1.msra.mxu0 0.0
        %1817 = vmatprep.subr.mxu0 0.0
        %1818 = vmatpush1.msra.mxu0 0.0
        %1819 = vmatprep.subr.mxu0 0.0
        %1820 = vmatpush1.msra.mxu0 0.0
        %1821 = vmatprep.subr.mxu0 0.0
        %1822 = vmatpush1.msra.mxu0 0.0
        %1823 = vmatprep.subr.mxu0 0.0
        %1824 = vmatpush1.msra.mxu0 0.0
        %1825 = vmatprep.subr.mxu0 0.0
        %1826 = vmatpush1.msra.mxu0 0.0
        %1827 = vmatprep.subr.mxu0 0.0
        %1828 = vmatpush1.msra.mxu0 0.0
        %1829 = vmatprep.subr.mxu0 0.0
        %1830 = vmatpush1.msra.mxu0 0.0
        %1831 = vmatprep.mubr.f32.mxu0 0.0
        %1832 = vmatmul.mubr.f32.gmra.mrb[0].mxu0 %v1688
        %v1833 = vpop.f32.mrb[0].mxu0
        %v1834 = vadd.f32 0.0, %v1833
        %v1835 = vpop.f32.mrb[0].mxu0
        %1836 = vdwg.mxu0
        %v1837 = vadd.f32 %v1668, %v1763
        %v1838 = vadd.f32 %v1669, %v1765
        %v1839 = vadd.f32 %v1670, %v1834
        %v1840 = vld [vmem:[%s168] sm:$0xff]
        %v1841 = vld [vmem:[%s168 + $0x8] sm:$0xf]
        %s1842 = scalar_lea.vmem %s0, 80
        %v1843 = vld [vmem:[%s1842] sm:$0x3f]
        %v1846 = vcombine.high %v1840, %v1840
        %1847 = vrot.lane.b32.xlu0 %v1840, 103
        %v1848 = vpop.permute.xlu0 %1847
        %1849 = vrot.lane.b32.xlu0 %v1846, 103
        %v1850 = vpop.permute.xlu0 %1849
        %1851 = vrot.lane.b32.xlu0 %v1841, 103
        %v1852 = vpop.permute.xlu0 %1851
        %vm1853 = vcmask 842752
        %v1854 = vsel %vm1853, %v1848, %v1850
        %v1855 = vsel %vm1853, %v1850, %v1852
        %v1857 = vsel %vm186, %v1843, 0
        %v1859 = vsel %vm190, %v1854, 0
        %v1861 = vsel %vm190, %v1855, 0
        %v1863 = vsel %vm190, %v1852, 0
        %1865 = vmatprep.subr.mxu0 %v1861
        %1866 = vmatpush1.msra.mxu0 %v1859
        %1867 = vmatprep.subr.mxu0 0.0
        %1868 = vmatpush1.msra.mxu0 0.0
        %1869 = vmatprep.subr.mxu0 0.0
        %1870 = vmatpush1.msra.mxu0 0.0
        %1871 = vmatprep.subr.mxu0 0.0
        %1872 = vmatpush1.msra.mxu0 0.0
        %1873 = vmatprep.subr.mxu0 0.0
        %1874 = vmatpush1.msra.mxu0 0.0
        %1875 = vmatprep.subr.mxu0 0.0
        %1876 = vmatpush1.msra.mxu0 0.0
        %1877 = vmatprep.subr.mxu0 0.0
        %1878 = vmatpush1.msra.mxu0 0.0
        %1879 = vmatprep.subr.mxu0 0.0
        %1880 = vmatpush1.msra.mxu0 0.0
        %1881 = vmatprep.subr.mxu0 0.0
        %1882 = vmatpush1.msra.mxu0 0.0
        %1883 = vmatprep.subr.mxu0 0.0
        %1884 = vmatpush1.msra.mxu0 0.0
        %1885 = vmatprep.subr.mxu0 0.0
        %1886 = vmatpush1.msra.mxu0 0.0
        %1887 = vmatprep.subr.mxu0 0.0
        %1888 = vmatpush1.msra.mxu0 0.0
        %1889 = vmatprep.subr.mxu0 0.0
        %1890 = vmatpush1.msra.mxu0 0.0
        %1891 = vmatprep.subr.mxu0 0.0
        %1892 = vmatpush1.msra.mxu0 0.0
        %1893 = vmatprep.subr.mxu0 0.0
        %1894 = vmatpush1.msra.mxu0 0.0
        %1895 = vmatprep.subr.mxu0 0.0
        %1896 = vmatpush1.msra.mxu0 0.0
        %1897 = vmatprep.subr.mxu0 0.0
        %1898 = vmatpush1.msra.mxu0 0.0
        %1899 = vmatprep.subr.mxu0 0.0
        %1900 = vmatpush1.msra.mxu0 0.0
        %1901 = vmatprep.subr.mxu0 0.0
        %1902 = vmatpush1.msra.mxu0 0.0
        %1903 = vmatprep.subr.mxu0 0.0
        %1904 = vmatpush1.msra.mxu0 0.0
        %1905 = vmatprep.subr.mxu0 0.0
        %1906 = vmatpush1.msra.mxu0 0.0
        %1907 = vmatprep.subr.mxu0 0.0
        %1908 = vmatpush1.msra.mxu0 0.0
        %1909 = vmatprep.subr.mxu0 0.0
        %1910 = vmatpush1.msra.mxu0 0.0
        %1911 = vmatprep.subr.mxu0 0.0
        %1912 = vmatpush1.msra.mxu0 0.0
        %1913 = vmatprep.subr.mxu0 0.0
        %1914 = vmatpush1.msra.mxu0 0.0
        %1915 = vmatprep.subr.mxu0 0.0
        %1916 = vmatpush1.msra.mxu0 0.0
        %1917 = vmatprep.subr.mxu0 0.0
        %1918 = vmatpush1.msra.mxu0 0.0
        %1919 = vmatprep.subr.mxu0 0.0
        %1920 = vmatpush1.msra.mxu0 0.0
        %1921 = vmatprep.subr.mxu0 0.0
        %1922 = vmatpush1.msra.mxu0 0.0
        %1923 = vmatprep.subr.mxu0 0.0
        %1924 = vmatpush1.msra.mxu0 0.0
        %1925 = vmatprep.subr.mxu0 0.0
        %1926 = vmatpush1.msra.mxu0 0.0
        %1927 = vmatprep.subr.mxu0 0.0
        %1928 = vmatpush1.msra.mxu0 0.0
        %1929 = vmatprep.mubr.f32.mxu0 0.0
        %1930 = vmatmul.mubr.f32.gmra.mrb[0].mxu0 %v1857
        %v1931 = vpop.f32.mrb[0].mxu0
        %v1932 = vadd.f32 0.0, %v1931
        %v1933 = vpop.f32.mrb[0].mxu0
        %v1934 = vadd.f32 0.0, %v1933
        %1935 = vdwg.mxu0
        %1936 = vmatprep.subr.mxu0 0.0
        %1937 = vmatpush1.msra.mxu0 %v1863
        %1938 = vmatprep.subr.mxu0 0.0
        %1939 = vmatpush1.msra.mxu0 0.0
        %1940 = vmatprep.subr.mxu0 0.0
        %1941 = vmatpush1.msra.mxu0 0.0
        %1942 = vmatprep.subr.mxu0 0.0
        %1943 = vmatpush1.msra.mxu0 0.0
        %1944 = vmatprep.subr.mxu0 0.0
        %1945 = vmatpush1.msra.mxu0 0.0
        %1946 = vmatprep.subr.mxu0 0.0
        %1947 = vmatpush1.msra.mxu0 0.0
        %1948 = vmatprep.subr.mxu0 0.0
        %1949 = vmatpush1.msra.mxu0 0.0
        %1950 = vmatprep.subr.mxu0 0.0
        %1951 = vmatpush1.msra.mxu0 0.0
        %1952 = vmatprep.subr.mxu0 0.0
        %1953 = vmatpush1.msra.mxu0 0.0
        %1954 = vmatprep.subr.mxu0 0.0
        %1955 = vmatpush1.msra.mxu0 0.0
        %1956 = vmatprep.subr.mxu0 0.0
        %1957 = vmatpush1.msra.mxu0 0.0
        %1958 = vmatprep.subr.mxu0 0.0
        %1959 = vmatpush1.msra.mxu0 0.0
        %1960 = vmatprep.subr.mxu0 0.0
        %1961 = vmatpush1.msra.mxu0 0.0
        %1962 = vmatprep.subr.mxu0 0.0
        %1963 = vmatpush1.msra.mxu0 0.0
        %1964 = vmatprep.subr.mxu0 0.0
        %1965 = vmatpush1.msra.mxu0 0.0
        %1966 = vmatprep.subr.mxu0 0.0
        %1967 = vmatpush1.msra.mxu0 0.0
        %1968 = vmatprep.subr.mxu0 0.0
        %1969 = vmatpush1.msra.mxu0 0.0
        %1970 = vmatprep.subr.mxu0 0.0
        %1971 = vmatpush1.msra.mxu0 0.0
        %1972 = vmatprep.subr.mxu0 0.0
        %1973 = vmatpush1.msra.mxu0 0.0
        %1974 = vmatprep.subr.mxu0 0.0
        %1975 = vmatpush1.msra.mxu0 0.0
        %1976 = vmatprep.subr.mxu0 0.0
        %1977 = vmatpush1.msra.mxu0 0.0
        %1978 = vmatprep.subr.mxu0 0.0
        %1979 = vmatpush1.msra.mxu0 0.0
        %1980 = vmatprep.subr.mxu0 0.0
        %1981 = vmatpush1.msra.mxu0 0.0
        %1982 = vmatprep.subr.mxu0 0.0
        %1983 = vmatpush1.msra.mxu0 0.0
        %1984 = vmatprep.subr.mxu0 0.0
        %1985 = vmatpush1.msra.mxu0 0.0
        %1986 = vmatprep.subr.mxu0 0.0
        %1987 = vmatpush1.msra.mxu0 0.0
        %1988 = vmatprep.subr.mxu0 0.0
        %1989 = vmatpush1.msra.mxu0 0.0
        %1990 = vmatprep.subr.mxu0 0.0
        %1991 = vmatpush1.msra.mxu0 0.0
        %1992 = vmatprep.subr.mxu0 0.0
        %1993 = vmatpush1.msra.mxu0 0.0
        %1994 = vmatprep.subr.mxu0 0.0
        %1995 = vmatpush1.msra.mxu0 0.0
        %1996 = vmatprep.subr.mxu0 0.0
        %1997 = vmatpush1.msra.mxu0 0.0
        %1998 = vmatprep.subr.mxu0 0.0
        %1999 = vmatpush1.msra.mxu0 0.0
        %2000 = vmatprep.mubr.f32.mxu0 0.0
        %2001 = vmatmul.mubr.f32.gmra.mrb[0].mxu0 %v1857
        %v2002 = vpop.f32.mrb[0].mxu0
        %v2003 = vadd.f32 0.0, %v2002
        %v2004 = vpop.f32.mrb[0].mxu0
        %2005 = vdwg.mxu0
        %v2006 = vadd.f32 %v1837, %v1932
        %v2007 = vadd.f32 %v1838, %v1934
        %v2008 = vadd.f32 %v1839, %v2003
        %v2009 = vld [vmem:[%s168] sm:$0xff]
        %v2010 = vld [vmem:[%s168 + $0x8] sm:$0xf]
        %s2011 = scalar_lea.vmem %s0, 88
        %v2012 = vld [vmem:[%s2011] sm:$0x3f]
        %v2015 = vcombine.high %v2009, %v2009
        %2016 = vrot.lane.b32.xlu0 %v2009, 102
        %v2017 = vpop.permute.xlu0 %2016
        %2018 = vrot.lane.b32.xlu0 %v2015, 102
        %v2019 = vpop.permute.xlu0 %2018
        %2020 = vrot.lane.b32.xlu0 %v2010, 102
        %v2021 = vpop.permute.xlu0 %2020
        %vm2022 = vcmask 834560
        %v2023 = vsel %vm2022, %v2017, %v2019
        %v2024 = vsel %vm2022, %v2019, %v2021
        %v2026 = vsel %vm186, %v2012, 0
        %v2028 = vsel %vm190, %v2023, 0
        %v2030 = vsel %vm190, %v2024, 0
        %v2032 = vsel %vm190, %v2021, 0
        %2034 = vmatprep.subr.mxu0 %v2030
        %2035 = vmatpush1.msra.mxu0 %v2028
        %2036 = vmatprep.subr.mxu0 0.0
        %2037 = vmatpush1.msra.mxu0 0.0
        %2038 = vmatprep.subr.mxu0 0.0
        %2039 = vmatpush1.msra.mxu0 0.0
        %2040 = vmatprep.subr.mxu0 0.0
        %2041 = vmatpush1.msra.mxu0 0.0
        %2042 = vmatprep.subr.mxu0 0.0
        %2043 = vmatpush1.msra.mxu0 0.0
        %2044 = vmatprep.subr.mxu0 0.0
        %2045 = vmatpush1.msra.mxu0 0.0
        %2046 = vmatprep.subr.mxu0 0.0
        %2047 = vmatpush1.msra.mxu0 0.0
        %2048 = vmatprep.subr.mxu0 0.0
        %2049 = vmatpush1.msra.mxu0 0.0
        %2050 = vmatprep.subr.mxu0 0.0
        %2051 = vmatpush1.msra.mxu0 0.0
        %2052 = vmatprep.subr.mxu0 0.0
        %2053 = vmatpush1.msra.mxu0 0.0
        %2054 = vmatprep.subr.mxu0 0.0
        %2055 = vmatpush1.msra.mxu0 0.0
        %2056 = vmatprep.subr.mxu0 0.0
        %2057 = vmatpush1.msra.mxu0 0.0
        %2058 = vmatprep.subr.mxu0 0.0
        %2059 = vmatpush1.msra.mxu0 0.0
        %2060 = vmatprep.subr.mxu0 0.0
        %2061 = vmatpush1.msra.mxu0 0.0
        %2062 = vmatprep.subr.mxu0 0.0
        %2063 = vmatpush1.msra.mxu0 0.0
        %2064 = vmatprep.subr.mxu0 0.0
        %2065 = vmatpush1.msra.mxu0 0.0
        %2066 = vmatprep.subr.mxu0 0.0
        %2067 = vmatpush1.msra.mxu0 0.0
        %2068 = vmatprep.subr.mxu0 0.0
        %2069 = vmatpush1.msra.mxu0 0.0
        %2070 = vmatprep.subr.mxu0 0.0
        %2071 = vmatpush1.msra.mxu0 0.0
        %2072 = vmatprep.subr.mxu0 0.0
        %2073 = vmatpush1.msra.mxu0 0.0
        %2074 = vmatprep.subr.mxu0 0.0
        %2075 = vmatpush1.msra.mxu0 0.0
        %2076 = vmatprep.subr.mxu0 0.0
        %2077 = vmatpush1.msra.mxu0 0.0
        %2078 = vmatprep.subr.mxu0 0.0
        %2079 = vmatpush1.msra.mxu0 0.0
        %2080 = vmatprep.subr.mxu0 0.0
        %2081 = vmatpush1.msra.mxu0 0.0
        %2082 = vmatprep.subr.mxu0 0.0
        %2083 = vmatpush1.msra.mxu0 0.0
        %2084 = vmatprep.subr.mxu0 0.0
        %2085 = vmatpush1.msra.mxu0 0.0
        %2086 = vmatprep.subr.mxu0 0.0
        %2087 = vmatpush1.msra.mxu0 0.0
        %2088 = vmatprep.subr.mxu0 0.0
        %2089 = vmatpush1.msra.mxu0 0.0
        %2090 = vmatprep.subr.mxu0 0.0
        %2091 = vmatpush1.msra.mxu0 0.0
        %2092 = vmatprep.subr.mxu0 0.0
        %2093 = vmatpush1.msra.mxu0 0.0
        %2094 = vmatprep.subr.mxu0 0.0
        %2095 = vmatpush1.msra.mxu0 0.0
        %2096 = vmatprep.subr.mxu0 0.0
        %2097 = vmatpush1.msra.mxu0 0.0
        %2098 = vmatprep.mubr.f32.mxu0 0.0
        %2099 = vmatmul.mubr.f32.gmra.mrb[0].mxu0 %v2026
        %v2100 = vpop.f32.mrb[0].mxu0
        %v2101 = vadd.f32 0.0, %v2100
        %v2102 = vpop.f32.mrb[0].mxu0
        %v2103 = vadd.f32 0.0, %v2102
        %2104 = vdwg.mxu0
        %2105 = vmatprep.subr.mxu0 0.0
        %2106 = vmatpush1.msra.mxu0 %v2032
        %2107 = vmatprep.subr.mxu0 0.0
        %2108 = vmatpush1.msra.mxu0 0.0
        %2109 = vmatprep.subr.mxu0 0.0
        %2110 = vmatpush1.msra.mxu0 0.0
        %2111 = vmatprep.subr.mxu0 0.0
        %2112 = vmatpush1.msra.mxu0 0.0
        %2113 = vmatprep.subr.mxu0 0.0
        %2114 = vmatpush1.msra.mxu0 0.0
        %2115 = vmatprep.subr.mxu0 0.0
        %2116 = vmatpush1.msra.mxu0 0.0
        %2117 = vmatprep.subr.mxu0 0.0
        %2118 = vmatpush1.msra.mxu0 0.0
        %2119 = vmatprep.subr.mxu0 0.0
        %2120 = vmatpush1.msra.mxu0 0.0
        %2121 = vmatprep.subr.mxu0 0.0
        %2122 = vmatpush1.msra.mxu0 0.0
        %2123 = vmatprep.subr.mxu0 0.0
        %2124 = vmatpush1.msra.mxu0 0.0
        %2125 = vmatprep.subr.mxu0 0.0
        %2126 = vmatpush1.msra.mxu0 0.0
        %2127 = vmatprep.subr.mxu0 0.0
        %2128 = vmatpush1.msra.mxu0 0.0
        %2129 = vmatprep.subr.mxu0 0.0
        %2130 = vmatpush1.msra.mxu0 0.0
        %2131 = vmatprep.subr.mxu0 0.0
        %2132 = vmatpush1.msra.mxu0 0.0
        %2133 = vmatprep.subr.mxu0 0.0
        %2134 = vmatpush1.msra.mxu0 0.0
        %2135 = vmatprep.subr.mxu0 0.0
        %2136 = vmatpush1.msra.mxu0 0.0
        %2137 = vmatprep.subr.mxu0 0.0
        %2138 = vmatpush1.msra.mxu0 0.0
        %2139 = vmatprep.subr.mxu0 0.0
        %2140 = vmatpush1.msra.mxu0 0.0
        %2141 = vmatprep.subr.mxu0 0.0
        %2142 = vmatpush1.msra.mxu0 0.0
        %2143 = vmatprep.subr.mxu0 0.0
        %2144 = vmatpush1.msra.mxu0 0.0
        %2145 = vmatprep.subr.mxu0 0.0
        %2146 = vmatpush1.msra.mxu0 0.0
        %2147 = vmatprep.subr.mxu0 0.0
        %2148 = vmatpush1.msra.mxu0 0.0
        %2149 = vmatprep.subr.mxu0 0.0
        %2150 = vmatpush1.msra.mxu0 0.0
        %2151 = vmatprep.subr.mxu0 0.0
        %2152 = vmatpush1.msra.mxu0 0.0
        %2153 = vmatprep.subr.mxu0 0.0
        %2154 = vmatpush1.msra.mxu0 0.0
        %2155 = vmatprep.subr.mxu0 0.0
        %2156 = vmatpush1.msra.mxu0 0.0
        %2157 = vmatprep.subr.mxu0 0.0
        %2158 = vmatpush1.msra.mxu0 0.0
        %2159 = vmatprep.subr.mxu0 0.0
        %2160 = vmatpush1.msra.mxu0 0.0
        %2161 = vmatprep.subr.mxu0 0.0
        %2162 = vmatpush1.msra.mxu0 0.0
        %2163 = vmatprep.subr.mxu0 0.0
        %2164 = vmatpush1.msra.mxu0 0.0
        %2165 = vmatprep.subr.mxu0 0.0
        %2166 = vmatpush1.msra.mxu0 0.0
        %2167 = vmatprep.subr.mxu0 0.0
        %2168 = vmatpush1.msra.mxu0 0.0
        %2169 = vmatprep.mubr.f32.mxu0 0.0
        %2170 = vmatmul.mubr.f32.gmra.mrb[0].mxu0 %v2026
        %v2171 = vpop.f32.mrb[0].mxu0
        %v2172 = vadd.f32 0.0, %v2171
        %v2173 = vpop.f32.mrb[0].mxu0
        %2174 = vdwg.mxu0
        %v2175 = vadd.f32 %v2006, %v2101
        %v2176 = vadd.f32 %v2007, %v2103
        %v2177 = vadd.f32 %v2008, %v2172
        %v2178 = vld [vmem:[%s168] sm:$0xff]
        %v2179 = vld [vmem:[%s168 + $0x8] sm:$0xf]
        %s2180 = scalar_lea.vmem %s0, 96
        %v2181 = vld [vmem:[%s2180] sm:$0x3f]
        %v2184 = vcombine.high %v2178, %v2178
        %2185 = vrot.lane.b32.xlu0 %v2178, 101
        %v2186 = vpop.permute.xlu0 %2185
        %2187 = vrot.lane.b32.xlu0 %v2184, 101
        %v2188 = vpop.permute.xlu0 %2187
        %2189 = vrot.lane.b32.xlu0 %v2179, 101
        %v2190 = vpop.permute.xlu0 %2189
        %vm2191 = vcmask 826368
        %v2192 = vsel %vm2191, %v2186, %v2188
        %v2193 = vsel %vm2191, %v2188, %v2190
        %v2195 = vsel %vm186, %v2181, 0
        %v2197 = vsel %vm190, %v2192, 0
        %v2199 = vsel %vm190, %v2193, 0
        %v2201 = vsel %vm190, %v2190, 0
        %2203 = vmatprep.subr.mxu0 %v2199
        %2204 = vmatpush1.msra.mxu0 %v2197
        %2205 = vmatprep.subr.mxu0 0.0
        %2206 = vmatpush1.msra.mxu0 0.0
        %2207 = vmatprep.subr.mxu0 0.0
        %2208 = vmatpush1.msra.mxu0 0.0
        %2209 = vmatprep.subr.mxu0 0.0
        %2210 = vmatpush1.msra.mxu0 0.0
        %2211 = vmatprep.subr.mxu0 0.0
        %2212 = vmatpush1.msra.mxu0 0.0
        %2213 = vmatprep.subr.mxu0 0.0
        %2214 = vmatpush1.msra.mxu0 0.0
        %2215 = vmatprep.subr.mxu0 0.0
        %2216 = vmatpush1.msra.mxu0 0.0
        %2217 = vmatprep.subr.mxu0 0.0
        %2218 = vmatpush1.msra.mxu0 0.0
        %2219 = vmatprep.subr.mxu0 0.0
        %2220 = vmatpush1.msra.mxu0 0.0
        %2221 = vmatprep.subr.mxu0 0.0
        %2222 = vmatpush1.msra.mxu0 0.0
        %2223 = vmatprep.subr.mxu0 0.0
        %2224 = vmatpush1.msra.mxu0 0.0
        %2225 = vmatprep.subr.mxu0 0.0
        %2226 = vmatpush1.msra.mxu0 0.0
        %2227 = vmatprep.subr.mxu0 0.0
        %2228 = vmatpush1.msra.mxu0 0.0
        %2229 = vmatprep.subr.mxu0 0.0
        %2230 = vmatpush1.msra.mxu0 0.0
        %2231 = vmatprep.subr.mxu0 0.0
        %2232 = vmatpush1.msra.mxu0 0.0
        %2233 = vmatprep.subr.mxu0 0.0
        %2234 = vmatpush1.msra.mxu0 0.0
        %2235 = vmatprep.subr.mxu0 0.0
        %2236 = vmatpush1.msra.mxu0 0.0
        %2237 = vmatprep.subr.mxu0 0.0
        %2238 = vmatpush1.msra.mxu0 0.0
        %2239 = vmatprep.subr.mxu0 0.0
        %2240 = vmatpush1.msra.mxu0 0.0
        %2241 = vmatprep.subr.mxu0 0.0
        %2242 = vmatpush1.msra.mxu0 0.0
        %2243 = vmatprep.subr.mxu0 0.0
        %2244 = vmatpush1.msra.mxu0 0.0
        %2245 = vmatprep.subr.mxu0 0.0
        %2246 = vmatpush1.msra.mxu0 0.0
        %2247 = vmatprep.subr.mxu0 0.0
        %2248 = vmatpush1.msra.mxu0 0.0
        %2249 = vmatprep.subr.mxu0 0.0
        %2250 = vmatpush1.msra.mxu0 0.0
        %2251 = vmatprep.subr.mxu0 0.0
        %2252 = vmatpush1.msra.mxu0 0.0
        %2253 = vmatprep.subr.mxu0 0.0
        %2254 = vmatpush1.msra.mxu0 0.0
        %2255 = vmatprep.subr.mxu0 0.0
        %2256 = vmatpush1.msra.mxu0 0.0
        %2257 = vmatprep.subr.mxu0 0.0
        %2258 = vmatpush1.msra.mxu0 0.0
        %2259 = vmatprep.subr.mxu0 0.0
        %2260 = vmatpush1.msra.mxu0 0.0
        %2261 = vmatprep.subr.mxu0 0.0
        %2262 = vmatpush1.msra.mxu0 0.0
        %2263 = vmatprep.subr.mxu0 0.0
        %2264 = vmatpush1.msra.mxu0 0.0
        %2265 = vmatprep.subr.mxu0 0.0
        %2266 = vmatpush1.msra.mxu0 0.0
        %2267 = vmatprep.mubr.f32.mxu0 0.0
        %2268 = vmatmul.mubr.f32.gmra.mrb[0].mxu0 %v2195
        %v2269 = vpop.f32.mrb[0].mxu0
        %v2270 = vadd.f32 0.0, %v2269
        %v2271 = vpop.f32.mrb[0].mxu0
        %v2272 = vadd.f32 0.0, %v2271
        %2273 = vdwg.mxu0
        %2274 = vmatprep.subr.mxu0 0.0
        %2275 = vmatpush1.msra.mxu0 %v2201
        %2276 = vmatprep.subr.mxu0 0.0
        %2277 = vmatpush1.msra.mxu0 0.0
        %2278 = vmatprep.subr.mxu0 0.0
        %2279 = vmatpush1.msra.mxu0 0.0
        %2280 = vmatprep.subr.mxu0 0.0
        %2281 = vmatpush1.msra.mxu0 0.0
        %2282 = vmatprep.subr.mxu0 0.0
        %2283 = vmatpush1.msra.mxu0 0.0
        %2284 = vmatprep.subr.mxu0 0.0
        %2285 = vmatpush1.msra.mxu0 0.0
        %2286 = vmatprep.subr.mxu0 0.0
        %2287 = vmatpush1.msra.mxu0 0.0
        %2288 = vmatprep.subr.mxu0 0.0
        %2289 = vmatpush1.msra.mxu0 0.0
        %2290 = vmatprep.subr.mxu0 0.0
        %2291 = vmatpush1.msra.mxu0 0.0
        %2292 = vmatprep.subr.mxu0 0.0
        %2293 = vmatpush1.msra.mxu0 0.0
        %2294 = vmatprep.subr.mxu0 0.0
        %2295 = vmatpush1.msra.mxu0 0.0
        %2296 = vmatprep.subr.mxu0 0.0
        %2297 = vmatpush1.msra.mxu0 0.0
        %2298 = vmatprep.subr.mxu0 0.0
        %2299 = vmatpush1.msra.mxu0 0.0
        %2300 = vmatprep.subr.mxu0 0.0
        %2301 = vmatpush1.msra.mxu0 0.0
        %2302 = vmatprep.subr.mxu0 0.0
        %2303 = vmatpush1.msra.mxu0 0.0
        %2304 = vmatprep.subr.mxu0 0.0
        %2305 = vmatpush1.msra.mxu0 0.0
        %2306 = vmatprep.subr.mxu0 0.0
        %2307 = vmatpush1.msra.mxu0 0.0
        %2308 = vmatprep.subr.mxu0 0.0
        %2309 = vmatpush1.msra.mxu0 0.0
        %2310 = vmatprep.subr.mxu0 0.0
        %2311 = vmatpush1.msra.mxu0 0.0
        %2312 = vmatprep.subr.mxu0 0.0
        %2313 = vmatpush1.msra.mxu0 0.0
        %2314 = vmatprep.subr.mxu0 0.0
        %2315 = vmatpush1.msra.mxu0 0.0
        %2316 = vmatprep.subr.mxu0 0.0
        %2317 = vmatpush1.msra.mxu0 0.0
        %2318 = vmatprep.subr.mxu0 0.0
        %2319 = vmatpush1.msra.mxu0 0.0
        %2320 = vmatprep.subr.mxu0 0.0
        %2321 = vmatpush1.msra.mxu0 0.0
        %2322 = vmatprep.subr.mxu0 0.0
        %2323 = vmatpush1.msra.mxu0 0.0
        %2324 = vmatprep.subr.mxu0 0.0
        %2325 = vmatpush1.msra.mxu0 0.0
        %2326 = vmatprep.subr.mxu0 0.0
        %2327 = vmatpush1.msra.mxu0 0.0
        %2328 = vmatprep.subr.mxu0 0.0
        %2329 = vmatpush1.msra.mxu0 0.0
        %2330 = vmatprep.subr.mxu0 0.0
        %2331 = vmatpush1.msra.mxu0 0.0
        %2332 = vmatprep.subr.mxu0 0.0
        %2333 = vmatpush1.msra.mxu0 0.0
        %2334 = vmatprep.subr.mxu0 0.0
        %2335 = vmatpush1.msra.mxu0 0.0
        %2336 = vmatprep.subr.mxu0 0.0
        %2337 = vmatpush1.msra.mxu0 0.0
        %2338 = vmatprep.mubr.f32.mxu0 0.0
        %2339 = vmatmul.mubr.f32.gmra.mrb[0].mxu0 %v2195
        %v2340 = vpop.f32.mrb[0].mxu0
        %v2341 = vadd.f32 0.0, %v2340
        %v2342 = vpop.f32.mrb[0].mxu0
        %2343 = vdwg.mxu0
        %v2344 = vadd.f32 %v2175, %v2270
        %v2345 = vadd.f32 %v2176, %v2272
        %v2346 = vadd.f32 %v2177, %v2341
        %v2347 = vld [vmem:[%s168] sm:$0xff]
        %v2348 = vld [vmem:[%s168 + $0x8] sm:$0xf]
        %s2349 = scalar_lea.vmem %s0, 104
        %v2350 = vld [vmem:[%s2349] sm:$0x3f]
        %v2353 = vcombine.high %v2347, %v2347
        %2354 = vrot.lane.b32.xlu0 %v2347, 100
        %v2355 = vpop.permute.xlu0 %2354
        %2356 = vrot.lane.b32.xlu0 %v2353, 100
        %v2357 = vpop.permute.xlu0 %2356
        %2358 = vrot.lane.b32.xlu0 %v2348, 100
        %v2359 = vpop.permute.xlu0 %2358
        %vm2360 = vcmask 818176
        %v2361 = vsel %vm2360, %v2355, %v2357
        %v2362 = vsel %vm2360, %v2357, %v2359
        %v2364 = vsel %vm186, %v2350, 0
        %v2366 = vsel %vm190, %v2361, 0
        %v2368 = vsel %vm190, %v2362, 0
        %v2370 = vsel %vm190, %v2359, 0
        %2372 = vmatprep.subr.mxu0 %v2368
        %2373 = vmatpush1.msra.mxu0 %v2366
        %2374 = vmatprep.subr.mxu0 0.0
        %2375 = vmatpush1.msra.mxu0 0.0
        %2376 = vmatprep.subr.mxu0 0.0
        %2377 = vmatpush1.msra.mxu0 0.0
        %2378 = vmatprep.subr.mxu0 0.0
        %2379 = vmatpush1.msra.mxu0 0.0
        %2380 = vmatprep.subr.mxu0 0.0
        %2381 = vmatpush1.msra.mxu0 0.0
        %2382 = vmatprep.subr.mxu0 0.0
        %2383 = vmatpush1.msra.mxu0 0.0
        %2384 = vmatprep.subr.mxu0 0.0
        %2385 = vmatpush1.msra.mxu0 0.0
        %2386 = vmatprep.subr.mxu0 0.0
        %2387 = vmatpush1.msra.mxu0 0.0
        %2388 = vmatprep.subr.mxu0 0.0
        %2389 = vmatpush1.msra.mxu0 0.0
        %2390 = vmatprep.subr.mxu0 0.0
        %2391 = vmatpush1.msra.mxu0 0.0
        %2392 = vmatprep.subr.mxu0 0.0
        %2393 = vmatpush1.msra.mxu0 0.0
        %2394 = vmatprep.subr.mxu0 0.0
        %2395 = vmatpush1.msra.mxu0 0.0
        %2396 = vmatprep.subr.mxu0 0.0
        %2397 = vmatpush1.msra.mxu0 0.0
        %2398 = vmatprep.subr.mxu0 0.0
        %2399 = vmatpush1.msra.mxu0 0.0
        %2400 = vmatprep.subr.mxu0 0.0
        %2401 = vmatpush1.msra.mxu0 0.0
        %2402 = vmatprep.subr.mxu0 0.0
        %2403 = vmatpush1.msra.mxu0 0.0
        %2404 = vmatprep.subr.mxu0 0.0
        %2405 = vmatpush1.msra.mxu0 0.0
        %2406 = vmatprep.subr.mxu0 0.0
        %2407 = vmatpush1.msra.mxu0 0.0
        %2408 = vmatprep.subr.mxu0 0.0
        %2409 = vmatpush1.msra.mxu0 0.0
        %2410 = vmatprep.subr.mxu0 0.0
        %2411 = vmatpush1.msra.mxu0 0.0
        %2412 = vmatprep.subr.mxu0 0.0
        %2413 = vmatpush1.msra.mxu0 0.0
        %2414 = vmatprep.subr.mxu0 0.0
        %2415 = vmatpush1.msra.mxu0 0.0
        %2416 = vmatprep.subr.mxu0 0.0
        %2417 = vmatpush1.msra.mxu0 0.0
        %2418 = vmatprep.subr.mxu0 0.0
        %2419 = vmatpush1.msra.mxu0 0.0
        %2420 = vmatprep.subr.mxu0 0.0
        %2421 = vmatpush1.msra.mxu0 0.0
        %2422 = vmatprep.subr.mxu0 0.0
        %2423 = vmatpush1.msra.mxu0 0.0
        %2424 = vmatprep.subr.mxu0 0.0
        %2425 = vmatpush1.msra.mxu0 0.0
        %2426 = vmatprep.subr.mxu0 0.0
        %2427 = vmatpush1.msra.mxu0 0.0
        %2428 = vmatprep.subr.mxu0 0.0
        %2429 = vmatpush1.msra.mxu0 0.0
        %2430 = vmatprep.subr.mxu0 0.0
        %2431 = vmatpush1.msra.mxu0 0.0
        %2432 = vmatprep.subr.mxu0 0.0
        %2433 = vmatpush1.msra.mxu0 0.0
        %2434 = vmatprep.subr.mxu0 0.0
        %2435 = vmatpush1.msra.mxu0 0.0
        %2436 = vmatprep.mubr.f32.mxu0 0.0
        %2437 = vmatmul.mubr.f32.gmra.mrb[0].mxu0 %v2364
        %v2438 = vpop.f32.mrb[0].mxu0
        %v2439 = vadd.f32 0.0, %v2438
        %v2440 = vpop.f32.mrb[0].mxu0
        %v2441 = vadd.f32 0.0, %v2440
        %2442 = vdwg.mxu0
        %2443 = vmatprep.subr.mxu0 0.0
        %2444 = vmatpush1.msra.mxu0 %v2370
        %2445 = vmatprep.subr.mxu0 0.0
        %2446 = vmatpush1.msra.mxu0 0.0
        %2447 = vmatprep.subr.mxu0 0.0
        %2448 = vmatpush1.msra.mxu0 0.0
        %2449 = vmatprep.subr.mxu0 0.0
        %2450 = vmatpush1.msra.mxu0 0.0
        %2451 = vmatprep.subr.mxu0 0.0
        %2452 = vmatpush1.msra.mxu0 0.0
        %2453 = vmatprep.subr.mxu0 0.0
        %2454 = vmatpush1.msra.mxu0 0.0
        %2455 = vmatprep.subr.mxu0 0.0
        %2456 = vmatpush1.msra.mxu0 0.0
        %2457 = vmatprep.subr.mxu0 0.0
        %2458 = vmatpush1.msra.mxu0 0.0
        %2459 = vmatprep.subr.mxu0 0.0
        %2460 = vmatpush1.msra.mxu0 0.0
        %2461 = vmatprep.subr.mxu0 0.0
        %2462 = vmatpush1.msra.mxu0 0.0
        %2463 = vmatprep.subr.mxu0 0.0
        %2464 = vmatpush1.msra.mxu0 0.0
        %2465 = vmatprep.subr.mxu0 0.0
        %2466 = vmatpush1.msra.mxu0 0.0
        %2467 = vmatprep.subr.mxu0 0.0
        %2468 = vmatpush1.msra.mxu0 0.0
        %2469 = vmatprep.subr.mxu0 0.0
        %2470 = vmatpush1.msra.mxu0 0.0
        %2471 = vmatprep.subr.mxu0 0.0
        %2472 = vmatpush1.msra.mxu0 0.0
        %2473 = vmatprep.subr.mxu0 0.0
        %2474 = vmatpush1.msra.mxu0 0.0
        %2475 = vmatprep.subr.mxu0 0.0
        %2476 = vmatpush1.msra.mxu0 0.0
        %2477 = vmatprep.subr.mxu0 0.0
        %2478 = vmatpush1.msra.mxu0 0.0
        %2479 = vmatprep.subr.mxu0 0.0
        %2480 = vmatpush1.msra.mxu0 0.0
        %2481 = vmatprep.subr.mxu0 0.0
        %2482 = vmatpush1.msra.mxu0 0.0
        %2483 = vmatprep.subr.mxu0 0.0
        %2484 = vmatpush1.msra.mxu0 0.0
        %2485 = vmatprep.subr.mxu0 0.0
        %2486 = vmatpush1.msra.mxu0 0.0
        %2487 = vmatprep.subr.mxu0 0.0
        %2488 = vmatpush1.msra.mxu0 0.0
        %2489 = vmatprep.subr.mxu0 0.0
        %2490 = vmatpush1.msra.mxu0 0.0
        %2491 = vmatprep.subr.mxu0 0.0
        %2492 = vmatpush1.msra.mxu0 0.0
        %2493 = vmatprep.subr.mxu0 0.0
        %2494 = vmatpush1.msra.mxu0 0.0
        %2495 = vmatprep.subr.mxu0 0.0
        %2496 = vmatpush1.msra.mxu0 0.0
        %2497 = vmatprep.subr.mxu0 0.0
        %2498 = vmatpush1.msra.mxu0 0.0
        %2499 = vmatprep.subr.mxu0 0.0
        %2500 = vmatpush1.msra.mxu0 0.0
        %2501 = vmatprep.subr.mxu0 0.0
        %2502 = vmatpush1.msra.mxu0 0.0
        %2503 = vmatprep.subr.mxu0 0.0
        %2504 = vmatpush1.msra.mxu0 0.0
        %2505 = vmatprep.subr.mxu0 0.0
        %2506 = vmatpush1.msra.mxu0 0.0
        %2507 = vmatprep.mubr.f32.mxu0 0.0
        %2508 = vmatmul.mubr.f32.gmra.mrb[0].mxu0 %v2364
        %v2509 = vpop.f32.mrb[0].mxu0
        %v2510 = vadd.f32 0.0, %v2509
        %v2511 = vpop.f32.mrb[0].mxu0
        %2512 = vdwg.mxu0
        %v2513 = vadd.f32 %v2344, %v2439
        %v2514 = vadd.f32 %v2345, %v2441
        %v2515 = vadd.f32 %v2346, %v2510
        %v2516 = vld [vmem:[%s168] sm:$0xff]
        %v2517 = vld [vmem:[%s168 + $0x8] sm:$0xff]
        %s2518 = scalar_lea.vmem %s0, 112
        %v2519 = vld [vmem:[%s2518] sm:$0x3f]
        %v2522 = vcombine.high %v2516, %v2516
        %v2523 = vcombine.high %v2517, %v2517
        %2524 = vrot.lane.b32.xlu0 %v2516, 84
        %v2525 = vpop.permute.xlu0 %2524
        %2526 = vrot.lane.b32.xlu0 %v2522, 84
        %v2527 = vpop.permute.xlu0 %2526
        %2528 = vrot.lane.b32.xlu0 %v2517, 84
        %v2529 = vpop.permute.xlu0 %2528
        %2530 = vrot.lane.b32.xlu0 %v2523, 84
        %v2531 = vpop.permute.xlu0 %2530
        %vm2532 = vcmask 687104
        %v2533 = vsel %vm2532, %v2525, %v2527
        %v2534 = vsel %vm2532, %v2527, %v2529
        %v2535 = vsel %vm2532, %v2529, %v2531
        %v2537 = vsel %vm186, %v2519, 0
        %v2539 = vsel %vm190, %v2533, 0
        %v2541 = vsel %vm190, %v2534, 0
        %v2543 = vsel %vm190, %v2535, 0
        %2545 = vmatprep.subr.mxu0 %v2541
        %2546 = vmatpush1.msra.mxu0 %v2539
        %2547 = vmatprep.subr.mxu0 0.0
        %2548 = vmatpush1.msra.mxu0 0.0
        %2549 = vmatprep.subr.mxu0 0.0
        %2550 = vmatpush1.msra.mxu0 0.0
        %2551 = vmatprep.subr.mxu0 0.0
        %2552 = vmatpush1.msra.mxu0 0.0
        %2553 = vmatprep.subr.mxu0 0.0
        %2554 = vmatpush1.msra.mxu0 0.0
        %2555 = vmatprep.subr.mxu0 0.0
        %2556 = vmatpush1.msra.mxu0 0.0
        %2557 = vmatprep.subr.mxu0 0.0
        %2558 = vmatpush1.msra.mxu0 0.0
        %2559 = vmatprep.subr.mxu0 0.0
        %2560 = vmatpush1.msra.mxu0 0.0
        %2561 = vmatprep.subr.mxu0 0.0
        %2562 = vmatpush1.msra.mxu0 0.0
        %2563 = vmatprep.subr.mxu0 0.0
        %2564 = vmatpush1.msra.mxu0 0.0
        %2565 = vmatprep.subr.mxu0 0.0
        %2566 = vmatpush1.msra.mxu0 0.0
        %2567 = vmatprep.subr.mxu0 0.0
        %2568 = vmatpush1.msra.mxu0 0.0
        %2569 = vmatprep.subr.mxu0 0.0
        %2570 = vmatpush1.msra.mxu0 0.0
        %2571 = vmatprep.subr.mxu0 0.0
        %2572 = vmatpush1.msra.mxu0 0.0
        %2573 = vmatprep.subr.mxu0 0.0
        %2574 = vmatpush1.msra.mxu0 0.0
        %2575 = vmatprep.subr.mxu0 0.0
        %2576 = vmatpush1.msra.mxu0 0.0
        %2577 = vmatprep.subr.mxu0 0.0
        %2578 = vmatpush1.msra.mxu0 0.0
        %2579 = vmatprep.subr.mxu0 0.0
        %2580 = vmatpush1.msra.mxu0 0.0
        %2581 = vmatprep.subr.mxu0 0.0
        %2582 = vmatpush1.msra.mxu0 0.0
        %2583 = vmatprep.subr.mxu0 0.0
        %2584 = vmatpush1.msra.mxu0 0.0
        %2585 = vmatprep.subr.mxu0 0.0
        %2586 = vmatpush1.msra.mxu0 0.0
        %2587 = vmatprep.subr.mxu0 0.0
        %2588 = vmatpush1.msra.mxu0 0.0
        %2589 = vmatprep.subr.mxu0 0.0
        %2590 = vmatpush1.msra.mxu0 0.0
        %2591 = vmatprep.subr.mxu0 0.0
        %2592 = vmatpush1.msra.mxu0 0.0
        %2593 = vmatprep.subr.mxu0 0.0
        %2594 = vmatpush1.msra.mxu0 0.0
        %2595 = vmatprep.subr.mxu0 0.0
        %2596 = vmatpush1.msra.mxu0 0.0
        %2597 = vmatprep.subr.mxu0 0.0
        %2598 = vmatpush1.msra.mxu0 0.0
        %2599 = vmatprep.subr.mxu0 0.0
        %2600 = vmatpush1.msra.mxu0 0.0
        %2601 = vmatprep.subr.mxu0 0.0
        %2602 = vmatpush1.msra.mxu0 0.0
        %2603 = vmatprep.subr.mxu0 0.0
        %2604 = vmatpush1.msra.mxu0 0.0
        %2605 = vmatprep.subr.mxu0 0.0
        %2606 = vmatpush1.msra.mxu0 0.0
        %2607 = vmatprep.subr.mxu0 0.0
        %2608 = vmatpush1.msra.mxu0 0.0
        %2609 = vmatprep.mubr.f32.mxu0 0.0
        %2610 = vmatmul.mubr.f32.gmra.mrb[0].mxu0 %v2537
        %v2611 = vpop.f32.mrb[0].mxu0
        %v2612 = vadd.f32 0.0, %v2611
        %v2613 = vpop.f32.mrb[0].mxu0
        %v2614 = vadd.f32 0.0, %v2613
        %2615 = vdwg.mxu0
        %2616 = vmatprep.subr.mxu0 0.0
        %2617 = vmatpush1.msra.mxu0 %v2543
        %2618 = vmatprep.subr.mxu0 0.0
        %2619 = vmatpush1.msra.mxu0 0.0
        %2620 = vmatprep.subr.mxu0 0.0
        %2621 = vmatpush1.msra.mxu0 0.0
        %2622 = vmatprep.subr.mxu0 0.0
        %2623 = vmatpush1.msra.mxu0 0.0
        %2624 = vmatprep.subr.mxu0 0.0
        %2625 = vmatpush1.msra.mxu0 0.0
        %2626 = vmatprep.subr.mxu0 0.0
        %2627 = vmatpush1.msra.mxu0 0.0
        %2628 = vmatprep.subr.mxu0 0.0
        %2629 = vmatpush1.msra.mxu0 0.0
        %2630 = vmatprep.subr.mxu0 0.0
        %2631 = vmatpush1.msra.mxu0 0.0
        %2632 = vmatprep.subr.mxu0 0.0
        %2633 = vmatpush1.msra.mxu0 0.0
        %2634 = vmatprep.subr.mxu0 0.0
        %2635 = vmatpush1.msra.mxu0 0.0
        %2636 = vmatprep.subr.mxu0 0.0
        %2637 = vmatpush1.msra.mxu0 0.0
        %2638 = vmatprep.subr.mxu0 0.0
        %2639 = vmatpush1.msra.mxu0 0.0
        %2640 = vmatprep.subr.mxu0 0.0
        %2641 = vmatpush1.msra.mxu0 0.0
        %2642 = vmatprep.subr.mxu0 0.0
        %2643 = vmatpush1.msra.mxu0 0.0
        %2644 = vmatprep.subr.mxu0 0.0
        %2645 = vmatpush1.msra.mxu0 0.0
        %2646 = vmatprep.subr.mxu0 0.0
        %2647 = vmatpush1.msra.mxu0 0.0
        %2648 = vmatprep.subr.mxu0 0.0
        %2649 = vmatpush1.msra.mxu0 0.0
        %2650 = vmatprep.subr.mxu0 0.0
        %2651 = vmatpush1.msra.mxu0 0.0
        %2652 = vmatprep.subr.mxu0 0.0
        %2653 = vmatpush1.msra.mxu0 0.0
        %2654 = vmatprep.subr.mxu0 0.0
        %2655 = vmatpush1.msra.mxu0 0.0
        %2656 = vmatprep.subr.mxu0 0.0
        %2657 = vmatpush1.msra.mxu0 0.0
        %2658 = vmatprep.subr.mxu0 0.0
        %2659 = vmatpush1.msra.mxu0 0.0
        %2660 = vmatprep.subr.mxu0 0.0
        %2661 = vmatpush1.msra.mxu0 0.0
        %2662 = vmatprep.subr.mxu0 0.0
        %2663 = vmatpush1.msra.mxu0 0.0
        %2664 = vmatprep.subr.mxu0 0.0
        %2665 = vmatpush1.msra.mxu0 0.0
        %2666 = vmatprep.subr.mxu0 0.0
        %2667 = vmatpush1.msra.mxu0 0.0
        %2668 = vmatprep.subr.mxu0 0.0
        %2669 = vmatpush1.msra.mxu0 0.0
        %2670 = vmatprep.subr.mxu0 0.0
        %2671 = vmatpush1.msra.mxu0 0.0
        %2672 = vmatprep.subr.mxu0 0.0
        %2673 = vmatpush1.msra.mxu0 0.0
        %2674 = vmatprep.subr.mxu0 0.0
        %2675 = vmatpush1.msra.mxu0 0.0
        %2676 = vmatprep.subr.mxu0 0.0
        %2677 = vmatpush1.msra.mxu0 0.0
        %2678 = vmatprep.subr.mxu0 0.0
        %2679 = vmatpush1.msra.mxu0 0.0
        %2680 = vmatprep.mubr.f32.mxu0 0.0
        %2681 = vmatmul.mubr.f32.gmra.mrb[0].mxu0 %v2537
        %v2682 = vpop.f32.mrb[0].mxu0
        %v2683 = vadd.f32 0.0, %v2682
        %v2684 = vpop.f32.mrb[0].mxu0
        %2685 = vdwg.mxu0
        %v2686 = vadd.f32 %v2513, %v2612
        %v2687 = vadd.f32 %v2514, %v2614
        %v2688 = vadd.f32 %v2515, %v2683
        %v2689 = vld [vmem:[%s168] sm:$0xff]
        %v2690 = vld [vmem:[%s168 + $0x8] sm:$0xff]
        %s2691 = scalar_lea.vmem %s0, 120
        %v2692 = vld [vmem:[%s2691] sm:$0x3f]
        %v2695 = vcombine.high %v2689, %v2689
        %v2696 = vcombine.high %v2690, %v2690
        %2697 = vrot.lane.b32.xlu0 %v2689, 83
        %v2698 = vpop.permute.xlu0 %2697
        %2699 = vrot.lane.b32.xlu0 %v2695, 83
        %v2700 = vpop.permute.xlu0 %2699
        %2701 = vrot.lane.b32.xlu0 %v2690, 83
        %v2702 = vpop.permute.xlu0 %2701
        %2703 = vrot.lane.b32.xlu0 %v2696, 83
        %v2704 = vpop.permute.xlu0 %2703
        %vm2705 = vcmask 678912
        %v2706 = vsel %vm2705, %v2698, %v2700
        %v2707 = vsel %vm2705, %v2700, %v2702
        %v2708 = vsel %vm2705, %v2702, %v2704
        %v2710 = vsel %vm186, %v2692, 0
        %v2712 = vsel %vm190, %v2706, 0
        %v2714 = vsel %vm190, %v2707, 0
        %v2716 = vsel %vm190, %v2708, 0
        %2718 = vmatprep.subr.mxu0 %v2714
        %2719 = vmatpush1.msra.mxu0 %v2712
        %2720 = vmatprep.subr.mxu0 0.0
        %2721 = vmatpush1.msra.mxu0 0.0
        %2722 = vmatprep.subr.mxu0 0.0
        %2723 = vmatpush1.msra.mxu0 0.0
        %2724 = vmatprep.subr.mxu0 0.0
        %2725 = vmatpush1.msra.mxu0 0.0
        %2726 = vmatprep.subr.mxu0 0.0
        %2727 = vmatpush1.msra.mxu0 0.0
        %2728 = vmatprep.subr.mxu0 0.0
        %2729 = vmatpush1.msra.mxu0 0.0
        %2730 = vmatprep.subr.mxu0 0.0
        %2731 = vmatpush1.msra.mxu0 0.0
        %2732 = vmatprep.subr.mxu0 0.0
        %2733 = vmatpush1.msra.mxu0 0.0
        %2734 = vmatprep.subr.mxu0 0.0
        %2735 = vmatpush1.msra.mxu0 0.0
        %2736 = vmatprep.subr.mxu0 0.0
        %2737 = vmatpush1.msra.mxu0 0.0
        %2738 = vmatprep.subr.mxu0 0.0
        %2739 = vmatpush1.msra.mxu0 0.0
        %2740 = vmatprep.subr.mxu0 0.0
        %2741 = vmatpush1.msra.mxu0 0.0
        %2742 = vmatprep.subr.mxu0 0.0
        %2743 = vmatpush1.msra.mxu0 0.0
        %2744 = vmatprep.subr.mxu0 0.0
        %2745 = vmatpush1.msra.mxu0 0.0
        %2746 = vmatprep.subr.mxu0 0.0
        %2747 = vmatpush1.msra.mxu0 0.0
        %2748 = vmatprep.subr.mxu0 0.0
        %2749 = vmatpush1.msra.mxu0 0.0
        %2750 = vmatprep.subr.mxu0 0.0
        %2751 = vmatpush1.msra.mxu0 0.0
        %2752 = vmatprep.subr.mxu0 0.0
        %2753 = vmatpush1.msra.mxu0 0.0
        %2754 = vmatprep.subr.mxu0 0.0
        %2755 = vmatpush1.msra.mxu0 0.0
        %2756 = vmatprep.subr.mxu0 0.0
        %2757 = vmatpush1.msra.mxu0 0.0
        %2758 = vmatprep.subr.mxu0 0.0
        %2759 = vmatpush1.msra.mxu0 0.0
        %2760 = vmatprep.subr.mxu0 0.0
        %2761 = vmatpush1.msra.mxu0 0.0
        %2762 = vmatprep.subr.mxu0 0.0
        %2763 = vmatpush1.msra.mxu0 0.0
        %2764 = vmatprep.subr.mxu0 0.0
        %2765 = vmatpush1.msra.mxu0 0.0
        %2766 = vmatprep.subr.mxu0 0.0
        %2767 = vmatpush1.msra.mxu0 0.0
        %2768 = vmatprep.subr.mxu0 0.0
        %2769 = vmatpush1.msra.mxu0 0.0
        %2770 = vmatprep.subr.mxu0 0.0
        %2771 = vmatpush1.msra.mxu0 0.0
        %2772 = vmatprep.subr.mxu0 0.0
        %2773 = vmatpush1.msra.mxu0 0.0
        %2774 = vmatprep.subr.mxu0 0.0
        %2775 = vmatpush1.msra.mxu0 0.0
        %2776 = vmatprep.subr.mxu0 0.0
        %2777 = vmatpush1.msra.mxu0 0.0
        %2778 = vmatprep.subr.mxu0 0.0
        %2779 = vmatpush1.msra.mxu0 0.0
        %2780 = vmatprep.subr.mxu0 0.0
        %2781 = vmatpush1.msra.mxu0 0.0
        %2782 = vmatprep.mubr.f32.mxu0 0.0
        %2783 = vmatmul.mubr.f32.gmra.mrb[0].mxu0 %v2710
        %v2784 = vpop.f32.mrb[0].mxu0
        %v2785 = vadd.f32 0.0, %v2784
        %v2786 = vpop.f32.mrb[0].mxu0
        %v2787 = vadd.f32 0.0, %v2786
        %2788 = vdwg.mxu0
        %2789 = vmatprep.subr.mxu0 0.0
        %2790 = vmatpush1.msra.mxu0 %v2716
        %2791 = vmatprep.subr.mxu0 0.0
        %2792 = vmatpush1.msra.mxu0 0.0
        %2793 = vmatprep.subr.mxu0 0.0
        %2794 = vmatpush1.msra.mxu0 0.0
        %2795 = vmatprep.subr.mxu0 0.0
        %2796 = vmatpush1.msra.mxu0 0.0
        %2797 = vmatprep.subr.mxu0 0.0
        %2798 = vmatpush1.msra.mxu0 0.0
        %2799 = vmatprep.subr.mxu0 0.0
        %2800 = vmatpush1.msra.mxu0 0.0
        %2801 = vmatprep.subr.mxu0 0.0
        %2802 = vmatpush1.msra.mxu0 0.0
        %2803 = vmatprep.subr.mxu0 0.0
        %2804 = vmatpush1.msra.mxu0 0.0
        %2805 = vmatprep.subr.mxu0 0.0
        %2806 = vmatpush1.msra.mxu0 0.0
        %2807 = vmatprep.subr.mxu0 0.0
        %2808 = vmatpush1.msra.mxu0 0.0
        %2809 = vmatprep.subr.mxu0 0.0
        %2810 = vmatpush1.msra.mxu0 0.0
        %2811 = vmatprep.subr.mxu0 0.0
        %2812 = vmatpush1.msra.mxu0 0.0
        %2813 = vmatprep.subr.mxu0 0.0
        %2814 = vmatpush1.msra.mxu0 0.0
        %2815 = vmatprep.subr.mxu0 0.0
        %2816 = vmatpush1.msra.mxu0 0.0
        %2817 = vmatprep.subr.mxu0 0.0
        %2818 = vmatpush1.msra.mxu0 0.0
        %2819 = vmatprep.subr.mxu0 0.0
        %2820 = vmatpush1.msra.mxu0 0.0
        %2821 = vmatprep.subr.mxu0 0.0
        %2822 = vmatpush1.msra.mxu0 0.0
        %2823 = vmatprep.subr.mxu0 0.0
        %2824 = vmatpush1.msra.mxu0 0.0
        %2825 = vmatprep.subr.mxu0 0.0
        %2826 = vmatpush1.msra.mxu0 0.0
        %2827 = vmatprep.subr.mxu0 0.0
        %2828 = vmatpush1.msra.mxu0 0.0
        %2829 = vmatprep.subr.mxu0 0.0
        %2830 = vmatpush1.msra.mxu0 0.0
        %2831 = vmatprep.subr.mxu0 0.0
        %2832 = vmatpush1.msra.mxu0 0.0
        %2833 = vmatprep.subr.mxu0 0.0
        %2834 = vmatpush1.msra.mxu0 0.0
        %2835 = vmatprep.subr.mxu0 0.0
        %2836 = vmatpush1.msra.mxu0 0.0
        %2837 = vmatprep.subr.mxu0 0.0
        %2838 = vmatpush1.msra.mxu0 0.0
        %2839 = vmatprep.subr.mxu0 0.0
        %2840 = vmatpush1.msra.mxu0 0.0
        %2841 = vmatprep.subr.mxu0 0.0
        %2842 = vmatpush1.msra.mxu0 0.0
        %2843 = vmatprep.subr.mxu0 0.0
        %2844 = vmatpush1.msra.mxu0 0.0
        %2845 = vmatprep.subr.mxu0 0.0
        %2846 = vmatpush1.msra.mxu0 0.0
        %2847 = vmatprep.subr.mxu0 0.0
        %2848 = vmatpush1.msra.mxu0 0.0
        %2849 = vmatprep.subr.mxu0 0.0
        %2850 = vmatpush1.msra.mxu0 0.0
        %2851 = vmatprep.subr.mxu0 0.0
        %2852 = vmatpush1.msra.mxu0 0.0
        %2853 = vmatprep.mubr.f32.mxu0 0.0
        %2854 = vmatmul.mubr.f32.gmra.mrb[0].mxu0 %v2710
        %v2855 = vpop.f32.mrb[0].mxu0
        %v2856 = vadd.f32 0.0, %v2855
        %v2857 = vpop.f32.mrb[0].mxu0
        %2858 = vdwg.mxu0
        %v2859 = vadd.f32 %v2686, %v2785
        %v2860 = vadd.f32 %v2687, %v2787
        %v2861 = vadd.f32 %v2688, %v2856
        %v2862 = vld [vmem:[%s168] sm:$0xff]
        %v2863 = vld [vmem:[%s168 + $0x8] sm:$0xff]
        %s2864 = scalar_lea.vmem %s0, 128
        %v2865 = vld [vmem:[%s2864] sm:$0x3f]
        %v2868 = vcombine.high %v2862, %v2862
        %v2869 = vcombine.high %v2863, %v2863
        %2870 = vrot.lane.b32.xlu0 %v2862, 82
        %v2871 = vpop.permute.xlu0 %2870
        %2872 = vrot.lane.b32.xlu0 %v2868, 82
        %v2873 = vpop.permute.xlu0 %2872
        %2874 = vrot.lane.b32.xlu0 %v2863, 82
        %v2875 = vpop.permute.xlu0 %2874
        %2876 = vrot.lane.b32.xlu0 %v2869, 82
        %v2877 = vpop.permute.xlu0 %2876
        %vm2878 = vcmask 670720
        %v2879 = vsel %vm2878, %v2871, %v2873
        %v2880 = vsel %vm2878, %v2873, %v2875
        %v2881 = vsel %vm2878, %v2875, %v2877
        %v2883 = vsel %vm186, %v2865, 0
        %v2885 = vsel %vm190, %v2879, 0
        %v2887 = vsel %vm190, %v2880, 0
        %v2889 = vsel %vm190, %v2881, 0
        %2891 = vmatprep.subr.mxu0 %v2887
        %2892 = vmatpush1.msra.mxu0 %v2885
        %2893 = vmatprep.subr.mxu0 0.0
        %2894 = vmatpush1.msra.mxu0 0.0
        %2895 = vmatprep.subr.mxu0 0.0
        %2896 = vmatpush1.msra.mxu0 0.0
        %2897 = vmatprep.subr.mxu0 0.0
        %2898 = vmatpush1.msra.mxu0 0.0
        %2899 = vmatprep.subr.mxu0 0.0
        %2900 = vmatpush1.msra.mxu0 0.0
        %2901 = vmatprep.subr.mxu0 0.0
        %2902 = vmatpush1.msra.mxu0 0.0
        %2903 = vmatprep.subr.mxu0 0.0
        %2904 = vmatpush1.msra.mxu0 0.0
        %2905 = vmatprep.subr.mxu0 0.0
        %2906 = vmatpush1.msra.mxu0 0.0
        %2907 = vmatprep.subr.mxu0 0.0
        %2908 = vmatpush1.msra.mxu0 0.0
        %2909 = vmatprep.subr.mxu0 0.0
        %2910 = vmatpush1.msra.mxu0 0.0
        %2911 = vmatprep.subr.mxu0 0.0
        %2912 = vmatpush1.msra.mxu0 0.0
        %2913 = vmatprep.subr.mxu0 0.0
        %2914 = vmatpush1.msra.mxu0 0.0
        %2915 = vmatprep.subr.mxu0 0.0
        %2916 = vmatpush1.msra.mxu0 0.0
        %2917 = vmatprep.subr.mxu0 0.0
        %2918 = vmatpush1.msra.mxu0 0.0
        %2919 = vmatprep.subr.mxu0 0.0
        %2920 = vmatpush1.msra.mxu0 0.0
        %2921 = vmatprep.subr.mxu0 0.0
        %2922 = vmatpush1.msra.mxu0 0.0
        %2923 = vmatprep.subr.mxu0 0.0
        %2924 = vmatpush1.msra.mxu0 0.0
        %2925 = vmatprep.subr.mxu0 0.0
        %2926 = vmatpush1.msra.mxu0 0.0
        %2927 = vmatprep.subr.mxu0 0.0
        %2928 = vmatpush1.msra.mxu0 0.0
        %2929 = vmatprep.subr.mxu0 0.0
        %2930 = vmatpush1.msra.mxu0 0.0
        %2931 = vmatprep.subr.mxu0 0.0
        %2932 = vmatpush1.msra.mxu0 0.0
        %2933 = vmatprep.subr.mxu0 0.0
        %2934 = vmatpush1.msra.mxu0 0.0
        %2935 = vmatprep.subr.mxu0 0.0
        %2936 = vmatpush1.msra.mxu0 0.0
        %2937 = vmatprep.subr.mxu0 0.0
        %2938 = vmatpush1.msra.mxu0 0.0
        %2939 = vmatprep.subr.mxu0 0.0
        %2940 = vmatpush1.msra.mxu0 0.0
        %2941 = vmatprep.subr.mxu0 0.0
        %2942 = vmatpush1.msra.mxu0 0.0
        %2943 = vmatprep.subr.mxu0 0.0
        %2944 = vmatpush1.msra.mxu0 0.0
        %2945 = vmatprep.subr.mxu0 0.0
        %2946 = vmatpush1.msra.mxu0 0.0
        %2947 = vmatprep.subr.mxu0 0.0
        %2948 = vmatpush1.msra.mxu0 0.0
        %2949 = vmatprep.subr.mxu0 0.0
        %2950 = vmatpush1.msra.mxu0 0.0
        %2951 = vmatprep.subr.mxu0 0.0
        %2952 = vmatpush1.msra.mxu0 0.0
        %2953 = vmatprep.subr.mxu0 0.0
        %2954 = vmatpush1.msra.mxu0 0.0
        %2955 = vmatprep.mubr.f32.mxu0 0.0
        %2956 = vmatmul.mubr.f32.gmra.mrb[0].mxu0 %v2883
        %v2957 = vpop.f32.mrb[0].mxu0
        %v2958 = vadd.f32 0.0, %v2957
        %v2959 = vpop.f32.mrb[0].mxu0
        %v2960 = vadd.f32 0.0, %v2959
        %2961 = vdwg.mxu0
        %2962 = vmatprep.subr.mxu0 0.0
        %2963 = vmatpush1.msra.mxu0 %v2889
        %2964 = vmatprep.subr.mxu0 0.0
        %2965 = vmatpush1.msra.mxu0 0.0
        %2966 = vmatprep.subr.mxu0 0.0
        %2967 = vmatpush1.msra.mxu0 0.0
        %2968 = vmatprep.subr.mxu0 0.0
        %2969 = vmatpush1.msra.mxu0 0.0
        %2970 = vmatprep.subr.mxu0 0.0
        %2971 = vmatpush1.msra.mxu0 0.0
        %2972 = vmatprep.subr.mxu0 0.0
        %2973 = vmatpush1.msra.mxu0 0.0
        %2974 = vmatprep.subr.mxu0 0.0
        %2975 = vmatpush1.msra.mxu0 0.0
        %2976 = vmatprep.subr.mxu0 0.0
        %2977 = vmatpush1.msra.mxu0 0.0
        %2978 = vmatprep.subr.mxu0 0.0
        %2979 = vmatpush1.msra.mxu0 0.0
        %2980 = vmatprep.subr.mxu0 0.0
        %2981 = vmatpush1.msra.mxu0 0.0
        %2982 = vmatprep.subr.mxu0 0.0
        %2983 = vmatpush1.msra.mxu0 0.0
        %2984 = vmatprep.subr.mxu0 0.0
        %2985 = vmatpush1.msra.mxu0 0.0
        %2986 = vmatprep.subr.mxu0 0.0
        %2987 = vmatpush1.msra.mxu0 0.0
        %2988 = vmatprep.subr.mxu0 0.0
        %2989 = vmatpush1.msra.mxu0 0.0
        %2990 = vmatprep.subr.mxu0 0.0
        %2991 = vmatpush1.msra.mxu0 0.0
        %2992 = vmatprep.subr.mxu0 0.0
        %2993 = vmatpush1.msra.mxu0 0.0
        %2994 = vmatprep.subr.mxu0 0.0
        %2995 = vmatpush1.msra.mxu0 0.0
        %2996 = vmatprep.subr.mxu0 0.0
        %2997 = vmatpush1.msra.mxu0 0.0
        %2998 = vmatprep.subr.mxu0 0.0
        %2999 = vmatpush1.msra.mxu0 0.0
        %3000 = vmatprep.subr.mxu0 0.0
        %3001 = vmatpush1.msra.mxu0 0.0
        %3002 = vmatprep.subr.mxu0 0.0
        %3003 = vmatpush1.msra.mxu0 0.0
        %3004 = vmatprep.subr.mxu0 0.0
        %3005 = vmatpush1.msra.mxu0 0.0
        %3006 = vmatprep.subr.mxu0 0.0
        %3007 = vmatpush1.msra.mxu0 0.0
        %3008 = vmatprep.subr.mxu0 0.0
        %3009 = vmatpush1.msra.mxu0 0.0
        %3010 = vmatprep.subr.mxu0 0.0
        %3011 = vmatpush1.msra.mxu0 0.0
        %3012 = vmatprep.subr.mxu0 0.0
        %3013 = vmatpush1.msra.mxu0 0.0
        %3014 = vmatprep.subr.mxu0 0.0
        %3015 = vmatpush1.msra.mxu0 0.0
        %3016 = vmatprep.subr.mxu0 0.0
        %3017 = vmatpush1.msra.mxu0 0.0
        %3018 = vmatprep.subr.mxu0 0.0
        %3019 = vmatpush1.msra.mxu0 0.0
        %3020 = vmatprep.subr.mxu0 0.0
        %3021 = vmatpush1.msra.mxu0 0.0
        %3022 = vmatprep.subr.mxu0 0.0
        %3023 = vmatpush1.msra.mxu0 0.0
        %3024 = vmatprep.subr.mxu0 0.0
        %3025 = vmatpush1.msra.mxu0 0.0
        %3026 = vmatprep.mubr.f32.mxu0 0.0
        %3027 = vmatmul.mubr.f32.gmra.mrb[0].mxu0 %v2883
        %v3028 = vpop.f32.mrb[0].mxu0
        %v3029 = vadd.f32 0.0, %v3028
        %v3030 = vpop.f32.mrb[0].mxu0
        %3031 = vdwg.mxu0
        %v3032 = vadd.f32 %v2859, %v2958
        %v3033 = vadd.f32 %v2860, %v2960
        %v3034 = vadd.f32 %v2861, %v3029
        %v3035 = vld [vmem:[%s168] sm:$0xff]
        %v3036 = vld [vmem:[%s168 + $0x8] sm:$0xff]
        %s3037 = scalar_lea.vmem %s0, 136
        %v3038 = vld [vmem:[%s3037] sm:$0x3f]
        %v3041 = vcombine.high %v3035, %v3035
        %v3042 = vcombine.high %v3036, %v3036
        %3043 = vrot.lane.b32.xlu0 %v3035, 81
        %v3044 = vpop.permute.xlu0 %3043
        %3045 = vrot.lane.b32.xlu0 %v3041, 81
        %v3046 = vpop.permute.xlu0 %3045
        %3047 = vrot.lane.b32.xlu0 %v3036, 81
        %v3048 = vpop.permute.xlu0 %3047
        %3049 = vrot.lane.b32.xlu0 %v3042, 81
        %v3050 = vpop.permute.xlu0 %3049
        %vm3051 = vcmask 662528
        %v3052 = vsel %vm3051, %v3044, %v3046
        %v3053 = vsel %vm3051, %v3046, %v3048
        %v3054 = vsel %vm3051, %v3048, %v3050
        %v3056 = vsel %vm186, %v3038, 0
        %v3058 = vsel %vm190, %v3052, 0
        %v3060 = vsel %vm190, %v3053, 0
        %v3062 = vsel %vm190, %v3054, 0
        %3064 = vmatprep.subr.mxu0 %v3060
        %3065 = vmatpush1.msra.mxu0 %v3058
        %3066 = vmatprep.subr.mxu0 0.0
        %3067 = vmatpush1.msra.mxu0 0.0
        %3068 = vmatprep.subr.mxu0 0.0
        %3069 = vmatpush1.msra.mxu0 0.0
        %3070 = vmatprep.subr.mxu0 0.0
        %3071 = vmatpush1.msra.mxu0 0.0
        %3072 = vmatprep.subr.mxu0 0.0
        %3073 = vmatpush1.msra.mxu0 0.0
        %3074 = vmatprep.subr.mxu0 0.0
        %3075 = vmatpush1.msra.mxu0 0.0
        %3076 = vmatprep.subr.mxu0 0.0
        %3077 = vmatpush1.msra.mxu0 0.0
        %3078 = vmatprep.subr.mxu0 0.0
        %3079 = vmatpush1.msra.mxu0 0.0
        %3080 = vmatprep.subr.mxu0 0.0
        %3081 = vmatpush1.msra.mxu0 0.0
        %3082 = vmatprep.subr.mxu0 0.0
        %3083 = vmatpush1.msra.mxu0 0.0
        %3084 = vmatprep.subr.mxu0 0.0
        %3085 = vmatpush1.msra.mxu0 0.0
        %3086 = vmatprep.subr.mxu0 0.0
        %3087 = vmatpush1.msra.mxu0 0.0
        %3088 = vmatprep.subr.mxu0 0.0
        %3089 = vmatpush1.msra.mxu0 0.0
        %3090 = vmatprep.subr.mxu0 0.0
        %3091 = vmatpush1.msra.mxu0 0.0
        %3092 = vmatprep.subr.mxu0 0.0
        %3093 = vmatpush1.msra.mxu0 0.0
        %3094 = vmatprep.subr.mxu0 0.0
        %3095 = vmatpush1.msra.mxu0 0.0
        %3096 = vmatprep.subr.mxu0 0.0
        %3097 = vmatpush1.msra.mxu0 0.0
        %3098 = vmatprep.subr.mxu0 0.0
        %3099 = vmatpush1.msra.mxu0 0.0
        %3100 = vmatprep.subr.mxu0 0.0
        %3101 = vmatpush1.msra.mxu0 0.0
        %3102 = vmatprep.subr.mxu0 0.0
        %3103 = vmatpush1.msra.mxu0 0.0
        %3104 = vmatprep.subr.mxu0 0.0
        %3105 = vmatpush1.msra.mxu0 0.0
        %3106 = vmatprep.subr.mxu0 0.0
        %3107 = vmatpush1.msra.mxu0 0.0
        %3108 = vmatprep.subr.mxu0 0.0
        %3109 = vmatpush1.msra.mxu0 0.0
        %3110 = vmatprep.subr.mxu0 0.0
        %3111 = vmatpush1.msra.mxu0 0.0
        %3112 = vmatprep.subr.mxu0 0.0
        %3113 = vmatpush1.msra.mxu0 0.0
        %3114 = vmatprep.subr.mxu0 0.0
        %3115 = vmatpush1.msra.mxu0 0.0
        %3116 = vmatprep.subr.mxu0 0.0
        %3117 = vmatpush1.msra.mxu0 0.0
        %3118 = vmatprep.subr.mxu0 0.0
        %3119 = vmatpush1.msra.mxu0 0.0
        %3120 = vmatprep.subr.mxu0 0.0
        %3121 = vmatpush1.msra.mxu0 0.0
        %3122 = vmatprep.subr.mxu0 0.0
        %3123 = vmatpush1.msra.mxu0 0.0
        %3124 = vmatprep.subr.mxu0 0.0
        %3125 = vmatpush1.msra.mxu0 0.0
        %3126 = vmatprep.subr.mxu0 0.0
        %3127 = vmatpush1.msra.mxu0 0.0
        %3128 = vmatprep.mubr.f32.mxu0 0.0
        %3129 = vmatmul.mubr.f32.gmra.mrb[0].mxu0 %v3056
        %v3130 = vpop.f32.mrb[0].mxu0
        %v3131 = vadd.f32 0.0, %v3130
        %v3132 = vpop.f32.mrb[0].mxu0
        %v3133 = vadd.f32 0.0, %v3132
        %3134 = vdwg.mxu0
        %3135 = vmatprep.subr.mxu0 0.0
        %3136 = vmatpush1.msra.mxu0 %v3062
        %3137 = vmatprep.subr.mxu0 0.0
        %3138 = vmatpush1.msra.mxu0 0.0
        %3139 = vmatprep.subr.mxu0 0.0
        %3140 = vmatpush1.msra.mxu0 0.0
        %3141 = vmatprep.subr.mxu0 0.0
        %3142 = vmatpush1.msra.mxu0 0.0
        %3143 = vmatprep.subr.mxu0 0.0
        %3144 = vmatpush1.msra.mxu0 0.0
        %3145 = vmatprep.subr.mxu0 0.0
        %3146 = vmatpush1.msra.mxu0 0.0
        %3147 = vmatprep.subr.mxu0 0.0
        %3148 = vmatpush1.msra.mxu0 0.0
        %3149 = vmatprep.subr.mxu0 0.0
        %3150 = vmatpush1.msra.mxu0 0.0
        %3151 = vmatprep.subr.mxu0 0.0
        %3152 = vmatpush1.msra.mxu0 0.0
        %3153 = vmatprep.subr.mxu0 0.0
        %3154 = vmatpush1.msra.mxu0 0.0
        %3155 = vmatprep.subr.mxu0 0.0
        %3156 = vmatpush1.msra.mxu0 0.0
        %3157 = vmatprep.subr.mxu0 0.0
        %3158 = vmatpush1.msra.mxu0 0.0
        %3159 = vmatprep.subr.mxu0 0.0
        %3160 = vmatpush1.msra.mxu0 0.0
        %3161 = vmatprep.subr.mxu0 0.0
        %3162 = vmatpush1.msra.mxu0 0.0
        %3163 = vmatprep.subr.mxu0 0.0
        %3164 = vmatpush1.msra.mxu0 0.0
        %3165 = vmatprep.subr.mxu0 0.0
        %3166 = vmatpush1.msra.mxu0 0.0
        %3167 = vmatprep.subr.mxu0 0.0
        %3168 = vmatpush1.msra.mxu0 0.0
        %3169 = vmatprep.subr.mxu0 0.0
        %3170 = vmatpush1.msra.mxu0 0.0
        %3171 = vmatprep.subr.mxu0 0.0
        %3172 = vmatpush1.msra.mxu0 0.0
        %3173 = vmatprep.subr.mxu0 0.0
        %3174 = vmatpush1.msra.mxu0 0.0
        %3175 = vmatprep.subr.mxu0 0.0
        %3176 = vmatpush1.msra.mxu0 0.0
        %3177 = vmatprep.subr.mxu0 0.0
        %3178 = vmatpush1.msra.mxu0 0.0
        %3179 = vmatprep.subr.mxu0 0.0
        %3180 = vmatpush1.msra.mxu0 0.0
        %3181 = vmatprep.subr.mxu0 0.0
        %3182 = vmatpush1.msra.mxu0 0.0
        %3183 = vmatprep.subr.mxu0 0.0
        %3184 = vmatpush1.msra.mxu0 0.0
        %3185 = vmatprep.subr.mxu0 0.0
        %3186 = vmatpush1.msra.mxu0 0.0
        %3187 = vmatprep.subr.mxu0 0.0
        %3188 = vmatpush1.msra.mxu0 0.0
        %3189 = vmatprep.subr.mxu0 0.0
        %3190 = vmatpush1.msra.mxu0 0.0
        %3191 = vmatprep.subr.mxu0 0.0
        %3192 = vmatpush1.msra.mxu0 0.0
        %3193 = vmatprep.subr.mxu0 0.0
        %3194 = vmatpush1.msra.mxu0 0.0
        %3195 = vmatprep.subr.mxu0 0.0
        %3196 = vmatpush1.msra.mxu0 0.0
        %3197 = vmatprep.subr.mxu0 0.0
        %3198 = vmatpush1.msra.mxu0 0.0
        %3199 = vmatprep.mubr.f32.mxu0 0.0
        %3200 = vmatmul.mubr.f32.gmra.mrb[0].mxu0 %v3056
        %v3201 = vpop.f32.mrb[0].mxu0
        %v3202 = vadd.f32 0.0, %v3201
        %v3203 = vpop.f32.mrb[0].mxu0
        %3204 = vdwg.mxu0
        %v3205 = vadd.f32 %v3032, %v3131
        %v3206 = vadd.f32 %v3033, %v3133
        %v3207 = vadd.f32 %v3034, %v3202
        %v3208 = vld [vmem:[%s168] sm:$0xff]
        %v3209 = vld [vmem:[%s168 + $0x8] sm:$0xff]
        %s3210 = scalar_lea.vmem %s0, 144
        %v3211 = vld [vmem:[%s3210] sm:$0x3f]
        %v3214 = vcombine.high %v3208, %v3208
        %v3215 = vcombine.high %v3209, %v3209
        %3216 = vrot.lane.b32.xlu0 %v3208, 80
        %v3217 = vpop.permute.xlu0 %3216
        %3218 = vrot.lane.b32.xlu0 %v3214, 80
        %v3219 = vpop.permute.xlu0 %3218
        %3220 = vrot.lane.b32.xlu0 %v3209, 80
        %v3221 = vpop.permute.xlu0 %3220
        %3222 = vrot.lane.b32.xlu0 %v3215, 80
        %v3223 = vpop.permute.xlu0 %3222
        %vm3224 = vcmask 654336
        %v3225 = vsel %vm3224, %v3217, %v3219
        %v3226 = vsel %vm3224, %v3219, %v3221
        %v3227 = vsel %vm3224, %v3221, %v3223
        %v3229 = vsel %vm186, %v3211, 0
        %v3231 = vsel %vm190, %v3225, 0
        %v3233 = vsel %vm190, %v3226, 0
        %v3235 = vsel %vm190, %v3227, 0
        %3237 = vmatprep.subr.mxu0 %v3233
        %3238 = vmatpush1.msra.mxu0 %v3231
        %3239 = vmatprep.subr.mxu0 0.0
        %3240 = vmatpush1.msra.mxu0 0.0
        %3241 = vmatprep.subr.mxu0 0.0
        %3242 = vmatpush1.msra.mxu0 0.0
        %3243 = vmatprep.subr.mxu0 0.0
        %3244 = vmatpush1.msra.mxu0 0.0
        %3245 = vmatprep.subr.mxu0 0.0
        %3246 = vmatpush1.msra.mxu0 0.0
        %3247 = vmatprep.subr.mxu0 0.0
        %3248 = vmatpush1.msra.mxu0 0.0
        %3249 = vmatprep.subr.mxu0 0.0
        %3250 = vmatpush1.msra.mxu0 0.0
        %3251 = vmatprep.subr.mxu0 0.0
        %3252 = vmatpush1.msra.mxu0 0.0
        %3253 = vmatprep.subr.mxu0 0.0
        %3254 = vmatpush1.msra.mxu0 0.0
        %3255 = vmatprep.subr.mxu0 0.0
        %3256 = vmatpush1.msra.mxu0 0.0
        %3257 = vmatprep.subr.mxu0 0.0
        %3258 = vmatpush1.msra.mxu0 0.0
        %3259 = vmatprep.subr.mxu0 0.0
        %3260 = vmatpush1.msra.mxu0 0.0
        %3261 = vmatprep.subr.mxu0 0.0
        %3262 = vmatpush1.msra.mxu0 0.0
        %3263 = vmatprep.subr.mxu0 0.0
        %3264 = vmatpush1.msra.mxu0 0.0
        %3265 = vmatprep.subr.mxu0 0.0
        %3266 = vmatpush1.msra.mxu0 0.0
        %3267 = vmatprep.subr.mxu0 0.0
        %3268 = vmatpush1.msra.mxu0 0.0
        %3269 = vmatprep.subr.mxu0 0.0
        %3270 = vmatpush1.msra.mxu0 0.0
        %3271 = vmatprep.subr.mxu0 0.0
        %3272 = vmatpush1.msra.mxu0 0.0
        %3273 = vmatprep.subr.mxu0 0.0
        %3274 = vmatpush1.msra.mxu0 0.0
        %3275 = vmatprep.subr.mxu0 0.0
        %3276 = vmatpush1.msra.mxu0 0.0
        %3277 = vmatprep.subr.mxu0 0.0
        %3278 = vmatpush1.msra.mxu0 0.0
        %3279 = vmatprep.subr.mxu0 0.0
        %3280 = vmatpush1.msra.mxu0 0.0
        %3281 = vmatprep.subr.mxu0 0.0
        %3282 = vmatpush1.msra.mxu0 0.0
        %3283 = vmatprep.subr.mxu0 0.0
        %3284 = vmatpush1.msra.mxu0 0.0
        %3285 = vmatprep.subr.mxu0 0.0
        %3286 = vmatpush1.msra.mxu0 0.0
        %3287 = vmatprep.subr.mxu0 0.0
        %3288 = vmatpush1.msra.mxu0 0.0
        %3289 = vmatprep.subr.mxu0 0.0
        %3290 = vmatpush1.msra.mxu0 0.0
        %3291 = vmatprep.subr.mxu0 0.0
        %3292 = vmatpush1.msra.mxu0 0.0
        %3293 = vmatprep.subr.mxu0 0.0
        %3294 = vmatpush1.msra.mxu0 0.0
        %3295 = vmatprep.subr.mxu0 0.0
        %3296 = vmatpush1.msra.mxu0 0.0
        %3297 = vmatprep.subr.mxu0 0.0
        %3298 = vmatpush1.msra.mxu0 0.0
        %3299 = vmatprep.subr.mxu0 0.0
        %3300 = vmatpush1.msra.mxu0 0.0
        %3301 = vmatprep.mubr.f32.mxu0 0.0
        %3302 = vmatmul.mubr.f32.gmra.mrb[0].mxu0 %v3229
        %v3303 = vpop.f32.mrb[0].mxu0
        %v3304 = vadd.f32 0.0, %v3303
        %v3305 = vpop.f32.mrb[0].mxu0
        %v3306 = vadd.f32 0.0, %v3305
        %3307 = vdwg.mxu0
        %3308 = vmatprep.subr.mxu0 0.0
        %3309 = vmatpush1.msra.mxu0 %v3235
        %3310 = vmatprep.subr.mxu0 0.0
        %3311 = vmatpush1.msra.mxu0 0.0
        %3312 = vmatprep.subr.mxu0 0.0
        %3313 = vmatpush1.msra.mxu0 0.0
        %3314 = vmatprep.subr.mxu0 0.0
        %3315 = vmatpush1.msra.mxu0 0.0
        %3316 = vmatprep.subr.mxu0 0.0
        %3317 = vmatpush1.msra.mxu0 0.0
        %3318 = vmatprep.subr.mxu0 0.0
        %3319 = vmatpush1.msra.mxu0 0.0
        %3320 = vmatprep.subr.mxu0 0.0
        %3321 = vmatpush1.msra.mxu0 0.0
        %3322 = vmatprep.subr.mxu0 0.0
        %3323 = vmatpush1.msra.mxu0 0.0
        %3324 = vmatprep.subr.mxu0 0.0
        %3325 = vmatpush1.msra.mxu0 0.0
        %3326 = vmatprep.subr.mxu0 0.0
        %3327 = vmatpush1.msra.mxu0 0.0
        %3328 = vmatprep.subr.mxu0 0.0
        %3329 = vmatpush1.msra.mxu0 0.0
        %3330 = vmatprep.subr.mxu0 0.0
        %3331 = vmatpush1.msra.mxu0 0.0
        %3332 = vmatprep.subr.mxu0 0.0
        %3333 = vmatpush1.msra.mxu0 0.0
        %3334 = vmatprep.subr.mxu0 0.0
        %3335 = vmatpush1.msra.mxu0 0.0
        %3336 = vmatprep.subr.mxu0 0.0
        %3337 = vmatpush1.msra.mxu0 0.0
        %3338 = vmatprep.subr.mxu0 0.0
        %3339 = vmatpush1.msra.mxu0 0.0
        %3340 = vmatprep.subr.mxu0 0.0
        %3341 = vmatpush1.msra.mxu0 0.0
        %3342 = vmatprep.subr.mxu0 0.0
        %3343 = vmatpush1.msra.mxu0 0.0
        %3344 = vmatprep.subr.mxu0 0.0
        %3345 = vmatpush1.msra.mxu0 0.0
        %3346 = vmatprep.subr.mxu0 0.0
        %3347 = vmatpush1.msra.mxu0 0.0
        %3348 = vmatprep.subr.mxu0 0.0
        %3349 = vmatpush1.msra.mxu0 0.0
        %3350 = vmatprep.subr.mxu0 0.0
        %3351 = vmatpush1.msra.mxu0 0.0
        %3352 = vmatprep.subr.mxu0 0.0
        %3353 = vmatpush1.msra.mxu0 0.0
        %3354 = vmatprep.subr.mxu0 0.0
        %3355 = vmatpush1.msra.mxu0 0.0
        %3356 = vmatprep.subr.mxu0 0.0
        %3357 = vmatpush1.msra.mxu0 0.0
        %3358 = vmatprep.subr.mxu0 0.0
        %3359 = vmatpush1.msra.mxu0 0.0
        %3360 = vmatprep.subr.mxu0 0.0
        %3361 = vmatpush1.msra.mxu0 0.0
        %3362 = vmatprep.subr.mxu0 0.0
        %3363 = vmatpush1.msra.mxu0 0.0
        %3364 = vmatprep.subr.mxu0 0.0
        %3365 = vmatpush1.msra.mxu0 0.0
        %3366 = vmatprep.subr.mxu0 0.0
        %3367 = vmatpush1.msra.mxu0 0.0
        %3368 = vmatprep.subr.mxu0 0.0
        %3369 = vmatpush1.msra.mxu0 0.0
        %3370 = vmatprep.subr.mxu0 0.0
        %3371 = vmatpush1.msra.mxu0 0.0
        %3372 = vmatprep.mubr.f32.mxu0 0.0
        %3373 = vmatmul.mubr.f32.gmra.mrb[0].mxu0 %v3229
        %v3374 = vpop.f32.mrb[0].mxu0
        %v3375 = vadd.f32 0.0, %v3374
        %v3376 = vpop.f32.mrb[0].mxu0
        %3377 = vdwg.mxu0
        %v3378 = vadd.f32 %v3205, %v3304
        %v3379 = vadd.f32 %v3206, %v3306
        %v3380 = vadd.f32 %v3207, %v3375
        %v3381 = vld [vmem:[%s168] sm:$0xff]
        %v3382 = vld [vmem:[%s168 + $0x8] sm:$0xff]
        %s3383 = scalar_lea.vmem %s0, 152
        %v3384 = vld [vmem:[%s3383] sm:$0x3f]
        %v3387 = vcombine.high %v3381, %v3381
        %v3388 = vcombine.high %v3382, %v3382
        %3389 = vrot.lane.b32.xlu0 %v3381, 79
        %v3390 = vpop.permute.xlu0 %3389
        %3391 = vrot.lane.b32.xlu0 %v3387, 79
        %v3392 = vpop.permute.xlu0 %3391
        %3393 = vrot.lane.b32.xlu0 %v3382, 79
        %v3394 = vpop.permute.xlu0 %3393
        %3395 = vrot.lane.b32.xlu0 %v3388, 79
        %v3396 = vpop.permute.xlu0 %3395
        %vm3397 = vcmask 646144
        %v3398 = vsel %vm3397, %v3390, %v3392
        %v3399 = vsel %vm3397, %v3392, %v3394
        %v3400 = vsel %vm3397, %v3394, %v3396
        %v3402 = vsel %vm186, %v3384, 0
        %v3404 = vsel %vm190, %v3398, 0
        %v3406 = vsel %vm190, %v3399, 0
        %v3408 = vsel %vm190, %v3400, 0
        %3410 = vmatprep.subr.mxu0 %v3406
        %3411 = vmatpush1.msra.mxu0 %v3404
        %3412 = vmatprep.subr.mxu0 0.0
        %3413 = vmatpush1.msra.mxu0 0.0
        %3414 = vmatprep.subr.mxu0 0.0
        %3415 = vmatpush1.msra.mxu0 0.0
        %3416 = vmatprep.subr.mxu0 0.0
        %3417 = vmatpush1.msra.mxu0 0.0
        %3418 = vmatprep.subr.mxu0 0.0
        %3419 = vmatpush1.msra.mxu0 0.0
        %3420 = vmatprep.subr.mxu0 0.0
        %3421 = vmatpush1.msra.mxu0 0.0
        %3422 = vmatprep.subr.mxu0 0.0
        %3423 = vmatpush1.msra.mxu0 0.0
        %3424 = vmatprep.subr.mxu0 0.0
        %3425 = vmatpush1.msra.mxu0 0.0
        %3426 = vmatprep.subr.mxu0 0.0
        %3427 = vmatpush1.msra.mxu0 0.0
        %3428 = vmatprep.subr.mxu0 0.0
        %3429 = vmatpush1.msra.mxu0 0.0
        %3430 = vmatprep.subr.mxu0 0.0
        %3431 = vmatpush1.msra.mxu0 0.0
        %3432 = vmatprep.subr.mxu0 0.0
        %3433 = vmatpush1.msra.mxu0 0.0
        %3434 = vmatprep.subr.mxu0 0.0
        %3435 = vmatpush1.msra.mxu0 0.0
        %3436 = vmatprep.subr.mxu0 0.0
        %3437 = vmatpush1.msra.mxu0 0.0
        %3438 = vmatprep.subr.mxu0 0.0
        %3439 = vmatpush1.msra.mxu0 0.0
        %3440 = vmatprep.subr.mxu0 0.0
        %3441 = vmatpush1.msra.mxu0 0.0
        %3442 = vmatprep.subr.mxu0 0.0
        %3443 = vmatpush1.msra.mxu0 0.0
        %3444 = vmatprep.subr.mxu0 0.0
        %3445 = vmatpush1.msra.mxu0 0.0
        %3446 = vmatprep.subr.mxu0 0.0
        %3447 = vmatpush1.msra.mxu0 0.0
        %3448 = vmatprep.subr.mxu0 0.0
        %3449 = vmatpush1.msra.mxu0 0.0
        %3450 = vmatprep.subr.mxu0 0.0
        %3451 = vmatpush1.msra.mxu0 0.0
        %3452 = vmatprep.subr.mxu0 0.0
        %3453 = vmatpush1.msra.mxu0 0.0
        %3454 = vmatprep.subr.mxu0 0.0
        %3455 = vmatpush1.msra.mxu0 0.0
        %3456 = vmatprep.subr.mxu0 0.0
        %3457 = vmatpush1.msra.mxu0 0.0
        %3458 = vmatprep.subr.mxu0 0.0
        %3459 = vmatpush1.msra.mxu0 0.0
        %3460 = vmatprep.subr.mxu0 0.0
        %3461 = vmatpush1.msra.mxu0 0.0
        %3462 = vmatprep.subr.mxu0 0.0
        %3463 = vmatpush1.msra.mxu0 0.0
        %3464 = vmatprep.subr.mxu0 0.0
        %3465 = vmatpush1.msra.mxu0 0.0
        %3466 = vmatprep.subr.mxu0 0.0
        %3467 = vmatpush1.msra.mxu0 0.0
        %3468 = vmatprep.subr.mxu0 0.0
        %3469 = vmatpush1.msra.mxu0 0.0
        %3470 = vmatprep.subr.mxu0 0.0
        %3471 = vmatpush1.msra.mxu0 0.0
        %3472 = vmatprep.subr.mxu0 0.0
        %3473 = vmatpush1.msra.mxu0 0.0
        %3474 = vmatprep.mubr.f32.mxu0 0.0
        %3475 = vmatmul.mubr.f32.gmra.mrb[0].mxu0 %v3402
        %v3476 = vpop.f32.mrb[0].mxu0
        %v3477 = vadd.f32 0.0, %v3476
        %v3478 = vpop.f32.mrb[0].mxu0
        %v3479 = vadd.f32 0.0, %v3478
        %3480 = vdwg.mxu0
        %3481 = vmatprep.subr.mxu0 0.0
        %3482 = vmatpush1.msra.mxu0 %v3408
        %3483 = vmatprep.subr.mxu0 0.0
        %3484 = vmatpush1.msra.mxu0 0.0
        %3485 = vmatprep.subr.mxu0 0.0
        %3486 = vmatpush1.msra.mxu0 0.0
        %3487 = vmatprep.subr.mxu0 0.0
        %3488 = vmatpush1.msra.mxu0 0.0
        %3489 = vmatprep.subr.mxu0 0.0
        %3490 = vmatpush1.msra.mxu0 0.0
        %3491 = vmatprep.subr.mxu0 0.0
        %3492 = vmatpush1.msra.mxu0 0.0
        %3493 = vmatprep.subr.mxu0 0.0
        %3494 = vmatpush1.msra.mxu0 0.0
        %3495 = vmatprep.subr.mxu0 0.0
        %3496 = vmatpush1.msra.mxu0 0.0
        %3497 = vmatprep.subr.mxu0 0.0
        %3498 = vmatpush1.msra.mxu0 0.0
        %3499 = vmatprep.subr.mxu0 0.0
        %3500 = vmatpush1.msra.mxu0 0.0
        %3501 = vmatprep.subr.mxu0 0.0
        %3502 = vmatpush1.msra.mxu0 0.0
        %3503 = vmatprep.subr.mxu0 0.0
        %3504 = vmatpush1.msra.mxu0 0.0
        %3505 = vmatprep.subr.mxu0 0.0
        %3506 = vmatpush1.msra.mxu0 0.0
        %3507 = vmatprep.subr.mxu0 0.0
        %3508 = vmatpush1.msra.mxu0 0.0
        %3509 = vmatprep.subr.mxu0 0.0
        %3510 = vmatpush1.msra.mxu0 0.0
        %3511 = vmatprep.subr.mxu0 0.0
        %3512 = vmatpush1.msra.mxu0 0.0
        %3513 = vmatprep.subr.mxu0 0.0
        %3514 = vmatpush1.msra.mxu0 0.0
        %3515 = vmatprep.subr.mxu0 0.0
        %3516 = vmatpush1.msra.mxu0 0.0
        %3517 = vmatprep.subr.mxu0 0.0
        %3518 = vmatpush1.msra.mxu0 0.0
        %3519 = vmatprep.subr.mxu0 0.0
        %3520 = vmatpush1.msra.mxu0 0.0
        %3521 = vmatprep.subr.mxu0 0.0
        %3522 = vmatpush1.msra.mxu0 0.0
        %3523 = vmatprep.subr.mxu0 0.0
        %3524 = vmatpush1.msra.mxu0 0.0
        %3525 = vmatprep.subr.mxu0 0.0
        %3526 = vmatpush1.msra.mxu0 0.0
        %3527 = vmatprep.subr.mxu0 0.0
        %3528 = vmatpush1.msra.mxu0 0.0
        %3529 = vmatprep.subr.mxu0 0.0
        %3530 = vmatpush1.msra.mxu0 0.0
        %3531 = vmatprep.subr.mxu0 0.0
        %3532 = vmatpush1.msra.mxu0 0.0
        %3533 = vmatprep.subr.mxu0 0.0
        %3534 = vmatpush1.msra.mxu0 0.0
        %3535 = vmatprep.subr.mxu0 0.0
        %3536 = vmatpush1.msra.mxu0 0.0
        %3537 = vmatprep.subr.mxu0 0.0
        %3538 = vmatpush1.msra.mxu0 0.0
        %3539 = vmatprep.subr.mxu0 0.0
        %3540 = vmatpush1.msra.mxu0 0.0
        %3541 = vmatprep.subr.mxu0 0.0
        %3542 = vmatpush1.msra.mxu0 0.0
        %3543 = vmatprep.subr.mxu0 0.0
        %3544 = vmatpush1.msra.mxu0 0.0
        %3545 = vmatprep.mubr.f32.mxu0 0.0
        %3546 = vmatmul.mubr.f32.gmra.mrb[0].mxu0 %v3402
        %v3547 = vpop.f32.mrb[0].mxu0
        %v3548 = vadd.f32 0.0, %v3547
        %v3549 = vpop.f32.mrb[0].mxu0
        %3550 = vdwg.mxu0
        %v3551 = vadd.f32 %v3378, %v3477
        %v3552 = vadd.f32 %v3379, %v3479
        %v3553 = vadd.f32 %v3380, %v3548
        %v3554 = vld [vmem:[%s168] sm:$0xff]
        %v3555 = vld [vmem:[%s168 + $0x8] sm:$0xff]
        %s3556 = scalar_lea.vmem %s0, 160
        %v3557 = vld [vmem:[%s3556] sm:$0x3f]
        %v3560 = vcombine.high %v3554, %v3554
        %v3561 = vcombine.high %v3555, %v3555
        %3562 = vrot.lane.b32.xlu0 %v3554, 78
        %v3563 = vpop.permute.xlu0 %3562
        %3564 = vrot.lane.b32.xlu0 %v3560, 78
        %v3565 = vpop.permute.xlu0 %3564
        %3566 = vrot.lane.b32.xlu0 %v3555, 78
        %v3567 = vpop.permute.xlu0 %3566
        %3568 = vrot.lane.b32.xlu0 %v3561, 78
        %v3569 = vpop.permute.xlu0 %3568
        %vm3570 = vcmask 637952
        %v3571 = vsel %vm3570, %v3563, %v3565
        %v3572 = vsel %vm3570, %v3565, %v3567
        %v3573 = vsel %vm3570, %v3567, %v3569
        %v3575 = vsel %vm186, %v3557, 0
        %v3577 = vsel %vm190, %v3571, 0
        %v3579 = vsel %vm190, %v3572, 0
        %v3581 = vsel %vm190, %v3573, 0
        %3583 = vmatprep.subr.mxu0 %v3579
        %3584 = vmatpush1.msra.mxu0 %v3577
        %3585 = vmatprep.subr.mxu0 0.0
        %3586 = vmatpush1.msra.mxu0 0.0
        %3587 = vmatprep.subr.mxu0 0.0
        %3588 = vmatpush1.msra.mxu0 0.0
        %3589 = vmatprep.subr.mxu0 0.0
        %3590 = vmatpush1.msra.mxu0 0.0
        %3591 = vmatprep.subr.mxu0 0.0
        %3592 = vmatpush1.msra.mxu0 0.0
        %3593 = vmatprep.subr.mxu0 0.0
        %3594 = vmatpush1.msra.mxu0 0.0
        %3595 = vmatprep.subr.mxu0 0.0
        %3596 = vmatpush1.msra.mxu0 0.0
        %3597 = vmatprep.subr.mxu0 0.0
        %3598 = vmatpush1.msra.mxu0 0.0
        %3599 = vmatprep.subr.mxu0 0.0
        %3600 = vmatpush1.msra.mxu0 0.0
        %3601 = vmatprep.subr.mxu0 0.0
        %3602 = vmatpush1.msra.mxu0 0.0
        %3603 = vmatprep.subr.mxu0 0.0
        %3604 = vmatpush1.msra.mxu0 0.0
        %3605 = vmatprep.subr.mxu0 0.0
        %3606 = vmatpush1.msra.mxu0 0.0
        %3607 = vmatprep.subr.mxu0 0.0
        %3608 = vmatpush1.msra.mxu0 0.0
        %3609 = vmatprep.subr.mxu0 0.0
        %3610 = vmatpush1.msra.mxu0 0.0
        %3611 = vmatprep.subr.mxu0 0.0
        %3612 = vmatpush1.msra.mxu0 0.0
        %3613 = vmatprep.subr.mxu0 0.0
        %3614 = vmatpush1.msra.mxu0 0.0
        %3615 = vmatprep.subr.mxu0 0.0
        %3616 = vmatpush1.msra.mxu0 0.0
        %3617 = vmatprep.subr.mxu0 0.0
        %3618 = vmatpush1.msra.mxu0 0.0
        %3619 = vmatprep.subr.mxu0 0.0
        %3620 = vmatpush1.msra.mxu0 0.0
        %3621 = vmatprep.subr.mxu0 0.0
        %3622 = vmatpush1.msra.mxu0 0.0
        %3623 = vmatprep.subr.mxu0 0.0
        %3624 = vmatpush1.msra.mxu0 0.0
        %3625 = vmatprep.subr.mxu0 0.0
        %3626 = vmatpush1.msra.mxu0 0.0
        %3627 = vmatprep.subr.mxu0 0.0
        %3628 = vmatpush1.msra.mxu0 0.0
        %3629 = vmatprep.subr.mxu0 0.0
        %3630 = vmatpush1.msra.mxu0 0.0
        %3631 = vmatprep.subr.mxu0 0.0
        %3632 = vmatpush1.msra.mxu0 0.0
        %3633 = vmatprep.subr.mxu0 0.0
        %3634 = vmatpush1.msra.mxu0 0.0
        %3635 = vmatprep.subr.mxu0 0.0
        %3636 = vmatpush1.msra.mxu0 0.0
        %3637 = vmatprep.subr.mxu0 0.0
        %3638 = vmatpush1.msra.mxu0 0.0
        %3639 = vmatprep.subr.mxu0 0.0
        %3640 = vmatpush1.msra.mxu0 0.0
        %3641 = vmatprep.subr.mxu0 0.0
        %3642 = vmatpush1.msra.mxu0 0.0
        %3643 = vmatprep.subr.mxu0 0.0
        %3644 = vmatpush1.msra.mxu0 0.0
        %3645 = vmatprep.subr.mxu0 0.0
        %3646 = vmatpush1.msra.mxu0 0.0
        %3647 = vmatprep.mubr.f32.mxu0 0.0
        %3648 = vmatmul.mubr.f32.gmra.mrb[0].mxu0 %v3575
        %v3649 = vpop.f32.mrb[0].mxu0
        %v3650 = vadd.f32 0.0, %v3649
        %v3651 = vpop.f32.mrb[0].mxu0
        %v3652 = vadd.f32 0.0, %v3651
        %3653 = vdwg.mxu0
        %3654 = vmatprep.subr.mxu0 0.0
        %3655 = vmatpush1.msra.mxu0 %v3581
        %3656 = vmatprep.subr.mxu0 0.0
        %3657 = vmatpush1.msra.mxu0 0.0
        %3658 = vmatprep.subr.mxu0 0.0
        %3659 = vmatpush1.msra.mxu0 0.0
        %3660 = vmatprep.subr.mxu0 0.0
        %3661 = vmatpush1.msra.mxu0 0.0
        %3662 = vmatprep.subr.mxu0 0.0
        %3663 = vmatpush1.msra.mxu0 0.0
        %3664 = vmatprep.subr.mxu0 0.0
        %3665 = vmatpush1.msra.mxu0 0.0
        %3666 = vmatprep.subr.mxu0 0.0
        %3667 = vmatpush1.msra.mxu0 0.0
        %3668 = vmatprep.subr.mxu0 0.0
        %3669 = vmatpush1.msra.mxu0 0.0
        %3670 = vmatprep.subr.mxu0 0.0
        %3671 = vmatpush1.msra.mxu0 0.0
        %3672 = vmatprep.subr.mxu0 0.0
        %3673 = vmatpush1.msra.mxu0 0.0
        %3674 = vmatprep.subr.mxu0 0.0
        %3675 = vmatpush1.msra.mxu0 0.0
        %3676 = vmatprep.subr.mxu0 0.0
        %3677 = vmatpush1.msra.mxu0 0.0
        %3678 = vmatprep.subr.mxu0 0.0
        %3679 = vmatpush1.msra.mxu0 0.0
        %3680 = vmatprep.subr.mxu0 0.0
        %3681 = vmatpush1.msra.mxu0 0.0
        %3682 = vmatprep.subr.mxu0 0.0
        %3683 = vmatpush1.msra.mxu0 0.0
        %3684 = vmatprep.subr.mxu0 0.0
        %3685 = vmatpush1.msra.mxu0 0.0
        %3686 = vmatprep.subr.mxu0 0.0
        %3687 = vmatpush1.msra.mxu0 0.0
        %3688 = vmatprep.subr.mxu0 0.0
        %3689 = vmatpush1.msra.mxu0 0.0
        %3690 = vmatprep.subr.mxu0 0.0
        %3691 = vmatpush1.msra.mxu0 0.0
        %3692 = vmatprep.subr.mxu0 0.0
        %3693 = vmatpush1.msra.mxu0 0.0
        %3694 = vmatprep.subr.mxu0 0.0
        %3695 = vmatpush1.msra.mxu0 0.0
        %3696 = vmatprep.subr.mxu0 0.0
        %3697 = vmatpush1.msra.mxu0 0.0
        %3698 = vmatprep.subr.mxu0 0.0
        %3699 = vmatpush1.msra.mxu0 0.0
        %3700 = vmatprep.subr.mxu0 0.0
        %3701 = vmatpush1.msra.mxu0 0.0
        %3702 = vmatprep.subr.mxu0 0.0
        %3703 = vmatpush1.msra.mxu0 0.0
        %3704 = vmatprep.subr.mxu0 0.0
        %3705 = vmatpush1.msra.mxu0 0.0
        %3706 = vmatprep.subr.mxu0 0.0
        %3707 = vmatpush1.msra.mxu0 0.0
        %3708 = vmatprep.subr.mxu0 0.0
        %3709 = vmatpush1.msra.mxu0 0.0
        %3710 = vmatprep.subr.mxu0 0.0
        %3711 = vmatpush1.msra.mxu0 0.0
        %3712 = vmatprep.subr.mxu0 0.0
        %3713 = vmatpush1.msra.mxu0 0.0
        %3714 = vmatprep.subr.mxu0 0.0
        %3715 = vmatpush1.msra.mxu0 0.0
        %3716 = vmatprep.subr.mxu0 0.0
        %3717 = vmatpush1.msra.mxu0 0.0
        %3718 = vmatprep.mubr.f32.mxu0 0.0
        %3719 = vmatmul.mubr.f32.gmra.mrb[0].mxu0 %v3575
        %v3720 = vpop.f32.mrb[0].mxu0
        %v3721 = vadd.f32 0.0, %v3720
        %v3722 = vpop.f32.mrb[0].mxu0
        %3723 = vdwg.mxu0
        %v3724 = vadd.f32 %v3551, %v3650
        %v3725 = vadd.f32 %v3552, %v3652
        %v3726 = vadd.f32 %v3553, %v3721
        %v3727 = vld [vmem:[%s168] sm:$0xff]
        %v3728 = vld [vmem:[%s168 + $0x8] sm:$0xff]
        %s3729 = scalar_lea.vmem %s0, 168
        %v3730 = vld [vmem:[%s3729] sm:$0x3f]
        %v3733 = vcombine.high %v3727, %v3727
        %v3734 = vcombine.high %v3728, %v3728
        %3735 = vrot.lane.b32.xlu0 %v3727, 62
        %v3736 = vpop.permute.xlu0 %3735
        %3737 = vrot.lane.b32.xlu0 %v3733, 62
        %v3738 = vpop.permute.xlu0 %3737
        %3739 = vrot.lane.b32.xlu0 %v3728, 62
        %v3740 = vpop.permute.xlu0 %3739
        %3741 = vrot.lane.b32.xlu0 %v3734, 62
        %v3742 = vpop.permute.xlu0 %3741
        %vm3743 = vcmask 506880
        %v3744 = vsel %vm3743, %v3736, %v3738
        %v3745 = vsel %vm3743, %v3738, %v3740
        %v3746 = vsel %vm3743, %v3740, %v3742
        %v3748 = vsel %vm186, %v3730, 0
        %v3750 = vsel %vm190, %v3744, 0
        %v3752 = vsel %vm190, %v3745, 0
        %v3754 = vsel %vm190, %v3746, 0
        %3756 = vmatprep.subr.mxu0 %v3752
        %3757 = vmatpush1.msra.mxu0 %v3750
        %3758 = vmatprep.subr.mxu0 0.0
        %3759 = vmatpush1.msra.mxu0 0.0
        %3760 = vmatprep.subr.mxu0 0.0
        %3761 = vmatpush1.msra.mxu0 0.0
        %3762 = vmatprep.subr.mxu0 0.0
        %3763 = vmatpush1.msra.mxu0 0.0
        %3764 = vmatprep.subr.mxu0 0.0
        %3765 = vmatpush1.msra.mxu0 0.0
        %3766 = vmatprep.subr.mxu0 0.0
        %3767 = vmatpush1.msra.mxu0 0.0
        %3768 = vmatprep.subr.mxu0 0.0
        %3769 = vmatpush1.msra.mxu0 0.0
        %3770 = vmatprep.subr.mxu0 0.0
        %3771 = vmatpush1.msra.mxu0 0.0
        %3772 = vmatprep.subr.mxu0 0.0
        %3773 = vmatpush1.msra.mxu0 0.0
        %3774 = vmatprep.subr.mxu0 0.0
        %3775 = vmatpush1.msra.mxu0 0.0
        %3776 = vmatprep.subr.mxu0 0.0
        %3777 = vmatpush1.msra.mxu0 0.0
        %3778 = vmatprep.subr.mxu0 0.0
        %3779 = vmatpush1.msra.mxu0 0.0
        %3780 = vmatprep.subr.mxu0 0.0
        %3781 = vmatpush1.msra.mxu0 0.0
        %3782 = vmatprep.subr.mxu0 0.0
        %3783 = vmatpush1.msra.mxu0 0.0
        %3784 = vmatprep.subr.mxu0 0.0
        %3785 = vmatpush1.msra.mxu0 0.0
        %3786 = vmatprep.subr.mxu0 0.0
        %3787 = vmatpush1.msra.mxu0 0.0
        %3788 = vmatprep.subr.mxu0 0.0
        %3789 = vmatpush1.msra.mxu0 0.0
        %3790 = vmatprep.subr.mxu0 0.0
        %3791 = vmatpush1.msra.mxu0 0.0
        %3792 = vmatprep.subr.mxu0 0.0
        %3793 = vmatpush1.msra.mxu0 0.0
        %3794 = vmatprep.subr.mxu0 0.0
        %3795 = vmatpush1.msra.mxu0 0.0
        %3796 = vmatprep.subr.mxu0 0.0
        %3797 = vmatpush1.msra.mxu0 0.0
        %3798 = vmatprep.subr.mxu0 0.0
        %3799 = vmatpush1.msra.mxu0 0.0
        %3800 = vmatprep.subr.mxu0 0.0
        %3801 = vmatpush1.msra.mxu0 0.0
        %3802 = vmatprep.subr.mxu0 0.0
        %3803 = vmatpush1.msra.mxu0 0.0
        %3804 = vmatprep.subr.mxu0 0.0
        %3805 = vmatpush1.msra.mxu0 0.0
        %3806 = vmatprep.subr.mxu0 0.0
        %3807 = vmatpush1.msra.mxu0 0.0
        %3808 = vmatprep.subr.mxu0 0.0
        %3809 = vmatpush1.msra.mxu0 0.0
        %3810 = vmatprep.subr.mxu0 0.0
        %3811 = vmatpush1.msra.mxu0 0.0
        %3812 = vmatprep.subr.mxu0 0.0
        %3813 = vmatpush1.msra.mxu0 0.0
        %3814 = vmatprep.subr.mxu0 0.0
        %3815 = vmatpush1.msra.mxu0 0.0
        %3816 = vmatprep.subr.mxu0 0.0
        %3817 = vmatpush1.msra.mxu0 0.0
        %3818 = vmatprep.subr.mxu0 0.0
        %3819 = vmatpush1.msra.mxu0 0.0
        %3820 = vmatprep.mubr.f32.mxu0 0.0
        %3821 = vmatmul.mubr.f32.gmra.mrb[0].mxu0 %v3748
        %v3822 = vpop.f32.mrb[0].mxu0
        %v3823 = vadd.f32 0.0, %v3822
        %v3824 = vpop.f32.mrb[0].mxu0
        %v3825 = vadd.f32 0.0, %v3824
        %3826 = vdwg.mxu0
        %3827 = vmatprep.subr.mxu0 0.0
        %3828 = vmatpush1.msra.mxu0 %v3754
        %3829 = vmatprep.subr.mxu0 0.0
        %3830 = vmatpush1.msra.mxu0 0.0
        %3831 = vmatprep.subr.mxu0 0.0
        %3832 = vmatpush1.msra.mxu0 0.0
        %3833 = vmatprep.subr.mxu0 0.0
        %3834 = vmatpush1.msra.mxu0 0.0
        %3835 = vmatprep.subr.mxu0 0.0
        %3836 = vmatpush1.msra.mxu0 0.0
        %3837 = vmatprep.subr.mxu0 0.0
        %3838 = vmatpush1.msra.mxu0 0.0
        %3839 = vmatprep.subr.mxu0 0.0
        %3840 = vmatpush1.msra.mxu0 0.0
        %3841 = vmatprep.subr.mxu0 0.0
        %3842 = vmatpush1.msra.mxu0 0.0
        %3843 = vmatprep.subr.mxu0 0.0
        %3844 = vmatpush1.msra.mxu0 0.0
        %3845 = vmatprep.subr.mxu0 0.0
        %3846 = vmatpush1.msra.mxu0 0.0
        %3847 = vmatprep.subr.mxu0 0.0
        %3848 = vmatpush1.msra.mxu0 0.0
        %3849 = vmatprep.subr.mxu0 0.0
        %3850 = vmatpush1.msra.mxu0 0.0
        %3851 = vmatprep.subr.mxu0 0.0
        %3852 = vmatpush1.msra.mxu0 0.0
        %3853 = vmatprep.subr.mxu0 0.0
        %3854 = vmatpush1.msra.mxu0 0.0
        %3855 = vmatprep.subr.mxu0 0.0
        %3856 = vmatpush1.msra.mxu0 0.0
        %3857 = vmatprep.subr.mxu0 0.0
        %3858 = vmatpush1.msra.mxu0 0.0
        %3859 = vmatprep.subr.mxu0 0.0
        %3860 = vmatpush1.msra.mxu0 0.0
        %3861 = vmatprep.subr.mxu0 0.0
        %3862 = vmatpush1.msra.mxu0 0.0
        %3863 = vmatprep.subr.mxu0 0.0
        %3864 = vmatpush1.msra.mxu0 0.0
        %3865 = vmatprep.subr.mxu0 0.0
        %3866 = vmatpush1.msra.mxu0 0.0
        %3867 = vmatprep.subr.mxu0 0.0
        %3868 = vmatpush1.msra.mxu0 0.0
        %3869 = vmatprep.subr.mxu0 0.0
        %3870 = vmatpush1.msra.mxu0 0.0
        %3871 = vmatprep.subr.mxu0 0.0
        %3872 = vmatpush1.msra.mxu0 0.0
        %3873 = vmatprep.subr.mxu0 0.0
        %3874 = vmatpush1.msra.mxu0 0.0
        %3875 = vmatprep.subr.mxu0 0.0
        %3876 = vmatpush1.msra.mxu0 0.0
        %3877 = vmatprep.subr.mxu0 0.0
        %3878 = vmatpush1.msra.mxu0 0.0
        %3879 = vmatprep.subr.mxu0 0.0
        %3880 = vmatpush1.msra.mxu0 0.0
        %3881 = vmatprep.subr.mxu0 0.0
        %3882 = vmatpush1.msra.mxu0 0.0
        %3883 = vmatprep.subr.mxu0 0.0
        %3884 = vmatpush1.msra.mxu0 0.0
        %3885 = vmatprep.subr.mxu0 0.0
        %3886 = vmatpush1.msra.mxu0 0.0
        %3887 = vmatprep.subr.mxu0 0.0
        %3888 = vmatpush1.msra.mxu0 0.0
        %3889 = vmatprep.subr.mxu0 0.0
        %3890 = vmatpush1.msra.mxu0 0.0
        %3891 = vmatprep.mubr.f32.mxu0 0.0
        %3892 = vmatmul.mubr.f32.gmra.mrb[0].mxu0 %v3748
        %v3893 = vpop.f32.mrb[0].mxu0
        %v3894 = vadd.f32 0.0, %v3893
        %v3895 = vpop.f32.mrb[0].mxu0
        %3896 = vdwg.mxu0
        %v3897 = vadd.f32 %v3724, %v3823
        %v3898 = vadd.f32 %v3725, %v3825
        %v3899 = vadd.f32 %v3726, %v3894
        %v3900 = vld [vmem:[%s168] sm:$0xff]
        %v3901 = vld [vmem:[%s168 + $0x8] sm:$0xff]
        %s3902 = scalar_lea.vmem %s0, 176
        %v3903 = vld [vmem:[%s3902] sm:$0x3f]
        %v3906 = vcombine.high %v3900, %v3900
        %v3907 = vcombine.high %v3901, %v3901
        %3908 = vrot.lane.b32.xlu0 %v3900, 61
        %v3909 = vpop.permute.xlu0 %3908
        %3910 = vrot.lane.b32.xlu0 %v3906, 61
        %v3911 = vpop.permute.xlu0 %3910
        %3912 = vrot.lane.b32.xlu0 %v3901, 61
        %v3913 = vpop.permute.xlu0 %3912
        %3914 = vrot.lane.b32.xlu0 %v3907, 61
        %v3915 = vpop.permute.xlu0 %3914
        %vm3916 = vcmask 498688
        %v3917 = vsel %vm3916, %v3909, %v3911
        %v3918 = vsel %vm3916, %v3911, %v3913
        %v3919 = vsel %vm3916, %v3913, %v3915
        %v3921 = vsel %vm186, %v3903, 0
        %v3923 = vsel %vm190, %v3917, 0
        %v3925 = vsel %vm190, %v3918, 0
        %v3927 = vsel %vm190, %v3919, 0
        %3929 = vmatprep.subr.mxu0 %v3925
        %3930 = vmatpush1.msra.mxu0 %v3923
        %3931 = vmatprep.subr.mxu0 0.0
        %3932 = vmatpush1.msra.mxu0 0.0
        %3933 = vmatprep.subr.mxu0 0.0
        %3934 = vmatpush1.msra.mxu0 0.0
        %3935 = vmatprep.subr.mxu0 0.0
        %3936 = vmatpush1.msra.mxu0 0.0
        %3937 = vmatprep.subr.mxu0 0.0
        %3938 = vmatpush1.msra.mxu0 0.0
        %3939 = vmatprep.subr.mxu0 0.0
        %3940 = vmatpush1.msra.mxu0 0.0
        %3941 = vmatprep.subr.mxu0 0.0
        %3942 = vmatpush1.msra.mxu0 0.0
        %3943 = vmatprep.subr.mxu0 0.0
        %3944 = vmatpush1.msra.mxu0 0.0
        %3945 = vmatprep.subr.mxu0 0.0
        %3946 = vmatpush1.msra.mxu0 0.0
        %3947 = vmatprep.subr.mxu0 0.0
        %3948 = vmatpush1.msra.mxu0 0.0
        %3949 = vmatprep.subr.mxu0 0.0
        %3950 = vmatpush1.msra.mxu0 0.0
        %3951 = vmatprep.subr.mxu0 0.0
        %3952 = vmatpush1.msra.mxu0 0.0
        %3953 = vmatprep.subr.mxu0 0.0
        %3954 = vmatpush1.msra.mxu0 0.0
        %3955 = vmatprep.subr.mxu0 0.0
        %3956 = vmatpush1.msra.mxu0 0.0
        %3957 = vmatprep.subr.mxu0 0.0
        %3958 = vmatpush1.msra.mxu0 0.0
        %3959 = vmatprep.subr.mxu0 0.0
        %3960 = vmatpush1.msra.mxu0 0.0
        %3961 = vmatprep.subr.mxu0 0.0
        %3962 = vmatpush1.msra.mxu0 0.0
        %3963 = vmatprep.subr.mxu0 0.0
        %3964 = vmatpush1.msra.mxu0 0.0
        %3965 = vmatprep.subr.mxu0 0.0
        %3966 = vmatpush1.msra.mxu0 0.0
        %3967 = vmatprep.subr.mxu0 0.0
        %3968 = vmatpush1.msra.mxu0 0.0
        %3969 = vmatprep.subr.mxu0 0.0
        %3970 = vmatpush1.msra.mxu0 0.0
        %3971 = vmatprep.subr.mxu0 0.0
        %3972 = vmatpush1.msra.mxu0 0.0
        %3973 = vmatprep.subr.mxu0 0.0
        %3974 = vmatpush1.msra.mxu0 0.0
        %3975 = vmatprep.subr.mxu0 0.0
        %3976 = vmatpush1.msra.mxu0 0.0
        %3977 = vmatprep.subr.mxu0 0.0
        %3978 = vmatpush1.msra.mxu0 0.0
        %3979 = vmatprep.subr.mxu0 0.0
        %3980 = vmatpush1.msra.mxu0 0.0
        %3981 = vmatprep.subr.mxu0 0.0
        %3982 = vmatpush1.msra.mxu0 0.0
        %3983 = vmatprep.subr.mxu0 0.0
        %3984 = vmatpush1.msra.mxu0 0.0
        %3985 = vmatprep.subr.mxu0 0.0
        %3986 = vmatpush1.msra.mxu0 0.0
        %3987 = vmatprep.subr.mxu0 0.0
        %3988 = vmatpush1.msra.mxu0 0.0
        %3989 = vmatprep.subr.mxu0 0.0
        %3990 = vmatpush1.msra.mxu0 0.0
        %3991 = vmatprep.subr.mxu0 0.0
        %3992 = vmatpush1.msra.mxu0 0.0
        %3993 = vmatprep.mubr.f32.mxu0 0.0
        %3994 = vmatmul.mubr.f32.gmra.mrb[0].mxu0 %v3921
        %v3995 = vpop.f32.mrb[0].mxu0
        %v3996 = vadd.f32 0.0, %v3995
        %v3997 = vpop.f32.mrb[0].mxu0
        %v3998 = vadd.f32 0.0, %v3997
        %3999 = vdwg.mxu0
        %4000 = vmatprep.subr.mxu0 0.0
        %4001 = vmatpush1.msra.mxu0 %v3927
        %4002 = vmatprep.subr.mxu0 0.0
        %4003 = vmatpush1.msra.mxu0 0.0
        %4004 = vmatprep.subr.mxu0 0.0
        %4005 = vmatpush1.msra.mxu0 0.0
        %4006 = vmatprep.subr.mxu0 0.0
        %4007 = vmatpush1.msra.mxu0 0.0
        %4008 = vmatprep.subr.mxu0 0.0
        %4009 = vmatpush1.msra.mxu0 0.0
        %4010 = vmatprep.subr.mxu0 0.0
        %4011 = vmatpush1.msra.mxu0 0.0
        %4012 = vmatprep.subr.mxu0 0.0
        %4013 = vmatpush1.msra.mxu0 0.0
        %4014 = vmatprep.subr.mxu0 0.0
        %4015 = vmatpush1.msra.mxu0 0.0
        %4016 = vmatprep.subr.mxu0 0.0
        %4017 = vmatpush1.msra.mxu0 0.0
        %4018 = vmatprep.subr.mxu0 0.0
        %4019 = vmatpush1.msra.mxu0 0.0
        %4020 = vmatprep.subr.mxu0 0.0
        %4021 = vmatpush1.msra.mxu0 0.0
        %4022 = vmatprep.subr.mxu0 0.0
        %4023 = vmatpush1.msra.mxu0 0.0
        %4024 = vmatprep.subr.mxu0 0.0
        %4025 = vmatpush1.msra.mxu0 0.0
        %4026 = vmatprep.subr.mxu0 0.0
        %4027 = vmatpush1.msra.mxu0 0.0
        %4028 = vmatprep.subr.mxu0 0.0
        %4029 = vmatpush1.msra.mxu0 0.0
        %4030 = vmatprep.subr.mxu0 0.0
        %4031 = vmatpush1.msra.mxu0 0.0
        %4032 = vmatprep.subr.mxu0 0.0
        %4033 = vmatpush1.msra.mxu0 0.0
        %4034 = vmatprep.subr.mxu0 0.0
        %4035 = vmatpush1.msra.mxu0 0.0
        %4036 = vmatprep.subr.mxu0 0.0
        %4037 = vmatpush1.msra.mxu0 0.0
        %4038 = vmatprep.subr.mxu0 0.0
        %4039 = vmatpush1.msra.mxu0 0.0
        %4040 = vmatprep.subr.mxu0 0.0
        %4041 = vmatpush1.msra.mxu0 0.0
        %4042 = vmatprep.subr.mxu0 0.0
        %4043 = vmatpush1.msra.mxu0 0.0
        %4044 = vmatprep.subr.mxu0 0.0
        %4045 = vmatpush1.msra.mxu0 0.0
        %4046 = vmatprep.subr.mxu0 0.0
        %4047 = vmatpush1.msra.mxu0 0.0
        %4048 = vmatprep.subr.mxu0 0.0
        %4049 = vmatpush1.msra.mxu0 0.0
        %4050 = vmatprep.subr.mxu0 0.0
        %4051 = vmatpush1.msra.mxu0 0.0
        %4052 = vmatprep.subr.mxu0 0.0
        %4053 = vmatpush1.msra.mxu0 0.0
        %4054 = vmatprep.subr.mxu0 0.0
        %4055 = vmatpush1.msra.mxu0 0.0
        %4056 = vmatprep.subr.mxu0 0.0
        %4057 = vmatpush1.msra.mxu0 0.0
        %4058 = vmatprep.subr.mxu0 0.0
        %4059 = vmatpush1.msra.mxu0 0.0
        %4060 = vmatprep.subr.mxu0 0.0
        %4061 = vmatpush1.msra.mxu0 0.0
        %4062 = vmatprep.subr.mxu0 0.0
        %4063 = vmatpush1.msra.mxu0 0.0
        %4064 = vmatprep.mubr.f32.mxu0 0.0
        %4065 = vmatmul.mubr.f32.gmra.mrb[0].mxu0 %v3921
        %v4066 = vpop.f32.mrb[0].mxu0
        %v4067 = vadd.f32 0.0, %v4066
        %v4068 = vpop.f32.mrb[0].mxu0
        %4069 = vdwg.mxu0
        %v4070 = vadd.f32 %v3897, %v3996
        %v4071 = vadd.f32 %v3898, %v3998
        %v4072 = vadd.f32 %v3899, %v4067
        %v4073 = vld [vmem:[%s168] sm:$0xff]
        %v4074 = vld [vmem:[%s168 + $0x8] sm:$0xff]
        %s4075 = scalar_lea.vmem %s0, 184
        %v4076 = vld [vmem:[%s4075] sm:$0x3f]
        %v4079 = vcombine.high %v4073, %v4073
        %v4080 = vcombine.high %v4074, %v4074
        %4081 = vrot.lane.b32.xlu0 %v4073, 60
        %v4082 = vpop.permute.xlu0 %4081
        %4083 = vrot.lane.b32.xlu0 %v4079, 60
        %v4084 = vpop.permute.xlu0 %4083
        %4085 = vrot.lane.b32.xlu0 %v4074, 60
        %v4086 = vpop.permute.xlu0 %4085
        %4087 = vrot.lane.b32.xlu0 %v4080, 60
        %v4088 = vpop.permute.xlu0 %4087
        %vm4089 = vcmask 490496
        %v4090 = vsel %vm4089, %v4082, %v4084
        %v4091 = vsel %vm4089, %v4084, %v4086
        %v4092 = vsel %vm4089, %v4086, %v4088
        %v4094 = vsel %vm186, %v4076, 0
        %v4096 = vsel %vm190, %v4090, 0
        %v4098 = vsel %vm190, %v4091, 0
        %v4100 = vsel %vm190, %v4092, 0
        %4102 = vmatprep.subr.mxu0 %v4098
        %4103 = vmatpush1.msra.mxu0 %v4096
        %4104 = vmatprep.subr.mxu0 0.0
        %4105 = vmatpush1.msra.mxu0 0.0
        %4106 = vmatprep.subr.mxu0 0.0
        %4107 = vmatpush1.msra.mxu0 0.0
        %4108 = vmatprep.subr.mxu0 0.0
        %4109 = vmatpush1.msra.mxu0 0.0
        %4110 = vmatprep.subr.mxu0 0.0
        %4111 = vmatpush1.msra.mxu0 0.0
        %4112 = vmatprep.subr.mxu0 0.0
        %4113 = vmatpush1.msra.mxu0 0.0
        %4114 = vmatprep.subr.mxu0 0.0
        %4115 = vmatpush1.msra.mxu0 0.0
        %4116 = vmatprep.subr.mxu0 0.0
        %4117 = vmatpush1.msra.mxu0 0.0
        %4118 = vmatprep.subr.mxu0 0.0
        %4119 = vmatpush1.msra.mxu0 0.0
        %4120 = vmatprep.subr.mxu0 0.0
        %4121 = vmatpush1.msra.mxu0 0.0
        %4122 = vmatprep.subr.mxu0 0.0
        %4123 = vmatpush1.msra.mxu0 0.0
        %4124 = vmatprep.subr.mxu0 0.0
        %4125 = vmatpush1.msra.mxu0 0.0
        %4126 = vmatprep.subr.mxu0 0.0
        %4127 = vmatpush1.msra.mxu0 0.0
        %4128 = vmatprep.subr.mxu0 0.0
        %4129 = vmatpush1.msra.mxu0 0.0
        %4130 = vmatprep.subr.mxu0 0.0
        %4131 = vmatpush1.msra.mxu0 0.0
        %4132 = vmatprep.subr.mxu0 0.0
        %4133 = vmatpush1.msra.mxu0 0.0
        %4134 = vmatprep.subr.mxu0 0.0
        %4135 = vmatpush1.msra.mxu0 0.0
        %4136 = vmatprep.subr.mxu0 0.0
        %4137 = vmatpush1.msra.mxu0 0.0
        %4138 = vmatprep.subr.mxu0 0.0
        %4139 = vmatpush1.msra.mxu0 0.0
        %4140 = vmatprep.subr.mxu0 0.0
        %4141 = vmatpush1.msra.mxu0 0.0
        %4142 = vmatprep.subr.mxu0 0.0
        %4143 = vmatpush1.msra.mxu0 0.0
        %4144 = vmatprep.subr.mxu0 0.0
        %4145 = vmatpush1.msra.mxu0 0.0
        %4146 = vmatprep.subr.mxu0 0.0
        %4147 = vmatpush1.msra.mxu0 0.0
        %4148 = vmatprep.subr.mxu0 0.0
        %4149 = vmatpush1.msra.mxu0 0.0
        %4150 = vmatprep.subr.mxu0 0.0
        %4151 = vmatpush1.msra.mxu0 0.0
        %4152 = vmatprep.subr.mxu0 0.0
        %4153 = vmatpush1.msra.mxu0 0.0
        %4154 = vmatprep.subr.mxu0 0.0
        %4155 = vmatpush1.msra.mxu0 0.0
        %4156 = vmatprep.subr.mxu0 0.0
        %4157 = vmatpush1.msra.mxu0 0.0
        %4158 = vmatprep.subr.mxu0 0.0
        %4159 = vmatpush1.msra.mxu0 0.0
        %4160 = vmatprep.subr.mxu0 0.0
        %4161 = vmatpush1.msra.mxu0 0.0
        %4162 = vmatprep.subr.mxu0 0.0
        %4163 = vmatpush1.msra.mxu0 0.0
        %4164 = vmatprep.subr.mxu0 0.0
        %4165 = vmatpush1.msra.mxu0 0.0
        %4166 = vmatprep.mubr.f32.mxu0 0.0
        %4167 = vmatmul.mubr.f32.gmra.mrb[0].mxu0 %v4094
        %v4168 = vpop.f32.mrb[0].mxu0
        %v4169 = vadd.f32 0.0, %v4168
        %v4170 = vpop.f32.mrb[0].mxu0
        %v4171 = vadd.f32 0.0, %v4170
        %4172 = vdwg.mxu0
        %4173 = vmatprep.subr.mxu0 0.0
        %4174 = vmatpush1.msra.mxu0 %v4100
        %4175 = vmatprep.subr.mxu0 0.0
        %4176 = vmatpush1.msra.mxu0 0.0
        %4177 = vmatprep.subr.mxu0 0.0
        %4178 = vmatpush1.msra.mxu0 0.0
        %4179 = vmatprep.subr.mxu0 0.0
        %4180 = vmatpush1.msra.mxu0 0.0
        %4181 = vmatprep.subr.mxu0 0.0
        %4182 = vmatpush1.msra.mxu0 0.0
        %4183 = vmatprep.subr.mxu0 0.0
        %4184 = vmatpush1.msra.mxu0 0.0
        %4185 = vmatprep.subr.mxu0 0.0
        %4186 = vmatpush1.msra.mxu0 0.0
        %4187 = vmatprep.subr.mxu0 0.0
        %4188 = vmatpush1.msra.mxu0 0.0
        %4189 = vmatprep.subr.mxu0 0.0
        %4190 = vmatpush1.msra.mxu0 0.0
        %4191 = vmatprep.subr.mxu0 0.0
        %4192 = vmatpush1.msra.mxu0 0.0
        %4193 = vmatprep.subr.mxu0 0.0
        %4194 = vmatpush1.msra.mxu0 0.0
        %4195 = vmatprep.subr.mxu0 0.0
        %4196 = vmatpush1.msra.mxu0 0.0
        %4197 = vmatprep.subr.mxu0 0.0
        %4198 = vmatpush1.msra.mxu0 0.0
        %4199 = vmatprep.subr.mxu0 0.0
        %4200 = vmatpush1.msra.mxu0 0.0
        %4201 = vmatprep.subr.mxu0 0.0
        %4202 = vmatpush1.msra.mxu0 0.0
        %4203 = vmatprep.subr.mxu0 0.0
        %4204 = vmatpush1.msra.mxu0 0.0
        %4205 = vmatprep.subr.mxu0 0.0
        %4206 = vmatpush1.msra.mxu0 0.0
        %4207 = vmatprep.subr.mxu0 0.0
        %4208 = vmatpush1.msra.mxu0 0.0
        %4209 = vmatprep.subr.mxu0 0.0
        %4210 = vmatpush1.msra.mxu0 0.0
        %4211 = vmatprep.subr.mxu0 0.0
        %4212 = vmatpush1.msra.mxu0 0.0
        %4213 = vmatprep.subr.mxu0 0.0
        %4214 = vmatpush1.msra.mxu0 0.0
        %4215 = vmatprep.subr.mxu0 0.0
        %4216 = vmatpush1.msra.mxu0 0.0
        %4217 = vmatprep.subr.mxu0 0.0
        %4218 = vmatpush1.msra.mxu0 0.0
        %4219 = vmatprep.subr.mxu0 0.0
        %4220 = vmatpush1.msra.mxu0 0.0
        %4221 = vmatprep.subr.mxu0 0.0
        %4222 = vmatpush1.msra.mxu0 0.0
        %4223 = vmatprep.subr.mxu0 0.0
        %4224 = vmatpush1.msra.mxu0 0.0
        %4225 = vmatprep.subr.mxu0 0.0
        %4226 = vmatpush1.msra.mxu0 0.0
        %4227 = vmatprep.subr.mxu0 0.0
        %4228 = vmatpush1.msra.mxu0 0.0
        %4229 = vmatprep.subr.mxu0 0.0
        %4230 = vmatpush1.msra.mxu0 0.0
        %4231 = vmatprep.subr.mxu0 0.0
        %4232 = vmatpush1.msra.mxu0 0.0
        %4233 = vmatprep.subr.mxu0 0.0
        %4234 = vmatpush1.msra.mxu0 0.0
        %4235 = vmatprep.subr.mxu0 0.0
        %4236 = vmatpush1.msra.mxu0 0.0
        %4237 = vmatprep.mubr.f32.mxu0 0.0
        %4238 = vmatmul.mubr.f32.gmra.mrb[0].mxu0 %v4094
        %v4239 = vpop.f32.mrb[0].mxu0
        %v4240 = vadd.f32 0.0, %v4239
        %v4241 = vpop.f32.mrb[0].mxu0
        %4242 = vdwg.mxu0
        %v4243 = vadd.f32 %v4070, %v4169
        %v4244 = vadd.f32 %v4071, %v4171
        %v4245 = vadd.f32 %v4072, %v4240
        %v4246 = vld [vmem:[%s168] sm:$0xff]
        %v4247 = vld [vmem:[%s168 + $0x8] sm:$0xff]
        %s4248 = scalar_lea.vmem %s0, 192
        %v4249 = vld [vmem:[%s4248] sm:$0x3f]
        %v4252 = vcombine.high %v4246, %v4246
        %v4253 = vcombine.high %v4247, %v4247
        %4254 = vrot.lane.b32.xlu0 %v4246, 59
        %v4255 = vpop.permute.xlu0 %4254
        %4256 = vrot.lane.b32.xlu0 %v4252, 59
        %v4257 = vpop.permute.xlu0 %4256
        %4258 = vrot.lane.b32.xlu0 %v4247, 59
        %v4259 = vpop.permute.xlu0 %4258
        %4260 = vrot.lane.b32.xlu0 %v4253, 59
        %v4261 = vpop.permute.xlu0 %4260
        %vm4262 = vcmask 482304
        %v4263 = vsel %vm4262, %v4255, %v4257
        %v4264 = vsel %vm4262, %v4257, %v4259
        %v4265 = vsel %vm4262, %v4259, %v4261
        %v4267 = vsel %vm186, %v4249, 0
        %v4269 = vsel %vm190, %v4263, 0
        %v4271 = vsel %vm190, %v4264, 0
        %v4273 = vsel %vm190, %v4265, 0
        %4275 = vmatprep.subr.mxu0 %v4271
        %4276 = vmatpush1.msra.mxu0 %v4269
        %4277 = vmatprep.subr.mxu0 0.0
        %4278 = vmatpush1.msra.mxu0 0.0
        %4279 = vmatprep.subr.mxu0 0.0
        %4280 = vmatpush1.msra.mxu0 0.0
        %4281 = vmatprep.subr.mxu0 0.0
        %4282 = vmatpush1.msra.mxu0 0.0
        %4283 = vmatprep.subr.mxu0 0.0
        %4284 = vmatpush1.msra.mxu0 0.0
        %4285 = vmatprep.subr.mxu0 0.0
        %4286 = vmatpush1.msra.mxu0 0.0
        %4287 = vmatprep.subr.mxu0 0.0
        %4288 = vmatpush1.msra.mxu0 0.0
        %4289 = vmatprep.subr.mxu0 0.0
        %4290 = vmatpush1.msra.mxu0 0.0
        %4291 = vmatprep.subr.mxu0 0.0
        %4292 = vmatpush1.msra.mxu0 0.0
        %4293 = vmatprep.subr.mxu0 0.0
        %4294 = vmatpush1.msra.mxu0 0.0
        %4295 = vmatprep.subr.mxu0 0.0
        %4296 = vmatpush1.msra.mxu0 0.0
        %4297 = vmatprep.subr.mxu0 0.0
        %4298 = vmatpush1.msra.mxu0 0.0
        %4299 = vmatprep.subr.mxu0 0.0
        %4300 = vmatpush1.msra.mxu0 0.0
        %4301 = vmatprep.subr.mxu0 0.0
        %4302 = vmatpush1.msra.mxu0 0.0
        %4303 = vmatprep.subr.mxu0 0.0
        %4304 = vmatpush1.msra.mxu0 0.0
        %4305 = vmatprep.subr.mxu0 0.0
        %4306 = vmatpush1.msra.mxu0 0.0
        %4307 = vmatprep.subr.mxu0 0.0
        %4308 = vmatpush1.msra.mxu0 0.0
        %4309 = vmatprep.subr.mxu0 0.0
        %4310 = vmatpush1.msra.mxu0 0.0
        %4311 = vmatprep.subr.mxu0 0.0
        %4312 = vmatpush1.msra.mxu0 0.0
        %4313 = vmatprep.subr.mxu0 0.0
        %4314 = vmatpush1.msra.mxu0 0.0
        %4315 = vmatprep.subr.mxu0 0.0
        %4316 = vmatpush1.msra.mxu0 0.0
        %4317 = vmatprep.subr.mxu0 0.0
        %4318 = vmatpush1.msra.mxu0 0.0
        %4319 = vmatprep.subr.mxu0 0.0
        %4320 = vmatpush1.msra.mxu0 0.0
        %4321 = vmatprep.subr.mxu0 0.0
        %4322 = vmatpush1.msra.mxu0 0.0
        %4323 = vmatprep.subr.mxu0 0.0
        %4324 = vmatpush1.msra.mxu0 0.0
        %4325 = vmatprep.subr.mxu0 0.0
        %4326 = vmatpush1.msra.mxu0 0.0
        %4327 = vmatprep.subr.mxu0 0.0
        %4328 = vmatpush1.msra.mxu0 0.0
        %4329 = vmatprep.subr.mxu0 0.0
        %4330 = vmatpush1.msra.mxu0 0.0
        %4331 = vmatprep.subr.mxu0 0.0
        %4332 = vmatpush1.msra.mxu0 0.0
        %4333 = vmatprep.subr.mxu0 0.0
        %4334 = vmatpush1.msra.mxu0 0.0
        %4335 = vmatprep.subr.mxu0 0.0
        %4336 = vmatpush1.msra.mxu0 0.0
        %4337 = vmatprep.subr.mxu0 0.0
        %4338 = vmatpush1.msra.mxu0 0.0
        %4339 = vmatprep.mubr.f32.mxu0 0.0
        %4340 = vmatmul.mubr.f32.gmra.mrb[0].mxu0 %v4267
        %v4341 = vpop.f32.mrb[0].mxu0
        %v4342 = vadd.f32 0.0, %v4341
        %v4343 = vpop.f32.mrb[0].mxu0
        %v4344 = vadd.f32 0.0, %v4343
        %4345 = vdwg.mxu0
        %4346 = vmatprep.subr.mxu0 0.0
        %4347 = vmatpush1.msra.mxu0 %v4273
        %4348 = vmatprep.subr.mxu0 0.0
        %4349 = vmatpush1.msra.mxu0 0.0
        %4350 = vmatprep.subr.mxu0 0.0
        %4351 = vmatpush1.msra.mxu0 0.0
        %4352 = vmatprep.subr.mxu0 0.0
        %4353 = vmatpush1.msra.mxu0 0.0
        %4354 = vmatprep.subr.mxu0 0.0
        %4355 = vmatpush1.msra.mxu0 0.0
        %4356 = vmatprep.subr.mxu0 0.0
        %4357 = vmatpush1.msra.mxu0 0.0
        %4358 = vmatprep.subr.mxu0 0.0
        %4359 = vmatpush1.msra.mxu0 0.0
        %4360 = vmatprep.subr.mxu0 0.0
        %4361 = vmatpush1.msra.mxu0 0.0
        %4362 = vmatprep.subr.mxu0 0.0
        %4363 = vmatpush1.msra.mxu0 0.0
        %4364 = vmatprep.subr.mxu0 0.0
        %4365 = vmatpush1.msra.mxu0 0.0
        %4366 = vmatprep.subr.mxu0 0.0
        %4367 = vmatpush1.msra.mxu0 0.0
        %4368 = vmatprep.subr.mxu0 0.0
        %4369 = vmatpush1.msra.mxu0 0.0
        %4370 = vmatprep.subr.mxu0 0.0
        %4371 = vmatpush1.msra.mxu0 0.0
        %4372 = vmatprep.subr.mxu0 0.0
        %4373 = vmatpush1.msra.mxu0 0.0
        %4374 = vmatprep.subr.mxu0 0.0
        %4375 = vmatpush1.msra.mxu0 0.0
        %4376 = vmatprep.subr.mxu0 0.0
        %4377 = vmatpush1.msra.mxu0 0.0
        %4378 = vmatprep.subr.mxu0 0.0
        %4379 = vmatpush1.msra.mxu0 0.0
        %4380 = vmatprep.subr.mxu0 0.0
        %4381 = vmatpush1.msra.mxu0 0.0
        %4382 = vmatprep.subr.mxu0 0.0
        %4383 = vmatpush1.msra.mxu0 0.0
        %4384 = vmatprep.subr.mxu0 0.0
        %4385 = vmatpush1.msra.mxu0 0.0
        %4386 = vmatprep.subr.mxu0 0.0
        %4387 = vmatpush1.msra.mxu0 0.0
        %4388 = vmatprep.subr.mxu0 0.0
        %4389 = vmatpush1.msra.mxu0 0.0
        %4390 = vmatprep.subr.mxu0 0.0
        %4391 = vmatpush1.msra.mxu0 0.0
        %4392 = vmatprep.subr.mxu0 0.0
        %4393 = vmatpush1.msra.mxu0 0.0
        %4394 = vmatprep.subr.mxu0 0.0
        %4395 = vmatpush1.msra.mxu0 0.0
        %4396 = vmatprep.subr.mxu0 0.0
        %4397 = vmatpush1.msra.mxu0 0.0
        %4398 = vmatprep.subr.mxu0 0.0
        %4399 = vmatpush1.msra.mxu0 0.0
        %4400 = vmatprep.subr.mxu0 0.0
        %4401 = vmatpush1.msra.mxu0 0.0
        %4402 = vmatprep.subr.mxu0 0.0
        %4403 = vmatpush1.msra.mxu0 0.0
        %4404 = vmatprep.subr.mxu0 0.0
        %4405 = vmatpush1.msra.mxu0 0.0
        %4406 = vmatprep.subr.mxu0 0.0
        %4407 = vmatpush1.msra.mxu0 0.0
        %4408 = vmatprep.subr.mxu0 0.0
        %4409 = vmatpush1.msra.mxu0 0.0
        %4410 = vmatprep.mubr.f32.mxu0 0.0
        %4411 = vmatmul.mubr.f32.gmra.mrb[0].mxu0 %v4267
        %v4412 = vpop.f32.mrb[0].mxu0
        %v4413 = vadd.f32 0.0, %v4412
        %v4414 = vpop.f32.mrb[0].mxu0
        %4415 = vdwg.mxu0
        %v4416 = vadd.f32 %v4243, %v4342
        %v4417 = vadd.f32 %v4244, %v4344
        %v4418 = vadd.f32 %v4245, %v4413
        %v4419 = vld [vmem:[%s168] sm:$0xff]
        %v4420 = vld [vmem:[%s168 + $0x8] sm:$0xff]
        %s4421 = scalar_lea.vmem %s0, 200
        %v4422 = vld [vmem:[%s4421] sm:$0x3f]
        %v4425 = vcombine.high %v4419, %v4419
        %v4426 = vcombine.high %v4420, %v4420
        %4427 = vrot.lane.b32.xlu0 %v4419, 58
        %v4428 = vpop.permute.xlu0 %4427
        %4429 = vrot.lane.b32.xlu0 %v4425, 58
        %v4430 = vpop.permute.xlu0 %4429
        %4431 = vrot.lane.b32.xlu0 %v4420, 58
        %v4432 = vpop.permute.xlu0 %4431
        %4433 = vrot.lane.b32.xlu0 %v4426, 58
        %v4434 = vpop.permute.xlu0 %4433
        %vm4435 = vcmask 474112
        %v4436 = vsel %vm4435, %v4428, %v4430
        %v4437 = vsel %vm4435, %v4430, %v4432
        %v4438 = vsel %vm4435, %v4432, %v4434
        %v4440 = vsel %vm186, %v4422, 0
        %v4442 = vsel %vm190, %v4436, 0
        %v4444 = vsel %vm190, %v4437, 0
        %v4446 = vsel %vm190, %v4438, 0
        %4448 = vmatprep.subr.mxu0 %v4444
        %4449 = vmatpush1.msra.mxu0 %v4442
        %4450 = vmatprep.subr.mxu0 0.0
        %4451 = vmatpush1.msra.mxu0 0.0
        %4452 = vmatprep.subr.mxu0 0.0
        %4453 = vmatpush1.msra.mxu0 0.0
        %4454 = vmatprep.subr.mxu0 0.0
        %4455 = vmatpush1.msra.mxu0 0.0
        %4456 = vmatprep.subr.mxu0 0.0
        %4457 = vmatpush1.msra.mxu0 0.0
        %4458 = vmatprep.subr.mxu0 0.0
        %4459 = vmatpush1.msra.mxu0 0.0
        %4460 = vmatprep.subr.mxu0 0.0
        %4461 = vmatpush1.msra.mxu0 0.0
        %4462 = vmatprep.subr.mxu0 0.0
        %4463 = vmatpush1.msra.mxu0 0.0
        %4464 = vmatprep.subr.mxu0 0.0
        %4465 = vmatpush1.msra.mxu0 0.0
        %4466 = vmatprep.subr.mxu0 0.0
        %4467 = vmatpush1.msra.mxu0 0.0
        %4468 = vmatprep.subr.mxu0 0.0
        %4469 = vmatpush1.msra.mxu0 0.0
        %4470 = vmatprep.subr.mxu0 0.0
        %4471 = vmatpush1.msra.mxu0 0.0
        %4472 = vmatprep.subr.mxu0 0.0
        %4473 = vmatpush1.msra.mxu0 0.0
        %4474 = vmatprep.subr.mxu0 0.0
        %4475 = vmatpush1.msra.mxu0 0.0
        %4476 = vmatprep.subr.mxu0 0.0
        %4477 = vmatpush1.msra.mxu0 0.0
        %4478 = vmatprep.subr.mxu0 0.0
        %4479 = vmatpush1.msra.mxu0 0.0
        %4480 = vmatprep.subr.mxu0 0.0
        %4481 = vmatpush1.msra.mxu0 0.0
        %4482 = vmatprep.subr.mxu0 0.0
        %4483 = vmatpush1.msra.mxu0 0.0
        %4484 = vmatprep.subr.mxu0 0.0
        %4485 = vmatpush1.msra.mxu0 0.0
        %4486 = vmatprep.subr.mxu0 0.0
        %4487 = vmatpush1.msra.mxu0 0.0
        %4488 = vmatprep.subr.mxu0 0.0
        %4489 = vmatpush1.msra.mxu0 0.0
        %4490 = vmatprep.subr.mxu0 0.0
        %4491 = vmatpush1.msra.mxu0 0.0
        %4492 = vmatprep.subr.mxu0 0.0
        %4493 = vmatpush1.msra.mxu0 0.0
        %4494 = vmatprep.subr.mxu0 0.0
        %4495 = vmatpush1.msra.mxu0 0.0
        %4496 = vmatprep.subr.mxu0 0.0
        %4497 = vmatpush1.msra.mxu0 0.0
        %4498 = vmatprep.subr.mxu0 0.0
        %4499 = vmatpush1.msra.mxu0 0.0
        %4500 = vmatprep.subr.mxu0 0.0
        %4501 = vmatpush1.msra.mxu0 0.0
        %4502 = vmatprep.subr.mxu0 0.0
        %4503 = vmatpush1.msra.mxu0 0.0
        %4504 = vmatprep.subr.mxu0 0.0
        %4505 = vmatpush1.msra.mxu0 0.0
        %4506 = vmatprep.subr.mxu0 0.0
        %4507 = vmatpush1.msra.mxu0 0.0
        %4508 = vmatprep.subr.mxu0 0.0
        %4509 = vmatpush1.msra.mxu0 0.0
        %4510 = vmatprep.subr.mxu0 0.0
        %4511 = vmatpush1.msra.mxu0 0.0
        %4512 = vmatprep.mubr.f32.mxu0 0.0
        %4513 = vmatmul.mubr.f32.gmra.mrb[0].mxu0 %v4440
        %v4514 = vpop.f32.mrb[0].mxu0
        %v4515 = vadd.f32 0.0, %v4514
        %v4516 = vpop.f32.mrb[0].mxu0
        %v4517 = vadd.f32 0.0, %v4516
        %4518 = vdwg.mxu0
        %4519 = vmatprep.subr.mxu0 0.0
        %4520 = vmatpush1.msra.mxu0 %v4446
        %4521 = vmatprep.subr.mxu0 0.0
        %4522 = vmatpush1.msra.mxu0 0.0
        %4523 = vmatprep.subr.mxu0 0.0
        %4524 = vmatpush1.msra.mxu0 0.0
        %4525 = vmatprep.subr.mxu0 0.0
        %4526 = vmatpush1.msra.mxu0 0.0
        %4527 = vmatprep.subr.mxu0 0.0
        %4528 = vmatpush1.msra.mxu0 0.0
        %4529 = vmatprep.subr.mxu0 0.0
        %4530 = vmatpush1.msra.mxu0 0.0
        %4531 = vmatprep.subr.mxu0 0.0
        %4532 = vmatpush1.msra.mxu0 0.0
        %4533 = vmatprep.subr.mxu0 0.0
        %4534 = vmatpush1.msra.mxu0 0.0
        %4535 = vmatprep.subr.mxu0 0.0
        %4536 = vmatpush1.msra.mxu0 0.0
        %4537 = vmatprep.subr.mxu0 0.0
        %4538 = vmatpush1.msra.mxu0 0.0
        %4539 = vmatprep.subr.mxu0 0.0
        %4540 = vmatpush1.msra.mxu0 0.0
        %4541 = vmatprep.subr.mxu0 0.0
        %4542 = vmatpush1.msra.mxu0 0.0
        %4543 = vmatprep.subr.mxu0 0.0
        %4544 = vmatpush1.msra.mxu0 0.0
        %4545 = vmatprep.subr.mxu0 0.0
        %4546 = vmatpush1.msra.mxu0 0.0
        %4547 = vmatprep.subr.mxu0 0.0
        %4548 = vmatpush1.msra.mxu0 0.0
        %4549 = vmatprep.subr.mxu0 0.0
        %4550 = vmatpush1.msra.mxu0 0.0
        %4551 = vmatprep.subr.mxu0 0.0
        %4552 = vmatpush1.msra.mxu0 0.0
        %4553 = vmatprep.subr.mxu0 0.0
        %4554 = vmatpush1.msra.mxu0 0.0
        %4555 = vmatprep.subr.mxu0 0.0
        %4556 = vmatpush1.msra.mxu0 0.0
        %4557 = vmatprep.subr.mxu0 0.0
        %4558 = vmatpush1.msra.mxu0 0.0
        %4559 = vmatprep.subr.mxu0 0.0
        %4560 = vmatpush1.msra.mxu0 0.0
        %4561 = vmatprep.subr.mxu0 0.0
        %4562 = vmatpush1.msra.mxu0 0.0
        %4563 = vmatprep.subr.mxu0 0.0
        %4564 = vmatpush1.msra.mxu0 0.0
        %4565 = vmatprep.subr.mxu0 0.0
        %4566 = vmatpush1.msra.mxu0 0.0
        %4567 = vmatprep.subr.mxu0 0.0
        %4568 = vmatpush1.msra.mxu0 0.0
        %4569 = vmatprep.subr.mxu0 0.0
        %4570 = vmatpush1.msra.mxu0 0.0
        %4571 = vmatprep.subr.mxu0 0.0
        %4572 = vmatpush1.msra.mxu0 0.0
        %4573 = vmatprep.subr.mxu0 0.0
        %4574 = vmatpush1.msra.mxu0 0.0
        %4575 = vmatprep.subr.mxu0 0.0
        %4576 = vmatpush1.msra.mxu0 0.0
        %4577 = vmatprep.subr.mxu0 0.0
        %4578 = vmatpush1.msra.mxu0 0.0
        %4579 = vmatprep.subr.mxu0 0.0
        %4580 = vmatpush1.msra.mxu0 0.0
        %4581 = vmatprep.subr.mxu0 0.0
        %4582 = vmatpush1.msra.mxu0 0.0
        %4583 = vmatprep.mubr.f32.mxu0 0.0
        %4584 = vmatmul.mubr.f32.gmra.mrb[0].mxu0 %v4440
        %v4585 = vpop.f32.mrb[0].mxu0
        %v4586 = vadd.f32 0.0, %v4585
        %v4587 = vpop.f32.mrb[0].mxu0
        %4588 = vdwg.mxu0
        %v4589 = vadd.f32 %v4416, %v4515
        %v4590 = vadd.f32 %v4417, %v4517
        %v4591 = vadd.f32 %v4418, %v4586
        %v4592 = vld [vmem:[%s168] sm:$0xff]
        %v4593 = vld [vmem:[%s168 + $0x8] sm:$0xff]
        %s4594 = scalar_lea.vmem %s0, 208
        %v4595 = vld [vmem:[%s4594] sm:$0x3f]
        %v4598 = vcombine.high %v4592, %v4592
        %v4599 = vcombine.high %v4593, %v4593
        %4600 = vrot.lane.b32.xlu0 %v4592, 57
        %v4601 = vpop.permute.xlu0 %4600
        %4602 = vrot.lane.b32.xlu0 %v4598, 57
        %v4603 = vpop.permute.xlu0 %4602
        %4604 = vrot.lane.b32.xlu0 %v4593, 57
        %v4605 = vpop.permute.xlu0 %4604
        %4606 = vrot.lane.b32.xlu0 %v4599, 57
        %v4607 = vpop.permute.xlu0 %4606
        %vm4608 = vcmask 465920
        %v4609 = vsel %vm4608, %v4601, %v4603
        %v4610 = vsel %vm4608, %v4603, %v4605
        %v4611 = vsel %vm4608, %v4605, %v4607
        %v4613 = vsel %vm186, %v4595, 0
        %v4615 = vsel %vm190, %v4609, 0
        %v4617 = vsel %vm190, %v4610, 0
        %v4619 = vsel %vm190, %v4611, 0
        %4621 = vmatprep.subr.mxu0 %v4617
        %4622 = vmatpush1.msra.mxu0 %v4615
        %4623 = vmatprep.subr.mxu0 0.0
        %4624 = vmatpush1.msra.mxu0 0.0
        %4625 = vmatprep.subr.mxu0 0.0
        %4626 = vmatpush1.msra.mxu0 0.0
        %4627 = vmatprep.subr.mxu0 0.0
        %4628 = vmatpush1.msra.mxu0 0.0
        %4629 = vmatprep.subr.mxu0 0.0
        %4630 = vmatpush1.msra.mxu0 0.0
        %4631 = vmatprep.subr.mxu0 0.0
        %4632 = vmatpush1.msra.mxu0 0.0
        %4633 = vmatprep.subr.mxu0 0.0
        %4634 = vmatpush1.msra.mxu0 0.0
        %4635 = vmatprep.subr.mxu0 0.0
        %4636 = vmatpush1.msra.mxu0 0.0
        %4637 = vmatprep.subr.mxu0 0.0
        %4638 = vmatpush1.msra.mxu0 0.0
        %4639 = vmatprep.subr.mxu0 0.0
        %4640 = vmatpush1.msra.mxu0 0.0
        %4641 = vmatprep.subr.mxu0 0.0
        %4642 = vmatpush1.msra.mxu0 0.0
        %4643 = vmatprep.subr.mxu0 0.0
        %4644 = vmatpush1.msra.mxu0 0.0
        %4645 = vmatprep.subr.mxu0 0.0
        %4646 = vmatpush1.msra.mxu0 0.0
        %4647 = vmatprep.subr.mxu0 0.0
        %4648 = vmatpush1.msra.mxu0 0.0
        %4649 = vmatprep.subr.mxu0 0.0
        %4650 = vmatpush1.msra.mxu0 0.0
        %4651 = vmatprep.subr.mxu0 0.0
        %4652 = vmatpush1.msra.mxu0 0.0
        %4653 = vmatprep.subr.mxu0 0.0
        %4654 = vmatpush1.msra.mxu0 0.0
        %4655 = vmatprep.subr.mxu0 0.0
        %4656 = vmatpush1.msra.mxu0 0.0
        %4657 = vmatprep.subr.mxu0 0.0
        %4658 = vmatpush1.msra.mxu0 0.0
        %4659 = vmatprep.subr.mxu0 0.0
        %4660 = vmatpush1.msra.mxu0 0.0
        %4661 = vmatprep.subr.mxu0 0.0
        %4662 = vmatpush1.msra.mxu0 0.0
        %4663 = vmatprep.subr.mxu0 0.0
        %4664 = vmatpush1.msra.mxu0 0.0
        %4665 = vmatprep.subr.mxu0 0.0
        %4666 = vmatpush1.msra.mxu0 0.0
        %4667 = vmatprep.subr.mxu0 0.0
        %4668 = vmatpush1.msra.mxu0 0.0
        %4669 = vmatprep.subr.mxu0 0.0
        %4670 = vmatpush1.msra.mxu0 0.0
        %4671 = vmatprep.subr.mxu0 0.0
        %4672 = vmatpush1.msra.mxu0 0.0
        %4673 = vmatprep.subr.mxu0 0.0
        %4674 = vmatpush1.msra.mxu0 0.0
        %4675 = vmatprep.subr.mxu0 0.0
        %4676 = vmatpush1.msra.mxu0 0.0
        %4677 = vmatprep.subr.mxu0 0.0
        %4678 = vmatpush1.msra.mxu0 0.0
        %4679 = vmatprep.subr.mxu0 0.0
        %4680 = vmatpush1.msra.mxu0 0.0
        %4681 = vmatprep.subr.mxu0 0.0
        %4682 = vmatpush1.msra.mxu0 0.0
        %4683 = vmatprep.subr.mxu0 0.0
        %4684 = vmatpush1.msra.mxu0 0.0
        %4685 = vmatprep.mubr.f32.mxu0 0.0
        %4686 = vmatmul.mubr.f32.gmra.mrb[0].mxu0 %v4613
        %v4687 = vpop.f32.mrb[0].mxu0
        %v4688 = vadd.f32 0.0, %v4687
        %v4689 = vpop.f32.mrb[0].mxu0
        %v4690 = vadd.f32 0.0, %v4689
        %4691 = vdwg.mxu0
        %4692 = vmatprep.subr.mxu0 0.0
        %4693 = vmatpush1.msra.mxu0 %v4619
        %4694 = vmatprep.subr.mxu0 0.0
        %4695 = vmatpush1.msra.mxu0 0.0
        %4696 = vmatprep.subr.mxu0 0.0
        %4697 = vmatpush1.msra.mxu0 0.0
        %4698 = vmatprep.subr.mxu0 0.0
        %4699 = vmatpush1.msra.mxu0 0.0
        %4700 = vmatprep.subr.mxu0 0.0
        %4701 = vmatpush1.msra.mxu0 0.0
        %4702 = vmatprep.subr.mxu0 0.0
        %4703 = vmatpush1.msra.mxu0 0.0
        %4704 = vmatprep.subr.mxu0 0.0
        %4705 = vmatpush1.msra.mxu0 0.0
        %4706 = vmatprep.subr.mxu0 0.0
        %4707 = vmatpush1.msra.mxu0 0.0
        %4708 = vmatprep.subr.mxu0 0.0
        %4709 = vmatpush1.msra.mxu0 0.0
        %4710 = vmatprep.subr.mxu0 0.0
        %4711 = vmatpush1.msra.mxu0 0.0
        %4712 = vmatprep.subr.mxu0 0.0
        %4713 = vmatpush1.msra.mxu0 0.0
        %4714 = vmatprep.subr.mxu0 0.0
        %4715 = vmatpush1.msra.mxu0 0.0
        %4716 = vmatprep.subr.mxu0 0.0
        %4717 = vmatpush1.msra.mxu0 0.0
        %4718 = vmatprep.subr.mxu0 0.0
        %4719 = vmatpush1.msra.mxu0 0.0
        %4720 = vmatprep.subr.mxu0 0.0
        %4721 = vmatpush1.msra.mxu0 0.0
        %4722 = vmatprep.subr.mxu0 0.0
        %4723 = vmatpush1.msra.mxu0 0.0
        %4724 = vmatprep.subr.mxu0 0.0
        %4725 = vmatpush1.msra.mxu0 0.0
        %4726 = vmatprep.subr.mxu0 0.0
        %4727 = vmatpush1.msra.mxu0 0.0
        %4728 = vmatprep.subr.mxu0 0.0
        %4729 = vmatpush1.msra.mxu0 0.0
        %4730 = vmatprep.subr.mxu0 0.0
        %4731 = vmatpush1.msra.mxu0 0.0
        %4732 = vmatprep.subr.mxu0 0.0
        %4733 = vmatpush1.msra.mxu0 0.0
        %4734 = vmatprep.subr.mxu0 0.0
        %4735 = vmatpush1.msra.mxu0 0.0
        %4736 = vmatprep.subr.mxu0 0.0
        %4737 = vmatpush1.msra.mxu0 0.0
        %4738 = vmatprep.subr.mxu0 0.0
        %4739 = vmatpush1.msra.mxu0 0.0
        %4740 = vmatprep.subr.mxu0 0.0
        %4741 = vmatpush1.msra.mxu0 0.0
        %4742 = vmatprep.subr.mxu0 0.0
        %4743 = vmatpush1.msra.mxu0 0.0
        %4744 = vmatprep.subr.mxu0 0.0
        %4745 = vmatpush1.msra.mxu0 0.0
        %4746 = vmatprep.subr.mxu0 0.0
        %4747 = vmatpush1.msra.mxu0 0.0
        %4748 = vmatprep.subr.mxu0 0.0
        %4749 = vmatpush1.msra.mxu0 0.0
        %4750 = vmatprep.subr.mxu0 0.0
        %4751 = vmatpush1.msra.mxu0 0.0
        %4752 = vmatprep.subr.mxu0 0.0
        %4753 = vmatpush1.msra.mxu0 0.0
        %4754 = vmatprep.subr.mxu0 0.0
        %4755 = vmatpush1.msra.mxu0 0.0
        %4756 = vmatprep.mubr.f32.mxu0 0.0
        %4757 = vmatmul.mubr.f32.gmra.mrb[0].mxu0 %v4613
        %v4758 = vpop.f32.mrb[0].mxu0
        %v4759 = vadd.f32 0.0, %v4758
        %v4760 = vpop.f32.mrb[0].mxu0
        %4761 = vdwg.mxu0
        %v4762 = vadd.f32 %v4589, %v4688
        %v4763 = vadd.f32 %v4590, %v4690
        %v4764 = vadd.f32 %v4591, %v4759
        %v4765 = vld [vmem:[%s168] sm:$0xff]
        %v4766 = vld [vmem:[%s168 + $0x8] sm:$0xff]
        %s4767 = scalar_lea.vmem %s0, 216
        %v4768 = vld [vmem:[%s4767] sm:$0x3f]
        %v4771 = vcombine.high %v4765, %v4765
        %v4772 = vcombine.high %v4766, %v4766
        %4773 = vrot.lane.b32.xlu0 %v4765, 56
        %v4774 = vpop.permute.xlu0 %4773
        %4775 = vrot.lane.b32.xlu0 %v4771, 56
        %v4776 = vpop.permute.xlu0 %4775
        %4777 = vrot.lane.b32.xlu0 %v4766, 56
        %v4778 = vpop.permute.xlu0 %4777
        %4779 = vrot.lane.b32.xlu0 %v4772, 56
        %v4780 = vpop.permute.xlu0 %4779
        %vm4781 = vcmask 457728
        %v4782 = vsel %vm4781, %v4774, %v4776
        %v4783 = vsel %vm4781, %v4776, %v4778
        %v4784 = vsel %vm4781, %v4778, %v4780
        %v4786 = vsel %vm186, %v4768, 0
        %v4788 = vsel %vm190, %v4782, 0
        %v4790 = vsel %vm190, %v4783, 0
        %v4792 = vsel %vm190, %v4784, 0
        %4794 = vmatprep.subr.mxu0 %v4790
        %4795 = vmatpush1.msra.mxu0 %v4788
        %4796 = vmatprep.subr.mxu0 0.0
        %4797 = vmatpush1.msra.mxu0 0.0
        %4798 = vmatprep.subr.mxu0 0.0
        %4799 = vmatpush1.msra.mxu0 0.0
        %4800 = vmatprep.subr.mxu0 0.0
        %4801 = vmatpush1.msra.mxu0 0.0
        %4802 = vmatprep.subr.mxu0 0.0
        %4803 = vmatpush1.msra.mxu0 0.0
        %4804 = vmatprep.subr.mxu0 0.0
        %4805 = vmatpush1.msra.mxu0 0.0
        %4806 = vmatprep.subr.mxu0 0.0
        %4807 = vmatpush1.msra.mxu0 0.0
        %4808 = vmatprep.subr.mxu0 0.0
        %4809 = vmatpush1.msra.mxu0 0.0
        %4810 = vmatprep.subr.mxu0 0.0
        %4811 = vmatpush1.msra.mxu0 0.0
        %4812 = vmatprep.subr.mxu0 0.0
        %4813 = vmatpush1.msra.mxu0 0.0
        %4814 = vmatprep.subr.mxu0 0.0
        %4815 = vmatpush1.msra.mxu0 0.0
        %4816 = vmatprep.subr.mxu0 0.0
        %4817 = vmatpush1.msra.mxu0 0.0
        %4818 = vmatprep.subr.mxu0 0.0
        %4819 = vmatpush1.msra.mxu0 0.0
        %4820 = vmatprep.subr.mxu0 0.0
        %4821 = vmatpush1.msra.mxu0 0.0
        %4822 = vmatprep.subr.mxu0 0.0
        %4823 = vmatpush1.msra.mxu0 0.0
        %4824 = vmatprep.subr.mxu0 0.0
        %4825 = vmatpush1.msra.mxu0 0.0
        %4826 = vmatprep.subr.mxu0 0.0
        %4827 = vmatpush1.msra.mxu0 0.0
        %4828 = vmatprep.subr.mxu0 0.0
        %4829 = vmatpush1.msra.mxu0 0.0
        %4830 = vmatprep.subr.mxu0 0.0
        %4831 = vmatpush1.msra.mxu0 0.0
        %4832 = vmatprep.subr.mxu0 0.0
        %4833 = vmatpush1.msra.mxu0 0.0
        %4834 = vmatprep.subr.mxu0 0.0
        %4835 = vmatpush1.msra.mxu0 0.0
        %4836 = vmatprep.subr.mxu0 0.0
        %4837 = vmatpush1.msra.mxu0 0.0
        %4838 = vmatprep.subr.mxu0 0.0
        %4839 = vmatpush1.msra.mxu0 0.0
        %4840 = vmatprep.subr.mxu0 0.0
        %4841 = vmatpush1.msra.mxu0 0.0
        %4842 = vmatprep.subr.mxu0 0.0
        %4843 = vmatpush1.msra.mxu0 0.0
        %4844 = vmatprep.subr.mxu0 0.0
        %4845 = vmatpush1.msra.mxu0 0.0
        %4846 = vmatprep.subr.mxu0 0.0
        %4847 = vmatpush1.msra.mxu0 0.0
        %4848 = vmatprep.subr.mxu0 0.0
        %4849 = vmatpush1.msra.mxu0 0.0
        %4850 = vmatprep.subr.mxu0 0.0
        %4851 = vmatpush1.msra.mxu0 0.0
        %4852 = vmatprep.subr.mxu0 0.0
        %4853 = vmatpush1.msra.mxu0 0.0
        %4854 = vmatprep.subr.mxu0 0.0
        %4855 = vmatpush1.msra.mxu0 0.0
        %4856 = vmatprep.subr.mxu0 0.0
        %4857 = vmatpush1.msra.mxu0 0.0
        %4858 = vmatprep.mubr.f32.mxu0 0.0
        %4859 = vmatmul.mubr.f32.gmra.mrb[0].mxu0 %v4786
        %v4860 = vpop.f32.mrb[0].mxu0
        %v4861 = vadd.f32 0.0, %v4860
        %v4862 = vpop.f32.mrb[0].mxu0
        %v4863 = vadd.f32 0.0, %v4862
        %4864 = vdwg.mxu0
        %4865 = vmatprep.subr.mxu0 0.0
        %4866 = vmatpush1.msra.mxu0 %v4792
        %4867 = vmatprep.subr.mxu0 0.0
        %4868 = vmatpush1.msra.mxu0 0.0
        %4869 = vmatprep.subr.mxu0 0.0
        %4870 = vmatpush1.msra.mxu0 0.0
        %4871 = vmatprep.subr.mxu0 0.0
        %4872 = vmatpush1.msra.mxu0 0.0
        %4873 = vmatprep.subr.mxu0 0.0
        %4874 = vmatpush1.msra.mxu0 0.0
        %4875 = vmatprep.subr.mxu0 0.0
        %4876 = vmatpush1.msra.mxu0 0.0
        %4877 = vmatprep.subr.mxu0 0.0
        %4878 = vmatpush1.msra.mxu0 0.0
        %4879 = vmatprep.subr.mxu0 0.0
        %4880 = vmatpush1.msra.mxu0 0.0
        %4881 = vmatprep.subr.mxu0 0.0
        %4882 = vmatpush1.msra.mxu0 0.0
        %4883 = vmatprep.subr.mxu0 0.0
        %4884 = vmatpush1.msra.mxu0 0.0
        %4885 = vmatprep.subr.mxu0 0.0
        %4886 = vmatpush1.msra.mxu0 0.0
        %4887 = vmatprep.subr.mxu0 0.0
        %4888 = vmatpush1.msra.mxu0 0.0
        %4889 = vmatprep.subr.mxu0 0.0
        %4890 = vmatpush1.msra.mxu0 0.0
        %4891 = vmatprep.subr.mxu0 0.0
        %4892 = vmatpush1.msra.mxu0 0.0
        %4893 = vmatprep.subr.mxu0 0.0
        %4894 = vmatpush1.msra.mxu0 0.0
        %4895 = vmatprep.subr.mxu0 0.0
        %4896 = vmatpush1.msra.mxu0 0.0
        %4897 = vmatprep.subr.mxu0 0.0
        %4898 = vmatpush1.msra.mxu0 0.0
        %4899 = vmatprep.subr.mxu0 0.0
        %4900 = vmatpush1.msra.mxu0 0.0
        %4901 = vmatprep.subr.mxu0 0.0
        %4902 = vmatpush1.msra.mxu0 0.0
        %4903 = vmatprep.subr.mxu0 0.0
        %4904 = vmatpush1.msra.mxu0 0.0
        %4905 = vmatprep.subr.mxu0 0.0
        %4906 = vmatpush1.msra.mxu0 0.0
        %4907 = vmatprep.subr.mxu0 0.0
        %4908 = vmatpush1.msra.mxu0 0.0
        %4909 = vmatprep.subr.mxu0 0.0
        %4910 = vmatpush1.msra.mxu0 0.0
        %4911 = vmatprep.subr.mxu0 0.0
        %4912 = vmatpush1.msra.mxu0 0.0
        %4913 = vmatprep.subr.mxu0 0.0
        %4914 = vmatpush1.msra.mxu0 0.0
        %4915 = vmatprep.subr.mxu0 0.0
        %4916 = vmatpush1.msra.mxu0 0.0
        %4917 = vmatprep.subr.mxu0 0.0
        %4918 = vmatpush1.msra.mxu0 0.0
        %4919 = vmatprep.subr.mxu0 0.0
        %4920 = vmatpush1.msra.mxu0 0.0
        %4921 = vmatprep.subr.mxu0 0.0
        %4922 = vmatpush1.msra.mxu0 0.0
        %4923 = vmatprep.subr.mxu0 0.0
        %4924 = vmatpush1.msra.mxu0 0.0
        %4925 = vmatprep.subr.mxu0 0.0
        %4926 = vmatpush1.msra.mxu0 0.0
        %4927 = vmatprep.subr.mxu0 0.0
        %4928 = vmatpush1.msra.mxu0 0.0
        %4929 = vmatprep.mubr.f32.mxu0 0.0
        %4930 = vmatmul.mubr.f32.gmra.mrb[0].mxu0 %v4786
        %v4931 = vpop.f32.mrb[0].mxu0
        %v4932 = vadd.f32 0.0, %v4931
        %v4933 = vpop.f32.mrb[0].mxu0
        %4934 = vdwg.mxu0
        %v4935 = vadd.f32 %v4762, %v4861
        %v4936 = vadd.f32 %v4763, %v4863
        %v4937 = vadd.f32 %v4764, %v4932
        %v4938 = vld [vmem:[%s168] sm:$0xff]
        %v4939 = vld [vmem:[%s168 + $0x8] sm:$0xff]
        %s4940 = scalar_lea.vmem %s0, 224
        %v4941 = vld [vmem:[%s4940] sm:$0x3f]
        %v4944 = vcombine.high %v4938, %v4938
        %v4945 = vcombine.high %v4939, %v4939
        %4946 = vrot.lane.b32.xlu0 %v4938, 40
        %v4947 = vpop.permute.xlu0 %4946
        %4948 = vrot.lane.b32.xlu0 %v4944, 40
        %v4949 = vpop.permute.xlu0 %4948
        %4950 = vrot.lane.b32.xlu0 %v4939, 40
        %v4951 = vpop.permute.xlu0 %4950
        %4952 = vrot.lane.b32.xlu0 %v4945, 40
        %v4953 = vpop.permute.xlu0 %4952
        %vm4954 = vcmask 326656
        %v4955 = vsel %vm4954, %v4947, %v4949
        %v4956 = vsel %vm4954, %v4949, %v4951
        %v4957 = vsel %vm4954, %v4951, %v4953
        %v4959 = vsel %vm186, %v4941, 0
        %v4961 = vsel %vm190, %v4955, 0
        %v4963 = vsel %vm190, %v4956, 0
        %v4965 = vsel %vm190, %v4957, 0
        %4967 = vmatprep.subr.mxu0 %v4963
        %4968 = vmatpush1.msra.mxu0 %v4961
        %4969 = vmatprep.subr.mxu0 0.0
        %4970 = vmatpush1.msra.mxu0 0.0
        %4971 = vmatprep.subr.mxu0 0.0
        %4972 = vmatpush1.msra.mxu0 0.0
        %4973 = vmatprep.subr.mxu0 0.0
        %4974 = vmatpush1.msra.mxu0 0.0
        %4975 = vmatprep.subr.mxu0 0.0
        %4976 = vmatpush1.msra.mxu0 0.0
        %4977 = vmatprep.subr.mxu0 0.0
        %4978 = vmatpush1.msra.mxu0 0.0
        %4979 = vmatprep.subr.mxu0 0.0
        %4980 = vmatpush1.msra.mxu0 0.0
        %4981 = vmatprep.subr.mxu0 0.0
        %4982 = vmatpush1.msra.mxu0 0.0
        %4983 = vmatprep.subr.mxu0 0.0
        %4984 = vmatpush1.msra.mxu0 0.0
        %4985 = vmatprep.subr.mxu0 0.0
        %4986 = vmatpush1.msra.mxu0 0.0
        %4987 = vmatprep.subr.mxu0 0.0
        %4988 = vmatpush1.msra.mxu0 0.0
        %4989 = vmatprep.subr.mxu0 0.0
        %4990 = vmatpush1.msra.mxu0 0.0
        %4991 = vmatprep.subr.mxu0 0.0
        %4992 = vmatpush1.msra.mxu0 0.0
        %4993 = vmatprep.subr.mxu0 0.0
        %4994 = vmatpush1.msra.mxu0 0.0
        %4995 = vmatprep.subr.mxu0 0.0
        %4996 = vmatpush1.msra.mxu0 0.0
        %4997 = vmatprep.subr.mxu0 0.0
        %4998 = vmatpush1.msra.mxu0 0.0
        %4999 = vmatprep.subr.mxu0 0.0
        %5000 = vmatpush1.msra.mxu0 0.0
        %5001 = vmatprep.subr.mxu0 0.0
        %5002 = vmatpush1.msra.mxu0 0.0
        %5003 = vmatprep.subr.mxu0 0.0
        %5004 = vmatpush1.msra.mxu0 0.0
        %5005 = vmatprep.subr.mxu0 0.0
        %5006 = vmatpush1.msra.mxu0 0.0
        %5007 = vmatprep.subr.mxu0 0.0
        %5008 = vmatpush1.msra.mxu0 0.0
        %5009 = vmatprep.subr.mxu0 0.0
        %5010 = vmatpush1.msra.mxu0 0.0
        %5011 = vmatprep.subr.mxu0 0.0
        %5012 = vmatpush1.msra.mxu0 0.0
        %5013 = vmatprep.subr.mxu0 0.0
        %5014 = vmatpush1.msra.mxu0 0.0
        %5015 = vmatprep.subr.mxu0 0.0
        %5016 = vmatpush1.msra.mxu0 0.0
        %5017 = vmatprep.subr.mxu0 0.0
        %5018 = vmatpush1.msra.mxu0 0.0
        %5019 = vmatprep.subr.mxu0 0.0
        %5020 = vmatpush1.msra.mxu0 0.0
        %5021 = vmatprep.subr.mxu0 0.0
        %5022 = vmatpush1.msra.mxu0 0.0
        %5023 = vmatprep.subr.mxu0 0.0
        %5024 = vmatpush1.msra.mxu0 0.0
        %5025 = vmatprep.subr.mxu0 0.0
        %5026 = vmatpush1.msra.mxu0 0.0
        %5027 = vmatprep.subr.mxu0 0.0
        %5028 = vmatpush1.msra.mxu0 0.0
        %5029 = vmatprep.subr.mxu0 0.0
        %5030 = vmatpush1.msra.mxu0 0.0
        %5031 = vmatprep.mubr.f32.mxu0 0.0
        %5032 = vmatmul.mubr.f32.gmra.mrb[0].mxu0 %v4959
        %v5033 = vpop.f32.mrb[0].mxu0
        %v5034 = vadd.f32 0.0, %v5033
        %v5035 = vpop.f32.mrb[0].mxu0
        %v5036 = vadd.f32 0.0, %v5035
        %5037 = vdwg.mxu0
        %5038 = vmatprep.subr.mxu0 0.0
        %5039 = vmatpush1.msra.mxu0 %v4965
        %5040 = vmatprep.subr.mxu0 0.0
        %5041 = vmatpush1.msra.mxu0 0.0
        %5042 = vmatprep.subr.mxu0 0.0
        %5043 = vmatpush1.msra.mxu0 0.0
        %5044 = vmatprep.subr.mxu0 0.0
        %5045 = vmatpush1.msra.mxu0 0.0
        %5046 = vmatprep.subr.mxu0 0.0
        %5047 = vmatpush1.msra.mxu0 0.0
        %5048 = vmatprep.subr.mxu0 0.0
        %5049 = vmatpush1.msra.mxu0 0.0
        %5050 = vmatprep.subr.mxu0 0.0
        %5051 = vmatpush1.msra.mxu0 0.0
        %5052 = vmatprep.subr.mxu0 0.0
        %5053 = vmatpush1.msra.mxu0 0.0
        %5054 = vmatprep.subr.mxu0 0.0
        %5055 = vmatpush1.msra.mxu0 0.0
        %5056 = vmatprep.subr.mxu0 0.0
        %5057 = vmatpush1.msra.mxu0 0.0
        %5058 = vmatprep.subr.mxu0 0.0
        %5059 = vmatpush1.msra.mxu0 0.0
        %5060 = vmatprep.subr.mxu0 0.0
        %5061 = vmatpush1.msra.mxu0 0.0
        %5062 = vmatprep.subr.mxu0 0.0
        %5063 = vmatpush1.msra.mxu0 0.0
        %5064 = vmatprep.subr.mxu0 0.0
        %5065 = vmatpush1.msra.mxu0 0.0
        %5066 = vmatprep.subr.mxu0 0.0
        %5067 = vmatpush1.msra.mxu0 0.0
        %5068 = vmatprep.subr.mxu0 0.0
        %5069 = vmatpush1.msra.mxu0 0.0
        %5070 = vmatprep.subr.mxu0 0.0
        %5071 = vmatpush1.msra.mxu0 0.0
        %5072 = vmatprep.subr.mxu0 0.0
        %5073 = vmatpush1.msra.mxu0 0.0
        %5074 = vmatprep.subr.mxu0 0.0
        %5075 = vmatpush1.msra.mxu0 0.0
        %5076 = vmatprep.subr.mxu0 0.0
        %5077 = vmatpush1.msra.mxu0 0.0
        %5078 = vmatprep.subr.mxu0 0.0
        %5079 = vmatpush1.msra.mxu0 0.0
        %5080 = vmatprep.subr.mxu0 0.0
        %5081 = vmatpush1.msra.mxu0 0.0
        %5082 = vmatprep.subr.mxu0 0.0
        %5083 = vmatpush1.msra.mxu0 0.0
        %5084 = vmatprep.subr.mxu0 0.0
        %5085 = vmatpush1.msra.mxu0 0.0
        %5086 = vmatprep.subr.mxu0 0.0
        %5087 = vmatpush1.msra.mxu0 0.0
        %5088 = vmatprep.subr.mxu0 0.0
        %5089 = vmatpush1.msra.mxu0 0.0
        %5090 = vmatprep.subr.mxu0 0.0
        %5091 = vmatpush1.msra.mxu0 0.0
        %5092 = vmatprep.subr.mxu0 0.0
        %5093 = vmatpush1.msra.mxu0 0.0
        %5094 = vmatprep.subr.mxu0 0.0
        %5095 = vmatpush1.msra.mxu0 0.0
        %5096 = vmatprep.subr.mxu0 0.0
        %5097 = vmatpush1.msra.mxu0 0.0
        %5098 = vmatprep.subr.mxu0 0.0
        %5099 = vmatpush1.msra.mxu0 0.0
        %5100 = vmatprep.subr.mxu0 0.0
        %5101 = vmatpush1.msra.mxu0 0.0
        %5102 = vmatprep.mubr.f32.mxu0 0.0
        %5103 = vmatmul.mubr.f32.gmra.mrb[0].mxu0 %v4959
        %v5104 = vpop.f32.mrb[0].mxu0
        %v5105 = vadd.f32 0.0, %v5104
        %v5106 = vpop.f32.mrb[0].mxu0
        %5107 = vdwg.mxu0
        %v5108 = vadd.f32 %v4935, %v5034
        %v5109 = vadd.f32 %v4936, %v5036
        %v5110 = vadd.f32 %v4937, %v5105
        %v5111 = vld [vmem:[%s168] sm:$0xff]
        %v5112 = vld [vmem:[%s168 + $0x8] sm:$0xff]
        %s5113 = scalar_lea.vmem %s0, 232
        %v5114 = vld [vmem:[%s5113] sm:$0x3f]
        %v5117 = vcombine.high %v5111, %v5111
        %v5118 = vcombine.high %v5112, %v5112
        %5119 = vrot.lane.b32.xlu0 %v5111, 39
        %v5120 = vpop.permute.xlu0 %5119
        %5121 = vrot.lane.b32.xlu0 %v5117, 39
        %v5122 = vpop.permute.xlu0 %5121
        %5123 = vrot.lane.b32.xlu0 %v5112, 39
        %v5124 = vpop.permute.xlu0 %5123
        %5125 = vrot.lane.b32.xlu0 %v5118, 39
        %v5126 = vpop.permute.xlu0 %5125
        %vm5127 = vcmask 318464
        %v5128 = vsel %vm5127, %v5120, %v5122
        %v5129 = vsel %vm5127, %v5122, %v5124
        %v5130 = vsel %vm5127, %v5124, %v5126
        %v5132 = vsel %vm186, %v5114, 0
        %v5134 = vsel %vm190, %v5128, 0
        %v5136 = vsel %vm190, %v5129, 0
        %v5138 = vsel %vm190, %v5130, 0
        %5140 = vmatprep.subr.mxu0 %v5136
        %5141 = vmatpush1.msra.mxu0 %v5134
        %5142 = vmatprep.subr.mxu0 0.0
        %5143 = vmatpush1.msra.mxu0 0.0
        %5144 = vmatprep.subr.mxu0 0.0
        %5145 = vmatpush1.msra.mxu0 0.0
        %5146 = vmatprep.subr.mxu0 0.0
        %5147 = vmatpush1.msra.mxu0 0.0
        %5148 = vmatprep.subr.mxu0 0.0
        %5149 = vmatpush1.msra.mxu0 0.0
        %5150 = vmatprep.subr.mxu0 0.0
        %5151 = vmatpush1.msra.mxu0 0.0
        %5152 = vmatprep.subr.mxu0 0.0
        %5153 = vmatpush1.msra.mxu0 0.0
        %5154 = vmatprep.subr.mxu0 0.0
        %5155 = vmatpush1.msra.mxu0 0.0
        %5156 = vmatprep.subr.mxu0 0.0
        %5157 = vmatpush1.msra.mxu0 0.0
        %5158 = vmatprep.subr.mxu0 0.0
        %5159 = vmatpush1.msra.mxu0 0.0
        %5160 = vmatprep.subr.mxu0 0.0
        %5161 = vmatpush1.msra.mxu0 0.0
        %5162 = vmatprep.subr.mxu0 0.0
        %5163 = vmatpush1.msra.mxu0 0.0
        %5164 = vmatprep.subr.mxu0 0.0
        %5165 = vmatpush1.msra.mxu0 0.0
        %5166 = vmatprep.subr.mxu0 0.0
        %5167 = vmatpush1.msra.mxu0 0.0
        %5168 = vmatprep.subr.mxu0 0.0
        %5169 = vmatpush1.msra.mxu0 0.0
        %5170 = vmatprep.subr.mxu0 0.0
        %5171 = vmatpush1.msra.mxu0 0.0
        %5172 = vmatprep.subr.mxu0 0.0
        %5173 = vmatpush1.msra.mxu0 0.0
        %5174 = vmatprep.subr.mxu0 0.0
        %5175 = vmatpush1.msra.mxu0 0.0
        %5176 = vmatprep.subr.mxu0 0.0
        %5177 = vmatpush1.msra.mxu0 0.0
        %5178 = vmatprep.subr.mxu0 0.0
        %5179 = vmatpush1.msra.mxu0 0.0
        %5180 = vmatprep.subr.mxu0 0.0
        %5181 = vmatpush1.msra.mxu0 0.0
        %5182 = vmatprep.subr.mxu0 0.0
        %5183 = vmatpush1.msra.mxu0 0.0
        %5184 = vmatprep.subr.mxu0 0.0
        %5185 = vmatpush1.msra.mxu0 0.0
        %5186 = vmatprep.subr.mxu0 0.0
        %5187 = vmatpush1.msra.mxu0 0.0
        %5188 = vmatprep.subr.mxu0 0.0
        %5189 = vmatpush1.msra.mxu0 0.0
        %5190 = vmatprep.subr.mxu0 0.0
        %5191 = vmatpush1.msra.mxu0 0.0
        %5192 = vmatprep.subr.mxu0 0.0
        %5193 = vmatpush1.msra.mxu0 0.0
        %5194 = vmatprep.subr.mxu0 0.0
        %5195 = vmatpush1.msra.mxu0 0.0
        %5196 = vmatprep.subr.mxu0 0.0
        %5197 = vmatpush1.msra.mxu0 0.0
        %5198 = vmatprep.subr.mxu0 0.0
        %5199 = vmatpush1.msra.mxu0 0.0
        %5200 = vmatprep.subr.mxu0 0.0
        %5201 = vmatpush1.msra.mxu0 0.0
        %5202 = vmatprep.subr.mxu0 0.0
        %5203 = vmatpush1.msra.mxu0 0.0
        %5204 = vmatprep.mubr.f32.mxu0 0.0
        %5205 = vmatmul.mubr.f32.gmra.mrb[0].mxu0 %v5132
        %v5206 = vpop.f32.mrb[0].mxu0
        %v5207 = vadd.f32 0.0, %v5206
        %v5208 = vpop.f32.mrb[0].mxu0
        %v5209 = vadd.f32 0.0, %v5208
        %5210 = vdwg.mxu0
        %5211 = vmatprep.subr.mxu0 0.0
        %5212 = vmatpush1.msra.mxu0 %v5138
        %5213 = vmatprep.subr.mxu0 0.0
        %5214 = vmatpush1.msra.mxu0 0.0
        %5215 = vmatprep.subr.mxu0 0.0
        %5216 = vmatpush1.msra.mxu0 0.0
        %5217 = vmatprep.subr.mxu0 0.0
        %5218 = vmatpush1.msra.mxu0 0.0
        %5219 = vmatprep.subr.mxu0 0.0
        %5220 = vmatpush1.msra.mxu0 0.0
        %5221 = vmatprep.subr.mxu0 0.0
        %5222 = vmatpush1.msra.mxu0 0.0
        %5223 = vmatprep.subr.mxu0 0.0
        %5224 = vmatpush1.msra.mxu0 0.0
        %5225 = vmatprep.subr.mxu0 0.0
        %5226 = vmatpush1.msra.mxu0 0.0
        %5227 = vmatprep.subr.mxu0 0.0
        %5228 = vmatpush1.msra.mxu0 0.0
        %5229 = vmatprep.subr.mxu0 0.0
        %5230 = vmatpush1.msra.mxu0 0.0
        %5231 = vmatprep.subr.mxu0 0.0
        %5232 = vmatpush1.msra.mxu0 0.0
        %5233 = vmatprep.subr.mxu0 0.0
        %5234 = vmatpush1.msra.mxu0 0.0
        %5235 = vmatprep.subr.mxu0 0.0
        %5236 = vmatpush1.msra.mxu0 0.0
        %5237 = vmatprep.subr.mxu0 0.0
        %5238 = vmatpush1.msra.mxu0 0.0
        %5239 = vmatprep.subr.mxu0 0.0
        %5240 = vmatpush1.msra.mxu0 0.0
        %5241 = vmatprep.subr.mxu0 0.0
        %5242 = vmatpush1.msra.mxu0 0.0
        %5243 = vmatprep.subr.mxu0 0.0
        %5244 = vmatpush1.msra.mxu0 0.0
        %5245 = vmatprep.subr.mxu0 0.0
        %5246 = vmatpush1.msra.mxu0 0.0
        %5247 = vmatprep.subr.mxu0 0.0
        %5248 = vmatpush1.msra.mxu0 0.0
        %5249 = vmatprep.subr.mxu0 0.0
        %5250 = vmatpush1.msra.mxu0 0.0
        %5251 = vmatprep.subr.mxu0 0.0
        %5252 = vmatpush1.msra.mxu0 0.0
        %5253 = vmatprep.subr.mxu0 0.0
        %5254 = vmatpush1.msra.mxu0 0.0
        %5255 = vmatprep.subr.mxu0 0.0
        %5256 = vmatpush1.msra.mxu0 0.0
        %5257 = vmatprep.subr.mxu0 0.0
        %5258 = vmatpush1.msra.mxu0 0.0
        %5259 = vmatprep.subr.mxu0 0.0
        %5260 = vmatpush1.msra.mxu0 0.0
        %5261 = vmatprep.subr.mxu0 0.0
        %5262 = vmatpush1.msra.mxu0 0.0
        %5263 = vmatprep.subr.mxu0 0.0
        %5264 = vmatpush1.msra.mxu0 0.0
        %5265 = vmatprep.subr.mxu0 0.0
        %5266 = vmatpush1.msra.mxu0 0.0
        %5267 = vmatprep.subr.mxu0 0.0
        %5268 = vmatpush1.msra.mxu0 0.0
        %5269 = vmatprep.subr.mxu0 0.0
        %5270 = vmatpush1.msra.mxu0 0.0
        %5271 = vmatprep.subr.mxu0 0.0
        %5272 = vmatpush1.msra.mxu0 0.0
        %5273 = vmatprep.subr.mxu0 0.0
        %5274 = vmatpush1.msra.mxu0 0.0
        %5275 = vmatprep.mubr.f32.mxu0 0.0
        %5276 = vmatmul.mubr.f32.gmra.mrb[0].mxu0 %v5132
        %v5277 = vpop.f32.mrb[0].mxu0
        %v5278 = vadd.f32 0.0, %v5277
        %v5279 = vpop.f32.mrb[0].mxu0
        %5280 = vdwg.mxu0
        %v5281 = vadd.f32 %v5108, %v5207
        %v5282 = vadd.f32 %v5109, %v5209
        %v5283 = vadd.f32 %v5110, %v5278
        %v5284 = vld [vmem:[%s168] sm:$0xff]
        %v5285 = vld [vmem:[%s168 + $0x8] sm:$0xff]
        %s5286 = scalar_lea.vmem %s0, 240
        %v5287 = vld [vmem:[%s5286] sm:$0x3f]
        %v5290 = vcombine.high %v5284, %v5284
        %v5291 = vcombine.high %v5285, %v5285
        %5292 = vrot.lane.b32.xlu0 %v5284, 38
        %v5293 = vpop.permute.xlu0 %5292
        %5294 = vrot.lane.b32.xlu0 %v5290, 38
        %v5295 = vpop.permute.xlu0 %5294
        %5296 = vrot.lane.b32.xlu0 %v5285, 38
        %v5297 = vpop.permute.xlu0 %5296
        %5298 = vrot.lane.b32.xlu0 %v5291, 38
        %v5299 = vpop.permute.xlu0 %5298
        %vm5300 = vcmask 310272
        %v5301 = vsel %vm5300, %v5293, %v5295
        %v5302 = vsel %vm5300, %v5295, %v5297
        %v5303 = vsel %vm5300, %v5297, %v5299
        %v5305 = vsel %vm186, %v5287, 0
        %v5307 = vsel %vm190, %v5301, 0
        %v5309 = vsel %vm190, %v5302, 0
        %v5311 = vsel %vm190, %v5303, 0
        %5313 = vmatprep.subr.mxu0 %v5309
        %5314 = vmatpush1.msra.mxu0 %v5307
        %5315 = vmatprep.subr.mxu0 0.0
        %5316 = vmatpush1.msra.mxu0 0.0
        %5317 = vmatprep.subr.mxu0 0.0
        %5318 = vmatpush1.msra.mxu0 0.0
        %5319 = vmatprep.subr.mxu0 0.0
        %5320 = vmatpush1.msra.mxu0 0.0
        %5321 = vmatprep.subr.mxu0 0.0
        %5322 = vmatpush1.msra.mxu0 0.0
        %5323 = vmatprep.subr.mxu0 0.0
        %5324 = vmatpush1.msra.mxu0 0.0
        %5325 = vmatprep.subr.mxu0 0.0
        %5326 = vmatpush1.msra.mxu0 0.0
        %5327 = vmatprep.subr.mxu0 0.0
        %5328 = vmatpush1.msra.mxu0 0.0
        %5329 = vmatprep.subr.mxu0 0.0
        %5330 = vmatpush1.msra.mxu0 0.0
        %5331 = vmatprep.subr.mxu0 0.0
        %5332 = vmatpush1.msra.mxu0 0.0
        %5333 = vmatprep.subr.mxu0 0.0
        %5334 = vmatpush1.msra.mxu0 0.0
        %5335 = vmatprep.subr.mxu0 0.0
        %5336 = vmatpush1.msra.mxu0 0.0
        %5337 = vmatprep.subr.mxu0 0.0
        %5338 = vmatpush1.msra.mxu0 0.0
        %5339 = vmatprep.subr.mxu0 0.0
        %5340 = vmatpush1.msra.mxu0 0.0
        %5341 = vmatprep.subr.mxu0 0.0
        %5342 = vmatpush1.msra.mxu0 0.0
        %5343 = vmatprep.subr.mxu0 0.0
        %5344 = vmatpush1.msra.mxu0 0.0
        %5345 = vmatprep.subr.mxu0 0.0
        %5346 = vmatpush1.msra.mxu0 0.0
        %5347 = vmatprep.subr.mxu0 0.0
        %5348 = vmatpush1.msra.mxu0 0.0
        %5349 = vmatprep.subr.mxu0 0.0
        %5350 = vmatpush1.msra.mxu0 0.0
        %5351 = vmatprep.subr.mxu0 0.0
        %5352 = vmatpush1.msra.mxu0 0.0
        %5353 = vmatprep.subr.mxu0 0.0
        %5354 = vmatpush1.msra.mxu0 0.0
        %5355 = vmatprep.subr.mxu0 0.0
        %5356 = vmatpush1.msra.mxu0 0.0
        %5357 = vmatprep.subr.mxu0 0.0
        %5358 = vmatpush1.msra.mxu0 0.0
        %5359 = vmatprep.subr.mxu0 0.0
        %5360 = vmatpush1.msra.mxu0 0.0
        %5361 = vmatprep.subr.mxu0 0.0
        %5362 = vmatpush1.msra.mxu0 0.0
        %5363 = vmatprep.subr.mxu0 0.0
        %5364 = vmatpush1.msra.mxu0 0.0
        %5365 = vmatprep.subr.mxu0 0.0
        %5366 = vmatpush1.msra.mxu0 0.0
        %5367 = vmatprep.subr.mxu0 0.0
        %5368 = vmatpush1.msra.mxu0 0.0
        %5369 = vmatprep.subr.mxu0 0.0
        %5370 = vmatpush1.msra.mxu0 0.0
        %5371 = vmatprep.subr.mxu0 0.0
        %5372 = vmatpush1.msra.mxu0 0.0
        %5373 = vmatprep.subr.mxu0 0.0
        %5374 = vmatpush1.msra.mxu0 0.0
        %5375 = vmatprep.subr.mxu0 0.0
        %5376 = vmatpush1.msra.mxu0 0.0
        %5377 = vmatprep.mubr.f32.mxu0 0.0
        %5378 = vmatmul.mubr.f32.gmra.mrb[0].mxu0 %v5305
        %v5379 = vpop.f32.mrb[0].mxu0
        %v5380 = vadd.f32 0.0, %v5379
        %v5381 = vpop.f32.mrb[0].mxu0
        %v5382 = vadd.f32 0.0, %v5381
        %5383 = vdwg.mxu0
        %5384 = vmatprep.subr.mxu0 0.0
        %5385 = vmatpush1.msra.mxu0 %v5311
        %5386 = vmatprep.subr.mxu0 0.0
        %5387 = vmatpush1.msra.mxu0 0.0
        %5388 = vmatprep.subr.mxu0 0.0
        %5389 = vmatpush1.msra.mxu0 0.0
        %5390 = vmatprep.subr.mxu0 0.0
        %5391 = vmatpush1.msra.mxu0 0.0
        %5392 = vmatprep.subr.mxu0 0.0
        %5393 = vmatpush1.msra.mxu0 0.0
        %5394 = vmatprep.subr.mxu0 0.0
        %5395 = vmatpush1.msra.mxu0 0.0
        %5396 = vmatprep.subr.mxu0 0.0
        %5397 = vmatpush1.msra.mxu0 0.0
        %5398 = vmatprep.subr.mxu0 0.0
        %5399 = vmatpush1.msra.mxu0 0.0
        %5400 = vmatprep.subr.mxu0 0.0
        %5401 = vmatpush1.msra.mxu0 0.0
        %5402 = vmatprep.subr.mxu0 0.0
        %5403 = vmatpush1.msra.mxu0 0.0
        %5404 = vmatprep.subr.mxu0 0.0
        %5405 = vmatpush1.msra.mxu0 0.0
        %5406 = vmatprep.subr.mxu0 0.0
        %5407 = vmatpush1.msra.mxu0 0.0
        %5408 = vmatprep.subr.mxu0 0.0
        %5409 = vmatpush1.msra.mxu0 0.0
        %5410 = vmatprep.subr.mxu0 0.0
        %5411 = vmatpush1.msra.mxu0 0.0
        %5412 = vmatprep.subr.mxu0 0.0
        %5413 = vmatpush1.msra.mxu0 0.0
        %5414 = vmatprep.subr.mxu0 0.0
        %5415 = vmatpush1.msra.mxu0 0.0
        %5416 = vmatprep.subr.mxu0 0.0
        %5417 = vmatpush1.msra.mxu0 0.0
        %5418 = vmatprep.subr.mxu0 0.0
        %5419 = vmatpush1.msra.mxu0 0.0
        %5420 = vmatprep.subr.mxu0 0.0
        %5421 = vmatpush1.msra.mxu0 0.0
        %5422 = vmatprep.subr.mxu0 0.0
        %5423 = vmatpush1.msra.mxu0 0.0
        %5424 = vmatprep.subr.mxu0 0.0
        %5425 = vmatpush1.msra.mxu0 0.0
        %5426 = vmatprep.subr.mxu0 0.0
        %5427 = vmatpush1.msra.mxu0 0.0
        %5428 = vmatprep.subr.mxu0 0.0
        %5429 = vmatpush1.msra.mxu0 0.0
        %5430 = vmatprep.subr.mxu0 0.0
        %5431 = vmatpush1.msra.mxu0 0.0
        %5432 = vmatprep.subr.mxu0 0.0
        %5433 = vmatpush1.msra.mxu0 0.0
        %5434 = vmatprep.subr.mxu0 0.0
        %5435 = vmatpush1.msra.mxu0 0.0
        %5436 = vmatprep.subr.mxu0 0.0
        %5437 = vmatpush1.msra.mxu0 0.0
        %5438 = vmatprep.subr.mxu0 0.0
        %5439 = vmatpush1.msra.mxu0 0.0
        %5440 = vmatprep.subr.mxu0 0.0
        %5441 = vmatpush1.msra.mxu0 0.0
        %5442 = vmatprep.subr.mxu0 0.0
        %5443 = vmatpush1.msra.mxu0 0.0
        %5444 = vmatprep.subr.mxu0 0.0
        %5445 = vmatpush1.msra.mxu0 0.0
        %5446 = vmatprep.subr.mxu0 0.0
        %5447 = vmatpush1.msra.mxu0 0.0
        %5448 = vmatprep.mubr.f32.mxu0 0.0
        %5449 = vmatmul.mubr.f32.gmra.mrb[0].mxu0 %v5305
        %v5450 = vpop.f32.mrb[0].mxu0
        %v5451 = vadd.f32 0.0, %v5450
        %v5452 = vpop.f32.mrb[0].mxu0
        %5453 = vdwg.mxu0
        %v5454 = vadd.f32 %v5281, %v5380
        %v5455 = vadd.f32 %v5282, %v5382
        %v5456 = vadd.f32 %v5283, %v5451
        %v5457 = vld [vmem:[%s168] sm:$0xff]
        %v5458 = vld [vmem:[%s168 + $0x8] sm:$0xff]
        %s5459 = scalar_lea.vmem %s0, 248
        %v5460 = vld [vmem:[%s5459] sm:$0x3f]
        %v5463 = vcombine.high %v5457, %v5457
        %v5464 = vcombine.high %v5458, %v5458
        %5465 = vrot.lane.b32.xlu0 %v5457, 37
        %v5466 = vpop.permute.xlu0 %5465
        %5467 = vrot.lane.b32.xlu0 %v5463, 37
        %v5468 = vpop.permute.xlu0 %5467
        %5469 = vrot.lane.b32.xlu0 %v5458, 37
        %v5470 = vpop.permute.xlu0 %5469
        %5471 = vrot.lane.b32.xlu0 %v5464, 37
        %v5472 = vpop.permute.xlu0 %5471
        %vm5473 = vcmask 302080
        %v5474 = vsel %vm5473, %v5466, %v5468
        %v5475 = vsel %vm5473, %v5468, %v5470
        %v5476 = vsel %vm5473, %v5470, %v5472
        %v5478 = vsel %vm186, %v5460, 0
        %v5480 = vsel %vm190, %v5474, 0
        %v5482 = vsel %vm190, %v5475, 0
        %v5484 = vsel %vm190, %v5476, 0
        %5486 = vmatprep.subr.mxu0 %v5482
        %5487 = vmatpush1.msra.mxu0 %v5480
        %5488 = vmatprep.subr.mxu0 0.0
        %5489 = vmatpush1.msra.mxu0 0.0
        %5490 = vmatprep.subr.mxu0 0.0
        %5491 = vmatpush1.msra.mxu0 0.0
        %5492 = vmatprep.subr.mxu0 0.0
        %5493 = vmatpush1.msra.mxu0 0.0
        %5494 = vmatprep.subr.mxu0 0.0
        %5495 = vmatpush1.msra.mxu0 0.0
        %5496 = vmatprep.subr.mxu0 0.0
        %5497 = vmatpush1.msra.mxu0 0.0
        %5498 = vmatprep.subr.mxu0 0.0
        %5499 = vmatpush1.msra.mxu0 0.0
        %5500 = vmatprep.subr.mxu0 0.0
        %5501 = vmatpush1.msra.mxu0 0.0
        %5502 = vmatprep.subr.mxu0 0.0
        %5503 = vmatpush1.msra.mxu0 0.0
        %5504 = vmatprep.subr.mxu0 0.0
        %5505 = vmatpush1.msra.mxu0 0.0
        %5506 = vmatprep.subr.mxu0 0.0
        %5507 = vmatpush1.msra.mxu0 0.0
        %5508 = vmatprep.subr.mxu0 0.0
        %5509 = vmatpush1.msra.mxu0 0.0
        %5510 = vmatprep.subr.mxu0 0.0
        %5511 = vmatpush1.msra.mxu0 0.0
        %5512 = vmatprep.subr.mxu0 0.0
        %5513 = vmatpush1.msra.mxu0 0.0
        %5514 = vmatprep.subr.mxu0 0.0
        %5515 = vmatpush1.msra.mxu0 0.0
        %5516 = vmatprep.subr.mxu0 0.0
        %5517 = vmatpush1.msra.mxu0 0.0
        %5518 = vmatprep.subr.mxu0 0.0
        %5519 = vmatpush1.msra.mxu0 0.0
        %5520 = vmatprep.subr.mxu0 0.0
        %5521 = vmatpush1.msra.mxu0 0.0
        %5522 = vmatprep.subr.mxu0 0.0
        %5523 = vmatpush1.msra.mxu0 0.0
        %5524 = vmatprep.subr.mxu0 0.0
        %5525 = vmatpush1.msra.mxu0 0.0
        %5526 = vmatprep.subr.mxu0 0.0
        %5527 = vmatpush1.msra.mxu0 0.0
        %5528 = vmatprep.subr.mxu0 0.0
        %5529 = vmatpush1.msra.mxu0 0.0
        %5530 = vmatprep.subr.mxu0 0.0
        %5531 = vmatpush1.msra.mxu0 0.0
        %5532 = vmatprep.subr.mxu0 0.0
        %5533 = vmatpush1.msra.mxu0 0.0
        %5534 = vmatprep.subr.mxu0 0.0
        %5535 = vmatpush1.msra.mxu0 0.0
        %5536 = vmatprep.subr.mxu0 0.0
        %5537 = vmatpush1.msra.mxu0 0.0
        %5538 = vmatprep.subr.mxu0 0.0
        %5539 = vmatpush1.msra.mxu0 0.0
        %5540 = vmatprep.subr.mxu0 0.0
        %5541 = vmatpush1.msra.mxu0 0.0
        %5542 = vmatprep.subr.mxu0 0.0
        %5543 = vmatpush1.msra.mxu0 0.0
        %5544 = vmatprep.subr.mxu0 0.0
        %5545 = vmatpush1.msra.mxu0 0.0
        %5546 = vmatprep.subr.mxu0 0.0
        %5547 = vmatpush1.msra.mxu0 0.0
        %5548 = vmatprep.subr.mxu0 0.0
        %5549 = vmatpush1.msra.mxu0 0.0
        %5550 = vmatprep.mubr.f32.mxu0 0.0
        %5551 = vmatmul.mubr.f32.gmra.mrb[0].mxu0 %v5478
        %v5552 = vpop.f32.mrb[0].mxu0
        %v5553 = vadd.f32 0.0, %v5552
        %v5554 = vpop.f32.mrb[0].mxu0
        %v5555 = vadd.f32 0.0, %v5554
        %5556 = vdwg.mxu0
        %5557 = vmatprep.subr.mxu0 0.0
        %5558 = vmatpush1.msra.mxu0 %v5484
        %5559 = vmatprep.subr.mxu0 0.0
        %5560 = vmatpush1.msra.mxu0 0.0
        %5561 = vmatprep.subr.mxu0 0.0
        %5562 = vmatpush1.msra.mxu0 0.0
        %5563 = vmatprep.subr.mxu0 0.0
        %5564 = vmatpush1.msra.mxu0 0.0
        %5565 = vmatprep.subr.mxu0 0.0
        %5566 = vmatpush1.msra.mxu0 0.0
        %5567 = vmatprep.subr.mxu0 0.0
        %5568 = vmatpush1.msra.mxu0 0.0
        %5569 = vmatprep.subr.mxu0 0.0
        %5570 = vmatpush1.msra.mxu0 0.0
        %5571 = vmatprep.subr.mxu0 0.0
        %5572 = vmatpush1.msra.mxu0 0.0
        %5573 = vmatprep.subr.mxu0 0.0
        %5574 = vmatpush1.msra.mxu0 0.0
        %5575 = vmatprep.subr.mxu0 0.0
        %5576 = vmatpush1.msra.mxu0 0.0
        %5577 = vmatprep.subr.mxu0 0.0
        %5578 = vmatpush1.msra.mxu0 0.0
        %5579 = vmatprep.subr.mxu0 0.0
        %5580 = vmatpush1.msra.mxu0 0.0
        %5581 = vmatprep.subr.mxu0 0.0
        %5582 = vmatpush1.msra.mxu0 0.0
        %5583 = vmatprep.subr.mxu0 0.0
        %5584 = vmatpush1.msra.mxu0 0.0
        %5585 = vmatprep.subr.mxu0 0.0
        %5586 = vmatpush1.msra.mxu0 0.0
        %5587 = vmatprep.subr.mxu0 0.0
        %5588 = vmatpush1.msra.mxu0 0.0
        %5589 = vmatprep.subr.mxu0 0.0
        %5590 = vmatpush1.msra.mxu0 0.0
        %5591 = vmatprep.subr.mxu0 0.0
        %5592 = vmatpush1.msra.mxu0 0.0
        %5593 = vmatprep.subr.mxu0 0.0
        %5594 = vmatpush1.msra.mxu0 0.0
        %5595 = vmatprep.subr.mxu0 0.0
        %5596 = vmatpush1.msra.mxu0 0.0
        %5597 = vmatprep.subr.mxu0 0.0
        %5598 = vmatpush1.msra.mxu0 0.0
        %5599 = vmatprep.subr.mxu0 0.0
        %5600 = vmatpush1.msra.mxu0 0.0
        %5601 = vmatprep.subr.mxu0 0.0
        %5602 = vmatpush1.msra.mxu0 0.0
        %5603 = vmatprep.subr.mxu0 0.0
        %5604 = vmatpush1.msra.mxu0 0.0
        %5605 = vmatprep.subr.mxu0 0.0
        %5606 = vmatpush1.msra.mxu0 0.0
        %5607 = vmatprep.subr.mxu0 0.0
        %5608 = vmatpush1.msra.mxu0 0.0
        %5609 = vmatprep.subr.mxu0 0.0
        %5610 = vmatpush1.msra.mxu0 0.0
        %5611 = vmatprep.subr.mxu0 0.0
        %5612 = vmatpush1.msra.mxu0 0.0
        %5613 = vmatprep.subr.mxu0 0.0
        %5614 = vmatpush1.msra.mxu0 0.0
        %5615 = vmatprep.subr.mxu0 0.0
        %5616 = vmatpush1.msra.mxu0 0.0
        %5617 = vmatprep.subr.mxu0 0.0
        %5618 = vmatpush1.msra.mxu0 0.0
        %5619 = vmatprep.subr.mxu0 0.0
        %5620 = vmatpush1.msra.mxu0 0.0
        %5621 = vmatprep.mubr.f32.mxu0 0.0
        %5622 = vmatmul.mubr.f32.gmra.mrb[0].mxu0 %v5478
        %v5623 = vpop.f32.mrb[0].mxu0
        %v5624 = vadd.f32 0.0, %v5623
        %v5625 = vpop.f32.mrb[0].mxu0
        %5626 = vdwg.mxu0
        %v5627 = vadd.f32 %v5454, %v5553
        %v5628 = vadd.f32 %v5455, %v5555
        %v5629 = vadd.f32 %v5456, %v5624
        %v5630 = vld [vmem:[%s168] sm:$0xff]
        %v5631 = vld [vmem:[%s168 + $0x8] sm:$0xff]
        %s5632 = scalar_lea.vmem %s0, 256
        %v5633 = vld [vmem:[%s5632] sm:$0x3f]
        %v5636 = vcombine.high %v5630, %v5630
        %v5637 = vcombine.high %v5631, %v5631
        %5638 = vrot.lane.b32.xlu0 %v5630, 36
        %v5639 = vpop.permute.xlu0 %5638
        %5640 = vrot.lane.b32.xlu0 %v5636, 36
        %v5641 = vpop.permute.xlu0 %5640
        %5642 = vrot.lane.b32.xlu0 %v5631, 36
        %v5643 = vpop.permute.xlu0 %5642
        %5644 = vrot.lane.b32.xlu0 %v5637, 36
        %v5645 = vpop.permute.xlu0 %5644
        %vm5646 = vcmask 293888
        %v5647 = vsel %vm5646, %v5639, %v5641
        %v5648 = vsel %vm5646, %v5641, %v5643
        %v5649 = vsel %vm5646, %v5643, %v5645
        %v5651 = vsel %vm186, %v5633, 0
        %v5653 = vsel %vm190, %v5647, 0
        %v5655 = vsel %vm190, %v5648, 0
        %v5657 = vsel %vm190, %v5649, 0
        %5659 = vmatprep.subr.mxu0 %v5655
        %5660 = vmatpush1.msra.mxu0 %v5653
        %5661 = vmatprep.subr.mxu0 0.0
        %5662 = vmatpush1.msra.mxu0 0.0
        %5663 = vmatprep.subr.mxu0 0.0
        %5664 = vmatpush1.msra.mxu0 0.0
        %5665 = vmatprep.subr.mxu0 0.0
        %5666 = vmatpush1.msra.mxu0 0.0
        %5667 = vmatprep.subr.mxu0 0.0
        %5668 = vmatpush1.msra.mxu0 0.0
        %5669 = vmatprep.subr.mxu0 0.0
        %5670 = vmatpush1.msra.mxu0 0.0
        %5671 = vmatprep.subr.mxu0 0.0
        %5672 = vmatpush1.msra.mxu0 0.0
        %5673 = vmatprep.subr.mxu0 0.0
        %5674 = vmatpush1.msra.mxu0 0.0
        %5675 = vmatprep.subr.mxu0 0.0
        %5676 = vmatpush1.msra.mxu0 0.0
        %5677 = vmatprep.subr.mxu0 0.0
        %5678 = vmatpush1.msra.mxu0 0.0
        %5679 = vmatprep.subr.mxu0 0.0
        %5680 = vmatpush1.msra.mxu0 0.0
        %5681 = vmatprep.subr.mxu0 0.0
        %5682 = vmatpush1.msra.mxu0 0.0
        %5683 = vmatprep.subr.mxu0 0.0
        %5684 = vmatpush1.msra.mxu0 0.0
        %5685 = vmatprep.subr.mxu0 0.0
        %5686 = vmatpush1.msra.mxu0 0.0
        %5687 = vmatprep.subr.mxu0 0.0
        %5688 = vmatpush1.msra.mxu0 0.0
        %5689 = vmatprep.subr.mxu0 0.0
        %5690 = vmatpush1.msra.mxu0 0.0
        %5691 = vmatprep.subr.mxu0 0.0
        %5692 = vmatpush1.msra.mxu0 0.0
        %5693 = vmatprep.subr.mxu0 0.0
        %5694 = vmatpush1.msra.mxu0 0.0
        %5695 = vmatprep.subr.mxu0 0.0
        %5696 = vmatpush1.msra.mxu0 0.0
        %5697 = vmatprep.subr.mxu0 0.0
        %5698 = vmatpush1.msra.mxu0 0.0
        %5699 = vmatprep.subr.mxu0 0.0
        %5700 = vmatpush1.msra.mxu0 0.0
        %5701 = vmatprep.subr.mxu0 0.0
        %5702 = vmatpush1.msra.mxu0 0.0
        %5703 = vmatprep.subr.mxu0 0.0
        %5704 = vmatpush1.msra.mxu0 0.0
        %5705 = vmatprep.subr.mxu0 0.0
        %5706 = vmatpush1.msra.mxu0 0.0
        %5707 = vmatprep.subr.mxu0 0.0
        %5708 = vmatpush1.msra.mxu0 0.0
        %5709 = vmatprep.subr.mxu0 0.0
        %5710 = vmatpush1.msra.mxu0 0.0
        %5711 = vmatprep.subr.mxu0 0.0
        %5712 = vmatpush1.msra.mxu0 0.0
        %5713 = vmatprep.subr.mxu0 0.0
        %5714 = vmatpush1.msra.mxu0 0.0
        %5715 = vmatprep.subr.mxu0 0.0
        %5716 = vmatpush1.msra.mxu0 0.0
        %5717 = vmatprep.subr.mxu0 0.0
        %5718 = vmatpush1.msra.mxu0 0.0
        %5719 = vmatprep.subr.mxu0 0.0
        %5720 = vmatpush1.msra.mxu0 0.0
        %5721 = vmatprep.subr.mxu0 0.0
        %5722 = vmatpush1.msra.mxu0 0.0
        %5723 = vmatprep.mubr.f32.mxu0 0.0
        %5724 = vmatmul.mubr.f32.gmra.mrb[0].mxu0 %v5651
        %v5725 = vpop.f32.mrb[0].mxu0
        %v5726 = vadd.f32 0.0, %v5725
        %v5727 = vpop.f32.mrb[0].mxu0
        %v5728 = vadd.f32 0.0, %v5727
        %5729 = vdwg.mxu0
        %5730 = vmatprep.subr.mxu0 0.0
        %5731 = vmatpush1.msra.mxu0 %v5657
        %5732 = vmatprep.subr.mxu0 0.0
        %5733 = vmatpush1.msra.mxu0 0.0
        %5734 = vmatprep.subr.mxu0 0.0
        %5735 = vmatpush1.msra.mxu0 0.0
        %5736 = vmatprep.subr.mxu0 0.0
        %5737 = vmatpush1.msra.mxu0 0.0
        %5738 = vmatprep.subr.mxu0 0.0
        %5739 = vmatpush1.msra.mxu0 0.0
        %5740 = vmatprep.subr.mxu0 0.0
        %5741 = vmatpush1.msra.mxu0 0.0
        %5742 = vmatprep.subr.mxu0 0.0
        %5743 = vmatpush1.msra.mxu0 0.0
        %5744 = vmatprep.subr.mxu0 0.0
        %5745 = vmatpush1.msra.mxu0 0.0
        %5746 = vmatprep.subr.mxu0 0.0
        %5747 = vmatpush1.msra.mxu0 0.0
        %5748 = vmatprep.subr.mxu0 0.0
        %5749 = vmatpush1.msra.mxu0 0.0
        %5750 = vmatprep.subr.mxu0 0.0
        %5751 = vmatpush1.msra.mxu0 0.0
        %5752 = vmatprep.subr.mxu0 0.0
        %5753 = vmatpush1.msra.mxu0 0.0
        %5754 = vmatprep.subr.mxu0 0.0
        %5755 = vmatpush1.msra.mxu0 0.0
        %5756 = vmatprep.subr.mxu0 0.0
        %5757 = vmatpush1.msra.mxu0 0.0
        %5758 = vmatprep.subr.mxu0 0.0
        %5759 = vmatpush1.msra.mxu0 0.0
        %5760 = vmatprep.subr.mxu0 0.0
        %5761 = vmatpush1.msra.mxu0 0.0
        %5762 = vmatprep.subr.mxu0 0.0
        %5763 = vmatpush1.msra.mxu0 0.0
        %5764 = vmatprep.subr.mxu0 0.0
        %5765 = vmatpush1.msra.mxu0 0.0
        %5766 = vmatprep.subr.mxu0 0.0
        %5767 = vmatpush1.msra.mxu0 0.0
        %5768 = vmatprep.subr.mxu0 0.0
        %5769 = vmatpush1.msra.mxu0 0.0
        %5770 = vmatprep.subr.mxu0 0.0
        %5771 = vmatpush1.msra.mxu0 0.0
        %5772 = vmatprep.subr.mxu0 0.0
        %5773 = vmatpush1.msra.mxu0 0.0
        %5774 = vmatprep.subr.mxu0 0.0
        %5775 = vmatpush1.msra.mxu0 0.0
        %5776 = vmatprep.subr.mxu0 0.0
        %5777 = vmatpush1.msra.mxu0 0.0
        %5778 = vmatprep.subr.mxu0 0.0
        %5779 = vmatpush1.msra.mxu0 0.0
        %5780 = vmatprep.subr.mxu0 0.0
        %5781 = vmatpush1.msra.mxu0 0.0
        %5782 = vmatprep.subr.mxu0 0.0
        %5783 = vmatpush1.msra.mxu0 0.0
        %5784 = vmatprep.subr.mxu0 0.0
        %5785 = vmatpush1.msra.mxu0 0.0
        %5786 = vmatprep.subr.mxu0 0.0
        %5787 = vmatpush1.msra.mxu0 0.0
        %5788 = vmatprep.subr.mxu0 0.0
        %5789 = vmatpush1.msra.mxu0 0.0
        %5790 = vmatprep.subr.mxu0 0.0
        %5791 = vmatpush1.msra.mxu0 0.0
        %5792 = vmatprep.subr.mxu0 0.0
        %5793 = vmatpush1.msra.mxu0 0.0
        %5794 = vmatprep.mubr.f32.mxu0 0.0
        %5795 = vmatmul.mubr.f32.gmra.mrb[0].mxu0 %v5651
        %v5796 = vpop.f32.mrb[0].mxu0
        %v5797 = vadd.f32 0.0, %v5796
        %v5798 = vpop.f32.mrb[0].mxu0
        %5799 = vdwg.mxu0
        %v5800 = vadd.f32 %v5627, %v5726
        %v5801 = vadd.f32 %v5628, %v5728
        %v5802 = vadd.f32 %v5629, %v5797
        %v5803 = vld [vmem:[%s168] sm:$0xff]
        %v5804 = vld [vmem:[%s168 + $0x8] sm:$0xff]
        %s5805 = scalar_lea.vmem %s0, 264
        %v5806 = vld [vmem:[%s5805] sm:$0x3f]
        %v5809 = vcombine.high %v5803, %v5803
        %v5810 = vcombine.high %v5804, %v5804
        %5811 = vrot.lane.b32.xlu0 %v5803, 35
        %v5812 = vpop.permute.xlu0 %5811
        %5813 = vrot.lane.b32.xlu0 %v5809, 35
        %v5814 = vpop.permute.xlu0 %5813
        %5815 = vrot.lane.b32.xlu0 %v5804, 35
        %v5816 = vpop.permute.xlu0 %5815
        %5817 = vrot.lane.b32.xlu0 %v5810, 35
        %v5818 = vpop.permute.xlu0 %5817
        %vm5819 = vcmask 285696
        %v5820 = vsel %vm5819, %v5812, %v5814
        %v5821 = vsel %vm5819, %v5814, %v5816
        %v5822 = vsel %vm5819, %v5816, %v5818
        %v5824 = vsel %vm186, %v5806, 0
        %v5826 = vsel %vm190, %v5820, 0
        %v5828 = vsel %vm190, %v5821, 0
        %v5830 = vsel %vm190, %v5822, 0
        %5832 = vmatprep.subr.mxu0 %v5828
        %5833 = vmatpush1.msra.mxu0 %v5826
        %5834 = vmatprep.subr.mxu0 0.0
        %5835 = vmatpush1.msra.mxu0 0.0
        %5836 = vmatprep.subr.mxu0 0.0
        %5837 = vmatpush1.msra.mxu0 0.0
        %5838 = vmatprep.subr.mxu0 0.0
        %5839 = vmatpush1.msra.mxu0 0.0
        %5840 = vmatprep.subr.mxu0 0.0
        %5841 = vmatpush1.msra.mxu0 0.0
        %5842 = vmatprep.subr.mxu0 0.0
        %5843 = vmatpush1.msra.mxu0 0.0
        %5844 = vmatprep.subr.mxu0 0.0
        %5845 = vmatpush1.msra.mxu0 0.0
        %5846 = vmatprep.subr.mxu0 0.0
        %5847 = vmatpush1.msra.mxu0 0.0
        %5848 = vmatprep.subr.mxu0 0.0
        %5849 = vmatpush1.msra.mxu0 0.0
        %5850 = vmatprep.subr.mxu0 0.0
        %5851 = vmatpush1.msra.mxu0 0.0
        %5852 = vmatprep.subr.mxu0 0.0
        %5853 = vmatpush1.msra.mxu0 0.0
        %5854 = vmatprep.subr.mxu0 0.0
        %5855 = vmatpush1.msra.mxu0 0.0
        %5856 = vmatprep.subr.mxu0 0.0
        %5857 = vmatpush1.msra.mxu0 0.0
        %5858 = vmatprep.subr.mxu0 0.0
        %5859 = vmatpush1.msra.mxu0 0.0
        %5860 = vmatprep.subr.mxu0 0.0
        %5861 = vmatpush1.msra.mxu0 0.0
        %5862 = vmatprep.subr.mxu0 0.0
        %5863 = vmatpush1.msra.mxu0 0.0
        %5864 = vmatprep.subr.mxu0 0.0
        %5865 = vmatpush1.msra.mxu0 0.0
        %5866 = vmatprep.subr.mxu0 0.0
        %5867 = vmatpush1.msra.mxu0 0.0
        %5868 = vmatprep.subr.mxu0 0.0
        %5869 = vmatpush1.msra.mxu0 0.0
        %5870 = vmatprep.subr.mxu0 0.0
        %5871 = vmatpush1.msra.mxu0 0.0
        %5872 = vmatprep.subr.mxu0 0.0
        %5873 = vmatpush1.msra.mxu0 0.0
        %5874 = vmatprep.subr.mxu0 0.0
        %5875 = vmatpush1.msra.mxu0 0.0
        %5876 = vmatprep.subr.mxu0 0.0
        %5877 = vmatpush1.msra.mxu0 0.0
        %5878 = vmatprep.subr.mxu0 0.0
        %5879 = vmatpush1.msra.mxu0 0.0
        %5880 = vmatprep.subr.mxu0 0.0
        %5881 = vmatpush1.msra.mxu0 0.0
        %5882 = vmatprep.subr.mxu0 0.0
        %5883 = vmatpush1.msra.mxu0 0.0
        %5884 = vmatprep.subr.mxu0 0.0
        %5885 = vmatpush1.msra.mxu0 0.0
        %5886 = vmatprep.subr.mxu0 0.0
        %5887 = vmatpush1.msra.mxu0 0.0
        %5888 = vmatprep.subr.mxu0 0.0
        %5889 = vmatpush1.msra.mxu0 0.0
        %5890 = vmatprep.subr.mxu0 0.0
        %5891 = vmatpush1.msra.mxu0 0.0
        %5892 = vmatprep.subr.mxu0 0.0
        %5893 = vmatpush1.msra.mxu0 0.0
        %5894 = vmatprep.subr.mxu0 0.0
        %5895 = vmatpush1.msra.mxu0 0.0
        %5896 = vmatprep.mubr.f32.mxu0 0.0
        %5897 = vmatmul.mubr.f32.gmra.mrb[0].mxu0 %v5824
        %v5898 = vpop.f32.mrb[0].mxu0
        %v5899 = vadd.f32 0.0, %v5898
        %v5900 = vpop.f32.mrb[0].mxu0
        %v5901 = vadd.f32 0.0, %v5900
        %5902 = vdwg.mxu0
        %5903 = vmatprep.subr.mxu0 0.0
        %5904 = vmatpush1.msra.mxu0 %v5830
        %5905 = vmatprep.subr.mxu0 0.0
        %5906 = vmatpush1.msra.mxu0 0.0
        %5907 = vmatprep.subr.mxu0 0.0
        %5908 = vmatpush1.msra.mxu0 0.0
        %5909 = vmatprep.subr.mxu0 0.0
        %5910 = vmatpush1.msra.mxu0 0.0
        %5911 = vmatprep.subr.mxu0 0.0
        %5912 = vmatpush1.msra.mxu0 0.0
        %5913 = vmatprep.subr.mxu0 0.0
        %5914 = vmatpush1.msra.mxu0 0.0
        %5915 = vmatprep.subr.mxu0 0.0
        %5916 = vmatpush1.msra.mxu0 0.0
        %5917 = vmatprep.subr.mxu0 0.0
        %5918 = vmatpush1.msra.mxu0 0.0
        %5919 = vmatprep.subr.mxu0 0.0
        %5920 = vmatpush1.msra.mxu0 0.0
        %5921 = vmatprep.subr.mxu0 0.0
        %5922 = vmatpush1.msra.mxu0 0.0
        %5923 = vmatprep.subr.mxu0 0.0
        %5924 = vmatpush1.msra.mxu0 0.0
        %5925 = vmatprep.subr.mxu0 0.0
        %5926 = vmatpush1.msra.mxu0 0.0
        %5927 = vmatprep.subr.mxu0 0.0
        %5928 = vmatpush1.msra.mxu0 0.0
        %5929 = vmatprep.subr.mxu0 0.0
        %5930 = vmatpush1.msra.mxu0 0.0
        %5931 = vmatprep.subr.mxu0 0.0
        %5932 = vmatpush1.msra.mxu0 0.0
        %5933 = vmatprep.subr.mxu0 0.0
        %5934 = vmatpush1.msra.mxu0 0.0
        %5935 = vmatprep.subr.mxu0 0.0
        %5936 = vmatpush1.msra.mxu0 0.0
        %5937 = vmatprep.subr.mxu0 0.0
        %5938 = vmatpush1.msra.mxu0 0.0
        %5939 = vmatprep.subr.mxu0 0.0
        %5940 = vmatpush1.msra.mxu0 0.0
        %5941 = vmatprep.subr.mxu0 0.0
        %5942 = vmatpush1.msra.mxu0 0.0
        %5943 = vmatprep.subr.mxu0 0.0
        %5944 = vmatpush1.msra.mxu0 0.0
        %5945 = vmatprep.subr.mxu0 0.0
        %5946 = vmatpush1.msra.mxu0 0.0
        %5947 = vmatprep.subr.mxu0 0.0
        %5948 = vmatpush1.msra.mxu0 0.0
        %5949 = vmatprep.subr.mxu0 0.0
        %5950 = vmatpush1.msra.mxu0 0.0
        %5951 = vmatprep.subr.mxu0 0.0
        %5952 = vmatpush1.msra.mxu0 0.0
        %5953 = vmatprep.subr.mxu0 0.0
        %5954 = vmatpush1.msra.mxu0 0.0
        %5955 = vmatprep.subr.mxu0 0.0
        %5956 = vmatpush1.msra.mxu0 0.0
        %5957 = vmatprep.subr.mxu0 0.0
        %5958 = vmatpush1.msra.mxu0 0.0
        %5959 = vmatprep.subr.mxu0 0.0
        %5960 = vmatpush1.msra.mxu0 0.0
        %5961 = vmatprep.subr.mxu0 0.0
        %5962 = vmatpush1.msra.mxu0 0.0
        %5963 = vmatprep.subr.mxu0 0.0
        %5964 = vmatpush1.msra.mxu0 0.0
        %5965 = vmatprep.subr.mxu0 0.0
        %5966 = vmatpush1.msra.mxu0 0.0
        %5967 = vmatprep.mubr.f32.mxu0 0.0
        %5968 = vmatmul.mubr.f32.gmra.mrb[0].mxu0 %v5824
        %v5969 = vpop.f32.mrb[0].mxu0
        %v5970 = vadd.f32 0.0, %v5969
        %v5971 = vpop.f32.mrb[0].mxu0
        %5972 = vdwg.mxu0
        %v5973 = vadd.f32 %v5800, %v5899
        %v5974 = vadd.f32 %v5801, %v5901
        %v5975 = vadd.f32 %v5802, %v5970
        %v5976 = vld [vmem:[%s168] sm:$0xff]
        %v5977 = vld [vmem:[%s168 + $0x8] sm:$0xff]
        %s5978 = scalar_lea.vmem %s0, 272
        %v5979 = vld [vmem:[%s5978] sm:$0x3f]
        %v5982 = vcombine.high %v5976, %v5976
        %v5983 = vcombine.high %v5977, %v5977
        %5984 = vrot.lane.b32.xlu0 %v5976, 34
        %v5985 = vpop.permute.xlu0 %5984
        %5986 = vrot.lane.b32.xlu0 %v5982, 34
        %v5987 = vpop.permute.xlu0 %5986
        %5988 = vrot.lane.b32.xlu0 %v5977, 34
        %v5989 = vpop.permute.xlu0 %5988
        %5990 = vrot.lane.b32.xlu0 %v5983, 34
        %v5991 = vpop.permute.xlu0 %5990
        %vm5992 = vcmask 277504
        %v5993 = vsel %vm5992, %v5985, %v5987
        %v5994 = vsel %vm5992, %v5987, %v5989
        %v5995 = vsel %vm5992, %v5989, %v5991
        %v5997 = vsel %vm186, %v5979, 0
        %v5999 = vsel %vm190, %v5993, 0
        %v6001 = vsel %vm190, %v5994, 0
        %v6003 = vsel %vm190, %v5995, 0
        %6005 = vmatprep.subr.mxu0 %v6001
        %6006 = vmatpush1.msra.mxu0 %v5999
        %6007 = vmatprep.subr.mxu0 0.0
        %6008 = vmatpush1.msra.mxu0 0.0
        %6009 = vmatprep.subr.mxu0 0.0
        %6010 = vmatpush1.msra.mxu0 0.0
        %6011 = vmatprep.subr.mxu0 0.0
        %6012 = vmatpush1.msra.mxu0 0.0
        %6013 = vmatprep.subr.mxu0 0.0
        %6014 = vmatpush1.msra.mxu0 0.0
        %6015 = vmatprep.subr.mxu0 0.0
        %6016 = vmatpush1.msra.mxu0 0.0
        %6017 = vmatprep.subr.mxu0 0.0
        %6018 = vmatpush1.msra.mxu0 0.0
        %6019 = vmatprep.subr.mxu0 0.0
        %6020 = vmatpush1.msra.mxu0 0.0
        %6021 = vmatprep.subr.mxu0 0.0
        %6022 = vmatpush1.msra.mxu0 0.0
        %6023 = vmatprep.subr.mxu0 0.0
        %6024 = vmatpush1.msra.mxu0 0.0
        %6025 = vmatprep.subr.mxu0 0.0
        %6026 = vmatpush1.msra.mxu0 0.0
        %6027 = vmatprep.subr.mxu0 0.0
        %6028 = vmatpush1.msra.mxu0 0.0
        %6029 = vmatprep.subr.mxu0 0.0
        %6030 = vmatpush1.msra.mxu0 0.0
        %6031 = vmatprep.subr.mxu0 0.0
        %6032 = vmatpush1.msra.mxu0 0.0
        %6033 = vmatprep.subr.mxu0 0.0
        %6034 = vmatpush1.msra.mxu0 0.0
        %6035 = vmatprep.subr.mxu0 0.0
        %6036 = vmatpush1.msra.mxu0 0.0
        %6037 = vmatprep.subr.mxu0 0.0
        %6038 = vmatpush1.msra.mxu0 0.0
        %6039 = vmatprep.subr.mxu0 0.0
        %6040 = vmatpush1.msra.mxu0 0.0
        %6041 = vmatprep.subr.mxu0 0.0
        %6042 = vmatpush1.msra.mxu0 0.0
        %6043 = vmatprep.subr.mxu0 0.0
        %6044 = vmatpush1.msra.mxu0 0.0
        %6045 = vmatprep.subr.mxu0 0.0
        %6046 = vmatpush1.msra.mxu0 0.0
        %6047 = vmatprep.subr.mxu0 0.0
        %6048 = vmatpush1.msra.mxu0 0.0
        %6049 = vmatprep.subr.mxu0 0.0
        %6050 = vmatpush1.msra.mxu0 0.0
        %6051 = vmatprep.subr.mxu0 0.0
        %6052 = vmatpush1.msra.mxu0 0.0
        %6053 = vmatprep.subr.mxu0 0.0
        %6054 = vmatpush1.msra.mxu0 0.0
        %6055 = vmatprep.subr.mxu0 0.0
        %6056 = vmatpush1.msra.mxu0 0.0
        %6057 = vmatprep.subr.mxu0 0.0
        %6058 = vmatpush1.msra.mxu0 0.0
        %6059 = vmatprep.subr.mxu0 0.0
        %6060 = vmatpush1.msra.mxu0 0.0
        %6061 = vmatprep.subr.mxu0 0.0
        %6062 = vmatpush1.msra.mxu0 0.0
        %6063 = vmatprep.subr.mxu0 0.0
        %6064 = vmatpush1.msra.mxu0 0.0
        %6065 = vmatprep.subr.mxu0 0.0
        %6066 = vmatpush1.msra.mxu0 0.0
        %6067 = vmatprep.subr.mxu0 0.0
        %6068 = vmatpush1.msra.mxu0 0.0
        %6069 = vmatprep.mubr.f32.mxu0 0.0
        %6070 = vmatmul.mubr.f32.gmra.mrb[0].mxu0 %v5997
        %v6071 = vpop.f32.mrb[0].mxu0
        %v6072 = vadd.f32 0.0, %v6071
        %v6073 = vpop.f32.mrb[0].mxu0
        %v6074 = vadd.f32 0.0, %v6073
        %6075 = vdwg.mxu0
        %6076 = vmatprep.subr.mxu0 0.0
        %6077 = vmatpush1.msra.mxu0 %v6003
        %6078 = vmatprep.subr.mxu0 0.0
        %6079 = vmatpush1.msra.mxu0 0.0
        %6080 = vmatprep.subr.mxu0 0.0
        %6081 = vmatpush1.msra.mxu0 0.0
        %6082 = vmatprep.subr.mxu0 0.0
        %6083 = vmatpush1.msra.mxu0 0.0
        %6084 = vmatprep.subr.mxu0 0.0
        %6085 = vmatpush1.msra.mxu0 0.0
        %6086 = vmatprep.subr.mxu0 0.0
        %6087 = vmatpush1.msra.mxu0 0.0
        %6088 = vmatprep.subr.mxu0 0.0
        %6089 = vmatpush1.msra.mxu0 0.0
        %6090 = vmatprep.subr.mxu0 0.0
        %6091 = vmatpush1.msra.mxu0 0.0
        %6092 = vmatprep.subr.mxu0 0.0
        %6093 = vmatpush1.msra.mxu0 0.0
        %6094 = vmatprep.subr.mxu0 0.0
        %6095 = vmatpush1.msra.mxu0 0.0
        %6096 = vmatprep.subr.mxu0 0.0
        %6097 = vmatpush1.msra.mxu0 0.0
        %6098 = vmatprep.subr.mxu0 0.0
        %6099 = vmatpush1.msra.mxu0 0.0
        %6100 = vmatprep.subr.mxu0 0.0
        %6101 = vmatpush1.msra.mxu0 0.0
        %6102 = vmatprep.subr.mxu0 0.0
        %6103 = vmatpush1.msra.mxu0 0.0
        %6104 = vmatprep.subr.mxu0 0.0
        %6105 = vmatpush1.msra.mxu0 0.0
        %6106 = vmatprep.subr.mxu0 0.0
        %6107 = vmatpush1.msra.mxu0 0.0
        %6108 = vmatprep.subr.mxu0 0.0
        %6109 = vmatpush1.msra.mxu0 0.0
        %6110 = vmatprep.subr.mxu0 0.0
        %6111 = vmatpush1.msra.mxu0 0.0
        %6112 = vmatprep.subr.mxu0 0.0
        %6113 = vmatpush1.msra.mxu0 0.0
        %6114 = vmatprep.subr.mxu0 0.0
        %6115 = vmatpush1.msra.mxu0 0.0
        %6116 = vmatprep.subr.mxu0 0.0
        %6117 = vmatpush1.msra.mxu0 0.0
        %6118 = vmatprep.subr.mxu0 0.0
        %6119 = vmatpush1.msra.mxu0 0.0
        %6120 = vmatprep.subr.mxu0 0.0
        %6121 = vmatpush1.msra.mxu0 0.0
        %6122 = vmatprep.subr.mxu0 0.0
        %6123 = vmatpush1.msra.mxu0 0.0
        %6124 = vmatprep.subr.mxu0 0.0
        %6125 = vmatpush1.msra.mxu0 0.0
        %6126 = vmatprep.subr.mxu0 0.0
        %6127 = vmatpush1.msra.mxu0 0.0
        %6128 = vmatprep.subr.mxu0 0.0
        %6129 = vmatpush1.msra.mxu0 0.0
        %6130 = vmatprep.subr.mxu0 0.0
        %6131 = vmatpush1.msra.mxu0 0.0
        %6132 = vmatprep.subr.mxu0 0.0
        %6133 = vmatpush1.msra.mxu0 0.0
        %6134 = vmatprep.subr.mxu0 0.0
        %6135 = vmatpush1.msra.mxu0 0.0
        %6136 = vmatprep.subr.mxu0 0.0
        %6137 = vmatpush1.msra.mxu0 0.0
        %6138 = vmatprep.subr.mxu0 0.0
        %6139 = vmatpush1.msra.mxu0 0.0
        %6140 = vmatprep.mubr.f32.mxu0 0.0
        %6141 = vmatmul.mubr.f32.gmra.mrb[0].mxu0 %v5997
        %v6142 = vpop.f32.mrb[0].mxu0
        %v6143 = vadd.f32 0.0, %v6142
        %v6144 = vpop.f32.mrb[0].mxu0
        %6145 = vdwg.mxu0
        %v6146 = vadd.f32 %v5973, %v6072
        %v6147 = vadd.f32 %v5974, %v6074
        %v6148 = vadd.f32 %v5975, %v6143
        %v6149 = vld [vmem:[%s168] sm:$0xff]
        %v6150 = vld [vmem:[%s168 + $0x8] sm:$0xff]
        %s6151 = scalar_lea.vmem %s0, 280
        %v6152 = vld [vmem:[%s6151] sm:$0x3f]
        %v6155 = vcombine.high %v6149, %v6149
        %v6156 = vcombine.high %v6150, %v6150
        %6157 = vrot.lane.b32.xlu0 %v6149, 18
        %v6158 = vpop.permute.xlu0 %6157
        %6159 = vrot.lane.b32.xlu0 %v6155, 18
        %v6160 = vpop.permute.xlu0 %6159
        %6161 = vrot.lane.b32.xlu0 %v6150, 18
        %v6162 = vpop.permute.xlu0 %6161
        %6163 = vrot.lane.b32.xlu0 %v6156, 18
        %v6164 = vpop.permute.xlu0 %6163
        %vm6165 = vcmask 146432
        %v6166 = vsel %vm6165, %v6158, %v6160
        %v6167 = vsel %vm6165, %v6160, %v6162
        %v6168 = vsel %vm6165, %v6162, %v6164
        %v6170 = vsel %vm186, %v6152, 0
        %v6172 = vsel %vm190, %v6166, 0
        %v6174 = vsel %vm190, %v6167, 0
        %v6176 = vsel %vm190, %v6168, 0
        %6178 = vmatprep.subr.mxu0 %v6174
        %6179 = vmatpush1.msra.mxu0 %v6172
        %6180 = vmatprep.subr.mxu0 0.0
        %6181 = vmatpush1.msra.mxu0 0.0
        %6182 = vmatprep.subr.mxu0 0.0
        %6183 = vmatpush1.msra.mxu0 0.0
        %6184 = vmatprep.subr.mxu0 0.0
        %6185 = vmatpush1.msra.mxu0 0.0
        %6186 = vmatprep.subr.mxu0 0.0
        %6187 = vmatpush1.msra.mxu0 0.0
        %6188 = vmatprep.subr.mxu0 0.0
        %6189 = vmatpush1.msra.mxu0 0.0
        %6190 = vmatprep.subr.mxu0 0.0
        %6191 = vmatpush1.msra.mxu0 0.0
        %6192 = vmatprep.subr.mxu0 0.0
        %6193 = vmatpush1.msra.mxu0 0.0
        %6194 = vmatprep.subr.mxu0 0.0
        %6195 = vmatpush1.msra.mxu0 0.0
        %6196 = vmatprep.subr.mxu0 0.0
        %6197 = vmatpush1.msra.mxu0 0.0
        %6198 = vmatprep.subr.mxu0 0.0
        %6199 = vmatpush1.msra.mxu0 0.0
        %6200 = vmatprep.subr.mxu0 0.0
        %6201 = vmatpush1.msra.mxu0 0.0
        %6202 = vmatprep.subr.mxu0 0.0
        %6203 = vmatpush1.msra.mxu0 0.0
        %6204 = vmatprep.subr.mxu0 0.0
        %6205 = vmatpush1.msra.mxu0 0.0
        %6206 = vmatprep.subr.mxu0 0.0
        %6207 = vmatpush1.msra.mxu0 0.0
        %6208 = vmatprep.subr.mxu0 0.0
        %6209 = vmatpush1.msra.mxu0 0.0
        %6210 = vmatprep.subr.mxu0 0.0
        %6211 = vmatpush1.msra.mxu0 0.0
        %6212 = vmatprep.subr.mxu0 0.0
        %6213 = vmatpush1.msra.mxu0 0.0
        %6214 = vmatprep.subr.mxu0 0.0
        %6215 = vmatpush1.msra.mxu0 0.0
        %6216 = vmatprep.subr.mxu0 0.0
        %6217 = vmatpush1.msra.mxu0 0.0
        %6218 = vmatprep.subr.mxu0 0.0
        %6219 = vmatpush1.msra.mxu0 0.0
        %6220 = vmatprep.subr.mxu0 0.0
        %6221 = vmatpush1.msra.mxu0 0.0
        %6222 = vmatprep.subr.mxu0 0.0
        %6223 = vmatpush1.msra.mxu0 0.0
        %6224 = vmatprep.subr.mxu0 0.0
        %6225 = vmatpush1.msra.mxu0 0.0
        %6226 = vmatprep.subr.mxu0 0.0
        %6227 = vmatpush1.msra.mxu0 0.0
        %6228 = vmatprep.subr.mxu0 0.0
        %6229 = vmatpush1.msra.mxu0 0.0
        %6230 = vmatprep.subr.mxu0 0.0
        %6231 = vmatpush1.msra.mxu0 0.0
        %6232 = vmatprep.subr.mxu0 0.0
        %6233 = vmatpush1.msra.mxu0 0.0
        %6234 = vmatprep.subr.mxu0 0.0
        %6235 = vmatpush1.msra.mxu0 0.0
        %6236 = vmatprep.subr.mxu0 0.0
        %6237 = vmatpush1.msra.mxu0 0.0
        %6238 = vmatprep.subr.mxu0 0.0
        %6239 = vmatpush1.msra.mxu0 0.0
        %6240 = vmatprep.subr.mxu0 0.0
        %6241 = vmatpush1.msra.mxu0 0.0
        %6242 = vmatprep.mubr.f32.mxu0 0.0
        %6243 = vmatmul.mubr.f32.gmra.mrb[0].mxu0 %v6170
        %v6244 = vpop.f32.mrb[0].mxu0
        %v6245 = vadd.f32 0.0, %v6244
        %v6246 = vpop.f32.mrb[0].mxu0
        %v6247 = vadd.f32 0.0, %v6246
        %6248 = vdwg.mxu0
        %6249 = vmatprep.subr.mxu0 0.0
        %6250 = vmatpush1.msra.mxu0 %v6176
        %6251 = vmatprep.subr.mxu0 0.0
        %6252 = vmatpush1.msra.mxu0 0.0
        %6253 = vmatprep.subr.mxu0 0.0
        %6254 = vmatpush1.msra.mxu0 0.0
        %6255 = vmatprep.subr.mxu0 0.0
        %6256 = vmatpush1.msra.mxu0 0.0
        %6257 = vmatprep.subr.mxu0 0.0
        %6258 = vmatpush1.msra.mxu0 0.0
        %6259 = vmatprep.subr.mxu0 0.0
        %6260 = vmatpush1.msra.mxu0 0.0
        %6261 = vmatprep.subr.mxu0 0.0
        %6262 = vmatpush1.msra.mxu0 0.0
        %6263 = vmatprep.subr.mxu0 0.0
        %6264 = vmatpush1.msra.mxu0 0.0
        %6265 = vmatprep.subr.mxu0 0.0
        %6266 = vmatpush1.msra.mxu0 0.0
        %6267 = vmatprep.subr.mxu0 0.0
        %6268 = vmatpush1.msra.mxu0 0.0
        %6269 = vmatprep.subr.mxu0 0.0
        %6270 = vmatpush1.msra.mxu0 0.0
        %6271 = vmatprep.subr.mxu0 0.0
        %6272 = vmatpush1.msra.mxu0 0.0
        %6273 = vmatprep.subr.mxu0 0.0
        %6274 = vmatpush1.msra.mxu0 0.0
        %6275 = vmatprep.subr.mxu0 0.0
        %6276 = vmatpush1.msra.mxu0 0.0
        %6277 = vmatprep.subr.mxu0 0.0
        %6278 = vmatpush1.msra.mxu0 0.0
        %6279 = vmatprep.subr.mxu0 0.0
        %6280 = vmatpush1.msra.mxu0 0.0
        %6281 = vmatprep.subr.mxu0 0.0
        %6282 = vmatpush1.msra.mxu0 0.0
        %6283 = vmatprep.subr.mxu0 0.0
        %6284 = vmatpush1.msra.mxu0 0.0
        %6285 = vmatprep.subr.mxu0 0.0
        %6286 = vmatpush1.msra.mxu0 0.0
        %6287 = vmatprep.subr.mxu0 0.0
        %6288 = vmatpush1.msra.mxu0 0.0
        %6289 = vmatprep.subr.mxu0 0.0
        %6290 = vmatpush1.msra.mxu0 0.0
        %6291 = vmatprep.subr.mxu0 0.0
        %6292 = vmatpush1.msra.mxu0 0.0
        %6293 = vmatprep.subr.mxu0 0.0
        %6294 = vmatpush1.msra.mxu0 0.0
        %6295 = vmatprep.subr.mxu0 0.0
        %6296 = vmatpush1.msra.mxu0 0.0
        %6297 = vmatprep.subr.mxu0 0.0
        %6298 = vmatpush1.msra.mxu0 0.0
        %6299 = vmatprep.subr.mxu0 0.0
        %6300 = vmatpush1.msra.mxu0 0.0
        %6301 = vmatprep.subr.mxu0 0.0
        %6302 = vmatpush1.msra.mxu0 0.0
        %6303 = vmatprep.subr.mxu0 0.0
        %6304 = vmatpush1.msra.mxu0 0.0
        %6305 = vmatprep.subr.mxu0 0.0
        %6306 = vmatpush1.msra.mxu0 0.0
        %6307 = vmatprep.subr.mxu0 0.0
        %6308 = vmatpush1.msra.mxu0 0.0
        %6309 = vmatprep.subr.mxu0 0.0
        %6310 = vmatpush1.msra.mxu0 0.0
        %6311 = vmatprep.subr.mxu0 0.0
        %6312 = vmatpush1.msra.mxu0 0.0
        %6313 = vmatprep.mubr.f32.mxu0 0.0
        %6314 = vmatmul.mubr.f32.gmra.mrb[0].mxu0 %v6170
        %v6315 = vpop.f32.mrb[0].mxu0
        %v6316 = vadd.f32 0.0, %v6315
        %v6317 = vpop.f32.mrb[0].mxu0
        %6318 = vdwg.mxu0
        %v6319 = vadd.f32 %v6146, %v6245
        %v6320 = vadd.f32 %v6147, %v6247
        %v6321 = vadd.f32 %v6148, %v6316
        %v6322 = vld [vmem:[%s168] sm:$0xff]
        %v6323 = vld [vmem:[%s168 + $0x8] sm:$0xff]
        %s6324 = scalar_lea.vmem %s0, 288
        %v6325 = vld [vmem:[%s6324] sm:$0x3f]
        %v6328 = vcombine.high %v6322, %v6322
        %v6329 = vcombine.high %v6323, %v6323
        %6330 = vrot.lane.b32.xlu0 %v6322, 17
        %v6331 = vpop.permute.xlu0 %6330
        %6332 = vrot.lane.b32.xlu0 %v6328, 17
        %v6333 = vpop.permute.xlu0 %6332
        %6334 = vrot.lane.b32.xlu0 %v6323, 17
        %v6335 = vpop.permute.xlu0 %6334
        %6336 = vrot.lane.b32.xlu0 %v6329, 17
        %v6337 = vpop.permute.xlu0 %6336
        %vm6338 = vcmask 138240
        %v6339 = vsel %vm6338, %v6331, %v6333
        %v6340 = vsel %vm6338, %v6333, %v6335
        %v6341 = vsel %vm6338, %v6335, %v6337
        %v6343 = vsel %vm186, %v6325, 0
        %v6345 = vsel %vm190, %v6339, 0
        %v6347 = vsel %vm190, %v6340, 0
        %v6349 = vsel %vm190, %v6341, 0
        %6351 = vmatprep.subr.mxu0 %v6347
        %6352 = vmatpush1.msra.mxu0 %v6345
        %6353 = vmatprep.subr.mxu0 0.0
        %6354 = vmatpush1.msra.mxu0 0.0
        %6355 = vmatprep.subr.mxu0 0.0
        %6356 = vmatpush1.msra.mxu0 0.0
        %6357 = vmatprep.subr.mxu0 0.0
        %6358 = vmatpush1.msra.mxu0 0.0
        %6359 = vmatprep.subr.mxu0 0.0
        %6360 = vmatpush1.msra.mxu0 0.0
        %6361 = vmatprep.subr.mxu0 0.0
        %6362 = vmatpush1.msra.mxu0 0.0
        %6363 = vmatprep.subr.mxu0 0.0
        %6364 = vmatpush1.msra.mxu0 0.0
        %6365 = vmatprep.subr.mxu0 0.0
        %6366 = vmatpush1.msra.mxu0 0.0
        %6367 = vmatprep.subr.mxu0 0.0
        %6368 = vmatpush1.msra.mxu0 0.0
        %6369 = vmatprep.subr.mxu0 0.0
        %6370 = vmatpush1.msra.mxu0 0.0
        %6371 = vmatprep.subr.mxu0 0.0
        %6372 = vmatpush1.msra.mxu0 0.0
        %6373 = vmatprep.subr.mxu0 0.0
        %6374 = vmatpush1.msra.mxu0 0.0
        %6375 = vmatprep.subr.mxu0 0.0
        %6376 = vmatpush1.msra.mxu0 0.0
        %6377 = vmatprep.subr.mxu0 0.0
        %6378 = vmatpush1.msra.mxu0 0.0
        %6379 = vmatprep.subr.mxu0 0.0
        %6380 = vmatpush1.msra.mxu0 0.0
        %6381 = vmatprep.subr.mxu0 0.0
        %6382 = vmatpush1.msra.mxu0 0.0
        %6383 = vmatprep.subr.mxu0 0.0
        %6384 = vmatpush1.msra.mxu0 0.0
        %6385 = vmatprep.subr.mxu0 0.0
        %6386 = vmatpush1.msra.mxu0 0.0
        %6387 = vmatprep.subr.mxu0 0.0
        %6388 = vmatpush1.msra.mxu0 0.0
        %6389 = vmatprep.subr.mxu0 0.0
        %6390 = vmatpush1.msra.mxu0 0.0
        %6391 = vmatprep.subr.mxu0 0.0
        %6392 = vmatpush1.msra.mxu0 0.0
        %6393 = vmatprep.subr.mxu0 0.0
        %6394 = vmatpush1.msra.mxu0 0.0
        %6395 = vmatprep.subr.mxu0 0.0
        %6396 = vmatpush1.msra.mxu0 0.0
        %6397 = vmatprep.subr.mxu0 0.0
        %6398 = vmatpush1.msra.mxu0 0.0
        %6399 = vmatprep.subr.mxu0 0.0
        %6400 = vmatpush1.msra.mxu0 0.0
        %6401 = vmatprep.subr.mxu0 0.0
        %6402 = vmatpush1.msra.mxu0 0.0
        %6403 = vmatprep.subr.mxu0 0.0
        %6404 = vmatpush1.msra.mxu0 0.0
        %6405 = vmatprep.subr.mxu0 0.0
        %6406 = vmatpush1.msra.mxu0 0.0
        %6407 = vmatprep.subr.mxu0 0.0
        %6408 = vmatpush1.msra.mxu0 0.0
        %6409 = vmatprep.subr.mxu0 0.0
        %6410 = vmatpush1.msra.mxu0 0.0
        %6411 = vmatprep.subr.mxu0 0.0
        %6412 = vmatpush1.msra.mxu0 0.0
        %6413 = vmatprep.subr.mxu0 0.0
        %6414 = vmatpush1.msra.mxu0 0.0
        %6415 = vmatprep.mubr.f32.mxu0 0.0
        %6416 = vmatmul.mubr.f32.gmra.mrb[0].mxu0 %v6343
        %v6417 = vpop.f32.mrb[0].mxu0
        %v6418 = vadd.f32 0.0, %v6417
        %v6419 = vpop.f32.mrb[0].mxu0
        %v6420 = vadd.f32 0.0, %v6419
        %6421 = vdwg.mxu0
        %6422 = vmatprep.subr.mxu0 0.0
        %6423 = vmatpush1.msra.mxu0 %v6349
        %6424 = vmatprep.subr.mxu0 0.0
        %6425 = vmatpush1.msra.mxu0 0.0
        %6426 = vmatprep.subr.mxu0 0.0
        %6427 = vmatpush1.msra.mxu0 0.0
        %6428 = vmatprep.subr.mxu0 0.0
        %6429 = vmatpush1.msra.mxu0 0.0
        %6430 = vmatprep.subr.mxu0 0.0
        %6431 = vmatpush1.msra.mxu0 0.0
        %6432 = vmatprep.subr.mxu0 0.0
        %6433 = vmatpush1.msra.mxu0 0.0
        %6434 = vmatprep.subr.mxu0 0.0
        %6435 = vmatpush1.msra.mxu0 0.0
        %6436 = vmatprep.subr.mxu0 0.0
        %6437 = vmatpush1.msra.mxu0 0.0
        %6438 = vmatprep.subr.mxu0 0.0
        %6439 = vmatpush1.msra.mxu0 0.0
        %6440 = vmatprep.subr.mxu0 0.0
        %6441 = vmatpush1.msra.mxu0 0.0
        %6442 = vmatprep.subr.mxu0 0.0
        %6443 = vmatpush1.msra.mxu0 0.0
        %6444 = vmatprep.subr.mxu0 0.0
        %6445 = vmatpush1.msra.mxu0 0.0
        %6446 = vmatprep.subr.mxu0 0.0
        %6447 = vmatpush1.msra.mxu0 0.0
        %6448 = vmatprep.subr.mxu0 0.0
        %6449 = vmatpush1.msra.mxu0 0.0
        %6450 = vmatprep.subr.mxu0 0.0
        %6451 = vmatpush1.msra.mxu0 0.0
        %6452 = vmatprep.subr.mxu0 0.0
        %6453 = vmatpush1.msra.mxu0 0.0
        %6454 = vmatprep.subr.mxu0 0.0
        %6455 = vmatpush1.msra.mxu0 0.0
        %6456 = vmatprep.subr.mxu0 0.0
        %6457 = vmatpush1.msra.mxu0 0.0
        %6458 = vmatprep.subr.mxu0 0.0
        %6459 = vmatpush1.msra.mxu0 0.0
        %6460 = vmatprep.subr.mxu0 0.0
        %6461 = vmatpush1.msra.mxu0 0.0
        %6462 = vmatprep.subr.mxu0 0.0
        %6463 = vmatpush1.msra.mxu0 0.0
        %6464 = vmatprep.subr.mxu0 0.0
        %6465 = vmatpush1.msra.mxu0 0.0
        %6466 = vmatprep.subr.mxu0 0.0
        %6467 = vmatpush1.msra.mxu0 0.0
        %6468 = vmatprep.subr.mxu0 0.0
        %6469 = vmatpush1.msra.mxu0 0.0
        %6470 = vmatprep.subr.mxu0 0.0
        %6471 = vmatpush1.msra.mxu0 0.0
        %6472 = vmatprep.subr.mxu0 0.0
        %6473 = vmatpush1.msra.mxu0 0.0
        %6474 = vmatprep.subr.mxu0 0.0
        %6475 = vmatpush1.msra.mxu0 0.0
        %6476 = vmatprep.subr.mxu0 0.0
        %6477 = vmatpush1.msra.mxu0 0.0
        %6478 = vmatprep.subr.mxu0 0.0
        %6479 = vmatpush1.msra.mxu0 0.0
        %6480 = vmatprep.subr.mxu0 0.0
        %6481 = vmatpush1.msra.mxu0 0.0
        %6482 = vmatprep.subr.mxu0 0.0
        %6483 = vmatpush1.msra.mxu0 0.0
        %6484 = vmatprep.subr.mxu0 0.0
        %6485 = vmatpush1.msra.mxu0 0.0
        %6486 = vmatprep.mubr.f32.mxu0 0.0
        %6487 = vmatmul.mubr.f32.gmra.mrb[0].mxu0 %v6343
        %v6488 = vpop.f32.mrb[0].mxu0
        %v6489 = vadd.f32 0.0, %v6488
        %v6490 = vpop.f32.mrb[0].mxu0
        %6491 = vdwg.mxu0
        %v6492 = vadd.f32 %v6319, %v6418
        %v6493 = vadd.f32 %v6320, %v6420
        %v6494 = vadd.f32 %v6321, %v6489
        %v6495 = vld [vmem:[%s168] sm:$0xff]
        %v6496 = vld [vmem:[%s168 + $0x8] sm:$0xff]
        %s6497 = scalar_lea.vmem %s0, 296
        %v6498 = vld [vmem:[%s6497] sm:$0x3f]
        %v6501 = vcombine.high %v6495, %v6495
        %v6502 = vcombine.high %v6496, %v6496
        %6503 = vrot.lane.b32.xlu0 %v6495, 16
        %v6504 = vpop.permute.xlu0 %6503
        %6505 = vrot.lane.b32.xlu0 %v6501, 16
        %v6506 = vpop.permute.xlu0 %6505
        %6507 = vrot.lane.b32.xlu0 %v6496, 16
        %v6508 = vpop.permute.xlu0 %6507
        %6509 = vrot.lane.b32.xlu0 %v6502, 16
        %v6510 = vpop.permute.xlu0 %6509
        %vm6511 = vcmask 130048
        %v6512 = vsel %vm6511, %v6504, %v6506
        %v6513 = vsel %vm6511, %v6506, %v6508
        %v6514 = vsel %vm6511, %v6508, %v6510
        %v6516 = vsel %vm186, %v6498, 0
        %v6518 = vsel %vm190, %v6512, 0
        %v6520 = vsel %vm190, %v6513, 0
        %v6522 = vsel %vm190, %v6514, 0
        %6524 = vmatprep.subr.mxu0 %v6520
        %6525 = vmatpush1.msra.mxu0 %v6518
        %6526 = vmatprep.subr.mxu0 0.0
        %6527 = vmatpush1.msra.mxu0 0.0
        %6528 = vmatprep.subr.mxu0 0.0
        %6529 = vmatpush1.msra.mxu0 0.0
        %6530 = vmatprep.subr.mxu0 0.0
        %6531 = vmatpush1.msra.mxu0 0.0
        %6532 = vmatprep.subr.mxu0 0.0
        %6533 = vmatpush1.msra.mxu0 0.0
        %6534 = vmatprep.subr.mxu0 0.0
        %6535 = vmatpush1.msra.mxu0 0.0
        %6536 = vmatprep.subr.mxu0 0.0
        %6537 = vmatpush1.msra.mxu0 0.0
        %6538 = vmatprep.subr.mxu0 0.0
        %6539 = vmatpush1.msra.mxu0 0.0
        %6540 = vmatprep.subr.mxu0 0.0
        %6541 = vmatpush1.msra.mxu0 0.0
        %6542 = vmatprep.subr.mxu0 0.0
        %6543 = vmatpush1.msra.mxu0 0.0
        %6544 = vmatprep.subr.mxu0 0.0
        %6545 = vmatpush1.msra.mxu0 0.0
        %6546 = vmatprep.subr.mxu0 0.0
        %6547 = vmatpush1.msra.mxu0 0.0
        %6548 = vmatprep.subr.mxu0 0.0
        %6549 = vmatpush1.msra.mxu0 0.0
        %6550 = vmatprep.subr.mxu0 0.0
        %6551 = vmatpush1.msra.mxu0 0.0
        %6552 = vmatprep.subr.mxu0 0.0
        %6553 = vmatpush1.msra.mxu0 0.0
        %6554 = vmatprep.subr.mxu0 0.0
        %6555 = vmatpush1.msra.mxu0 0.0
        %6556 = vmatprep.subr.mxu0 0.0
        %6557 = vmatpush1.msra.mxu0 0.0
        %6558 = vmatprep.subr.mxu0 0.0
        %6559 = vmatpush1.msra.mxu0 0.0
        %6560 = vmatprep.subr.mxu0 0.0
        %6561 = vmatpush1.msra.mxu0 0.0
        %6562 = vmatprep.subr.mxu0 0.0
        %6563 = vmatpush1.msra.mxu0 0.0
        %6564 = vmatprep.subr.mxu0 0.0
        %6565 = vmatpush1.msra.mxu0 0.0
        %6566 = vmatprep.subr.mxu0 0.0
        %6567 = vmatpush1.msra.mxu0 0.0
        %6568 = vmatprep.subr.mxu0 0.0
        %6569 = vmatpush1.msra.mxu0 0.0
        %6570 = vmatprep.subr.mxu0 0.0
        %6571 = vmatpush1.msra.mxu0 0.0
        %6572 = vmatprep.subr.mxu0 0.0
        %6573 = vmatpush1.msra.mxu0 0.0
        %6574 = vmatprep.subr.mxu0 0.0
        %6575 = vmatpush1.msra.mxu0 0.0
        %6576 = vmatprep.subr.mxu0 0.0
        %6577 = vmatpush1.msra.mxu0 0.0
        %6578 = vmatprep.subr.mxu0 0.0
        %6579 = vmatpush1.msra.mxu0 0.0
        %6580 = vmatprep.subr.mxu0 0.0
        %6581 = vmatpush1.msra.mxu0 0.0
        %6582 = vmatprep.subr.mxu0 0.0
        %6583 = vmatpush1.msra.mxu0 0.0
        %6584 = vmatprep.subr.mxu0 0.0
        %6585 = vmatpush1.msra.mxu0 0.0
        %6586 = vmatprep.subr.mxu0 0.0
        %6587 = vmatpush1.msra.mxu0 0.0
        %6588 = vmatprep.mubr.f32.mxu0 0.0
        %6589 = vmatmul.mubr.f32.gmra.mrb[0].mxu0 %v6516
        %v6590 = vpop.f32.mrb[0].mxu0
        %v6591 = vadd.f32 0.0, %v6590
        %v6592 = vpop.f32.mrb[0].mxu0
        %v6593 = vadd.f32 0.0, %v6592
        %6594 = vdwg.mxu0
        %6595 = vmatprep.subr.mxu0 0.0
        %6596 = vmatpush1.msra.mxu0 %v6522
        %6597 = vmatprep.subr.mxu0 0.0
        %6598 = vmatpush1.msra.mxu0 0.0
        %6599 = vmatprep.subr.mxu0 0.0
        %6600 = vmatpush1.msra.mxu0 0.0
        %6601 = vmatprep.subr.mxu0 0.0
        %6602 = vmatpush1.msra.mxu0 0.0
        %6603 = vmatprep.subr.mxu0 0.0
        %6604 = vmatpush1.msra.mxu0 0.0
        %6605 = vmatprep.subr.mxu0 0.0
        %6606 = vmatpush1.msra.mxu0 0.0
        %6607 = vmatprep.subr.mxu0 0.0
        %6608 = vmatpush1.msra.mxu0 0.0
        %6609 = vmatprep.subr.mxu0 0.0
        %6610 = vmatpush1.msra.mxu0 0.0
        %6611 = vmatprep.subr.mxu0 0.0
        %6612 = vmatpush1.msra.mxu0 0.0
        %6613 = vmatprep.subr.mxu0 0.0
        %6614 = vmatpush1.msra.mxu0 0.0
        %6615 = vmatprep.subr.mxu0 0.0
        %6616 = vmatpush1.msra.mxu0 0.0
        %6617 = vmatprep.subr.mxu0 0.0
        %6618 = vmatpush1.msra.mxu0 0.0
        %6619 = vmatprep.subr.mxu0 0.0
        %6620 = vmatpush1.msra.mxu0 0.0
        %6621 = vmatprep.subr.mxu0 0.0
        %6622 = vmatpush1.msra.mxu0 0.0
        %6623 = vmatprep.subr.mxu0 0.0
        %6624 = vmatpush1.msra.mxu0 0.0
        %6625 = vmatprep.subr.mxu0 0.0
        %6626 = vmatpush1.msra.mxu0 0.0
        %6627 = vmatprep.subr.mxu0 0.0
        %6628 = vmatpush1.msra.mxu0 0.0
        %6629 = vmatprep.subr.mxu0 0.0
        %6630 = vmatpush1.msra.mxu0 0.0
        %6631 = vmatprep.subr.mxu0 0.0
        %6632 = vmatpush1.msra.mxu0 0.0
        %6633 = vmatprep.subr.mxu0 0.0
        %6634 = vmatpush1.msra.mxu0 0.0
        %6635 = vmatprep.subr.mxu0 0.0
        %6636 = vmatpush1.msra.mxu0 0.0
        %6637 = vmatprep.subr.mxu0 0.0
        %6638 = vmatpush1.msra.mxu0 0.0
        %6639 = vmatprep.subr.mxu0 0.0
        %6640 = vmatpush1.msra.mxu0 0.0
        %6641 = vmatprep.subr.mxu0 0.0
        %6642 = vmatpush1.msra.mxu0 0.0
        %6643 = vmatprep.subr.mxu0 0.0
        %6644 = vmatpush1.msra.mxu0 0.0
        %6645 = vmatprep.subr.mxu0 0.0
        %6646 = vmatpush1.msra.mxu0 0.0
        %6647 = vmatprep.subr.mxu0 0.0
        %6648 = vmatpush1.msra.mxu0 0.0
        %6649 = vmatprep.subr.mxu0 0.0
        %6650 = vmatpush1.msra.mxu0 0.0
        %6651 = vmatprep.subr.mxu0 0.0
        %6652 = vmatpush1.msra.mxu0 0.0
        %6653 = vmatprep.subr.mxu0 0.0
        %6654 = vmatpush1.msra.mxu0 0.0
        %6655 = vmatprep.subr.mxu0 0.0
        %6656 = vmatpush1.msra.mxu0 0.0
        %6657 = vmatprep.subr.mxu0 0.0
        %6658 = vmatpush1.msra.mxu0 0.0
        %6659 = vmatprep.mubr.f32.mxu0 0.0
        %6660 = vmatmul.mubr.f32.gmra.mrb[0].mxu0 %v6516
        %v6661 = vpop.f32.mrb[0].mxu0
        %v6662 = vadd.f32 0.0, %v6661
        %v6663 = vpop.f32.mrb[0].mxu0
        %6664 = vdwg.mxu0
        %v6665 = vadd.f32 %v6492, %v6591
        %v6666 = vadd.f32 %v6493, %v6593
        %v6667 = vadd.f32 %v6494, %v6662
        %v6668 = vld [vmem:[%s168] sm:$0xff]
        %v6669 = vld [vmem:[%s168 + $0x8] sm:$0xff]
        %s6670 = scalar_lea.vmem %s0, 304
        %v6671 = vld [vmem:[%s6670] sm:$0x3f]
        %v6674 = vcombine.high %v6668, %v6668
        %v6675 = vcombine.high %v6669, %v6669
        %6676 = vrot.lane.b32.xlu0 %v6668, 15
        %v6677 = vpop.permute.xlu0 %6676
        %6678 = vrot.lane.b32.xlu0 %v6674, 15
        %v6679 = vpop.permute.xlu0 %6678
        %6680 = vrot.lane.b32.xlu0 %v6669, 15
        %v6681 = vpop.permute.xlu0 %6680
        %6682 = vrot.lane.b32.xlu0 %v6675, 15
        %v6683 = vpop.permute.xlu0 %6682
        %vm6684 = vcmask 121856
        %v6685 = vsel %vm6684, %v6677, %v6679
        %v6686 = vsel %vm6684, %v6679, %v6681
        %v6687 = vsel %vm6684, %v6681, %v6683
        %v6689 = vsel %vm186, %v6671, 0
        %v6691 = vsel %vm190, %v6685, 0
        %v6693 = vsel %vm190, %v6686, 0
        %v6695 = vsel %vm190, %v6687, 0
        %6697 = vmatprep.subr.mxu0 %v6693
        %6698 = vmatpush1.msra.mxu0 %v6691
        %6699 = vmatprep.subr.mxu0 0.0
        %6700 = vmatpush1.msra.mxu0 0.0
        %6701 = vmatprep.subr.mxu0 0.0
        %6702 = vmatpush1.msra.mxu0 0.0
        %6703 = vmatprep.subr.mxu0 0.0
        %6704 = vmatpush1.msra.mxu0 0.0
        %6705 = vmatprep.subr.mxu0 0.0
        %6706 = vmatpush1.msra.mxu0 0.0
        %6707 = vmatprep.subr.mxu0 0.0
        %6708 = vmatpush1.msra.mxu0 0.0
        %6709 = vmatprep.subr.mxu0 0.0
        %6710 = vmatpush1.msra.mxu0 0.0
        %6711 = vmatprep.subr.mxu0 0.0
        %6712 = vmatpush1.msra.mxu0 0.0
        %6713 = vmatprep.subr.mxu0 0.0
        %6714 = vmatpush1.msra.mxu0 0.0
        %6715 = vmatprep.subr.mxu0 0.0
        %6716 = vmatpush1.msra.mxu0 0.0
        %6717 = vmatprep.subr.mxu0 0.0
        %6718 = vmatpush1.msra.mxu0 0.0
        %6719 = vmatprep.subr.mxu0 0.0
        %6720 = vmatpush1.msra.mxu0 0.0
        %6721 = vmatprep.subr.mxu0 0.0
        %6722 = vmatpush1.msra.mxu0 0.0
        %6723 = vmatprep.subr.mxu0 0.0
        %6724 = vmatpush1.msra.mxu0 0.0
        %6725 = vmatprep.subr.mxu0 0.0
        %6726 = vmatpush1.msra.mxu0 0.0
        %6727 = vmatprep.subr.mxu0 0.0
        %6728 = vmatpush1.msra.mxu0 0.0
        %6729 = vmatprep.subr.mxu0 0.0
        %6730 = vmatpush1.msra.mxu0 0.0
        %6731 = vmatprep.subr.mxu0 0.0
        %6732 = vmatpush1.msra.mxu0 0.0
        %6733 = vmatprep.subr.mxu0 0.0
        %6734 = vmatpush1.msra.mxu0 0.0
        %6735 = vmatprep.subr.mxu0 0.0
        %6736 = vmatpush1.msra.mxu0 0.0
        %6737 = vmatprep.subr.mxu0 0.0
        %6738 = vmatpush1.msra.mxu0 0.0
        %6739 = vmatprep.subr.mxu0 0.0
        %6740 = vmatpush1.msra.mxu0 0.0
        %6741 = vmatprep.subr.mxu0 0.0
        %6742 = vmatpush1.msra.mxu0 0.0
        %6743 = vmatprep.subr.mxu0 0.0
        %6744 = vmatpush1.msra.mxu0 0.0
        %6745 = vmatprep.subr.mxu0 0.0
        %6746 = vmatpush1.msra.mxu0 0.0
        %6747 = vmatprep.subr.mxu0 0.0
        %6748 = vmatpush1.msra.mxu0 0.0
        %6749 = vmatprep.subr.mxu0 0.0
        %6750 = vmatpush1.msra.mxu0 0.0
        %6751 = vmatprep.subr.mxu0 0.0
        %6752 = vmatpush1.msra.mxu0 0.0
        %6753 = vmatprep.subr.mxu0 0.0
        %6754 = vmatpush1.msra.mxu0 0.0
        %6755 = vmatprep.subr.mxu0 0.0
        %6756 = vmatpush1.msra.mxu0 0.0
        %6757 = vmatprep.subr.mxu0 0.0
        %6758 = vmatpush1.msra.mxu0 0.0
        %6759 = vmatprep.subr.mxu0 0.0
        %6760 = vmatpush1.msra.mxu0 0.0
        %6761 = vmatprep.mubr.f32.mxu0 0.0
        %6762 = vmatmul.mubr.f32.gmra.mrb[0].mxu0 %v6689
        %v6763 = vpop.f32.mrb[0].mxu0
        %v6764 = vadd.f32 0.0, %v6763
        %v6765 = vpop.f32.mrb[0].mxu0
        %v6766 = vadd.f32 0.0, %v6765
        %6767 = vdwg.mxu0
        %6768 = vmatprep.subr.mxu0 0.0
        %6769 = vmatpush1.msra.mxu0 %v6695
        %6770 = vmatprep.subr.mxu0 0.0
        %6771 = vmatpush1.msra.mxu0 0.0
        %6772 = vmatprep.subr.mxu0 0.0
        %6773 = vmatpush1.msra.mxu0 0.0
        %6774 = vmatprep.subr.mxu0 0.0
        %6775 = vmatpush1.msra.mxu0 0.0
        %6776 = vmatprep.subr.mxu0 0.0
        %6777 = vmatpush1.msra.mxu0 0.0
        %6778 = vmatprep.subr.mxu0 0.0
        %6779 = vmatpush1.msra.mxu0 0.0
        %6780 = vmatprep.subr.mxu0 0.0
        %6781 = vmatpush1.msra.mxu0 0.0
        %6782 = vmatprep.subr.mxu0 0.0
        %6783 = vmatpush1.msra.mxu0 0.0
        %6784 = vmatprep.subr.mxu0 0.0
        %6785 = vmatpush1.msra.mxu0 0.0
        %6786 = vmatprep.subr.mxu0 0.0
        %6787 = vmatpush1.msra.mxu0 0.0
        %6788 = vmatprep.subr.mxu0 0.0
        %6789 = vmatpush1.msra.mxu0 0.0
        %6790 = vmatprep.subr.mxu0 0.0
        %6791 = vmatpush1.msra.mxu0 0.0
        %6792 = vmatprep.subr.mxu0 0.0
        %6793 = vmatpush1.msra.mxu0 0.0
        %6794 = vmatprep.subr.mxu0 0.0
        %6795 = vmatpush1.msra.mxu0 0.0
        %6796 = vmatprep.subr.mxu0 0.0
        %6797 = vmatpush1.msra.mxu0 0.0
        %6798 = vmatprep.subr.mxu0 0.0
        %6799 = vmatpush1.msra.mxu0 0.0
        %6800 = vmatprep.subr.mxu0 0.0
        %6801 = vmatpush1.msra.mxu0 0.0
        %6802 = vmatprep.subr.mxu0 0.0
        %6803 = vmatpush1.msra.mxu0 0.0
        %6804 = vmatprep.subr.mxu0 0.0
        %6805 = vmatpush1.msra.mxu0 0.0
        %6806 = vmatprep.subr.mxu0 0.0
        %6807 = vmatpush1.msra.mxu0 0.0
        %6808 = vmatprep.subr.mxu0 0.0
        %6809 = vmatpush1.msra.mxu0 0.0
        %6810 = vmatprep.subr.mxu0 0.0
        %6811 = vmatpush1.msra.mxu0 0.0
        %6812 = vmatprep.subr.mxu0 0.0
        %6813 = vmatpush1.msra.mxu0 0.0
        %6814 = vmatprep.subr.mxu0 0.0
        %6815 = vmatpush1.msra.mxu0 0.0
        %6816 = vmatprep.subr.mxu0 0.0
        %6817 = vmatpush1.msra.mxu0 0.0
        %6818 = vmatprep.subr.mxu0 0.0
        %6819 = vmatpush1.msra.mxu0 0.0
        %6820 = vmatprep.subr.mxu0 0.0
        %6821 = vmatpush1.msra.mxu0 0.0
        %6822 = vmatprep.subr.mxu0 0.0
        %6823 = vmatpush1.msra.mxu0 0.0
        %6824 = vmatprep.subr.mxu0 0.0
        %6825 = vmatpush1.msra.mxu0 0.0
        %6826 = vmatprep.subr.mxu0 0.0
        %6827 = vmatpush1.msra.mxu0 0.0
        %6828 = vmatprep.subr.mxu0 0.0
        %6829 = vmatpush1.msra.mxu0 0.0
        %6830 = vmatprep.subr.mxu0 0.0
        %6831 = vmatpush1.msra.mxu0 0.0
        %6832 = vmatprep.mubr.f32.mxu0 0.0
        %6833 = vmatmul.mubr.f32.gmra.mrb[0].mxu0 %v6689
        %v6834 = vpop.f32.mrb[0].mxu0
        %v6835 = vadd.f32 0.0, %v6834
        %v6836 = vpop.f32.mrb[0].mxu0
        %6837 = vdwg.mxu0
        %v6838 = vadd.f32 %v6665, %v6764
        %v6839 = vadd.f32 %v6666, %v6766
        %v6840 = vadd.f32 %v6667, %v6835
        %v6841 = vld [vmem:[%s168] sm:$0xff]
        %v6842 = vld [vmem:[%s168 + $0x8] sm:$0xff]
        %s6843 = scalar_lea.vmem %s0, 312
        %v6844 = vld [vmem:[%s6843] sm:$0x3f]
        %v6847 = vcombine.high %v6841, %v6841
        %v6848 = vcombine.high %v6842, %v6842
        %6849 = vrot.lane.b32.xlu0 %v6841, 14
        %v6850 = vpop.permute.xlu0 %6849
        %6851 = vrot.lane.b32.xlu0 %v6847, 14
        %v6852 = vpop.permute.xlu0 %6851
        %6853 = vrot.lane.b32.xlu0 %v6842, 14
        %v6854 = vpop.permute.xlu0 %6853
        %6855 = vrot.lane.b32.xlu0 %v6848, 14
        %v6856 = vpop.permute.xlu0 %6855
        %vm6857 = vcmask 113664
        %v6858 = vsel %vm6857, %v6850, %v6852
        %v6859 = vsel %vm6857, %v6852, %v6854
        %v6860 = vsel %vm6857, %v6854, %v6856
        %v6862 = vsel %vm186, %v6844, 0
        %v6864 = vsel %vm190, %v6858, 0
        %v6866 = vsel %vm190, %v6859, 0
        %v6868 = vsel %vm190, %v6860, 0
        %6870 = vmatprep.subr.mxu0 %v6866
        %6871 = vmatpush1.msra.mxu0 %v6864
        %6872 = vmatprep.subr.mxu0 0.0
        %6873 = vmatpush1.msra.mxu0 0.0
        %6874 = vmatprep.subr.mxu0 0.0
        %6875 = vmatpush1.msra.mxu0 0.0
        %6876 = vmatprep.subr.mxu0 0.0
        %6877 = vmatpush1.msra.mxu0 0.0
        %6878 = vmatprep.subr.mxu0 0.0
        %6879 = vmatpush1.msra.mxu0 0.0
        %6880 = vmatprep.subr.mxu0 0.0
        %6881 = vmatpush1.msra.mxu0 0.0
        %6882 = vmatprep.subr.mxu0 0.0
        %6883 = vmatpush1.msra.mxu0 0.0
        %6884 = vmatprep.subr.mxu0 0.0
        %6885 = vmatpush1.msra.mxu0 0.0
        %6886 = vmatprep.subr.mxu0 0.0
        %6887 = vmatpush1.msra.mxu0 0.0
        %6888 = vmatprep.subr.mxu0 0.0
        %6889 = vmatpush1.msra.mxu0 0.0
        %6890 = vmatprep.subr.mxu0 0.0
        %6891 = vmatpush1.msra.mxu0 0.0
        %6892 = vmatprep.subr.mxu0 0.0
        %6893 = vmatpush1.msra.mxu0 0.0
        %6894 = vmatprep.subr.mxu0 0.0
        %6895 = vmatpush1.msra.mxu0 0.0
        %6896 = vmatprep.subr.mxu0 0.0
        %6897 = vmatpush1.msra.mxu0 0.0
        %6898 = vmatprep.subr.mxu0 0.0
        %6899 = vmatpush1.msra.mxu0 0.0
        %6900 = vmatprep.subr.mxu0 0.0
        %6901 = vmatpush1.msra.mxu0 0.0
        %6902 = vmatprep.subr.mxu0 0.0
        %6903 = vmatpush1.msra.mxu0 0.0
        %6904 = vmatprep.subr.mxu0 0.0
        %6905 = vmatpush1.msra.mxu0 0.0
        %6906 = vmatprep.subr.mxu0 0.0
        %6907 = vmatpush1.msra.mxu0 0.0
        %6908 = vmatprep.subr.mxu0 0.0
        %6909 = vmatpush1.msra.mxu0 0.0
        %6910 = vmatprep.subr.mxu0 0.0
        %6911 = vmatpush1.msra.mxu0 0.0
        %6912 = vmatprep.subr.mxu0 0.0
        %6913 = vmatpush1.msra.mxu0 0.0
        %6914 = vmatprep.subr.mxu0 0.0
        %6915 = vmatpush1.msra.mxu0 0.0
        %6916 = vmatprep.subr.mxu0 0.0
        %6917 = vmatpush1.msra.mxu0 0.0
        %6918 = vmatprep.subr.mxu0 0.0
        %6919 = vmatpush1.msra.mxu0 0.0
        %6920 = vmatprep.subr.mxu0 0.0
        %6921 = vmatpush1.msra.mxu0 0.0
        %6922 = vmatprep.subr.mxu0 0.0
        %6923 = vmatpush1.msra.mxu0 0.0
        %6924 = vmatprep.subr.mxu0 0.0
        %6925 = vmatpush1.msra.mxu0 0.0
        %6926 = vmatprep.subr.mxu0 0.0
        %6927 = vmatpush1.msra.mxu0 0.0
        %6928 = vmatprep.subr.mxu0 0.0
        %6929 = vmatpush1.msra.mxu0 0.0
        %6930 = vmatprep.subr.mxu0 0.0
        %6931 = vmatpush1.msra.mxu0 0.0
        %6932 = vmatprep.subr.mxu0 0.0
        %6933 = vmatpush1.msra.mxu0 0.0
        %6934 = vmatprep.mubr.f32.mxu0 0.0
        %6935 = vmatmul.mubr.f32.gmra.mrb[0].mxu0 %v6862
        %v6936 = vpop.f32.mrb[0].mxu0
        %v6937 = vadd.f32 0.0, %v6936
        %v6938 = vpop.f32.mrb[0].mxu0
        %v6939 = vadd.f32 0.0, %v6938
        %6940 = vdwg.mxu0
        %6941 = vmatprep.subr.mxu0 0.0
        %6942 = vmatpush1.msra.mxu0 %v6868
        %6943 = vmatprep.subr.mxu0 0.0
        %6944 = vmatpush1.msra.mxu0 0.0
        %6945 = vmatprep.subr.mxu0 0.0
        %6946 = vmatpush1.msra.mxu0 0.0
        %6947 = vmatprep.subr.mxu0 0.0
        %6948 = vmatpush1.msra.mxu0 0.0
        %6949 = vmatprep.subr.mxu0 0.0
        %6950 = vmatpush1.msra.mxu0 0.0
        %6951 = vmatprep.subr.mxu0 0.0
        %6952 = vmatpush1.msra.mxu0 0.0
        %6953 = vmatprep.subr.mxu0 0.0
        %6954 = vmatpush1.msra.mxu0 0.0
        %6955 = vmatprep.subr.mxu0 0.0
        %6956 = vmatpush1.msra.mxu0 0.0
        %6957 = vmatprep.subr.mxu0 0.0
        %6958 = vmatpush1.msra.mxu0 0.0
        %6959 = vmatprep.subr.mxu0 0.0
        %6960 = vmatpush1.msra.mxu0 0.0
        %6961 = vmatprep.subr.mxu0 0.0
        %6962 = vmatpush1.msra.mxu0 0.0
        %6963 = vmatprep.subr.mxu0 0.0
        %6964 = vmatpush1.msra.mxu0 0.0
        %6965 = vmatprep.subr.mxu0 0.0
        %6966 = vmatpush1.msra.mxu0 0.0
        %6967 = vmatprep.subr.mxu0 0.0
        %6968 = vmatpush1.msra.mxu0 0.0
        %6969 = vmatprep.subr.mxu0 0.0
        %6970 = vmatpush1.msra.mxu0 0.0
        %6971 = vmatprep.subr.mxu0 0.0
        %6972 = vmatpush1.msra.mxu0 0.0
        %6973 = vmatprep.subr.mxu0 0.0
        %6974 = vmatpush1.msra.mxu0 0.0
        %6975 = vmatprep.subr.mxu0 0.0
        %6976 = vmatpush1.msra.mxu0 0.0
        %6977 = vmatprep.subr.mxu0 0.0
        %6978 = vmatpush1.msra.mxu0 0.0
        %6979 = vmatprep.subr.mxu0 0.0
        %6980 = vmatpush1.msra.mxu0 0.0
        %6981 = vmatprep.subr.mxu0 0.0
        %6982 = vmatpush1.msra.mxu0 0.0
        %6983 = vmatprep.subr.mxu0 0.0
        %6984 = vmatpush1.msra.mxu0 0.0
        %6985 = vmatprep.subr.mxu0 0.0
        %6986 = vmatpush1.msra.mxu0 0.0
        %6987 = vmatprep.subr.mxu0 0.0
        %6988 = vmatpush1.msra.mxu0 0.0
        %6989 = vmatprep.subr.mxu0 0.0
        %6990 = vmatpush1.msra.mxu0 0.0
        %6991 = vmatprep.subr.mxu0 0.0
        %6992 = vmatpush1.msra.mxu0 0.0
        %6993 = vmatprep.subr.mxu0 0.0
        %6994 = vmatpush1.msra.mxu0 0.0
        %6995 = vmatprep.subr.mxu0 0.0
        %6996 = vmatpush1.msra.mxu0 0.0
        %6997 = vmatprep.subr.mxu0 0.0
        %6998 = vmatpush1.msra.mxu0 0.0
        %6999 = vmatprep.subr.mxu0 0.0
        %7000 = vmatpush1.msra.mxu0 0.0
        %7001 = vmatprep.subr.mxu0 0.0
        %7002 = vmatpush1.msra.mxu0 0.0
        %7003 = vmatprep.subr.mxu0 0.0
        %7004 = vmatpush1.msra.mxu0 0.0
        %7005 = vmatprep.mubr.f32.mxu0 0.0
        %7006 = vmatmul.mubr.f32.gmra.mrb[0].mxu0 %v6862
        %v7007 = vpop.f32.mrb[0].mxu0
        %v7008 = vadd.f32 0.0, %v7007
        %v7009 = vpop.f32.mrb[0].mxu0
        %7010 = vdwg.mxu0
        %v7011 = vadd.f32 %v6838, %v6937
        %v7012 = vadd.f32 %v6839, %v6939
        %v7013 = vadd.f32 %v6840, %v7008
        %v7014 = vld [vmem:[%s168] sm:$0xff]
        %v7015 = vld [vmem:[%s168 + $0x8] sm:$0xff]
        %s7016 = scalar_lea.vmem %s0, 320
        %v7017 = vld [vmem:[%s7016] sm:$0x3f]
        %v7020 = vcombine.high %v7014, %v7014
        %v7021 = vcombine.high %v7015, %v7015
        %7022 = vrot.lane.b32.xlu0 %v7014, 13
        %v7023 = vpop.permute.xlu0 %7022
        %7024 = vrot.lane.b32.xlu0 %v7020, 13
        %v7025 = vpop.permute.xlu0 %7024
        %7026 = vrot.lane.b32.xlu0 %v7015, 13
        %v7027 = vpop.permute.xlu0 %7026
        %7028 = vrot.lane.b32.xlu0 %v7021, 13
        %v7029 = vpop.permute.xlu0 %7028
        %vm7030 = vcmask 105472
        %v7031 = vsel %vm7030, %v7023, %v7025
        %v7032 = vsel %vm7030, %v7025, %v7027
        %v7033 = vsel %vm7030, %v7027, %v7029
        %v7035 = vsel %vm186, %v7017, 0
        %v7037 = vsel %vm190, %v7031, 0
        %v7039 = vsel %vm190, %v7032, 0
        %v7041 = vsel %vm190, %v7033, 0
        %7043 = vmatprep.subr.mxu0 %v7039
        %7044 = vmatpush1.msra.mxu0 %v7037
        %7045 = vmatprep.subr.mxu0 0.0
        %7046 = vmatpush1.msra.mxu0 0.0
        %7047 = vmatprep.subr.mxu0 0.0
        %7048 = vmatpush1.msra.mxu0 0.0
        %7049 = vmatprep.subr.mxu0 0.0
        %7050 = vmatpush1.msra.mxu0 0.0
        %7051 = vmatprep.subr.mxu0 0.0
        %7052 = vmatpush1.msra.mxu0 0.0
        %7053 = vmatprep.subr.mxu0 0.0
        %7054 = vmatpush1.msra.mxu0 0.0
        %7055 = vmatprep.subr.mxu0 0.0
        %7056 = vmatpush1.msra.mxu0 0.0
        %7057 = vmatprep.subr.mxu0 0.0
        %7058 = vmatpush1.msra.mxu0 0.0
        %7059 = vmatprep.subr.mxu0 0.0
        %7060 = vmatpush1.msra.mxu0 0.0
        %7061 = vmatprep.subr.mxu0 0.0
        %7062 = vmatpush1.msra.mxu0 0.0
        %7063 = vmatprep.subr.mxu0 0.0
        %7064 = vmatpush1.msra.mxu0 0.0
        %7065 = vmatprep.subr.mxu0 0.0
        %7066 = vmatpush1.msra.mxu0 0.0
        %7067 = vmatprep.subr.mxu0 0.0
        %7068 = vmatpush1.msra.mxu0 0.0
        %7069 = vmatprep.subr.mxu0 0.0
        %7070 = vmatpush1.msra.mxu0 0.0
        %7071 = vmatprep.subr.mxu0 0.0
        %7072 = vmatpush1.msra.mxu0 0.0
        %7073 = vmatprep.subr.mxu0 0.0
        %7074 = vmatpush1.msra.mxu0 0.0
        %7075 = vmatprep.subr.mxu0 0.0
        %7076 = vmatpush1.msra.mxu0 0.0
        %7077 = vmatprep.subr.mxu0 0.0
        %7078 = vmatpush1.msra.mxu0 0.0
        %7079 = vmatprep.subr.mxu0 0.0
        %7080 = vmatpush1.msra.mxu0 0.0
        %7081 = vmatprep.subr.mxu0 0.0
        %7082 = vmatpush1.msra.mxu0 0.0
        %7083 = vmatprep.subr.mxu0 0.0
        %7084 = vmatpush1.msra.mxu0 0.0
        %7085 = vmatprep.subr.mxu0 0.0
        %7086 = vmatpush1.msra.mxu0 0.0
        %7087 = vmatprep.subr.mxu0 0.0
        %7088 = vmatpush1.msra.mxu0 0.0
        %7089 = vmatprep.subr.mxu0 0.0
        %7090 = vmatpush1.msra.mxu0 0.0
        %7091 = vmatprep.subr.mxu0 0.0
        %7092 = vmatpush1.msra.mxu0 0.0
        %7093 = vmatprep.subr.mxu0 0.0
        %7094 = vmatpush1.msra.mxu0 0.0
        %7095 = vmatprep.subr.mxu0 0.0
        %7096 = vmatpush1.msra.mxu0 0.0
        %7097 = vmatprep.subr.mxu0 0.0
        %7098 = vmatpush1.msra.mxu0 0.0
        %7099 = vmatprep.subr.mxu0 0.0
        %7100 = vmatpush1.msra.mxu0 0.0
        %7101 = vmatprep.subr.mxu0 0.0
        %7102 = vmatpush1.msra.mxu0 0.0
        %7103 = vmatprep.subr.mxu0 0.0
        %7104 = vmatpush1.msra.mxu0 0.0
        %7105 = vmatprep.subr.mxu0 0.0
        %7106 = vmatpush1.msra.mxu0 0.0
        %7107 = vmatprep.mubr.f32.mxu0 0.0
        %7108 = vmatmul.mubr.f32.gmra.mrb[0].mxu0 %v7035
        %v7109 = vpop.f32.mrb[0].mxu0
        %v7110 = vadd.f32 0.0, %v7109
        %v7111 = vpop.f32.mrb[0].mxu0
        %v7112 = vadd.f32 0.0, %v7111
        %7113 = vdwg.mxu0
        %7114 = vmatprep.subr.mxu0 0.0
        %7115 = vmatpush1.msra.mxu0 %v7041
        %7116 = vmatprep.subr.mxu0 0.0
        %7117 = vmatpush1.msra.mxu0 0.0
        %7118 = vmatprep.subr.mxu0 0.0
        %7119 = vmatpush1.msra.mxu0 0.0
        %7120 = vmatprep.subr.mxu0 0.0
        %7121 = vmatpush1.msra.mxu0 0.0
        %7122 = vmatprep.subr.mxu0 0.0
        %7123 = vmatpush1.msra.mxu0 0.0
        %7124 = vmatprep.subr.mxu0 0.0
        %7125 = vmatpush1.msra.mxu0 0.0
        %7126 = vmatprep.subr.mxu0 0.0
        %7127 = vmatpush1.msra.mxu0 0.0
        %7128 = vmatprep.subr.mxu0 0.0
        %7129 = vmatpush1.msra.mxu0 0.0
        %7130 = vmatprep.subr.mxu0 0.0
        %7131 = vmatpush1.msra.mxu0 0.0
        %7132 = vmatprep.subr.mxu0 0.0
        %7133 = vmatpush1.msra.mxu0 0.0
        %7134 = vmatprep.subr.mxu0 0.0
        %7135 = vmatpush1.msra.mxu0 0.0
        %7136 = vmatprep.subr.mxu0 0.0
        %7137 = vmatpush1.msra.mxu0 0.0
        %7138 = vmatprep.subr.mxu0 0.0
        %7139 = vmatpush1.msra.mxu0 0.0
        %7140 = vmatprep.subr.mxu0 0.0
        %7141 = vmatpush1.msra.mxu0 0.0
        %7142 = vmatprep.subr.mxu0 0.0
        %7143 = vmatpush1.msra.mxu0 0.0
        %7144 = vmatprep.subr.mxu0 0.0
        %7145 = vmatpush1.msra.mxu0 0.0
        %7146 = vmatprep.subr.mxu0 0.0
        %7147 = vmatpush1.msra.mxu0 0.0
        %7148 = vmatprep.subr.mxu0 0.0
        %7149 = vmatpush1.msra.mxu0 0.0
        %7150 = vmatprep.subr.mxu0 0.0
        %7151 = vmatpush1.msra.mxu0 0.0
        %7152 = vmatprep.subr.mxu0 0.0
        %7153 = vmatpush1.msra.mxu0 0.0
        %7154 = vmatprep.subr.mxu0 0.0
        %7155 = vmatpush1.msra.mxu0 0.0
        %7156 = vmatprep.subr.mxu0 0.0
        %7157 = vmatpush1.msra.mxu0 0.0
        %7158 = vmatprep.subr.mxu0 0.0
        %7159 = vmatpush1.msra.mxu0 0.0
        %7160 = vmatprep.subr.mxu0 0.0
        %7161 = vmatpush1.msra.mxu0 0.0
        %7162 = vmatprep.subr.mxu0 0.0
        %7163 = vmatpush1.msra.mxu0 0.0
        %7164 = vmatprep.subr.mxu0 0.0
        %7165 = vmatpush1.msra.mxu0 0.0
        %7166 = vmatprep.subr.mxu0 0.0
        %7167 = vmatpush1.msra.mxu0 0.0
        %7168 = vmatprep.subr.mxu0 0.0
        %7169 = vmatpush1.msra.mxu0 0.0
        %7170 = vmatprep.subr.mxu0 0.0
        %7171 = vmatpush1.msra.mxu0 0.0
        %7172 = vmatprep.subr.mxu0 0.0
        %7173 = vmatpush1.msra.mxu0 0.0
        %7174 = vmatprep.subr.mxu0 0.0
        %7175 = vmatpush1.msra.mxu0 0.0
        %7176 = vmatprep.subr.mxu0 0.0
        %7177 = vmatpush1.msra.mxu0 0.0
        %7178 = vmatprep.mubr.f32.mxu0 0.0
        %7179 = vmatmul.mubr.f32.gmra.mrb[0].mxu0 %v7035
        %v7180 = vpop.f32.mrb[0].mxu0
        %v7181 = vadd.f32 0.0, %v7180
        %v7182 = vpop.f32.mrb[0].mxu0
        %7183 = vdwg.mxu0
        %v7184 = vadd.f32 %v7011, %v7110
        %v7185 = vadd.f32 %v7012, %v7112
        %v7186 = vadd.f32 %v7013, %v7181
        %v7187 = vld [vmem:[%s168] sm:$0xff]
        %v7188 = vld [vmem:[%s168 + $0x8] sm:$0xff]
        %s7189 = scalar_lea.vmem %s0, 328
        %v7190 = vld [vmem:[%s7189] sm:$0x3f]
        %v7193 = vcombine.high %v7187, %v7187
        %v7194 = vcombine.high %v7188, %v7188
        %7195 = vrot.lane.b32.xlu0 %v7187, 12
        %v7196 = vpop.permute.xlu0 %7195
        %7197 = vrot.lane.b32.xlu0 %v7193, 12
        %v7198 = vpop.permute.xlu0 %7197
        %7199 = vrot.lane.b32.xlu0 %v7188, 12
        %v7200 = vpop.permute.xlu0 %7199
        %7201 = vrot.lane.b32.xlu0 %v7194, 12
        %v7202 = vpop.permute.xlu0 %7201
        %vm7203 = vcmask 97280
        %v7204 = vsel %vm7203, %v7196, %v7198
        %v7205 = vsel %vm7203, %v7198, %v7200
        %v7206 = vsel %vm7203, %v7200, %v7202
        %v7208 = vsel %vm186, %v7190, 0
        %v7210 = vsel %vm190, %v7204, 0
        %v7212 = vsel %vm190, %v7205, 0
        %v7214 = vsel %vm190, %v7206, 0
        %7216 = vmatprep.subr.mxu0 %v7212
        %7217 = vmatpush1.msra.mxu0 %v7210
        %7218 = vmatprep.subr.mxu0 0.0
        %7219 = vmatpush1.msra.mxu0 0.0
        %7220 = vmatprep.subr.mxu0 0.0
        %7221 = vmatpush1.msra.mxu0 0.0
        %7222 = vmatprep.subr.mxu0 0.0
        %7223 = vmatpush1.msra.mxu0 0.0
        %7224 = vmatprep.subr.mxu0 0.0
        %7225 = vmatpush1.msra.mxu0 0.0
        %7226 = vmatprep.subr.mxu0 0.0
        %7227 = vmatpush1.msra.mxu0 0.0
        %7228 = vmatprep.subr.mxu0 0.0
        %7229 = vmatpush1.msra.mxu0 0.0
        %7230 = vmatprep.subr.mxu0 0.0
        %7231 = vmatpush1.msra.mxu0 0.0
        %7232 = vmatprep.subr.mxu0 0.0
        %7233 = vmatpush1.msra.mxu0 0.0
        %7234 = vmatprep.subr.mxu0 0.0
        %7235 = vmatpush1.msra.mxu0 0.0
        %7236 = vmatprep.subr.mxu0 0.0
        %7237 = vmatpush1.msra.mxu0 0.0
        %7238 = vmatprep.subr.mxu0 0.0
        %7239 = vmatpush1.msra.mxu0 0.0
        %7240 = vmatprep.subr.mxu0 0.0
        %7241 = vmatpush1.msra.mxu0 0.0
        %7242 = vmatprep.subr.mxu0 0.0
        %7243 = vmatpush1.msra.mxu0 0.0
        %7244 = vmatprep.subr.mxu0 0.0
        %7245 = vmatpush1.msra.mxu0 0.0
        %7246 = vmatprep.subr.mxu0 0.0
        %7247 = vmatpush1.msra.mxu0 0.0
        %7248 = vmatprep.subr.mxu0 0.0
        %7249 = vmatpush1.msra.mxu0 0.0
        %7250 = vmatprep.subr.mxu0 0.0
        %7251 = vmatpush1.msra.mxu0 0.0
        %7252 = vmatprep.subr.mxu0 0.0
        %7253 = vmatpush1.msra.mxu0 0.0
        %7254 = vmatprep.subr.mxu0 0.0
        %7255 = vmatpush1.msra.mxu0 0.0
        %7256 = vmatprep.subr.mxu0 0.0
        %7257 = vmatpush1.msra.mxu0 0.0
        %7258 = vmatprep.subr.mxu0 0.0
        %7259 = vmatpush1.msra.mxu0 0.0
        %7260 = vmatprep.subr.mxu0 0.0
        %7261 = vmatpush1.msra.mxu0 0.0
        %7262 = vmatprep.subr.mxu0 0.0
        %7263 = vmatpush1.msra.mxu0 0.0
        %7264 = vmatprep.subr.mxu0 0.0
        %7265 = vmatpush1.msra.mxu0 0.0
        %7266 = vmatprep.subr.mxu0 0.0
        %7267 = vmatpush1.msra.mxu0 0.0
        %7268 = vmatprep.subr.mxu0 0.0
        %7269 = vmatpush1.msra.mxu0 0.0
        %7270 = vmatprep.subr.mxu0 0.0
        %7271 = vmatpush1.msra.mxu0 0.0
        %7272 = vmatprep.subr.mxu0 0.0
        %7273 = vmatpush1.msra.mxu0 0.0
        %7274 = vmatprep.subr.mxu0 0.0
        %7275 = vmatpush1.msra.mxu0 0.0
        %7276 = vmatprep.subr.mxu0 0.0
        %7277 = vmatpush1.msra.mxu0 0.0
        %7278 = vmatprep.subr.mxu0 0.0
        %7279 = vmatpush1.msra.mxu0 0.0
        %7280 = vmatprep.mubr.f32.mxu0 0.0
        %7281 = vmatmul.mubr.f32.gmra.mrb[0].mxu0 %v7208
        %v7282 = vpop.f32.mrb[0].mxu0
        %v7283 = vadd.f32 0.0, %v7282
        %v7284 = vpop.f32.mrb[0].mxu0
        %v7285 = vadd.f32 0.0, %v7284
        %7286 = vdwg.mxu0
        %7287 = vmatprep.subr.mxu0 0.0
        %7288 = vmatpush1.msra.mxu0 %v7214
        %7289 = vmatprep.subr.mxu0 0.0
        %7290 = vmatpush1.msra.mxu0 0.0
        %7291 = vmatprep.subr.mxu0 0.0
        %7292 = vmatpush1.msra.mxu0 0.0
        %7293 = vmatprep.subr.mxu0 0.0
        %7294 = vmatpush1.msra.mxu0 0.0
        %7295 = vmatprep.subr.mxu0 0.0
        %7296 = vmatpush1.msra.mxu0 0.0
        %7297 = vmatprep.subr.mxu0 0.0
        %7298 = vmatpush1.msra.mxu0 0.0
        %7299 = vmatprep.subr.mxu0 0.0
        %7300 = vmatpush1.msra.mxu0 0.0
        %7301 = vmatprep.subr.mxu0 0.0
        %7302 = vmatpush1.msra.mxu0 0.0
        %7303 = vmatprep.subr.mxu0 0.0
        %7304 = vmatpush1.msra.mxu0 0.0
        %7305 = vmatprep.subr.mxu0 0.0
        %7306 = vmatpush1.msra.mxu0 0.0
        %7307 = vmatprep.subr.mxu0 0.0
        %7308 = vmatpush1.msra.mxu0 0.0
        %7309 = vmatprep.subr.mxu0 0.0
        %7310 = vmatpush1.msra.mxu0 0.0
        %7311 = vmatprep.subr.mxu0 0.0
        %7312 = vmatpush1.msra.mxu0 0.0
        %7313 = vmatprep.subr.mxu0 0.0
        %7314 = vmatpush1.msra.mxu0 0.0
        %7315 = vmatprep.subr.mxu0 0.0
        %7316 = vmatpush1.msra.mxu0 0.0
        %7317 = vmatprep.subr.mxu0 0.0
        %7318 = vmatpush1.msra.mxu0 0.0
        %7319 = vmatprep.subr.mxu0 0.0
        %7320 = vmatpush1.msra.mxu0 0.0
        %7321 = vmatprep.subr.mxu0 0.0
        %7322 = vmatpush1.msra.mxu0 0.0
        %7323 = vmatprep.subr.mxu0 0.0
        %7324 = vmatpush1.msra.mxu0 0.0
        %7325 = vmatprep.subr.mxu0 0.0
        %7326 = vmatpush1.msra.mxu0 0.0
        %7327 = vmatprep.subr.mxu0 0.0
        %7328 = vmatpush1.msra.mxu0 0.0
        %7329 = vmatprep.subr.mxu0 0.0
        %7330 = vmatpush1.msra.mxu0 0.0
        %7331 = vmatprep.subr.mxu0 0.0
        %7332 = vmatpush1.msra.mxu0 0.0
        %7333 = vmatprep.subr.mxu0 0.0
        %7334 = vmatpush1.msra.mxu0 0.0
        %7335 = vmatprep.subr.mxu0 0.0
        %7336 = vmatpush1.msra.mxu0 0.0
        %7337 = vmatprep.subr.mxu0 0.0
        %7338 = vmatpush1.msra.mxu0 0.0
        %7339 = vmatprep.subr.mxu0 0.0
        %7340 = vmatpush1.msra.mxu0 0.0
        %7341 = vmatprep.subr.mxu0 0.0
        %7342 = vmatpush1.msra.mxu0 0.0
        %7343 = vmatprep.subr.mxu0 0.0
        %7344 = vmatpush1.msra.mxu0 0.0
        %7345 = vmatprep.subr.mxu0 0.0
        %7346 = vmatpush1.msra.mxu0 0.0
        %7347 = vmatprep.subr.mxu0 0.0
        %7348 = vmatpush1.msra.mxu0 0.0
        %7349 = vmatprep.subr.mxu0 0.0
        %7350 = vmatpush1.msra.mxu0 0.0
        %7351 = vmatprep.mubr.f32.mxu0 0.0
        %7352 = vmatmul.mubr.f32.gmra.mrb[0].mxu0 %v7208
        %v7353 = vpop.f32.mrb[0].mxu0
        %v7354 = vadd.f32 0.0, %v7353
        %v7355 = vpop.f32.mrb[0].mxu0
        %7356 = vdwg.mxu0
        %v7357 = vadd.f32 %v7184, %v7283
        %v7358 = vadd.f32 %v7185, %v7285
        %v7359 = vadd.f32 %v7186, %v7354
        %v7360 = vld [vmem:[%s168 + $0x4] sm:$0xff]
        %v7361 = vld [vmem:[%s168 + $0xc] sm:$0xf]
        %s7362 = scalar_lea.vmem %s0, 336
        %v7363 = vld [vmem:[%s7362] sm:$0x3f]
        %v7366 = vcombine.high %v7360, %v7360
        %7367 = vrot.lane.b32.xlu0 %v7360, 124
        %v7368 = vpop.permute.xlu0 %7367
        %7369 = vrot.lane.b32.xlu0 %v7366, 124
        %v7370 = vpop.permute.xlu0 %7369
        %7371 = vrot.lane.b32.xlu0 %v7361, 124
        %v7372 = vpop.permute.xlu0 %7371
        %v7373 = vsel %vm839, %v7368, %v7370
        %v7374 = vsel %vm839, %v7370, %v7372
        %v7376 = vsel %vm186, %v7363, 0
        %v7378 = vsel %vm190, %v7373, 0
        %v7380 = vsel %vm190, %v7374, 0
        %v7382 = vsel %vm190, %v7372, 0
        %7384 = vmatprep.subr.mxu0 %v7380
        %7385 = vmatpush1.msra.mxu0 %v7378
        %7386 = vmatprep.subr.mxu0 0.0
        %7387 = vmatpush1.msra.mxu0 0.0
        %7388 = vmatprep.subr.mxu0 0.0
        %7389 = vmatpush1.msra.mxu0 0.0
        %7390 = vmatprep.subr.mxu0 0.0
        %7391 = vmatpush1.msra.mxu0 0.0
        %7392 = vmatprep.subr.mxu0 0.0
        %7393 = vmatpush1.msra.mxu0 0.0
        %7394 = vmatprep.subr.mxu0 0.0
        %7395 = vmatpush1.msra.mxu0 0.0
        %7396 = vmatprep.subr.mxu0 0.0
        %7397 = vmatpush1.msra.mxu0 0.0
        %7398 = vmatprep.subr.mxu0 0.0
        %7399 = vmatpush1.msra.mxu0 0.0
        %7400 = vmatprep.subr.mxu0 0.0
        %7401 = vmatpush1.msra.mxu0 0.0
        %7402 = vmatprep.subr.mxu0 0.0
        %7403 = vmatpush1.msra.mxu0 0.0
        %7404 = vmatprep.subr.mxu0 0.0
        %7405 = vmatpush1.msra.mxu0 0.0
        %7406 = vmatprep.subr.mxu0 0.0
        %7407 = vmatpush1.msra.mxu0 0.0
        %7408 = vmatprep.subr.mxu0 0.0
        %7409 = vmatpush1.msra.mxu0 0.0
        %7410 = vmatprep.subr.mxu0 0.0
        %7411 = vmatpush1.msra.mxu0 0.0
        %7412 = vmatprep.subr.mxu0 0.0
        %7413 = vmatpush1.msra.mxu0 0.0
        %7414 = vmatprep.subr.mxu0 0.0
        %7415 = vmatpush1.msra.mxu0 0.0
        %7416 = vmatprep.subr.mxu0 0.0
        %7417 = vmatpush1.msra.mxu0 0.0
        %7418 = vmatprep.subr.mxu0 0.0
        %7419 = vmatpush1.msra.mxu0 0.0
        %7420 = vmatprep.subr.mxu0 0.0
        %7421 = vmatpush1.msra.mxu0 0.0
        %7422 = vmatprep.subr.mxu0 0.0
        %7423 = vmatpush1.msra.mxu0 0.0
        %7424 = vmatprep.subr.mxu0 0.0
        %7425 = vmatpush1.msra.mxu0 0.0
        %7426 = vmatprep.subr.mxu0 0.0
        %7427 = vmatpush1.msra.mxu0 0.0
        %7428 = vmatprep.subr.mxu0 0.0
        %7429 = vmatpush1.msra.mxu0 0.0
        %7430 = vmatprep.subr.mxu0 0.0
        %7431 = vmatpush1.msra.mxu0 0.0
        %7432 = vmatprep.subr.mxu0 0.0
        %7433 = vmatpush1.msra.mxu0 0.0
        %7434 = vmatprep.subr.mxu0 0.0
        %7435 = vmatpush1.msra.mxu0 0.0
        %7436 = vmatprep.subr.mxu0 0.0
        %7437 = vmatpush1.msra.mxu0 0.0
        %7438 = vmatprep.subr.mxu0 0.0
        %7439 = vmatpush1.msra.mxu0 0.0
        %7440 = vmatprep.subr.mxu0 0.0
        %7441 = vmatpush1.msra.mxu0 0.0
        %7442 = vmatprep.subr.mxu0 0.0
        %7443 = vmatpush1.msra.mxu0 0.0
        %7444 = vmatprep.subr.mxu0 0.0
        %7445 = vmatpush1.msra.mxu0 0.0
        %7446 = vmatprep.subr.mxu0 0.0
        %7447 = vmatpush1.msra.mxu0 0.0
        %7448 = vmatprep.mubr.f32.mxu0 0.0
        %7449 = vmatmul.mubr.f32.gmra.mrb[0].mxu0 %v7376
        %v7450 = vpop.f32.mrb[0].mxu0
        %v7451 = vadd.f32 0.0, %v7450
        %v7452 = vpop.f32.mrb[0].mxu0
        %v7453 = vadd.f32 0.0, %v7452
        %7454 = vdwg.mxu0
        %7455 = vmatprep.subr.mxu0 0.0
        %7456 = vmatpush1.msra.mxu0 %v7382
        %7457 = vmatprep.subr.mxu0 0.0
        %7458 = vmatpush1.msra.mxu0 0.0
        %7459 = vmatprep.subr.mxu0 0.0
        %7460 = vmatpush1.msra.mxu0 0.0
        %7461 = vmatprep.subr.mxu0 0.0
        %7462 = vmatpush1.msra.mxu0 0.0
        %7463 = vmatprep.subr.mxu0 0.0
        %7464 = vmatpush1.msra.mxu0 0.0
        %7465 = vmatprep.subr.mxu0 0.0
        %7466 = vmatpush1.msra.mxu0 0.0
        %7467 = vmatprep.subr.mxu0 0.0
        %7468 = vmatpush1.msra.mxu0 0.0
        %7469 = vmatprep.subr.mxu0 0.0
        %7470 = vmatpush1.msra.mxu0 0.0
        %7471 = vmatprep.subr.mxu0 0.0
        %7472 = vmatpush1.msra.mxu0 0.0
        %7473 = vmatprep.subr.mxu0 0.0
        %7474 = vmatpush1.msra.mxu0 0.0
        %7475 = vmatprep.subr.mxu0 0.0
        %7476 = vmatpush1.msra.mxu0 0.0
        %7477 = vmatprep.subr.mxu0 0.0
        %7478 = vmatpush1.msra.mxu0 0.0
        %7479 = vmatprep.subr.mxu0 0.0
        %7480 = vmatpush1.msra.mxu0 0.0
        %7481 = vmatprep.subr.mxu0 0.0
        %7482 = vmatpush1.msra.mxu0 0.0
        %7483 = vmatprep.subr.mxu0 0.0
        %7484 = vmatpush1.msra.mxu0 0.0
        %7485 = vmatprep.subr.mxu0 0.0
        %7486 = vmatpush1.msra.mxu0 0.0
        %7487 = vmatprep.subr.mxu0 0.0
        %7488 = vmatpush1.msra.mxu0 0.0
        %7489 = vmatprep.subr.mxu0 0.0
        %7490 = vmatpush1.msra.mxu0 0.0
        %7491 = vmatprep.subr.mxu0 0.0
        %7492 = vmatpush1.msra.mxu0 0.0
        %7493 = vmatprep.subr.mxu0 0.0
        %7494 = vmatpush1.msra.mxu0 0.0
        %7495 = vmatprep.subr.mxu0 0.0
        %7496 = vmatpush1.msra.mxu0 0.0
        %7497 = vmatprep.subr.mxu0 0.0
        %7498 = vmatpush1.msra.mxu0 0.0
        %7499 = vmatprep.subr.mxu0 0.0
        %7500 = vmatpush1.msra.mxu0 0.0
        %7501 = vmatprep.subr.mxu0 0.0
        %7502 = vmatpush1.msra.mxu0 0.0
        %7503 = vmatprep.subr.mxu0 0.0
        %7504 = vmatpush1.msra.mxu0 0.0
        %7505 = vmatprep.subr.mxu0 0.0
        %7506 = vmatpush1.msra.mxu0 0.0
        %7507 = vmatprep.subr.mxu0 0.0
        %7508 = vmatpush1.msra.mxu0 0.0
        %7509 = vmatprep.subr.mxu0 0.0
        %7510 = vmatpush1.msra.mxu0 0.0
        %7511 = vmatprep.subr.mxu0 0.0
        %7512 = vmatpush1.msra.mxu0 0.0
        %7513 = vmatprep.subr.mxu0 0.0
        %7514 = vmatpush1.msra.mxu0 0.0
        %7515 = vmatprep.subr.mxu0 0.0
        %7516 = vmatpush1.msra.mxu0 0.0
        %7517 = vmatprep.subr.mxu0 0.0
        %7518 = vmatpush1.msra.mxu0 0.0
        %7519 = vmatprep.mubr.f32.mxu0 0.0
        %7520 = vmatmul.mubr.f32.gmra.mrb[0].mxu0 %v7376
        %v7521 = vpop.f32.mrb[0].mxu0
        %v7522 = vadd.f32 0.0, %v7521
        %v7523 = vpop.f32.mrb[0].mxu0
        %7524 = vdwg.mxu0
        %v7525 = vadd.f32 %v7357, %v7451
        %v7526 = vadd.f32 %v7358, %v7453
        %v7527 = vadd.f32 %v7359, %v7522
        %v7528 = vld [vmem:[%s168 + $0x4] sm:$0xff]
        %v7529 = vld [vmem:[%s168 + $0xc] sm:$0xf]
        %s7530 = scalar_lea.vmem %s0, 344
        %v7531 = vld [vmem:[%s7530] sm:$0x3f]
        %v7534 = vcombine.high %v7528, %v7528
        %7535 = vrot.lane.b32.xlu0 %v7528, 123
        %v7536 = vpop.permute.xlu0 %7535
        %7537 = vrot.lane.b32.xlu0 %v7534, 123
        %v7538 = vpop.permute.xlu0 %7537
        %7539 = vrot.lane.b32.xlu0 %v7529, 123
        %v7540 = vpop.permute.xlu0 %7539
        %v7541 = vsel %vm1008, %v7536, %v7538
        %v7542 = vsel %vm1008, %v7538, %v7540
        %v7544 = vsel %vm186, %v7531, 0
        %v7546 = vsel %vm190, %v7541, 0
        %v7548 = vsel %vm190, %v7542, 0
        %v7550 = vsel %vm190, %v7540, 0
        %7552 = vmatprep.subr.mxu0 %v7548
        %7553 = vmatpush1.msra.mxu0 %v7546
        %7554 = vmatprep.subr.mxu0 0.0
        %7555 = vmatpush1.msra.mxu0 0.0
        %7556 = vmatprep.subr.mxu0 0.0
        %7557 = vmatpush1.msra.mxu0 0.0
        %7558 = vmatprep.subr.mxu0 0.0
        %7559 = vmatpush1.msra.mxu0 0.0
        %7560 = vmatprep.subr.mxu0 0.0
        %7561 = vmatpush1.msra.mxu0 0.0
        %7562 = vmatprep.subr.mxu0 0.0
        %7563 = vmatpush1.msra.mxu0 0.0
        %7564 = vmatprep.subr.mxu0 0.0
        %7565 = vmatpush1.msra.mxu0 0.0
        %7566 = vmatprep.subr.mxu0 0.0
        %7567 = vmatpush1.msra.mxu0 0.0
        %7568 = vmatprep.subr.mxu0 0.0
        %7569 = vmatpush1.msra.mxu0 0.0
        %7570 = vmatprep.subr.mxu0 0.0
        %7571 = vmatpush1.msra.mxu0 0.0
        %7572 = vmatprep.subr.mxu0 0.0
        %7573 = vmatpush1.msra.mxu0 0.0
        %7574 = vmatprep.subr.mxu0 0.0
        %7575 = vmatpush1.msra.mxu0 0.0
        %7576 = vmatprep.subr.mxu0 0.0
        %7577 = vmatpush1.msra.mxu0 0.0
        %7578 = vmatprep.subr.mxu0 0.0
        %7579 = vmatpush1.msra.mxu0 0.0
        %7580 = vmatprep.subr.mxu0 0.0
        %7581 = vmatpush1.msra.mxu0 0.0
        %7582 = vmatprep.subr.mxu0 0.0
        %7583 = vmatpush1.msra.mxu0 0.0
        %7584 = vmatprep.subr.mxu0 0.0
        %7585 = vmatpush1.msra.mxu0 0.0
        %7586 = vmatprep.subr.mxu0 0.0
        %7587 = vmatpush1.msra.mxu0 0.0
        %7588 = vmatprep.subr.mxu0 0.0
        %7589 = vmatpush1.msra.mxu0 0.0
        %7590 = vmatprep.subr.mxu0 0.0
        %7591 = vmatpush1.msra.mxu0 0.0
        %7592 = vmatprep.subr.mxu0 0.0
        %7593 = vmatpush1.msra.mxu0 0.0
        %7594 = vmatprep.subr.mxu0 0.0
        %7595 = vmatpush1.msra.mxu0 0.0
        %7596 = vmatprep.subr.mxu0 0.0
        %7597 = vmatpush1.msra.mxu0 0.0
        %7598 = vmatprep.subr.mxu0 0.0
        %7599 = vmatpush1.msra.mxu0 0.0
        %7600 = vmatprep.subr.mxu0 0.0
        %7601 = vmatpush1.msra.mxu0 0.0
        %7602 = vmatprep.subr.mxu0 0.0
        %7603 = vmatpush1.msra.mxu0 0.0
        %7604 = vmatprep.subr.mxu0 0.0
        %7605 = vmatpush1.msra.mxu0 0.0
        %7606 = vmatprep.subr.mxu0 0.0
        %7607 = vmatpush1.msra.mxu0 0.0
        %7608 = vmatprep.subr.mxu0 0.0
        %7609 = vmatpush1.msra.mxu0 0.0
        %7610 = vmatprep.subr.mxu0 0.0
        %7611 = vmatpush1.msra.mxu0 0.0
        %7612 = vmatprep.subr.mxu0 0.0
        %7613 = vmatpush1.msra.mxu0 0.0
        %7614 = vmatprep.subr.mxu0 0.0
        %7615 = vmatpush1.msra.mxu0 0.0
        %7616 = vmatprep.mubr.f32.mxu0 0.0
        %7617 = vmatmul.mubr.f32.gmra.mrb[0].mxu0 %v7544
        %v7618 = vpop.f32.mrb[0].mxu0
        %v7619 = vadd.f32 0.0, %v7618
        %v7620 = vpop.f32.mrb[0].mxu0
        %v7621 = vadd.f32 0.0, %v7620
        %7622 = vdwg.mxu0
        %7623 = vmatprep.subr.mxu0 0.0
        %7624 = vmatpush1.msra.mxu0 %v7550
        %7625 = vmatprep.subr.mxu0 0.0
        %7626 = vmatpush1.msra.mxu0 0.0
        %7627 = vmatprep.subr.mxu0 0.0
        %7628 = vmatpush1.msra.mxu0 0.0
        %7629 = vmatprep.subr.mxu0 0.0
        %7630 = vmatpush1.msra.mxu0 0.0
        %7631 = vmatprep.subr.mxu0 0.0
        %7632 = vmatpush1.msra.mxu0 0.0
        %7633 = vmatprep.subr.mxu0 0.0
        %7634 = vmatpush1.msra.mxu0 0.0
        %7635 = vmatprep.subr.mxu0 0.0
        %7636 = vmatpush1.msra.mxu0 0.0
        %7637 = vmatprep.subr.mxu0 0.0
        %7638 = vmatpush1.msra.mxu0 0.0
        %7639 = vmatprep.subr.mxu0 0.0
        %7640 = vmatpush1.msra.mxu0 0.0
        %7641 = vmatprep.subr.mxu0 0.0
        %7642 = vmatpush1.msra.mxu0 0.0
        %7643 = vmatprep.subr.mxu0 0.0
        %7644 = vmatpush1.msra.mxu0 0.0
        %7645 = vmatprep.subr.mxu0 0.0
        %7646 = vmatpush1.msra.mxu0 0.0
        %7647 = vmatprep.subr.mxu0 0.0
        %7648 = vmatpush1.msra.mxu0 0.0
        %7649 = vmatprep.subr.mxu0 0.0
        %7650 = vmatpush1.msra.mxu0 0.0
        %7651 = vmatprep.subr.mxu0 0.0
        %7652 = vmatpush1.msra.mxu0 0.0
        %7653 = vmatprep.subr.mxu0 0.0
        %7654 = vmatpush1.msra.mxu0 0.0
        %7655 = vmatprep.subr.mxu0 0.0
        %7656 = vmatpush1.msra.mxu0 0.0
        %7657 = vmatprep.subr.mxu0 0.0
        %7658 = vmatpush1.msra.mxu0 0.0
        %7659 = vmatprep.subr.mxu0 0.0
        %7660 = vmatpush1.msra.mxu0 0.0
        %7661 = vmatprep.subr.mxu0 0.0
        %7662 = vmatpush1.msra.mxu0 0.0
        %7663 = vmatprep.subr.mxu0 0.0
        %7664 = vmatpush1.msra.mxu0 0.0
        %7665 = vmatprep.subr.mxu0 0.0
        %7666 = vmatpush1.msra.mxu0 0.0
        %7667 = vmatprep.subr.mxu0 0.0
        %7668 = vmatpush1.msra.mxu0 0.0
        %7669 = vmatprep.subr.mxu0 0.0
        %7670 = vmatpush1.msra.mxu0 0.0
        %7671 = vmatprep.subr.mxu0 0.0
        %7672 = vmatpush1.msra.mxu0 0.0
        %7673 = vmatprep.subr.mxu0 0.0
        %7674 = vmatpush1.msra.mxu0 0.0
        %7675 = vmatprep.subr.mxu0 0.0
        %7676 = vmatpush1.msra.mxu0 0.0
        %7677 = vmatprep.subr.mxu0 0.0
        %7678 = vmatpush1.msra.mxu0 0.0
        %7679 = vmatprep.subr.mxu0 0.0
        %7680 = vmatpush1.msra.mxu0 0.0
        %7681 = vmatprep.subr.mxu0 0.0
        %7682 = vmatpush1.msra.mxu0 0.0
        %7683 = vmatprep.subr.mxu0 0.0
        %7684 = vmatpush1.msra.mxu0 0.0
        %7685 = vmatprep.subr.mxu0 0.0
        %7686 = vmatpush1.msra.mxu0 0.0
        %7687 = vmatprep.mubr.f32.mxu0 0.0
        %7688 = vmatmul.mubr.f32.gmra.mrb[0].mxu0 %v7544
        %v7689 = vpop.f32.mrb[0].mxu0
        %v7690 = vadd.f32 0.0, %v7689
        %v7691 = vpop.f32.mrb[0].mxu0
        %7692 = vdwg.mxu0
        %v7693 = vadd.f32 %v7525, %v7619
        %v7694 = vadd.f32 %v7526, %v7621
        %v7695 = vadd.f32 %v7527, %v7690
        %v7696 = vld [vmem:[%s168 + $0x4] sm:$0xff]
        %v7697 = vld [vmem:[%s168 + $0xc] sm:$0xf]
        %s7698 = scalar_lea.vmem %s0, 352
        %v7699 = vld [vmem:[%s7698] sm:$0x3f]
        %v7702 = vcombine.high %v7696, %v7696
        %7703 = vrot.lane.b32.xlu0 %v7696, 122
        %v7704 = vpop.permute.xlu0 %7703
        %7705 = vrot.lane.b32.xlu0 %v7702, 122
        %v7706 = vpop.permute.xlu0 %7705
        %7707 = vrot.lane.b32.xlu0 %v7697, 122
        %v7708 = vpop.permute.xlu0 %7707
        %v7709 = vsel %vm1177, %v7704, %v7706
        %v7710 = vsel %vm1177, %v7706, %v7708
        %v7712 = vsel %vm186, %v7699, 0
        %v7714 = vsel %vm190, %v7709, 0
        %v7716 = vsel %vm190, %v7710, 0
        %v7718 = vsel %vm190, %v7708, 0
        %7720 = vmatprep.subr.mxu0 %v7716
        %7721 = vmatpush1.msra.mxu0 %v7714
        %7722 = vmatprep.subr.mxu0 0.0
        %7723 = vmatpush1.msra.mxu0 0.0
        %7724 = vmatprep.subr.mxu0 0.0
        %7725 = vmatpush1.msra.mxu0 0.0
        %7726 = vmatprep.subr.mxu0 0.0
        %7727 = vmatpush1.msra.mxu0 0.0
        %7728 = vmatprep.subr.mxu0 0.0
        %7729 = vmatpush1.msra.mxu0 0.0
        %7730 = vmatprep.subr.mxu0 0.0
        %7731 = vmatpush1.msra.mxu0 0.0
        %7732 = vmatprep.subr.mxu0 0.0
        %7733 = vmatpush1.msra.mxu0 0.0
        %7734 = vmatprep.subr.mxu0 0.0
        %7735 = vmatpush1.msra.mxu0 0.0
        %7736 = vmatprep.subr.mxu0 0.0
        %7737 = vmatpush1.msra.mxu0 0.0
        %7738 = vmatprep.subr.mxu0 0.0
        %7739 = vmatpush1.msra.mxu0 0.0
        %7740 = vmatprep.subr.mxu0 0.0
        %7741 = vmatpush1.msra.mxu0 0.0
        %7742 = vmatprep.subr.mxu0 0.0
        %7743 = vmatpush1.msra.mxu0 0.0
        %7744 = vmatprep.subr.mxu0 0.0
        %7745 = vmatpush1.msra.mxu0 0.0
        %7746 = vmatprep.subr.mxu0 0.0
        %7747 = vmatpush1.msra.mxu0 0.0
        %7748 = vmatprep.subr.mxu0 0.0
        %7749 = vmatpush1.msra.mxu0 0.0
        %7750 = vmatprep.subr.mxu0 0.0
        %7751 = vmatpush1.msra.mxu0 0.0
        %7752 = vmatprep.subr.mxu0 0.0
        %7753 = vmatpush1.msra.mxu0 0.0
        %7754 = vmatprep.subr.mxu0 0.0
        %7755 = vmatpush1.msra.mxu0 0.0
        %7756 = vmatprep.subr.mxu0 0.0
        %7757 = vmatpush1.msra.mxu0 0.0
        %7758 = vmatprep.subr.mxu0 0.0
        %7759 = vmatpush1.msra.mxu0 0.0
        %7760 = vmatprep.subr.mxu0 0.0
        %7761 = vmatpush1.msra.mxu0 0.0
        %7762 = vmatprep.subr.mxu0 0.0
        %7763 = vmatpush1.msra.mxu0 0.0
        %7764 = vmatprep.subr.mxu0 0.0
        %7765 = vmatpush1.msra.mxu0 0.0
        %7766 = vmatprep.subr.mxu0 0.0
        %7767 = vmatpush1.msra.mxu0 0.0
        %7768 = vmatprep.subr.mxu0 0.0
        %7769 = vmatpush1.msra.mxu0 0.0
        %7770 = vmatprep.subr.mxu0 0.0
        %7771 = vmatpush1.msra.mxu0 0.0
        %7772 = vmatprep.subr.mxu0 0.0
        %7773 = vmatpush1.msra.mxu0 0.0
        %7774 = vmatprep.subr.mxu0 0.0
        %7775 = vmatpush1.msra.mxu0 0.0
        %7776 = vmatprep.subr.mxu0 0.0
        %7777 = vmatpush1.msra.mxu0 0.0
        %7778 = vmatprep.subr.mxu0 0.0
        %7779 = vmatpush1.msra.mxu0 0.0
        %7780 = vmatprep.subr.mxu0 0.0
        %7781 = vmatpush1.msra.mxu0 0.0
        %7782 = vmatprep.subr.mxu0 0.0
        %7783 = vmatpush1.msra.mxu0 0.0
        %7784 = vmatprep.mubr.f32.mxu0 0.0
        %7785 = vmatmul.mubr.f32.gmra.mrb[0].mxu0 %v7712
        %v7786 = vpop.f32.mrb[0].mxu0
        %v7787 = vadd.f32 0.0, %v7786
        %v7788 = vpop.f32.mrb[0].mxu0
        %v7789 = vadd.f32 0.0, %v7788
        %7790 = vdwg.mxu0
        %7791 = vmatprep.subr.mxu0 0.0
        %7792 = vmatpush1.msra.mxu0 %v7718
        %7793 = vmatprep.subr.mxu0 0.0
        %7794 = vmatpush1.msra.mxu0 0.0
        %7795 = vmatprep.subr.mxu0 0.0
        %7796 = vmatpush1.msra.mxu0 0.0
        %7797 = vmatprep.subr.mxu0 0.0
        %7798 = vmatpush1.msra.mxu0 0.0
        %7799 = vmatprep.subr.mxu0 0.0
        %7800 = vmatpush1.msra.mxu0 0.0
        %7801 = vmatprep.subr.mxu0 0.0
        %7802 = vmatpush1.msra.mxu0 0.0
        %7803 = vmatprep.subr.mxu0 0.0
        %7804 = vmatpush1.msra.mxu0 0.0
        %7805 = vmatprep.subr.mxu0 0.0
        %7806 = vmatpush1.msra.mxu0 0.0
        %7807 = vmatprep.subr.mxu0 0.0
        %7808 = vmatpush1.msra.mxu0 0.0
        %7809 = vmatprep.subr.mxu0 0.0
        %7810 = vmatpush1.msra.mxu0 0.0
        %7811 = vmatprep.subr.mxu0 0.0
        %7812 = vmatpush1.msra.mxu0 0.0
        %7813 = vmatprep.subr.mxu0 0.0
        %7814 = vmatpush1.msra.mxu0 0.0
        %7815 = vmatprep.subr.mxu0 0.0
        %7816 = vmatpush1.msra.mxu0 0.0
        %7817 = vmatprep.subr.mxu0 0.0
        %7818 = vmatpush1.msra.mxu0 0.0
        %7819 = vmatprep.subr.mxu0 0.0
        %7820 = vmatpush1.msra.mxu0 0.0
        %7821 = vmatprep.subr.mxu0 0.0
        %7822 = vmatpush1.msra.mxu0 0.0
        %7823 = vmatprep.subr.mxu0 0.0
        %7824 = vmatpush1.msra.mxu0 0.0
        %7825 = vmatprep.subr.mxu0 0.0
        %7826 = vmatpush1.msra.mxu0 0.0
        %7827 = vmatprep.subr.mxu0 0.0
        %7828 = vmatpush1.msra.mxu0 0.0
        %7829 = vmatprep.subr.mxu0 0.0
        %7830 = vmatpush1.msra.mxu0 0.0
        %7831 = vmatprep.subr.mxu0 0.0
        %7832 = vmatpush1.msra.mxu0 0.0
        %7833 = vmatprep.subr.mxu0 0.0
        %7834 = vmatpush1.msra.mxu0 0.0
        %7835 = vmatprep.subr.mxu0 0.0
        %7836 = vmatpush1.msra.mxu0 0.0
        %7837 = vmatprep.subr.mxu0 0.0
        %7838 = vmatpush1.msra.mxu0 0.0
        %7839 = vmatprep.subr.mxu0 0.0
        %7840 = vmatpush1.msra.mxu0 0.0
        %7841 = vmatprep.subr.mxu0 0.0
        %7842 = vmatpush1.msra.mxu0 0.0
        %7843 = vmatprep.subr.mxu0 0.0
        %7844 = vmatpush1.msra.mxu0 0.0
        %7845 = vmatprep.subr.mxu0 0.0
        %7846 = vmatpush1.msra.mxu0 0.0
        %7847 = vmatprep.subr.mxu0 0.0
        %7848 = vmatpush1.msra.mxu0 0.0
        %7849 = vmatprep.subr.mxu0 0.0
        %7850 = vmatpush1.msra.mxu0 0.0
        %7851 = vmatprep.subr.mxu0 0.0
        %7852 = vmatpush1.msra.mxu0 0.0
        %7853 = vmatprep.subr.mxu0 0.0
        %7854 = vmatpush1.msra.mxu0 0.0
        %7855 = vmatprep.mubr.f32.mxu0 0.0
        %7856 = vmatmul.mubr.f32.gmra.mrb[0].mxu0 %v7712
        %v7857 = vpop.f32.mrb[0].mxu0
        %v7858 = vadd.f32 0.0, %v7857
        %v7859 = vpop.f32.mrb[0].mxu0
        %7860 = vdwg.mxu0
        %v7861 = vadd.f32 %v7693, %v7787
        %v7862 = vadd.f32 %v7694, %v7789
        %v7863 = vadd.f32 %v7695, %v7858
        %v7864 = vld [vmem:[%s168 + $0x4] sm:$0xff]
        %v7865 = vld [vmem:[%s168 + $0xc] sm:$0xf]
        %s7866 = scalar_lea.vmem %s0, 360
        %v7867 = vld [vmem:[%s7866] sm:$0x3f]
        %v7870 = vcombine.high %v7864, %v7864
        %7871 = vrot.lane.b32.xlu0 %v7864, 121
        %v7872 = vpop.permute.xlu0 %7871
        %7873 = vrot.lane.b32.xlu0 %v7870, 121
        %v7874 = vpop.permute.xlu0 %7873
        %7875 = vrot.lane.b32.xlu0 %v7865, 121
        %v7876 = vpop.permute.xlu0 %7875
        %vm7877 = vcmask 990208
        %v7878 = vsel %vm7877, %v7872, %v7874
        %v7879 = vsel %vm7877, %v7874, %v7876
        %v7881 = vsel %vm186, %v7867, 0
        %v7883 = vsel %vm190, %v7878, 0
        %v7885 = vsel %vm190, %v7879, 0
        %v7887 = vsel %vm190, %v7876, 0
        %7889 = vmatprep.subr.mxu0 %v7885
        %7890 = vmatpush1.msra.mxu0 %v7883
        %7891 = vmatprep.subr.mxu0 0.0
        %7892 = vmatpush1.msra.mxu0 0.0
        %7893 = vmatprep.subr.mxu0 0.0
        %7894 = vmatpush1.msra.mxu0 0.0
        %7895 = vmatprep.subr.mxu0 0.0
        %7896 = vmatpush1.msra.mxu0 0.0
        %7897 = vmatprep.subr.mxu0 0.0
        %7898 = vmatpush1.msra.mxu0 0.0
        %7899 = vmatprep.subr.mxu0 0.0
        %7900 = vmatpush1.msra.mxu0 0.0
        %7901 = vmatprep.subr.mxu0 0.0
        %7902 = vmatpush1.msra.mxu0 0.0
        %7903 = vmatprep.subr.mxu0 0.0
        %7904 = vmatpush1.msra.mxu0 0.0
        %7905 = vmatprep.subr.mxu0 0.0
        %7906 = vmatpush1.msra.mxu0 0.0
        %7907 = vmatprep.subr.mxu0 0.0
        %7908 = vmatpush1.msra.mxu0 0.0
        %7909 = vmatprep.subr.mxu0 0.0
        %7910 = vmatpush1.msra.mxu0 0.0
        %7911 = vmatprep.subr.mxu0 0.0
        %7912 = vmatpush1.msra.mxu0 0.0
        %7913 = vmatprep.subr.mxu0 0.0
        %7914 = vmatpush1.msra.mxu0 0.0
        %7915 = vmatprep.subr.mxu0 0.0
        %7916 = vmatpush1.msra.mxu0 0.0
        %7917 = vmatprep.subr.mxu0 0.0
        %7918 = vmatpush1.msra.mxu0 0.0
        %7919 = vmatprep.subr.mxu0 0.0
        %7920 = vmatpush1.msra.mxu0 0.0
        %7921 = vmatprep.subr.mxu0 0.0
        %7922 = vmatpush1.msra.mxu0 0.0
        %7923 = vmatprep.subr.mxu0 0.0
        %7924 = vmatpush1.msra.mxu0 0.0
        %7925 = vmatprep.subr.mxu0 0.0
        %7926 = vmatpush1.msra.mxu0 0.0
        %7927 = vmatprep.subr.mxu0 0.0
        %7928 = vmatpush1.msra.mxu0 0.0
        %7929 = vmatprep.subr.mxu0 0.0
        %7930 = vmatpush1.msra.mxu0 0.0
        %7931 = vmatprep.subr.mxu0 0.0
        %7932 = vmatpush1.msra.mxu0 0.0
        %7933 = vmatprep.subr.mxu0 0.0
        %7934 = vmatpush1.msra.mxu0 0.0
        %7935 = vmatprep.subr.mxu0 0.0
        %7936 = vmatpush1.msra.mxu0 0.0
        %7937 = vmatprep.subr.mxu0 0.0
        %7938 = vmatpush1.msra.mxu0 0.0
        %7939 = vmatprep.subr.mxu0 0.0
        %7940 = vmatpush1.msra.mxu0 0.0
        %7941 = vmatprep.subr.mxu0 0.0
        %7942 = vmatpush1.msra.mxu0 0.0
        %7943 = vmatprep.subr.mxu0 0.0
        %7944 = vmatpush1.msra.mxu0 0.0
        %7945 = vmatprep.subr.mxu0 0.0
        %7946 = vmatpush1.msra.mxu0 0.0
        %7947 = vmatprep.subr.mxu0 0.0
        %7948 = vmatpush1.msra.mxu0 0.0
        %7949 = vmatprep.subr.mxu0 0.0
        %7950 = vmatpush1.msra.mxu0 0.0
        %7951 = vmatprep.subr.mxu0 0.0
        %7952 = vmatpush1.msra.mxu0 0.0
        %7953 = vmatprep.mubr.f32.mxu0 0.0
        %7954 = vmatmul.mubr.f32.gmra.mrb[0].mxu0 %v7881
        %v7955 = vpop.f32.mrb[0].mxu0
        %v7956 = vadd.f32 0.0, %v7955
        %v7957 = vpop.f32.mrb[0].mxu0
        %v7958 = vadd.f32 0.0, %v7957
        %7959 = vdwg.mxu0
        %7960 = vmatprep.subr.mxu0 0.0
        %7961 = vmatpush1.msra.mxu0 %v7887
        %7962 = vmatprep.subr.mxu0 0.0
        %7963 = vmatpush1.msra.mxu0 0.0
        %7964 = vmatprep.subr.mxu0 0.0
        %7965 = vmatpush1.msra.mxu0 0.0
        %7966 = vmatprep.subr.mxu0 0.0
        %7967 = vmatpush1.msra.mxu0 0.0
        %7968 = vmatprep.subr.mxu0 0.0
        %7969 = vmatpush1.msra.mxu0 0.0
        %7970 = vmatprep.subr.mxu0 0.0
        %7971 = vmatpush1.msra.mxu0 0.0
        %7972 = vmatprep.subr.mxu0 0.0
        %7973 = vmatpush1.msra.mxu0 0.0
        %7974 = vmatprep.subr.mxu0 0.0
        %7975 = vmatpush1.msra.mxu0 0.0
        %7976 = vmatprep.subr.mxu0 0.0
        %7977 = vmatpush1.msra.mxu0 0.0
        %7978 = vmatprep.subr.mxu0 0.0
        %7979 = vmatpush1.msra.mxu0 0.0
        %7980 = vmatprep.subr.mxu0 0.0
        %7981 = vmatpush1.msra.mxu0 0.0
        %7982 = vmatprep.subr.mxu0 0.0
        %7983 = vmatpush1.msra.mxu0 0.0
        %7984 = vmatprep.subr.mxu0 0.0
        %7985 = vmatpush1.msra.mxu0 0.0
        %7986 = vmatprep.subr.mxu0 0.0
        %7987 = vmatpush1.msra.mxu0 0.0
        %7988 = vmatprep.subr.mxu0 0.0
        %7989 = vmatpush1.msra.mxu0 0.0
        %7990 = vmatprep.subr.mxu0 0.0
        %7991 = vmatpush1.msra.mxu0 0.0
        %7992 = vmatprep.subr.mxu0 0.0
        %7993 = vmatpush1.msra.mxu0 0.0
        %7994 = vmatprep.subr.mxu0 0.0
        %7995 = vmatpush1.msra.mxu0 0.0
        %7996 = vmatprep.subr.mxu0 0.0
        %7997 = vmatpush1.msra.mxu0 0.0
        %7998 = vmatprep.subr.mxu0 0.0
        %7999 = vmatpush1.msra.mxu0 0.0
        %8000 = vmatprep.subr.mxu0 0.0
        %8001 = vmatpush1.msra.mxu0 0.0
        %8002 = vmatprep.subr.mxu0 0.0
        %8003 = vmatpush1.msra.mxu0 0.0
        %8004 = vmatprep.subr.mxu0 0.0
        %8005 = vmatpush1.msra.mxu0 0.0
        %8006 = vmatprep.subr.mxu0 0.0
        %8007 = vmatpush1.msra.mxu0 0.0
        %8008 = vmatprep.subr.mxu0 0.0
        %8009 = vmatpush1.msra.mxu0 0.0
        %8010 = vmatprep.subr.mxu0 0.0
        %8011 = vmatpush1.msra.mxu0 0.0
        %8012 = vmatprep.subr.mxu0 0.0
        %8013 = vmatpush1.msra.mxu0 0.0
        %8014 = vmatprep.subr.mxu0 0.0
        %8015 = vmatpush1.msra.mxu0 0.0
        %8016 = vmatprep.subr.mxu0 0.0
        %8017 = vmatpush1.msra.mxu0 0.0
        %8018 = vmatprep.subr.mxu0 0.0
        %8019 = vmatpush1.msra.mxu0 0.0
        %8020 = vmatprep.subr.mxu0 0.0
        %8021 = vmatpush1.msra.mxu0 0.0
        %8022 = vmatprep.subr.mxu0 0.0
        %8023 = vmatpush1.msra.mxu0 0.0
        %8024 = vmatprep.mubr.f32.mxu0 0.0
        %8025 = vmatmul.mubr.f32.gmra.mrb[0].mxu0 %v7881
        %v8026 = vpop.f32.mrb[0].mxu0
        %v8027 = vadd.f32 0.0, %v8026
        %v8028 = vpop.f32.mrb[0].mxu0
        %8029 = vdwg.mxu0
        %v8030 = vadd.f32 %v7861, %v7956
        %v8031 = vadd.f32 %v7862, %v7958
        %v8032 = vadd.f32 %v7863, %v8027
        %v8033 = vld [vmem:[%s168 + $0x4] sm:$0xff]
        %v8034 = vld [vmem:[%s168 + $0xc] sm:$0xf]
        %s8035 = scalar_lea.vmem %s0, 368
        %v8036 = vld [vmem:[%s8035] sm:$0x3f]
        %v8039 = vcombine.high %v8033, %v8033
        %8040 = vrot.lane.b32.xlu0 %v8033, 120
        %v8041 = vpop.permute.xlu0 %8040
        %8042 = vrot.lane.b32.xlu0 %v8039, 120
        %v8043 = vpop.permute.xlu0 %8042
        %8044 = vrot.lane.b32.xlu0 %v8034, 120
        %v8045 = vpop.permute.xlu0 %8044
        %vm8046 = vcmask 982016
        %v8047 = vsel %vm8046, %v8041, %v8043
        %v8048 = vsel %vm8046, %v8043, %v8045
        %v8050 = vsel %vm186, %v8036, 0
        %v8052 = vsel %vm190, %v8047, 0
        %v8054 = vsel %vm190, %v8048, 0
        %v8056 = vsel %vm190, %v8045, 0
        %8058 = vmatprep.subr.mxu0 %v8054
        %8059 = vmatpush1.msra.mxu0 %v8052
        %8060 = vmatprep.subr.mxu0 0.0
        %8061 = vmatpush1.msra.mxu0 0.0
        %8062 = vmatprep.subr.mxu0 0.0
        %8063 = vmatpush1.msra.mxu0 0.0
        %8064 = vmatprep.subr.mxu0 0.0
        %8065 = vmatpush1.msra.mxu0 0.0
        %8066 = vmatprep.subr.mxu0 0.0
        %8067 = vmatpush1.msra.mxu0 0.0
        %8068 = vmatprep.subr.mxu0 0.0
        %8069 = vmatpush1.msra.mxu0 0.0
        %8070 = vmatprep.subr.mxu0 0.0
        %8071 = vmatpush1.msra.mxu0 0.0
        %8072 = vmatprep.subr.mxu0 0.0
        %8073 = vmatpush1.msra.mxu0 0.0
        %8074 = vmatprep.subr.mxu0 0.0
        %8075 = vmatpush1.msra.mxu0 0.0
        %8076 = vmatprep.subr.mxu0 0.0
        %8077 = vmatpush1.msra.mxu0 0.0
        %8078 = vmatprep.subr.mxu0 0.0
        %8079 = vmatpush1.msra.mxu0 0.0
        %8080 = vmatprep.subr.mxu0 0.0
        %8081 = vmatpush1.msra.mxu0 0.0
        %8082 = vmatprep.subr.mxu0 0.0
        %8083 = vmatpush1.msra.mxu0 0.0
        %8084 = vmatprep.subr.mxu0 0.0
        %8085 = vmatpush1.msra.mxu0 0.0
        %8086 = vmatprep.subr.mxu0 0.0
        %8087 = vmatpush1.msra.mxu0 0.0
        %8088 = vmatprep.subr.mxu0 0.0
        %8089 = vmatpush1.msra.mxu0 0.0
        %8090 = vmatprep.subr.mxu0 0.0
        %8091 = vmatpush1.msra.mxu0 0.0
        %8092 = vmatprep.subr.mxu0 0.0
        %8093 = vmatpush1.msra.mxu0 0.0
        %8094 = vmatprep.subr.mxu0 0.0
        %8095 = vmatpush1.msra.mxu0 0.0
        %8096 = vmatprep.subr.mxu0 0.0
        %8097 = vmatpush1.msra.mxu0 0.0
        %8098 = vmatprep.subr.mxu0 0.0
        %8099 = vmatpush1.msra.mxu0 0.0
        %8100 = vmatprep.subr.mxu0 0.0
        %8101 = vmatpush1.msra.mxu0 0.0
        %8102 = vmatprep.subr.mxu0 0.0
        %8103 = vmatpush1.msra.mxu0 0.0
        %8104 = vmatprep.subr.mxu0 0.0
        %8105 = vmatpush1.msra.mxu0 0.0
        %8106 = vmatprep.subr.mxu0 0.0
        %8107 = vmatpush1.msra.mxu0 0.0
        %8108 = vmatprep.subr.mxu0 0.0
        %8109 = vmatpush1.msra.mxu0 0.0
        %8110 = vmatprep.subr.mxu0 0.0
        %8111 = vmatpush1.msra.mxu0 0.0
        %8112 = vmatprep.subr.mxu0 0.0
        %8113 = vmatpush1.msra.mxu0 0.0
        %8114 = vmatprep.subr.mxu0 0.0
        %8115 = vmatpush1.msra.mxu0 0.0
        %8116 = vmatprep.subr.mxu0 0.0
        %8117 = vmatpush1.msra.mxu0 0.0
        %8118 = vmatprep.subr.mxu0 0.0
        %8119 = vmatpush1.msra.mxu0 0.0
        %8120 = vmatprep.subr.mxu0 0.0
        %8121 = vmatpush1.msra.mxu0 0.0
        %8122 = vmatprep.mubr.f32.mxu0 0.0
        %8123 = vmatmul.mubr.f32.gmra.mrb[0].mxu0 %v8050
        %v8124 = vpop.f32.mrb[0].mxu0
        %v8125 = vadd.f32 0.0, %v8124
        %v8126 = vpop.f32.mrb[0].mxu0
        %v8127 = vadd.f32 0.0, %v8126
        %8128 = vdwg.mxu0
        %8129 = vmatprep.subr.mxu0 0.0
        %8130 = vmatpush1.msra.mxu0 %v8056
        %8131 = vmatprep.subr.mxu0 0.0
        %8132 = vmatpush1.msra.mxu0 0.0
        %8133 = vmatprep.subr.mxu0 0.0
        %8134 = vmatpush1.msra.mxu0 0.0
        %8135 = vmatprep.subr.mxu0 0.0
        %8136 = vmatpush1.msra.mxu0 0.0
        %8137 = vmatprep.subr.mxu0 0.0
        %8138 = vmatpush1.msra.mxu0 0.0
        %8139 = vmatprep.subr.mxu0 0.0
        %8140 = vmatpush1.msra.mxu0 0.0
        %8141 = vmatprep.subr.mxu0 0.0
        %8142 = vmatpush1.msra.mxu0 0.0
        %8143 = vmatprep.subr.mxu0 0.0
        %8144 = vmatpush1.msra.mxu0 0.0
        %8145 = vmatprep.subr.mxu0 0.0
        %8146 = vmatpush1.msra.mxu0 0.0
        %8147 = vmatprep.subr.mxu0 0.0
        %8148 = vmatpush1.msra.mxu0 0.0
        %8149 = vmatprep.subr.mxu0 0.0
        %8150 = vmatpush1.msra.mxu0 0.0
        %8151 = vmatprep.subr.mxu0 0.0
        %8152 = vmatpush1.msra.mxu0 0.0
        %8153 = vmatprep.subr.mxu0 0.0
        %8154 = vmatpush1.msra.mxu0 0.0
        %8155 = vmatprep.subr.mxu0 0.0
        %8156 = vmatpush1.msra.mxu0 0.0
        %8157 = vmatprep.subr.mxu0 0.0
        %8158 = vmatpush1.msra.mxu0 0.0
        %8159 = vmatprep.subr.mxu0 0.0
        %8160 = vmatpush1.msra.mxu0 0.0
        %8161 = vmatprep.subr.mxu0 0.0
        %8162 = vmatpush1.msra.mxu0 0.0
        %8163 = vmatprep.subr.mxu0 0.0
        %8164 = vmatpush1.msra.mxu0 0.0
        %8165 = vmatprep.subr.mxu0 0.0
        %8166 = vmatpush1.msra.mxu0 0.0
        %8167 = vmatprep.subr.mxu0 0.0
        %8168 = vmatpush1.msra.mxu0 0.0
        %8169 = vmatprep.subr.mxu0 0.0
        %8170 = vmatpush1.msra.mxu0 0.0
        %8171 = vmatprep.subr.mxu0 0.0
        %8172 = vmatpush1.msra.mxu0 0.0
        %8173 = vmatprep.subr.mxu0 0.0
        %8174 = vmatpush1.msra.mxu0 0.0
        %8175 = vmatprep.subr.mxu0 0.0
        %8176 = vmatpush1.msra.mxu0 0.0
        %8177 = vmatprep.subr.mxu0 0.0
        %8178 = vmatpush1.msra.mxu0 0.0
        %8179 = vmatprep.subr.mxu0 0.0
        %8180 = vmatpush1.msra.mxu0 0.0
        %8181 = vmatprep.subr.mxu0 0.0
        %8182 = vmatpush1.msra.mxu0 0.0
        %8183 = vmatprep.subr.mxu0 0.0
        %8184 = vmatpush1.msra.mxu0 0.0
        %8185 = vmatprep.subr.mxu0 0.0
        %8186 = vmatpush1.msra.mxu0 0.0
        %8187 = vmatprep.subr.mxu0 0.0
        %8188 = vmatpush1.msra.mxu0 0.0
        %8189 = vmatprep.subr.mxu0 0.0
        %8190 = vmatpush1.msra.mxu0 0.0
        %8191 = vmatprep.subr.mxu0 0.0
        %8192 = vmatpush1.msra.mxu0 0.0
        %8193 = vmatprep.mubr.f32.mxu0 0.0
        %8194 = vmatmul.mubr.f32.gmra.mrb[0].mxu0 %v8050
        %v8195 = vpop.f32.mrb[0].mxu0
        %v8196 = vadd.f32 0.0, %v8195
        %v8197 = vpop.f32.mrb[0].mxu0
        %8198 = vdwg.mxu0
        %v8199 = vadd.f32 %v8030, %v8125
        %v8200 = vadd.f32 %v8031, %v8127
        %v8201 = vadd.f32 %v8032, %v8196
        %v8202 = vld [vmem:[%s168 + $0x4] sm:$0xff]
        %v8203 = vld [vmem:[%s168 + $0xc] sm:$0xf]
        %s8204 = scalar_lea.vmem %s0, 376
        %v8205 = vld [vmem:[%s8204] sm:$0x3f]
        %v8208 = vcombine.high %v8202, %v8202
        %8209 = vrot.lane.b32.xlu0 %v8202, 119
        %v8210 = vpop.permute.xlu0 %8209
        %8211 = vrot.lane.b32.xlu0 %v8208, 119
        %v8212 = vpop.permute.xlu0 %8211
        %8213 = vrot.lane.b32.xlu0 %v8203, 119
        %v8214 = vpop.permute.xlu0 %8213
        %vm8215 = vcmask 973824
        %v8216 = vsel %vm8215, %v8210, %v8212
        %v8217 = vsel %vm8215, %v8212, %v8214
        %v8219 = vsel %vm186, %v8205, 0
        %v8221 = vsel %vm190, %v8216, 0
        %v8223 = vsel %vm190, %v8217, 0
        %v8225 = vsel %vm190, %v8214, 0
        %8227 = vmatprep.subr.mxu0 %v8223
        %8228 = vmatpush1.msra.mxu0 %v8221
        %8229 = vmatprep.subr.mxu0 0.0
        %8230 = vmatpush1.msra.mxu0 0.0
        %8231 = vmatprep.subr.mxu0 0.0
        %8232 = vmatpush1.msra.mxu0 0.0
        %8233 = vmatprep.subr.mxu0 0.0
        %8234 = vmatpush1.msra.mxu0 0.0
        %8235 = vmatprep.subr.mxu0 0.0
        %8236 = vmatpush1.msra.mxu0 0.0
        %8237 = vmatprep.subr.mxu0 0.0
        %8238 = vmatpush1.msra.mxu0 0.0
        %8239 = vmatprep.subr.mxu0 0.0
        %8240 = vmatpush1.msra.mxu0 0.0
        %8241 = vmatprep.subr.mxu0 0.0
        %8242 = vmatpush1.msra.mxu0 0.0
        %8243 = vmatprep.subr.mxu0 0.0
        %8244 = vmatpush1.msra.mxu0 0.0
        %8245 = vmatprep.subr.mxu0 0.0
        %8246 = vmatpush1.msra.mxu0 0.0
        %8247 = vmatprep.subr.mxu0 0.0
        %8248 = vmatpush1.msra.mxu0 0.0
        %8249 = vmatprep.subr.mxu0 0.0
        %8250 = vmatpush1.msra.mxu0 0.0
        %8251 = vmatprep.subr.mxu0 0.0
        %8252 = vmatpush1.msra.mxu0 0.0
        %8253 = vmatprep.subr.mxu0 0.0
        %8254 = vmatpush1.msra.mxu0 0.0
        %8255 = vmatprep.subr.mxu0 0.0
        %8256 = vmatpush1.msra.mxu0 0.0
        %8257 = vmatprep.subr.mxu0 0.0
        %8258 = vmatpush1.msra.mxu0 0.0
        %8259 = vmatprep.subr.mxu0 0.0
        %8260 = vmatpush1.msra.mxu0 0.0
        %8261 = vmatprep.subr.mxu0 0.0
        %8262 = vmatpush1.msra.mxu0 0.0
        %8263 = vmatprep.subr.mxu0 0.0
        %8264 = vmatpush1.msra.mxu0 0.0
        %8265 = vmatprep.subr.mxu0 0.0
        %8266 = vmatpush1.msra.mxu0 0.0
        %8267 = vmatprep.subr.mxu0 0.0
        %8268 = vmatpush1.msra.mxu0 0.0
        %8269 = vmatprep.subr.mxu0 0.0
        %8270 = vmatpush1.msra.mxu0 0.0
        %8271 = vmatprep.subr.mxu0 0.0
        %8272 = vmatpush1.msra.mxu0 0.0
        %8273 = vmatprep.subr.mxu0 0.0
        %8274 = vmatpush1.msra.mxu0 0.0
        %8275 = vmatprep.subr.mxu0 0.0
        %8276 = vmatpush1.msra.mxu0 0.0
        %8277 = vmatprep.subr.mxu0 0.0
        %8278 = vmatpush1.msra.mxu0 0.0
        %8279 = vmatprep.subr.mxu0 0.0
        %8280 = vmatpush1.msra.mxu0 0.0
        %8281 = vmatprep.subr.mxu0 0.0
        %8282 = vmatpush1.msra.mxu0 0.0
        %8283 = vmatprep.subr.mxu0 0.0
        %8284 = vmatpush1.msra.mxu0 0.0
        %8285 = vmatprep.subr.mxu0 0.0
        %8286 = vmatpush1.msra.mxu0 0.0
        %8287 = vmatprep.subr.mxu0 0.0
        %8288 = vmatpush1.msra.mxu0 0.0
        %8289 = vmatprep.subr.mxu0 0.0
        %8290 = vmatpush1.msra.mxu0 0.0
        %8291 = vmatprep.mubr.f32.mxu0 0.0
        %8292 = vmatmul.mubr.f32.gmra.mrb[0].mxu0 %v8219
        %v8293 = vpop.f32.mrb[0].mxu0
        %v8294 = vadd.f32 0.0, %v8293
        %v8295 = vpop.f32.mrb[0].mxu0
        %v8296 = vadd.f32 0.0, %v8295
        %8297 = vdwg.mxu0
        %8298 = vmatprep.subr.mxu0 0.0
        %8299 = vmatpush1.msra.mxu0 %v8225
        %8300 = vmatprep.subr.mxu0 0.0
        %8301 = vmatpush1.msra.mxu0 0.0
        %8302 = vmatprep.subr.mxu0 0.0
        %8303 = vmatpush1.msra.mxu0 0.0
        %8304 = vmatprep.subr.mxu0 0.0
        %8305 = vmatpush1.msra.mxu0 0.0
        %8306 = vmatprep.subr.mxu0 0.0
        %8307 = vmatpush1.msra.mxu0 0.0
        %8308 = vmatprep.subr.mxu0 0.0
        %8309 = vmatpush1.msra.mxu0 0.0
        %8310 = vmatprep.subr.mxu0 0.0
        %8311 = vmatpush1.msra.mxu0 0.0
        %8312 = vmatprep.subr.mxu0 0.0
        %8313 = vmatpush1.msra.mxu0 0.0
        %8314 = vmatprep.subr.mxu0 0.0
        %8315 = vmatpush1.msra.mxu0 0.0
        %8316 = vmatprep.subr.mxu0 0.0
        %8317 = vmatpush1.msra.mxu0 0.0
        %8318 = vmatprep.subr.mxu0 0.0
        %8319 = vmatpush1.msra.mxu0 0.0
        %8320 = vmatprep.subr.mxu0 0.0
        %8321 = vmatpush1.msra.mxu0 0.0
        %8322 = vmatprep.subr.mxu0 0.0
        %8323 = vmatpush1.msra.mxu0 0.0
        %8324 = vmatprep.subr.mxu0 0.0
        %8325 = vmatpush1.msra.mxu0 0.0
        %8326 = vmatprep.subr.mxu0 0.0
        %8327 = vmatpush1.msra.mxu0 0.0
        %8328 = vmatprep.subr.mxu0 0.0
        %8329 = vmatpush1.msra.mxu0 0.0
        %8330 = vmatprep.subr.mxu0 0.0
        %8331 = vmatpush1.msra.mxu0 0.0
        %8332 = vmatprep.subr.mxu0 0.0
        %8333 = vmatpush1.msra.mxu0 0.0
        %8334 = vmatprep.subr.mxu0 0.0
        %8335 = vmatpush1.msra.mxu0 0.0
        %8336 = vmatprep.subr.mxu0 0.0
        %8337 = vmatpush1.msra.mxu0 0.0
        %8338 = vmatprep.subr.mxu0 0.0
        %8339 = vmatpush1.msra.mxu0 0.0
        %8340 = vmatprep.subr.mxu0 0.0
        %8341 = vmatpush1.msra.mxu0 0.0
        %8342 = vmatprep.subr.mxu0 0.0
        %8343 = vmatpush1.msra.mxu0 0.0
        %8344 = vmatprep.subr.mxu0 0.0
        %8345 = vmatpush1.msra.mxu0 0.0
        %8346 = vmatprep.subr.mxu0 0.0
        %8347 = vmatpush1.msra.mxu0 0.0
        %8348 = vmatprep.subr.mxu0 0.0
        %8349 = vmatpush1.msra.mxu0 0.0
        %8350 = vmatprep.subr.mxu0 0.0
        %8351 = vmatpush1.msra.mxu0 0.0
        %8352 = vmatprep.subr.mxu0 0.0
        %8353 = vmatpush1.msra.mxu0 0.0
        %8354 = vmatprep.subr.mxu0 0.0
        %8355 = vmatpush1.msra.mxu0 0.0
        %8356 = vmatprep.subr.mxu0 0.0
        %8357 = vmatpush1.msra.mxu0 0.0
        %8358 = vmatprep.subr.mxu0 0.0
        %8359 = vmatpush1.msra.mxu0 0.0
        %8360 = vmatprep.subr.mxu0 0.0
        %8361 = vmatpush1.msra.mxu0 0.0
        %8362 = vmatprep.mubr.f32.mxu0 0.0
        %8363 = vmatmul.mubr.f32.gmra.mrb[0].mxu0 %v8219
        %v8364 = vpop.f32.mrb[0].mxu0
        %v8365 = vadd.f32 0.0, %v8364
        %v8366 = vpop.f32.mrb[0].mxu0
        %8367 = vdwg.mxu0
        %v8368 = vadd.f32 %v8199, %v8294
        %v8369 = vadd.f32 %v8200, %v8296
        %v8370 = vadd.f32 %v8201, %v8365
        %v8371 = vld [vmem:[%s168 + $0x4] sm:$0xff]
        %v8372 = vld [vmem:[%s168 + $0xc] sm:$0xf]
        %s8373 = scalar_lea.vmem %s0, 384
        %v8374 = vld [vmem:[%s8373] sm:$0x3f]
        %v8377 = vcombine.high %v8371, %v8371
        %8378 = vrot.lane.b32.xlu0 %v8371, 118
        %v8379 = vpop.permute.xlu0 %8378
        %8380 = vrot.lane.b32.xlu0 %v8377, 118
        %v8381 = vpop.permute.xlu0 %8380
        %8382 = vrot.lane.b32.xlu0 %v8372, 118
        %v8383 = vpop.permute.xlu0 %8382
        %vm8384 = vcmask 965632
        %v8385 = vsel %vm8384, %v8379, %v8381
        %v8386 = vsel %vm8384, %v8381, %v8383
        %v8388 = vsel %vm186, %v8374, 0
        %v8390 = vsel %vm190, %v8385, 0
        %v8392 = vsel %vm190, %v8386, 0
        %v8394 = vsel %vm190, %v8383, 0
        %8396 = vmatprep.subr.mxu0 %v8392
        %8397 = vmatpush1.msra.mxu0 %v8390
        %8398 = vmatprep.subr.mxu0 0.0
        %8399 = vmatpush1.msra.mxu0 0.0
        %8400 = vmatprep.subr.mxu0 0.0
        %8401 = vmatpush1.msra.mxu0 0.0
        %8402 = vmatprep.subr.mxu0 0.0
        %8403 = vmatpush1.msra.mxu0 0.0
        %8404 = vmatprep.subr.mxu0 0.0
        %8405 = vmatpush1.msra.mxu0 0.0
        %8406 = vmatprep.subr.mxu0 0.0
        %8407 = vmatpush1.msra.mxu0 0.0
        %8408 = vmatprep.subr.mxu0 0.0
        %8409 = vmatpush1.msra.mxu0 0.0
        %8410 = vmatprep.subr.mxu0 0.0
        %8411 = vmatpush1.msra.mxu0 0.0
        %8412 = vmatprep.subr.mxu0 0.0
        %8413 = vmatpush1.msra.mxu0 0.0
        %8414 = vmatprep.subr.mxu0 0.0
        %8415 = vmatpush1.msra.mxu0 0.0
        %8416 = vmatprep.subr.mxu0 0.0
        %8417 = vmatpush1.msra.mxu0 0.0
        %8418 = vmatprep.subr.mxu0 0.0
        %8419 = vmatpush1.msra.mxu0 0.0
        %8420 = vmatprep.subr.mxu0 0.0
        %8421 = vmatpush1.msra.mxu0 0.0
        %8422 = vmatprep.subr.mxu0 0.0
        %8423 = vmatpush1.msra.mxu0 0.0
        %8424 = vmatprep.subr.mxu0 0.0
        %8425 = vmatpush1.msra.mxu0 0.0
        %8426 = vmatprep.subr.mxu0 0.0
        %8427 = vmatpush1.msra.mxu0 0.0
        %8428 = vmatprep.subr.mxu0 0.0
        %8429 = vmatpush1.msra.mxu0 0.0
        %8430 = vmatprep.subr.mxu0 0.0
        %8431 = vmatpush1.msra.mxu0 0.0
        %8432 = vmatprep.subr.mxu0 0.0
        %8433 = vmatpush1.msra.mxu0 0.0
        %8434 = vmatprep.subr.mxu0 0.0
        %8435 = vmatpush1.msra.mxu0 0.0
        %8436 = vmatprep.subr.mxu0 0.0
        %8437 = vmatpush1.msra.mxu0 0.0
        %8438 = vmatprep.subr.mxu0 0.0
        %8439 = vmatpush1.msra.mxu0 0.0
        %8440 = vmatprep.subr.mxu0 0.0
        %8441 = vmatpush1.msra.mxu0 0.0
        %8442 = vmatprep.subr.mxu0 0.0
        %8443 = vmatpush1.msra.mxu0 0.0
        %8444 = vmatprep.subr.mxu0 0.0
        %8445 = vmatpush1.msra.mxu0 0.0
        %8446 = vmatprep.subr.mxu0 0.0
        %8447 = vmatpush1.msra.mxu0 0.0
        %8448 = vmatprep.subr.mxu0 0.0
        %8449 = vmatpush1.msra.mxu0 0.0
        %8450 = vmatprep.subr.mxu0 0.0
        %8451 = vmatpush1.msra.mxu0 0.0
        %8452 = vmatprep.subr.mxu0 0.0
        %8453 = vmatpush1.msra.mxu0 0.0
        %8454 = vmatprep.subr.mxu0 0.0
        %8455 = vmatpush1.msra.mxu0 0.0
        %8456 = vmatprep.subr.mxu0 0.0
        %8457 = vmatpush1.msra.mxu0 0.0
        %8458 = vmatprep.subr.mxu0 0.0
        %8459 = vmatpush1.msra.mxu0 0.0
        %8460 = vmatprep.mubr.f32.mxu0 0.0
        %8461 = vmatmul.mubr.f32.gmra.mrb[0].mxu0 %v8388
        %v8462 = vpop.f32.mrb[0].mxu0
        %v8463 = vadd.f32 0.0, %v8462
        %v8464 = vpop.f32.mrb[0].mxu0
        %v8465 = vadd.f32 0.0, %v8464
        %8466 = vdwg.mxu0
        %8467 = vmatprep.subr.mxu0 0.0
        %8468 = vmatpush1.msra.mxu0 %v8394
        %8469 = vmatprep.subr.mxu0 0.0
        %8470 = vmatpush1.msra.mxu0 0.0
        %8471 = vmatprep.subr.mxu0 0.0
        %8472 = vmatpush1.msra.mxu0 0.0
        %8473 = vmatprep.subr.mxu0 0.0
        %8474 = vmatpush1.msra.mxu0 0.0
        %8475 = vmatprep.subr.mxu0 0.0
        %8476 = vmatpush1.msra.mxu0 0.0
        %8477 = vmatprep.subr.mxu0 0.0
        %8478 = vmatpush1.msra.mxu0 0.0
        %8479 = vmatprep.subr.mxu0 0.0
        %8480 = vmatpush1.msra.mxu0 0.0
        %8481 = vmatprep.subr.mxu0 0.0
        %8482 = vmatpush1.msra.mxu0 0.0
        %8483 = vmatprep.subr.mxu0 0.0
        %8484 = vmatpush1.msra.mxu0 0.0
        %8485 = vmatprep.subr.mxu0 0.0
        %8486 = vmatpush1.msra.mxu0 0.0
        %8487 = vmatprep.subr.mxu0 0.0
        %8488 = vmatpush1.msra.mxu0 0.0
        %8489 = vmatprep.subr.mxu0 0.0
        %8490 = vmatpush1.msra.mxu0 0.0
        %8491 = vmatprep.subr.mxu0 0.0
        %8492 = vmatpush1.msra.mxu0 0.0
        %8493 = vmatprep.subr.mxu0 0.0
        %8494 = vmatpush1.msra.mxu0 0.0
        %8495 = vmatprep.subr.mxu0 0.0
        %8496 = vmatpush1.msra.mxu0 0.0
        %8497 = vmatprep.subr.mxu0 0.0
        %8498 = vmatpush1.msra.mxu0 0.0
        %8499 = vmatprep.subr.mxu0 0.0
        %8500 = vmatpush1.msra.mxu0 0.0
        %8501 = vmatprep.subr.mxu0 0.0
        %8502 = vmatpush1.msra.mxu0 0.0
        %8503 = vmatprep.subr.mxu0 0.0
        %8504 = vmatpush1.msra.mxu0 0.0
        %8505 = vmatprep.subr.mxu0 0.0
        %8506 = vmatpush1.msra.mxu0 0.0
        %8507 = vmatprep.subr.mxu0 0.0
        %8508 = vmatpush1.msra.mxu0 0.0
        %8509 = vmatprep.subr.mxu0 0.0
        %8510 = vmatpush1.msra.mxu0 0.0
        %8511 = vmatprep.subr.mxu0 0.0
        %8512 = vmatpush1.msra.mxu0 0.0
        %8513 = vmatprep.subr.mxu0 0.0
        %8514 = vmatpush1.msra.mxu0 0.0
        %8515 = vmatprep.subr.mxu0 0.0
        %8516 = vmatpush1.msra.mxu0 0.0
        %8517 = vmatprep.subr.mxu0 0.0
        %8518 = vmatpush1.msra.mxu0 0.0
        %8519 = vmatprep.subr.mxu0 0.0
        %8520 = vmatpush1.msra.mxu0 0.0
        %8521 = vmatprep.subr.mxu0 0.0
        %8522 = vmatpush1.msra.mxu0 0.0
        %8523 = vmatprep.subr.mxu0 0.0
        %8524 = vmatpush1.msra.mxu0 0.0
        %8525 = vmatprep.subr.mxu0 0.0
        %8526 = vmatpush1.msra.mxu0 0.0
        %8527 = vmatprep.subr.mxu0 0.0
        %8528 = vmatpush1.msra.mxu0 0.0
        %8529 = vmatprep.subr.mxu0 0.0
        %8530 = vmatpush1.msra.mxu0 0.0
        %8531 = vmatprep.mubr.f32.mxu0 0.0
        %8532 = vmatmul.mubr.f32.gmra.mrb[0].mxu0 %v8388
        %v8533 = vpop.f32.mrb[0].mxu0
        %v8534 = vadd.f32 0.0, %v8533
        %v8535 = vpop.f32.mrb[0].mxu0
        %8536 = vdwg.mxu0
        %v8537 = vadd.f32 %v8368, %v8463
        %v8538 = vadd.f32 %v8369, %v8465
        %v8539 = vadd.f32 %v8370, %v8534
        %v8540 = vmax.f32 %v8537, 0.0
        %v8541 = vmax.f32 %v8538, 0.0
        %v8542 = vmax.f32 %v8539, 0.0
        %v8543 = vld [vmem:[%s1] sm:$0x3f]
        %8545 = vset.pattern.permute.xlu0 0
        %8546 = vperm.xlu0 %8545, %v8543
        %v8547 = vpop.permute.xlu0 %8546
        %v8549 = vmul.f32 %v8547, %v8540
        %v8550 = vmul.f32 %v8547, %v8541
        %v8551 = vmul.f32 %v8547, %v8542
        %vm8552 = vcmask 1045504
        %v8553 = vsel %vm8552, %v8549, 0.0
        %v8554 = vrot.slane %v8553, 4
        %v8555 = vadd.f32 %v8553, %v8554
        %v8556 = vrot.slane %v8555, 2
        %v8557 = vadd.f32 %v8555, %v8556
        %v8558 = vrot.slane %v8557, 1
        %v8559 = vadd.f32 %v8557, %v8558
        %v8560 = vsel %vm8552, %v8550, 0.0
        %v8561 = vrot.slane %v8560, 4
        %v8562 = vadd.f32 %v8560, %v8561
        %v8563 = vrot.slane %v8562, 2
        %v8564 = vadd.f32 %v8562, %v8563
        %v8565 = vrot.slane %v8564, 1
        %v8566 = vadd.f32 %v8564, %v8565
        %vm8567 = vcmask 783360
        %v8568 = vsel %vm8567, %v8551, 0.0
        %v8569 = vrot.slane %v8568, 4
        %v8570 = vadd.f32 %v8568, %v8569
        %v8571 = vrot.slane %v8570, 2
        %v8572 = vadd.f32 %v8570, %v8571
        %v8573 = vrot.slane %v8572, 1
        %v8574 = vadd.f32 %v8572, %v8573
        %v8575 = vsub.f32 0.0, %v8559
        %v8576 = vsub.f32 0.0, %v8566
        %v8577 = vsub.f32 0.0, %v8574
        %v8578 = vmul.f32 %v8575, 1.442695
        %v8579 = vpow.pop %v8578
        %v8580 = vmul.f32 %v8576, 1.442695
        %v8581 = vpow.pop %v8580
        %v8582 = vmul.f32 %v8577, 1.442695
        %v8583 = vpow.pop %v8582
        %v8584 = vadd.f32 %v8579, 1.0
        %v8585 = vadd.f32 %v8581, 1.0
        %v8586 = vadd.f32 %v8583, 1.0
        %v8587 = vrcp.pop %v8584
        %v8588 = vmul.f32 1.0, %v8587
        %v8589 = vrcp.pop %v8585
        %v8590 = vmul.f32 1.0, %v8589
        %v8591 = vrcp.pop %v8586
        %v8592 = vmul.f32 1.0, %v8591
        %v8596 = vcombine.low %v8588, %v8590
        %8597 = vrot.lane.b32.xlu0 %v8596, 69
        %v8598 = vpop.permute.xlu0 %8597
        %8599 = vrot.lane.b32.xlu0 %v8592, 69
        %v8600 = vpop.permute.xlu0 %8599
        %v8601 = vrot.slane %v8598, 4
        %v8602 = vrot.slane %v8600, 4
        %vm8603 = vcmask 564224
        %v8604 = vsel %vm8603, %v8601, %v8598
        %v8605 = vsel %vm190, %v8601, %v8602
        %v8606 = vsel %vm8603, %v8605, %v8600
        %v8609 = vmul.f32 %v4246, %v8604
        %v8610 = vmul.f32 %v4247, %v8606
        %8613 = vrot.lane.b32.xlu0 %v8609, 59
        %v8614 = vpop.permute.xlu0 %8613
        %8615 = vrot.lane.b32.xlu0 %v8610, 59
        %v8616 = vpop.permute.xlu0 %8615
        %v8617 = vrot.slane %v8614, 4
        %v8618 = vrot.slane %v8616, 4
        %v8619 = vsel %vm190, %v8617, %v8618
        %v8620 = vsel %vm4262, %v8614, %v8619
        %v8621 = vsel %vm4262, %v8616, %v8618
        %8624 = vst [vmem:[%s163] sm:$0xff] %v8620
        %vm8625 = vcmask 781312
        %8626 = vst.msk [vmem:[%s163 + $0x8] sm:$0xf] %vm8625, %v8621
        %s8627 = sand.u32 %s93, 1
        %s8628 = scalar_lea.sflag [#allocation3], %s8627
        %s8629 = sand.u32 %s93, 1
        %s8630 = smul.addr %s8629, 12
        %s8631 = scalar_lea.vmem [#allocation2], %s8630
        // Predicated region
        $region33: #{tpu_custom_call.1} parent=31 // pred_check
          %p8632 = pneg %p103
        $region34: #{tpu_custom_call.1} parent=31 // pred_check_branch
          %8634 = sbr.rel (%p8632) target = $region36
        $region35: #{tpu_custom_call.1} parent=31 // pred_region
          %s8636 = ssub.s32 192, 192
          %8637 = vsyncadd %s8628, %s8636
          %s8638 = smul.addr %s17, 3
          %s8639 = smul.addr %s8638, 64
          %s8640 = scalar_lea.hbm %s3, %s8639
          %s8642 = sshll.u32 %s8631, 4
          %s8643 = int_to_ptr.vmem [resolvable:$true] %s8642
          %8645 = dma.vmem_to_hbm [thread:$0]  %s8643, 192, %s8640, %s8628
        $region36: #{tpu_custom_call.1} parent=31 // pred_fallthru
          _
      $region32: #{tpu_custom_call.1} parent=5 // pred_fallthru
        _
      %p8646 = scmp.le.s32.totalorder 2, %s12
      // Predicated region
      $region37: #{tpu_custom_call.1} parent=5 // pred_check
        %p8647 = pneg %p8646
      $region38: #{tpu_custom_call.1} parent=5 // pred_check_branch
        %8649 = sbr.rel (%p8647) target = $region40
      $region39: #{tpu_custom_call.1} parent=5 // pred_region
        %s8650 = ssub.s32 %s12, 2
        // Predicated region
        $region41: #{tpu_custom_call.1} parent=39 // pred_check
          %p8651 = pneg %p109
        $region42: #{tpu_custom_call.1} parent=39 // pred_check_branch
          %8653 = sbr.rel (%p8651) target = $region44
        $region43: #{tpu_custom_call.1} parent=39 // pred_region
          %s8654 = sand.u32 %s94, 1
          %s8655 = scalar_lea.sflag [#allocation3], %s8654
          %s8656 = sand.u32 %s94, 1
          %s8657 = smul.addr %s8656, 12
          %s8658 = scalar_lea.vmem [#allocation2], %s8657
          %8659 = dma.done %s8655, 192
        $region44: #{tpu_custom_call.1} parent=39 // pred_fallthru
          _
      $region40: #{tpu_custom_call.1} parent=5 // pred_fallthru
        _
    $region6: #{tpu_custom_call.1} parent=1 // loop_footer
      %s16 = sadd.s32 1, %s12
    $region7: #{tpu_custom_call.1} parent=1 // loop_footer_branch
      %11 = sbr.rel target = $region3
    $region8: #{tpu_custom_call.1} parent=1 // loop_exit
      _
    %8660 = vsyncpa [#allocation3], 1
    %s8661 = scalar_lea.sflag [#allocation3], 1
    %8662 = vsyncpa %s8661, 1

</llo_original>
